<compile_context>
chip_gen: v7x
topology: tpu7x:2x2x1
jax: 0.10.0
libtpu: 0.0.40
codegen_flags: <defaults>
</compile_context>

<pallas_src>
import jax
import jax.numpy as jnp
import numpy as np
from jax.experimental import pallas as pl
from jax.experimental.pallas import tpu as pltpu

LANE = 128
SUBLANE = 8


def _round_up(x, m):
    return (x + m - 1) // m * m


def residual_block_kernel(xpad_ref, w1_ref, s1_ref, t1_ref, w2_ref, s2_ref, t2_ref,
                          o_ref, mid_ref):
    """One (batch, H-tile) grid step.

    xpad_ref : (H+4, Wpad, Cp) bf16  padded image for this batch element
                                     (2-row H halo, 1-col left W halo,
                                      right-padded so Wpad % 8 == 0, Cp lanes)
    w1/w2    : (9, Cp, Cp) bf16      folded conv weights, tap-major (kh*3+kw)
    s*/t*    : (1, Cp) f32           folded FrozenBN scale / shift
    o_ref    : (tile_h, W, Cp) f32   output tile (lane-dense stores)
    mid_ref  : (tile_h+2, Wpad, Cp) bf16  conv1 result staged with 1-px border
    """
    th, W, Cp = o_ref.shape
    Wpad = xpad_ref.shape[1]
    h = pl.program_id(1)
    n_h = pl.num_programs(1)

    r0 = h * th
    if th % SUBLANE == 0:
        r0 = pl.multiple_of(r0, SUBLANE)

    # ---- conv1 + BN1 + ReLU: 9 accumulated bf16 MXU dots, f32 accumulation ----
    # Compute tile_h + 2 intermediate rows (1-row halo recompute on each side) so
    # conv2 never needs values from neighbouring tiles.
    m1 = (th + 2) * W
    acc1 = None
    for kh in range(3):
        for kw in range(3):
            lhs = xpad_ref[pl.ds(r0 + kh, th + 2), pl.ds(kw, W), :].reshape(m1, Cp)
            d = jnp.dot(lhs, w1_ref[kh * 3 + kw], preferred_element_type=jnp.float32)
            acc1 = d if acc1 is None else acc1 + d
    out1 = jnp.maximum(acc1 * s1_ref[...] + t1_ref[...], 0.0)

    # ---- stage intermediate (bf16) with zero border for conv2 ----
    mid_ref[:, pl.ds(1, W), :] = out1.reshape(th + 2, W, Cp).astype(mid_ref.dtype)
    zcol = jnp.zeros((th + 2, 1, Cp), mid_ref.dtype)
    mid_ref[:, 0:1, :] = zcol
    mid_ref[:, W + 1:W + 2, :] = zcol

    # Halo rows that fall outside the image are conv zero-padding.
    @pl.when(h == 0)
    def _():
        mid_ref[0:1, :, :] = jnp.zeros((1, Wpad, Cp), mid_ref.dtype)

    @pl.when(h == n_h - 1)
    def _():
        mid_ref[th + 1:th + 2, :, :] = jnp.zeros((1, Wpad, Cp), mid_ref.dtype)

    # ---- conv2 + BN2: 9 accumulated bf16 MXU dots ----
    m2 = th * W
    acc2 = None
    for kh in range(3):
        for kw in range(3):
            lhs = mid_ref[pl.ds(kh, th), pl.ds(kw, W), :].reshape(m2, Cp)
            d = jnp.dot(lhs, w2_ref[kh * 3 + kw], preferred_element_type=jnp.float32)
            acc2 = d if acc2 is None else acc2 + d
    out2 = acc2 * s2_ref[...] + t2_ref[...]

    # ---- residual add (f32) + ReLU ----
    resid = xpad_ref[pl.ds(r0 + 2, th), pl.ds(1, W), :].reshape(m2, Cp).astype(jnp.float32)
    o_ref[...] = jnp.maximum(out2 + resid, 0.0).reshape(th, W, Cp).astype(o_ref.dtype)


def _pick_tile_h(H):
    for th in (32, 16, 8):
        if H % th == 0 and H // th >= 2:
            return th
    return H


def _vmem_capacity_bytes():
    try:
        info = pltpu.get_tpu_info()
        cap = getattr(info, "vmem_capacity_bytes", None)
        if cap:
            return int(cap)
    except Exception:
        pass
    return 128 * 1024 * 1024


def residual_block(x_nchw, params):
    """x_nchw: (B, Cin, H, W) float32. Returns (B, Cout, H, W) float32."""
    B, C, H, W = x_nchw.shape
    Cout = params["w1"].shape[0]
    assert C == Cout, "downsample=None requires in_channels == out_channels"

    Cp = _round_up(C, LANE)               # channels on lanes
    Wpad = _round_up(W + 2, SUBLANE)      # sublane-aligned padded width
    th = _pick_tile_h(H)                  # H tile (halo handled in-kernel)
    n_h = H // th
    Hp = H + 4                            # 2-row halo top + bottom
    eps = 1e-5

    # ---- fold FrozenBN into (scale, shift); the module computes "... - b" ----
    def fold_bn(g, b, rm, rv):
        scale = (g / jnp.sqrt(rv + eps)).astype(jnp.float32)
        shift = (-rm * scale - b).astype(jnp.float32)
        pad = (0, Cp - C)
        return (jnp.pad(scale, pad).reshape(1, Cp),
                jnp.pad(shift, pad).reshape(1, Cp))

    s1, t1 = fold_bn(params["g1"], params["b1"], params["m1"], params["v1"])
    s2, t2 = fold_bn(params["g2"], params["b2"], params["m2"], params["v2"])

    # ---- fold 3x3 conv weights into (9, Cp, Cp) bf16, tap-major (kh*3+kw) ----
    def fold_w(w):  # (Cout, Cin, 3, 3) -> (3,3,Cin,Cout) -> pad -> (9, Cp, Cp)
        w = jnp.transpose(w, (2, 3, 1, 0)).astype(jnp.float32)
        w = jnp.pad(w, ((0, 0), (0, 0), (0, Cp - C), (0, Cp - Cout)))
        return w.reshape(9, Cp, Cp).astype(jnp.bfloat16)

    w1 = fold_w(params["w1"])
    w2 = fold_w(params["w2"])

    # Single fused layout pass: NCHW->NHWC, halo + channel pad, f32->bf16.
    x_nhwc = jnp.transpose(x_nchw, (0, 2, 3, 1))
    xpad = jnp.pad(
        x_nhwc, ((0, 0), (2, 2), (1, Wpad - W - 1), (0, Cp - C))
    ).astype(jnp.bfloat16)

    # ---- generation-aware VMEM budget (instead of a fixed 48 MiB) ----
    in_blk = Hp * Wpad * Cp * 2            # bf16 resident input (per buffer)
    w_blk = 9 * Cp * Cp * 2                # bf16 folded weights
    out_blk = th * W * Cp * 4              # f32 output tile
    mid_blk = (th + 2) * Wpad * Cp * 2     # bf16 staged intermediate
    acc_blk = ((th + 2) * W + th * W) * Cp * 4   # f32 accumulators (vregs/spill)
    need = 2 * in_blk + 2 * 2 * w_blk + 2 * out_blk + mid_blk + acc_blk
    cap = _vmem_capacity_bytes()
    vmem_limit = int(min(int(cap * 0.8), max(48 * 1024 * 1024, 2 * need)))

    out = pl.pallas_call(
        residual_block_kernel,
        out_shape=jax.ShapeDtypeStruct((B, H, W, Cp), jnp.float32),
        grid_spec=pltpu.PrefetchScalarGridSpec(
            num_scalar_prefetch=0,
            grid=(B, n_h),
            in_specs=[
                # padded input: constant block index across the H axis -> DMA'd
                # once per batch and kept resident while its H tiles execute.
                pl.BlockSpec((None, Hp, Wpad, Cp), lambda b, hh: (b, 0, 0, 0)),
                pl.BlockSpec((9, Cp, Cp), lambda b, hh: (0, 0, 0)),   # w1
                pl.BlockSpec((1, Cp), lambda b, hh: (0, 0)),          # bn1 scale
                pl.BlockSpec((1, Cp), lambda b, hh: (0, 0)),          # bn1 shift
                pl.BlockSpec((9, Cp, Cp), lambda b, hh: (0, 0, 0)),   # w2
                pl.BlockSpec((1, Cp), lambda b, hh: (0, 0)),          # bn2 scale
                pl.BlockSpec((1, Cp), lambda b, hh: (0, 0)),          # bn2 shift
            ],
            out_specs=pl.BlockSpec((None, th, W, Cp), lambda b, hh: (b, hh, 0, 0)),
            scratch_shapes=[
                pltpu.VMEM((th + 2, Wpad, Cp), jnp.bfloat16),   # staged conv1 output
            ],
        ),
        compiler_params=pltpu.CompilerParams(
            dimension_semantics=("parallel", "parallel"),
            vmem_limit_bytes=vmem_limit,
        ),
    )(xpad, w1, s1, t1, w2, s2, t2)

    # strip channel padding, back to NCHW (kept only because the module API is NCHW)
    return jnp.transpose(out[..., :C], (0, 3, 1, 2))


def reference_forward(x, p):
    """Pure-JAX f32 NCHW reference mirroring the PyTorch module exactly."""
    def conv(x, w):
        return jax.lax.conv_general_dilated(
            x, w, window_strides=(1, 1), padding=((1, 1), (1, 1)),
            dimension_numbers=("NCHW", "OIHW", "NCHW"))

    def frozen_bn(x, g, b, rm, rv):
        g = g.reshape(1, -1, 1, 1); b = b.reshape(1, -1, 1, 1)
        rm = rm.reshape(1, -1, 1, 1); rv = rv.reshape(1, -1, 1, 1)
        return (x - rm) * g / jnp.sqrt(rv + 1e-5) - b   # module does "... - b"

    out = jax.nn.relu(frozen_bn(conv(x, p["w1"]), p["g1"], p["b1"], p["m1"], p["v1"]))
    out = frozen_bn(conv(out, p["w2"]), p["g2"], p["b2"], p["m2"], p["v2"])
    return jax.nn.relu(out + x)


if __name__ == "__main__":
    B, C, H, W = 2, 4, 16, 16  # in_channels == out_channels == 4, stride=1
    key = jax.random.PRNGKey(0)
    keys = jax.random.split(key, 11)

    params = {
        "w1": jax.random.normal(keys[0], (C, C, 3, 3), jnp.float32) * 0.1,
        "w2": jax.random.normal(keys[1], (C, C, 3, 3), jnp.float32) * 0.1,
        "g1": jax.random.uniform(keys[2], (C,), jnp.float32, 0.5, 1.5),
        "b1": jax.random.normal(keys[3], (C,), jnp.float32) * 0.1,
        "m1": jax.random.normal(keys[4], (C,), jnp.float32) * 0.1,
        "v1": jax.random.uniform(keys[5], (C,), jnp.float32, 0.5, 1.5),
        "g2": jax.random.uniform(keys[6], (C,), jnp.float32, 0.5, 1.5),
        "b2": jax.random.normal(keys[7], (C,), jnp.float32) * 0.1,
        "m2": jax.random.normal(keys[8], (C,), jnp.float32) * 0.1,
        "v2": jax.random.uniform(keys[9], (C,), jnp.float32, 0.5, 1.5),
    }
    x = jax.random.normal(keys[10], (B, C, H, W), jnp.float32)

    out = jax.block_until_ready(residual_block(x, params))
    ref = jax.block_until_ready(reference_forward(x, params))

    assert out.shape == (B, C, H, W)
    # bf16 MXU operands + bf16 staged intermediate/residual -> bf16-level tolerance.
    np.testing.assert_allclose(np.asarray(out), np.asarray(ref), rtol=3e-2, atol=3e-2)
    print("KERNEL_OK")
</pallas_src>

<mosaic_0001>
module attributes {stable_mosaic.version = 11 : i64} {
  func.func @residual_block_kernel(%arg0: i32, %arg1: i32, %arg2: memref<1x20x24x128xbf16, #tpu.memory_space<vmem>>, %arg3: memref<9x128x128xbf16, #tpu.memory_space<vmem>>, %arg4: memref<1x128xf32, #tpu.memory_space<vmem>>, %arg5: memref<1x128xf32, #tpu.memory_space<vmem>>, %arg6: memref<9x128x128xbf16, #tpu.memory_space<vmem>>, %arg7: memref<1x128xf32, #tpu.memory_space<vmem>>, %arg8: memref<1x128xf32, #tpu.memory_space<vmem>>, %arg9: memref<1x8x16x128xf32, #tpu.memory_space<vmem>>, %arg10: memref<10x24x128xbf16, #tpu.memory_space<vmem>>) attributes {dimension_semantics = [#tpu.dimension_semantics<parallel>, #tpu.dimension_semantics<parallel>], iteration_bounds = array<i64: 2, 2>, scalar_prefetch = 0 : i64, scratch_operands = 1 : i64, tpu.core_type = #tpu.core_type<tc>, window_params = [{transform_indices = @transform_0, window_bounds = array<i64: 1, 20, 24, 128>}, {pipeline_mode = #tpu.pipeline_mode<synchronous>, transform_indices = @transform_1, window_bounds = array<i64: 9, 128, 128>}, {pipeline_mode = #tpu.pipeline_mode<synchronous>, transform_indices = @transform_2, window_bounds = array<i64: 1, 128>}, {pipeline_mode = #tpu.pipeline_mode<synchronous>, transform_indices = @transform_3, window_bounds = array<i64: 1, 128>}, {pipeline_mode = #tpu.pipeline_mode<synchronous>, transform_indices = @transform_4, window_bounds = array<i64: 9, 128, 128>}, {pipeline_mode = #tpu.pipeline_mode<synchronous>, transform_indices = @transform_5, window_bounds = array<i64: 1, 128>}, {pipeline_mode = #tpu.pipeline_mode<synchronous>, transform_indices = @transform_6, window_bounds = array<i64: 1, 128>}, {transform_indices = @transform_7, window_bounds = array<i64: 1, 8, 16, 128>}]} {
    %c8_i32 = arith.constant 8 : i32
    %0 = arith.muli %arg1, %c8_i32 : i32
    %1 = tpu.assume_multiple %0, 8 : i32
    %c0_i32 = arith.constant 0 : i32
    %2 = arith.addi %1, %c0_i32 : i32
    %c0 = arith.constant 0 : index
    %3 = arith.index_cast %2 : i32 to index
    %c0_0 = arith.constant 0 : index
    %c0_1 = arith.constant 0 : index
    %4 = vector.load %arg2[%c0, %3, %c0_0, %c0_1] : memref<1x20x24x128xbf16, #tpu.memory_space<vmem>>, vector<1x10x16x128xbf16>
    %5 = vector.shape_cast %4 : vector<1x10x16x128xbf16> to vector<10x16x128xbf16>
    %6 = vector.shape_cast %5 : vector<10x16x128xbf16> to vector<160x128xbf16>
    %c0_2 = arith.constant 0 : index
    %c0_3 = arith.constant 0 : index
    %c0_4 = arith.constant 0 : index
    %7 = vector.load %arg3[%c0_2, %c0_3, %c0_4] : memref<9x128x128xbf16, #tpu.memory_space<vmem>>, vector<1x128x128xbf16>
    %8 = vector.shape_cast %7 : vector<1x128x128xbf16> to vector<128x128xbf16>
    %cst = arith.constant dense<0.000000e+00> : vector<160x128xf32>
    %9 = tpu.matmul %6, %8, %cst {dimension_numbers = #tpu.dot_dimension_numbers<[1], [0], [0], [1], [0, 0, 1, 1], [], []>} : vector<160x128xbf16>, vector<128x128xbf16>, vector<160x128xf32> -> vector<160x128xf32>
    %c0_i32_5 = arith.constant 0 : i32
    %10 = arith.addi %1, %c0_i32_5 : i32
    %c0_6 = arith.constant 0 : index
    %11 = arith.index_cast %10 : i32 to index
    %c1 = arith.constant 1 : index
    %c0_7 = arith.constant 0 : index
    %12 = vector.load %arg2[%c0_6, %11, %c1, %c0_7] : memref<1x20x24x128xbf16, #tpu.memory_space<vmem>>, vector<1x10x16x128xbf16>
    %13 = vector.shape_cast %12 : vector<1x10x16x128xbf16> to vector<10x16x128xbf16>
    %14 = vector.shape_cast %13 : vector<10x16x128xbf16> to vector<160x128xbf16>
    %c1_8 = arith.constant 1 : index
    %c0_9 = arith.constant 0 : index
    %c0_10 = arith.constant 0 : index
    %15 = vector.load %arg3[%c1_8, %c0_9, %c0_10] : memref<9x128x128xbf16, #tpu.memory_space<vmem>>, vector<1x128x128xbf16>
    %16 = vector.shape_cast %15 : vector<1x128x128xbf16> to vector<128x128xbf16>
    %cst_11 = arith.constant dense<0.000000e+00> : vector<160x128xf32>
    %17 = tpu.matmul %14, %16, %cst_11 {dimension_numbers = #tpu.dot_dimension_numbers<[1], [0], [0], [1], [0, 0, 1, 1], [], []>} : vector<160x128xbf16>, vector<128x128xbf16>, vector<160x128xf32> -> vector<160x128xf32>
    %18 = arith.addf %9, %17 : vector<160x128xf32>
    %c0_i32_12 = arith.constant 0 : i32
    %19 = arith.addi %1, %c0_i32_12 : i32
    %c0_13 = arith.constant 0 : index
    %20 = arith.index_cast %19 : i32 to index
    %c2 = arith.constant 2 : index
    %c0_14 = arith.constant 0 : index
    %21 = vector.load %arg2[%c0_13, %20, %c2, %c0_14] : memref<1x20x24x128xbf16, #tpu.memory_space<vmem>>, vector<1x10x16x128xbf16>
    %22 = vector.shape_cast %21 : vector<1x10x16x128xbf16> to vector<10x16x128xbf16>
    %23 = vector.shape_cast %22 : vector<10x16x128xbf16> to vector<160x128xbf16>
    %c2_15 = arith.constant 2 : index
    %c0_16 = arith.constant 0 : index
    %c0_17 = arith.constant 0 : index
    %24 = vector.load %arg3[%c2_15, %c0_16, %c0_17] : memref<9x128x128xbf16, #tpu.memory_space<vmem>>, vector<1x128x128xbf16>
    %25 = vector.shape_cast %24 : vector<1x128x128xbf16> to vector<128x128xbf16>
    %cst_18 = arith.constant dense<0.000000e+00> : vector<160x128xf32>
    %26 = tpu.matmul %23, %25, %cst_18 {dimension_numbers = #tpu.dot_dimension_numbers<[1], [0], [0], [1], [0, 0, 1, 1], [], []>} : vector<160x128xbf16>, vector<128x128xbf16>, vector<160x128xf32> -> vector<160x128xf32>
    %27 = arith.addf %18, %26 : vector<160x128xf32>
    %c1_i32 = arith.constant 1 : i32
    %28 = arith.addi %1, %c1_i32 : i32
    %c0_19 = arith.constant 0 : index
    %29 = arith.index_cast %28 : i32 to index
    %c0_20 = arith.constant 0 : index
    %c0_21 = arith.constant 0 : index
    %30 = vector.load %arg2[%c0_19, %29, %c0_20, %c0_21] : memref<1x20x24x128xbf16, #tpu.memory_space<vmem>>, vector<1x10x16x128xbf16>
    %31 = vector.shape_cast %30 : vector<1x10x16x128xbf16> to vector<10x16x128xbf16>
    %32 = vector.shape_cast %31 : vector<10x16x128xbf16> to vector<160x128xbf16>
    %c3 = arith.constant 3 : index
    %c0_22 = arith.constant 0 : index
    %c0_23 = arith.constant 0 : index
    %33 = vector.load %arg3[%c3, %c0_22, %c0_23] : memref<9x128x128xbf16, #tpu.memory_space<vmem>>, vector<1x128x128xbf16>
    %34 = vector.shape_cast %33 : vector<1x128x128xbf16> to vector<128x128xbf16>
    %cst_24 = arith.constant dense<0.000000e+00> : vector<160x128xf32>
    %35 = tpu.matmul %32, %34, %cst_24 {dimension_numbers = #tpu.dot_dimension_numbers<[1], [0], [0], [1], [0, 0, 1, 1], [], []>} : vector<160x128xbf16>, vector<128x128xbf16>, vector<160x128xf32> -> vector<160x128xf32>
    %36 = arith.addf %27, %35 : vector<160x128xf32>
    %c1_i32_25 = arith.constant 1 : i32
    %37 = arith.addi %1, %c1_i32_25 : i32
    %c0_26 = arith.constant 0 : index
    %38 = arith.index_cast %37 : i32 to index
    %c1_27 = arith.constant 1 : index
    %c0_28 = arith.constant 0 : index
    %39 = vector.load %arg2[%c0_26, %38, %c1_27, %c0_28] : memref<1x20x24x128xbf16, #tpu.memory_space<vmem>>, vector<1x10x16x128xbf16>
    %40 = vector.shape_cast %39 : vector<1x10x16x128xbf16> to vector<10x16x128xbf16>
    %41 = vector.shape_cast %40 : vector<10x16x128xbf16> to vector<160x128xbf16>
    %c4 = arith.constant 4 : index
    %c0_29 = arith.constant 0 : index
    %c0_30 = arith.constant 0 : index
    %42 = vector.load %arg3[%c4, %c0_29, %c0_30] : memref<9x128x128xbf16, #tpu.memory_space<vmem>>, vector<1x128x128xbf16>
    %43 = vector.shape_cast %42 : vector<1x128x128xbf16> to vector<128x128xbf16>
    %cst_31 = arith.constant dense<0.000000e+00> : vector<160x128xf32>
    %44 = tpu.matmul %41, %43, %cst_31 {dimension_numbers = #tpu.dot_dimension_numbers<[1], [0], [0], [1], [0, 0, 1, 1], [], []>} : vector<160x128xbf16>, vector<128x128xbf16>, vector<160x128xf32> -> vector<160x128xf32>
    %45 = arith.addf %36, %44 : vector<160x128xf32>
    %c1_i32_32 = arith.constant 1 : i32
    %46 = arith.addi %1, %c1_i32_32 : i32
    %c0_33 = arith.constant 0 : index
    %47 = arith.index_cast %46 : i32 to index
    %c2_34 = arith.constant 2 : index
    %c0_35 = arith.constant 0 : index
    %48 = vector.load %arg2[%c0_33, %47, %c2_34, %c0_35] : memref<1x20x24x128xbf16, #tpu.memory_space<vmem>>, vector<1x10x16x128xbf16>
    %49 = vector.shape_cast %48 : vector<1x10x16x128xbf16> to vector<10x16x128xbf16>
    %50 = vector.shape_cast %49 : vector<10x16x128xbf16> to vector<160x128xbf16>
    %c5 = arith.constant 5 : index
    %c0_36 = arith.constant 0 : index
    %c0_37 = arith.constant 0 : index
    %51 = vector.load %arg3[%c5, %c0_36, %c0_37] : memref<9x128x128xbf16, #tpu.memory_space<vmem>>, vector<1x128x128xbf16>
    %52 = vector.shape_cast %51 : vector<1x128x128xbf16> to vector<128x128xbf16>
    %cst_38 = arith.constant dense<0.000000e+00> : vector<160x128xf32>
    %53 = tpu.matmul %50, %52, %cst_38 {dimension_numbers = #tpu.dot_dimension_numbers<[1], [0], [0], [1], [0, 0, 1, 1], [], []>} : vector<160x128xbf16>, vector<128x128xbf16>, vector<160x128xf32> -> vector<160x128xf32>
    %54 = arith.addf %45, %53 : vector<160x128xf32>
    %c2_i32 = arith.constant 2 : i32
    %55 = arith.addi %1, %c2_i32 : i32
    %c0_39 = arith.constant 0 : index
    %56 = arith.index_cast %55 : i32 to index
    %c0_40 = arith.constant 0 : index
    %c0_41 = arith.constant 0 : index
    %57 = vector.load %arg2[%c0_39, %56, %c0_40, %c0_41] : memref<1x20x24x128xbf16, #tpu.memory_space<vmem>>, vector<1x10x16x128xbf16>
    %58 = vector.shape_cast %57 : vector<1x10x16x128xbf16> to vector<10x16x128xbf16>
    %59 = vector.shape_cast %58 : vector<10x16x128xbf16> to vector<160x128xbf16>
    %c6 = arith.constant 6 : index
    %c0_42 = arith.constant 0 : index
    %c0_43 = arith.constant 0 : index
    %60 = vector.load %arg3[%c6, %c0_42, %c0_43] : memref<9x128x128xbf16, #tpu.memory_space<vmem>>, vector<1x128x128xbf16>
    %61 = vector.shape_cast %60 : vector<1x128x128xbf16> to vector<128x128xbf16>
    %cst_44 = arith.constant dense<0.000000e+00> : vector<160x128xf32>
    %62 = tpu.matmul %59, %61, %cst_44 {dimension_numbers = #tpu.dot_dimension_numbers<[1], [0], [0], [1], [0, 0, 1, 1], [], []>} : vector<160x128xbf16>, vector<128x128xbf16>, vector<160x128xf32> -> vector<160x128xf32>
    %63 = arith.addf %54, %62 : vector<160x128xf32>
    %c2_i32_45 = arith.constant 2 : i32
    %64 = arith.addi %1, %c2_i32_45 : i32
    %c0_46 = arith.constant 0 : index
    %65 = arith.index_cast %64 : i32 to index
    %c1_47 = arith.constant 1 : index
    %c0_48 = arith.constant 0 : index
    %66 = vector.load %arg2[%c0_46, %65, %c1_47, %c0_48] : memref<1x20x24x128xbf16, #tpu.memory_space<vmem>>, vector<1x10x16x128xbf16>
    %67 = vector.shape_cast %66 : vector<1x10x16x128xbf16> to vector<10x16x128xbf16>
    %68 = vector.shape_cast %67 : vector<10x16x128xbf16> to vector<160x128xbf16>
    %c7 = arith.constant 7 : index
    %c0_49 = arith.constant 0 : index
    %c0_50 = arith.constant 0 : index
    %69 = vector.load %arg3[%c7, %c0_49, %c0_50] : memref<9x128x128xbf16, #tpu.memory_space<vmem>>, vector<1x128x128xbf16>
    %70 = vector.shape_cast %69 : vector<1x128x128xbf16> to vector<128x128xbf16>
    %cst_51 = arith.constant dense<0.000000e+00> : vector<160x128xf32>
    %71 = tpu.matmul %68, %70, %cst_51 {dimension_numbers = #tpu.dot_dimension_numbers<[1], [0], [0], [1], [0, 0, 1, 1], [], []>} : vector<160x128xbf16>, vector<128x128xbf16>, vector<160x128xf32> -> vector<160x128xf32>
    %72 = arith.addf %63, %71 : vector<160x128xf32>
    %c2_i32_52 = arith.constant 2 : i32
    %73 = arith.addi %1, %c2_i32_52 : i32
    %c0_53 = arith.constant 0 : index
    %74 = arith.index_cast %73 : i32 to index
    %c2_54 = arith.constant 2 : index
    %c0_55 = arith.constant 0 : index
    %75 = vector.load %arg2[%c0_53, %74, %c2_54, %c0_55] : memref<1x20x24x128xbf16, #tpu.memory_space<vmem>>, vector<1x10x16x128xbf16>
    %76 = vector.shape_cast %75 : vector<1x10x16x128xbf16> to vector<10x16x128xbf16>
    %77 = vector.shape_cast %76 : vector<10x16x128xbf16> to vector<160x128xbf16>
    %c8 = arith.constant 8 : index
    %c0_56 = arith.constant 0 : index
    %c0_57 = arith.constant 0 : index
    %78 = vector.load %arg3[%c8, %c0_56, %c0_57] : memref<9x128x128xbf16, #tpu.memory_space<vmem>>, vector<1x128x128xbf16>
    %79 = vector.shape_cast %78 : vector<1x128x128xbf16> to vector<128x128xbf16>
    %cst_58 = arith.constant dense<0.000000e+00> : vector<160x128xf32>
    %80 = tpu.matmul %77, %79, %cst_58 {dimension_numbers = #tpu.dot_dimension_numbers<[1], [0], [0], [1], [0, 0, 1, 1], [], []>} : vector<160x128xbf16>, vector<128x128xbf16>, vector<160x128xf32> -> vector<160x128xf32>
    %81 = arith.addf %72, %80 : vector<160x128xf32>
    %c0_59 = arith.constant 0 : index
    %c0_60 = arith.constant 0 : index
    %82 = vector.load %arg4[%c0_59, %c0_60] : memref<1x128xf32, #tpu.memory_space<vmem>>, vector<1x128xf32>
    %83 = vector.broadcast %82 : vector<1x128xf32> to vector<160x128xf32>
    %84 = arith.mulf %81, %83 : vector<160x128xf32>
    %c0_61 = arith.constant 0 : index
    %c0_62 = arith.constant 0 : index
    %85 = vector.load %arg5[%c0_61, %c0_62] : memref<1x128xf32, #tpu.memory_space<vmem>>, vector<1x128xf32>
    %86 = vector.broadcast %85 : vector<1x128xf32> to vector<160x128xf32>
    %87 = arith.addf %84, %86 : vector<160x128xf32>
    %cst_63 = arith.constant 0.000000e+00 : f32
    %88 = vector.broadcast %cst_63 : f32 to vector<160x128xf32>
    %89 = arith.maximumf %87, %88 : vector<160x128xf32>
    %90 = vector.shape_cast %89 : vector<160x128xf32> to vector<10x16x128xf32>
    %91 = arith.truncf %90 : vector<10x16x128xf32> to vector<10x16x128xbf16>
    %c0_64 = arith.constant 0 : index
    %c1_65 = arith.constant 1 : index
    %c0_66 = arith.constant 0 : index
    %92 = vector.load %arg10[%c0_64, %c1_65, %c0_66] : memref<10x24x128xbf16, #tpu.memory_space<vmem>>, vector<10x16x128xbf16>
    tpu.vector_store %arg10[%c0_64, %c1_65, %c0_66], %91 {strides = array<i32>} : memref<10x24x128xbf16, #tpu.memory_space<vmem>>, vector<10x16x128xbf16>,
    %cst_67 = arith.constant 0.000000e+00 : bf16
    %93 = vector.broadcast %cst_67 : bf16 to vector<10x1x128xbf16>
    %c0_68 = arith.constant 0 : index
    %c0_69 = arith.constant 0 : index
    %c0_70 = arith.constant 0 : index
    %94 = vector.load %arg10[%c0_68, %c0_69, %c0_70] : memref<10x24x128xbf16, #tpu.memory_space<vmem>>, vector<10x1x128xbf16>
    tpu.vector_store %arg10[%c0_68, %c0_69, %c0_70], %93 {strides = array<i32>} : memref<10x24x128xbf16, #tpu.memory_space<vmem>>, vector<10x1x128xbf16>,
    %c0_71 = arith.constant 0 : index
    %c17 = arith.constant 17 : index
    %c0_72 = arith.constant 0 : index
    %95 = vector.load %arg10[%c0_71, %c17, %c0_72] : memref<10x24x128xbf16, #tpu.memory_space<vmem>>, vector<10x1x128xbf16>
    tpu.vector_store %arg10[%c0_71, %c17, %c0_72], %93 {strides = array<i32>} : memref<10x24x128xbf16, #tpu.memory_space<vmem>>, vector<10x1x128xbf16>,
    %c0_i32_73 = arith.constant 0 : i32
    %96 = arith.cmpi eq, %arg1, %c0_i32_73 : i32
    %97 = arith.extui %96 : i1 to i32
    %c0_i32_74 = arith.constant 0 : i32
    %98 = arith.cmpi ne, %97, %c0_i32_74 : i32
    scf.if %98 {
      %cst_153 = arith.constant 0.000000e+00 : bf16
      %174 = vector.broadcast %cst_153 : bf16 to vector<1x24x128xbf16>
      %c0_154 = arith.constant 0 : index
      %c0_155 = arith.constant 0 : index
      %c0_156 = arith.constant 0 : index
      %175 = vector.load %arg10[%c0_154, %c0_155, %c0_156] : memref<10x24x128xbf16, #tpu.memory_space<vmem>>, vector<1x24x128xbf16>
      tpu.vector_store %arg10[%c0_154, %c0_155, %c0_156], %174 {strides = array<i32>} : memref<10x24x128xbf16, #tpu.memory_space<vmem>>, vector<1x24x128xbf16>,
    } else {
    }
    %c1_i32_75 = arith.constant 1 : i32
    %99 = arith.cmpi eq, %arg1, %c1_i32_75 : i32
    %100 = arith.extui %99 : i1 to i32
    %c0_i32_76 = arith.constant 0 : i32
    %101 = arith.cmpi ne, %100, %c0_i32_76 : i32
    scf.if %101 {
      %cst_153 = arith.constant 0.000000e+00 : bf16
      %174 = vector.broadcast %cst_153 : bf16 to vector<1x24x128xbf16>
      %c9 = arith.constant 9 : index
      %c0_154 = arith.constant 0 : index
      %c0_155 = arith.constant 0 : index
      %175 = vector.load %arg10[%c9, %c0_154, %c0_155] : memref<10x24x128xbf16, #tpu.memory_space<vmem>>, vector<1x24x128xbf16>
      tpu.vector_store %arg10[%c9, %c0_154, %c0_155], %174 {strides = array<i32>} : memref<10x24x128xbf16, #tpu.memory_space<vmem>>, vector<1x24x128xbf16>,
    } else {
    }
    %c0_77 = arith.constant 0 : index
    %c0_78 = arith.constant 0 : index
    %c0_79 = arith.constant 0 : index
    %102 = vector.load %arg10[%c0_77, %c0_78, %c0_79] : memref<10x24x128xbf16, #tpu.memory_space<vmem>>, vector<8x16x128xbf16>
    %103 = vector.shape_cast %102 : vector<8x16x128xbf16> to vector<128x128xbf16>
    %c0_80 = arith.constant 0 : index
    %c0_81 = arith.constant 0 : index
    %c0_82 = arith.constant 0 : index
    %104 = vector.load %arg6[%c0_80, %c0_81, %c0_82] : memref<9x128x128xbf16, #tpu.memory_space<vmem>>, vector<1x128x128xbf16>
    %105 = vector.shape_cast %104 : vector<1x128x128xbf16> to vector<128x128xbf16>
    %cst_83 = arith.constant dense<0.000000e+00> : vector<128x128xf32>
    %106 = tpu.matmul %103, %105, %cst_83 {dimension_numbers = #tpu.dot_dimension_numbers<[1], [0], [0], [1], [0, 0, 1, 1], [], []>} : vector<128x128xbf16>, vector<128x128xbf16>, vector<128x128xf32> -> vector<128x128xf32>
    %c0_84 = arith.constant 0 : index
    %c1_85 = arith.constant 1 : index
    %c0_86 = arith.constant 0 : index
    %107 = vector.load %arg10[%c0_84, %c1_85, %c0_86] : memref<10x24x128xbf16, #tpu.memory_space<vmem>>, vector<8x16x128xbf16>
    %108 = vector.shape_cast %107 : vector<8x16x128xbf16> to vector<128x128xbf16>
    %c1_87 = arith.constant 1 : index
    %c0_88 = arith.constant 0 : index
    %c0_89 = arith.constant 0 : index
    %109 = vector.load %arg6[%c1_87, %c0_88, %c0_89] : memref<9x128x128xbf16, #tpu.memory_space<vmem>>, vector<1x128x128xbf16>
    %110 = vector.shape_cast %109 : vector<1x128x128xbf16> to vector<128x128xbf16>
    %cst_90 = arith.constant dense<0.000000e+00> : vector<128x128xf32>
    %111 = tpu.matmul %108, %110, %cst_90 {dimension_numbers = #tpu.dot_dimension_numbers<[1], [0], [0], [1], [0, 0, 1, 1], [], []>} : vector<128x128xbf16>, vector<128x128xbf16>, vector<128x128xf32> -> vector<128x128xf32>
    %112 = arith.addf %106, %111 : vector<128x128xf32>
    %c0_91 = arith.constant 0 : index
    %c2_92 = arith.constant 2 : index
    %c0_93 = arith.constant 0 : index
    %113 = vector.load %arg10[%c0_91, %c2_92, %c0_93] : memref<10x24x128xbf16, #tpu.memory_space<vmem>>, vector<8x16x128xbf16>
    %114 = vector.shape_cast %113 : vector<8x16x128xbf16> to vector<128x128xbf16>
    %c2_94 = arith.constant 2 : index
    %c0_95 = arith.constant 0 : index
    %c0_96 = arith.constant 0 : index
    %115 = vector.load %arg6[%c2_94, %c0_95, %c0_96] : memref<9x128x128xbf16, #tpu.memory_space<vmem>>, vector<1x128x128xbf16>
    %116 = vector.shape_cast %115 : vector<1x128x128xbf16> to vector<128x128xbf16>
    %cst_97 = arith.constant dense<0.000000e+00> : vector<128x128xf32>
    %117 = tpu.matmul %114, %116, %cst_97 {dimension_numbers = #tpu.dot_dimension_numbers<[1], [0], [0], [1], [0, 0, 1, 1], [], []>} : vector<128x128xbf16>, vector<128x128xbf16>, vector<128x128xf32> -> vector<128x128xf32>
    %118 = arith.addf %112, %117 : vector<128x128xf32>
    %c1_98 = arith.constant 1 : index
    %c0_99 = arith.constant 0 : index
    %c0_100 = arith.constant 0 : index
    %119 = vector.load %arg10[%c1_98, %c0_99, %c0_100] : memref<10x24x128xbf16, #tpu.memory_space<vmem>>, vector<8x16x128xbf16>
    %120 = vector.shape_cast %119 : vector<8x16x128xbf16> to vector<128x128xbf16>
    %c3_101 = arith.constant 3 : index
    %c0_102 = arith.constant 0 : index
    %c0_103 = arith.constant 0 : index
    %121 = vector.load %arg6[%c3_101, %c0_102, %c0_103] : memref<9x128x128xbf16, #tpu.memory_space<vmem>>, vector<1x128x128xbf16>
    %122 = vector.shape_cast %121 : vector<1x128x128xbf16> to vector<128x128xbf16>
    %cst_104 = arith.constant dense<0.000000e+00> : vector<128x128xf32>
    %123 = tpu.matmul %120, %122, %cst_104 {dimension_numbers = #tpu.dot_dimension_numbers<[1], [0], [0], [1], [0, 0, 1, 1], [], []>} : vector<128x128xbf16>, vector<128x128xbf16>, vector<128x128xf32> -> vector<128x128xf32>
    %124 = arith.addf %118, %123 : vector<128x128xf32>
    %c1_105 = arith.constant 1 : index
    %c1_106 = arith.constant 1 : index
    %c0_107 = arith.constant 0 : index
    %125 = vector.load %arg10[%c1_105, %c1_106, %c0_107] : memref<10x24x128xbf16, #tpu.memory_space<vmem>>, vector<8x16x128xbf16>
    %126 = vector.shape_cast %125 : vector<8x16x128xbf16> to vector<128x128xbf16>
    %c4_108 = arith.constant 4 : index
    %c0_109 = arith.constant 0 : index
    %c0_110 = arith.constant 0 : index
    %127 = vector.load %arg6[%c4_108, %c0_109, %c0_110] : memref<9x128x128xbf16, #tpu.memory_space<vmem>>, vector<1x128x128xbf16>
    %128 = vector.shape_cast %127 : vector<1x128x128xbf16> to vector<128x128xbf16>
    %cst_111 = arith.constant dense<0.000000e+00> : vector<128x128xf32>
    %129 = tpu.matmul %126, %128, %cst_111 {dimension_numbers = #tpu.dot_dimension_numbers<[1], [0], [0], [1], [0, 0, 1, 1], [], []>} : vector<128x128xbf16>, vector<128x128xbf16>, vector<128x128xf32> -> vector<128x128xf32>
    %130 = arith.addf %124, %129 : vector<128x128xf32>
    %c1_112 = arith.constant 1 : index
    %c2_113 = arith.constant 2 : index
    %c0_114 = arith.constant 0 : index
    %131 = vector.load %arg10[%c1_112, %c2_113, %c0_114] : memref<10x24x128xbf16, #tpu.memory_space<vmem>>, vector<8x16x128xbf16>
    %132 = vector.shape_cast %131 : vector<8x16x128xbf16> to vector<128x128xbf16>
    %c5_115 = arith.constant 5 : index
    %c0_116 = arith.constant 0 : index
    %c0_117 = arith.constant 0 : index
    %133 = vector.load %arg6[%c5_115, %c0_116, %c0_117] : memref<9x128x128xbf16, #tpu.memory_space<vmem>>, vector<1x128x128xbf16>
    %134 = vector.shape_cast %133 : vector<1x128x128xbf16> to vector<128x128xbf16>
    %cst_118 = arith.constant dense<0.000000e+00> : vector<128x128xf32>
    %135 = tpu.matmul %132, %134, %cst_118 {dimension_numbers = #tpu.dot_dimension_numbers<[1], [0], [0], [1], [0, 0, 1, 1], [], []>} : vector<128x128xbf16>, vector<128x128xbf16>, vector<128x128xf32> -> vector<128x128xf32>
    %136 = arith.addf %130, %135 : vector<128x128xf32>
    %c2_119 = arith.constant 2 : index
    %c0_120 = arith.constant 0 : index
    %c0_121 = arith.constant 0 : index
    %137 = vector.load %arg10[%c2_119, %c0_120, %c0_121] : memref<10x24x128xbf16, #tpu.memory_space<vmem>>, vector<8x16x128xbf16>
    %138 = vector.shape_cast %137 : vector<8x16x128xbf16> to vector<128x128xbf16>
    %c6_122 = arith.constant 6 : index
    %c0_123 = arith.constant 0 : index
    %c0_124 = arith.constant 0 : index
    %139 = vector.load %arg6[%c6_122, %c0_123, %c0_124] : memref<9x128x128xbf16, #tpu.memory_space<vmem>>, vector<1x128x128xbf16>
    %140 = vector.shape_cast %139 : vector<1x128x128xbf16> to vector<128x128xbf16>
    %cst_125 = arith.constant dense<0.000000e+00> : vector<128x128xf32>
    %141 = tpu.matmul %138, %140, %cst_125 {dimension_numbers = #tpu.dot_dimension_numbers<[1], [0], [0], [1], [0, 0, 1, 1], [], []>} : vector<128x128xbf16>, vector<128x128xbf16>, vector<128x128xf32> -> vector<128x128xf32>
    %142 = arith.addf %136, %141 : vector<128x128xf32>
    %c2_126 = arith.constant 2 : index
    %c1_127 = arith.constant 1 : index
    %c0_128 = arith.constant 0 : index
    %143 = vector.load %arg10[%c2_126, %c1_127, %c0_128] : memref<10x24x128xbf16, #tpu.memory_space<vmem>>, vector<8x16x128xbf16>
    %144 = vector.shape_cast %143 : vector<8x16x128xbf16> to vector<128x128xbf16>
    %c7_129 = arith.constant 7 : index
    %c0_130 = arith.constant 0 : index
    %c0_131 = arith.constant 0 : index
    %145 = vector.load %arg6[%c7_129, %c0_130, %c0_131] : memref<9x128x128xbf16, #tpu.memory_space<vmem>>, vector<1x128x128xbf16>
    %146 = vector.shape_cast %145 : vector<1x128x128xbf16> to vector<128x128xbf16>
    %cst_132 = arith.constant dense<0.000000e+00> : vector<128x128xf32>
    %147 = tpu.matmul %144, %146, %cst_132 {dimension_numbers = #tpu.dot_dimension_numbers<[1], [0], [0], [1], [0, 0, 1, 1], [], []>} : vector<128x128xbf16>, vector<128x128xbf16>, vector<128x128xf32> -> vector<128x128xf32>
    %148 = arith.addf %142, %147 : vector<128x128xf32>
    %c2_133 = arith.constant 2 : index
    %c2_134 = arith.constant 2 : index
    %c0_135 = arith.constant 0 : index
    %149 = vector.load %arg10[%c2_133, %c2_134, %c0_135] : memref<10x24x128xbf16, #tpu.memory_space<vmem>>, vector<8x16x128xbf16>
    %150 = vector.shape_cast %149 : vector<8x16x128xbf16> to vector<128x128xbf16>
    %c8_136 = arith.constant 8 : index
    %c0_137 = arith.constant 0 : index
    %c0_138 = arith.constant 0 : index
    %151 = vector.load %arg6[%c8_136, %c0_137, %c0_138] : memref<9x128x128xbf16, #tpu.memory_space<vmem>>, vector<1x128x128xbf16>
    %152 = vector.shape_cast %151 : vector<1x128x128xbf16> to vector<128x128xbf16>
    %cst_139 = arith.constant dense<0.000000e+00> : vector<128x128xf32>
    %153 = tpu.matmul %150, %152, %cst_139 {dimension_numbers = #tpu.dot_dimension_numbers<[1], [0], [0], [1], [0, 0, 1, 1], [], []>} : vector<128x128xbf16>, vector<128x128xbf16>, vector<128x128xf32> -> vector<128x128xf32>
    %154 = arith.addf %148, %153 : vector<128x128xf32>
    %c0_140 = arith.constant 0 : index
    %c0_141 = arith.constant 0 : index
    %155 = vector.load %arg7[%c0_140, %c0_141] : memref<1x128xf32, #tpu.memory_space<vmem>>, vector<1x128xf32>
    %156 = vector.broadcast %155 : vector<1x128xf32> to vector<128x128xf32>
    %157 = arith.mulf %154, %156 : vector<128x128xf32>
    %c0_142 = arith.constant 0 : index
    %c0_143 = arith.constant 0 : index
    %158 = vector.load %arg8[%c0_142, %c0_143] : memref<1x128xf32, #tpu.memory_space<vmem>>, vector<1x128xf32>
    %159 = vector.broadcast %158 : vector<1x128xf32> to vector<128x128xf32>
    %160 = arith.addf %157, %159 : vector<128x128xf32>
    %c2_i32_144 = arith.constant 2 : i32
    %161 = arith.addi %1, %c2_i32_144 : i32
    %c0_145 = arith.constant 0 : index
    %162 = arith.index_cast %161 : i32 to index
    %c1_146 = arith.constant 1 : index
    %c0_147 = arith.constant 0 : index
    %163 = vector.load %arg2[%c0_145, %162, %c1_146, %c0_147] : memref<1x20x24x128xbf16, #tpu.memory_space<vmem>>, vector<1x8x16x128xbf16>
    %164 = vector.shape_cast %163 : vector<1x8x16x128xbf16> to vector<8x16x128xbf16>
    %165 = vector.shape_cast %164 : vector<8x16x128xbf16> to vector<128x128xbf16>
    %166 = arith.extf %165 : vector<128x128xbf16> to vector<128x128xf32>
    %167 = arith.addf %160, %166 : vector<128x128xf32>
    %cst_148 = arith.constant 0.000000e+00 : f32
    %168 = vector.broadcast %cst_148 : f32 to vector<128x128xf32>
    %169 = arith.maximumf %167, %168 : vector<128x128xf32>
    %170 = vector.shape_cast %169 : vector<128x128xf32> to vector<8x16x128xf32>
    %c0_149 = arith.constant 0 : index
    %c0_150 = arith.constant 0 : index
    %c0_151 = arith.constant 0 : index
    %c0_152 = arith.constant 0 : index
    %171 = vector.load %arg9[%c0_149, %c0_150, %c0_151, %c0_152] : memref<1x8x16x128xf32, #tpu.memory_space<vmem>>, vector<1x8x16x128xf32>
    %172 = vector.shape_cast %171 : vector<1x8x16x128xf32> to vector<8x16x128xf32>
    %173 = vector.shape_cast %170 : vector<8x16x128xf32> to vector<1x8x16x128xf32>
    tpu.vector_store %arg9[%c0_149, %c0_150, %c0_151, %c0_152], %173 {strides = array<i32>} : memref<1x8x16x128xf32, #tpu.memory_space<vmem>>, vector<1x8x16x128xf32>,
    return
  }
  func.func @transform_0(%arg0: i32, %arg1: i32) -> (i32, i32, i32, i32) {
    %c0_i32 = arith.constant 0 : i32
    %c0_i32_0 = arith.constant 0 : i32
    %c0_i32_1 = arith.constant 0 : i32
    %c0_i32_2 = arith.constant 0 : i32
    return %arg0, %c0_i32, %c0_i32_0, %c0_i32_1 : i32, i32, i32, i32
  }
  func.func @transform_1(%arg0: i32, %arg1: i32) -> (i32, i32, i32) {
    %c0_i32 = arith.constant 0 : i32
    %c0_i32_0 = arith.constant 0 : i32
    %c0_i32_1 = arith.constant 0 : i32
    %c0_i32_2 = arith.constant 0 : i32
    return %c0_i32, %c0_i32_0, %c0_i32_1 : i32, i32, i32
  }
  func.func @transform_2(%arg0: i32, %arg1: i32) -> (i32, i32) {
    %c0_i32 = arith.constant 0 : i32
    %c0_i32_0 = arith.constant 0 : i32
    %c0_i32_1 = arith.constant 0 : i32
    return %c0_i32, %c0_i32_0 : i32, i32
  }
  func.func @transform_3(%arg0: i32, %arg1: i32) -> (i32, i32) {
    %c0_i32 = arith.constant 0 : i32
    %c0_i32_0 = arith.constant 0 : i32
    %c0_i32_1 = arith.constant 0 : i32
    return %c0_i32, %c0_i32_0 : i32, i32
  }
  func.func @transform_4(%arg0: i32, %arg1: i32) -> (i32, i32, i32) {
    %c0_i32 = arith.constant 0 : i32
    %c0_i32_0 = arith.constant 0 : i32
    %c0_i32_1 = arith.constant 0 : i32
    %c0_i32_2 = arith.constant 0 : i32
    return %c0_i32, %c0_i32_0, %c0_i32_1 : i32, i32, i32
  }
  func.func @transform_5(%arg0: i32, %arg1: i32) -> (i32, i32) {
    %c0_i32 = arith.constant 0 : i32
    %c0_i32_0 = arith.constant 0 : i32
    %c0_i32_1 = arith.constant 0 : i32
    return %c0_i32, %c0_i32_0 : i32, i32
  }
  func.func @transform_6(%arg0: i32, %arg1: i32) -> (i32, i32) {
    %c0_i32 = arith.constant 0 : i32
    %c0_i32_0 = arith.constant 0 : i32
    %c0_i32_1 = arith.constant 0 : i32
    return %c0_i32, %c0_i32_0 : i32, i32
  }
  func.func @transform_7(%arg0: i32, %arg1: i32) -> (i32, i32, i32, i32) {
    %c0_i32 = arith.constant 0 : i32
    %c0_i32_0 = arith.constant 0 : i32
    %c0_i32_1 = arith.constant 0 : i32
    return %arg0, %arg1, %c0_i32, %c0_i32_0 : i32, i32, i32, i32
  }
}

</mosaic_0001>

<llo_original>
// kernel: tpu_custom_call.1
$region0: #{tpu_custom_call.1}
  #allocation0 [shape = 'u32[]', space=smem, size = 0x4, offset = 0x4, fixed_abs, tag = 'smem constant byte address 0x4 - core index']
  #allocation1 [shape = 'u32[144,128]{1,0:T(1,128)}', space=vmem, size = 0x12000, scoped, tag = 'internal scratch']
  #allocation2 [shape = 'bf16[10,24,128]{2,1,0:T(8,128)(2,1)}', space=vmem, size = 0xf000, scoped, tag = 'scratch operand']
  %s0 = inlined_call_operand.hbm [shape: bf16[2,20,24,128], index: 0, kind: input, shape index: {}]
  %s1 = inlined_call_operand.hbm [shape: bf16[9,128,128], index: 1, kind: input, shape index: {}]
  %s2 = inlined_call_operand.vmem [shape: f32[1,128], index: 2, kind: input, shape index: {}]
  %s3 = inlined_call_operand.vmem [shape: f32[1,128], index: 3, kind: input, shape index: {}]
  %s4 = inlined_call_operand.hbm [shape: bf16[9,128,128], index: 4, kind: input, shape index: {}]
  %s5 = inlined_call_operand.vmem [shape: f32[1,128], index: 5, kind: input, shape index: {}]
  %s6 = inlined_call_operand.vmem [shape: f32[1,128], index: 6, kind: input, shape index: {}]
  %s7 = inlined_call_operand.hbm [shape: f32[2,16,16,128], index: 7, kind: output, shape index: {}]
  %s8 = sld [smem:[#allocation0]]
  $region81: #{tpu_custom_call.1} parent=0
    _
  %s10 = ssub.s32 1, %s8
  %s11 = scalar_select 0, %s10, %s8
  $region1: #{tpu_custom_call.1} parent=0
    #allocation3 [shape = 'u8[245760]{0}', space=vmem, size = 0x3c000, scoped, tag = 'input window, operand 0']
    #allocation4 [shape = 's32[2]{0}', space=sflag, size = 0x8, scoped, tag = 'scoped memory for tpu_custom_call.1']
    #allocation5 [shape = 's32[2]{0}', space=sflag, size = 0x8, scoped, tag = 'scoped memory for tpu_custom_call.1']
    #allocation6 [shape = 'u8[294912]{0}', space=vmem, size = 0x48000, scoped, tag = 'input window, operand 1, single buffered']
    #allocation7 [shape = 's32[1]{0}', space=sflag, size = 0x4, scoped, tag = 'scoped memory for tpu_custom_call.1']
    #allocation8 [shape = 'u8[294912]{0}', space=vmem, size = 0x48000, scoped, tag = 'input window, operand 4, single buffered']
    #allocation9 [shape = 'u8[131072]{0}', space=vmem, size = 0x20000, scoped, tag = 'output window, operand 0']
    %12 = vsyncpa [#allocation4], 0
    %s13 = scalar_lea.sflag [#allocation4], 1
    %14 = vsyncpa %s13, 0
    %15 = vsyncpa [#allocation7], 0
    %16 = vsyncpa [#allocation5], 0
    %s17 = scalar_lea.sflag [#allocation5], 1
    %18 = vsyncpa %s17, 0
    loop: start=0, step=1, limit=6
    $region2: #{tpu_custom_call.1} parent=1 // loop_pre_header
      _
    $region3: #{tpu_custom_call.1} parent=1 // loop_header
      %s20 = sphi 0, %s24
      %p21 = scmp.ge.s32.totalorder %s20, 6
      %s27 = sphi 0, %s39
      %s28 = sphi 0, %s35
      %s29 = sphi 0, %s27
      %s30 = sphi 0, %s28
      %s31 = sphi 0, %s29
      %s32 = sphi 0, %s30
      %s42 = sphi 0, %s44
      %s45 = sphi 0, %s42
      %s46 = sphi 0, %s45
      %s62 = sphi 0, %s46
      %s66 = sphi 0, %s66
      %s68 = sphi 0, %s66
      %s69 = sphi 0, %s68
      %s83 = sphi 0, %s69
      %s87 = sphi 0, %s87
      %s89 = sphi 0, %s87
      %s90 = sphi 0, %s89
      %s104 = sphi 0, %s90
      %s108 = sphi 0, %s108
      %s110 = sphi 0, %s108
      %s111 = sphi 0, %s110
      %s125 = sphi 0, %s111
      %s129 = sphi 0, %s129
      %s131 = sphi 0, %s129
      %s132 = sphi 0, %s131
      %s146 = sphi 0, %s132
      %s150 = sphi 0, %s150
      %s152 = sphi 0, %s150
      %s153 = sphi 0, %s152
      %s167 = sphi 0, %s153
      %s171 = sphi 0, %s171
      %s173 = sphi 0, %s171
      %s174 = sphi 0, %s173
      %s188 = sphi 0, %s174
      %s196 = sphi 0, %s198
      %s199 = sphi 0, %s196
      %s200 = sphi 0, %s199
      %s216 = sphi 0, %s200
    $region4: #{tpu_custom_call.1} parent=1 // loop_header_branch
      %23 = sbr.rel (%p21) target = $region8
    $region5: #{tpu_custom_call.1} parent=1 // loop_body
      %s25 = ssub.s32 %s20, 1
      %s26 = ssub.s32 %s20, 2
      %s33 = sadd.s32 1, %s28
      %p34 = scmp.ge.s32.totalorder %s33, 2
      %s35 = scalar_select %p34, 0, %s33
      %s36 = sadd.s32 1, %s27
      %s37 = scalar_select %p34, %s36, %s27
      %p38 = scmp.ge.s32.totalorder %s37, 2
      %s39 = scalar_select %p38, 0, %s37
      %s40 = ssub.s32 %s27, %s39
      %p41 = scmp.eq.s32.totalorder %s40, 0
      %s43 = sadd.s32 %s42, 1
      %s44 = scalar_select %p41, %s42, %s43
      %p47 = pneg %p41
      %p48 = scmp.eq.s32.totalorder %s20, 3
      %p49 = por %p47, %p48
      %p50 = scmp.ne.s32.totalorder %s42, %s45
      %p51 = scmp.eq.s32.totalorder %s20, 0
      %p52 = por %p50, %p51
      %p53 = scmp.ne.s32.totalorder %s42, %s45
      %p54 = scmp.eq.s32.totalorder %s25, 3
      %p55 = por %p53, %p54
      %p56 = scmp.ne.s32.totalorder %s45, %s46
      %p57 = scmp.eq.s32.totalorder %s25, 0
      %p58 = por %p56, %p57
      %p59 = scmp.ne.s32.totalorder %s45, %s46
      %p60 = scmp.eq.s32.totalorder %s26, 3
      %p61 = por %p59, %p60
      %p63 = scmp.ne.s32.totalorder %s46, %s62
      %p64 = scmp.eq.s32.totalorder %s26, 0
      %p65 = por %p63, %p64
      %s67 = sadd.s32 %s66, 1
      %p70 = scmp.eq.s32.totalorder %s20, 3
      %p71 = scmp.ne.s32.totalorder %s66, %s68
      %p72 = scmp.eq.s32.totalorder %s20, 0
      %p73 = por %p71, %p72
      %p74 = scmp.ne.s32.totalorder %s66, %s68
      %p75 = scmp.eq.s32.totalorder %s25, 3
      %p76 = por %p74, %p75
      %p77 = scmp.ne.s32.totalorder %s68, %s69
      %p78 = scmp.eq.s32.totalorder %s25, 0
      %p79 = por %p77, %p78
      %p80 = scmp.ne.s32.totalorder %s68, %s69
      %p81 = scmp.eq.s32.totalorder %s26, 3
      %p82 = por %p80, %p81
      %p84 = scmp.ne.s32.totalorder %s69, %s83
      %p85 = scmp.eq.s32.totalorder %s26, 0
      %p86 = por %p84, %p85
      %s88 = sadd.s32 %s87, 1
      %p91 = scmp.eq.s32.totalorder %s20, 3
      %p92 = scmp.ne.s32.totalorder %s87, %s89
      %p93 = scmp.eq.s32.totalorder %s20, 0
      %p94 = por %p92, %p93
      %p95 = scmp.ne.s32.totalorder %s87, %s89
      %p96 = scmp.eq.s32.totalorder %s25, 3
      %p97 = por %p95, %p96
      %p98 = scmp.ne.s32.totalorder %s89, %s90
      %p99 = scmp.eq.s32.totalorder %s25, 0
      %p100 = por %p98, %p99
      %p101 = scmp.ne.s32.totalorder %s89, %s90
      %p102 = scmp.eq.s32.totalorder %s26, 3
      %p103 = por %p101, %p102
      %p105 = scmp.ne.s32.totalorder %s90, %s104
      %p106 = scmp.eq.s32.totalorder %s26, 0
      %p107 = por %p105, %p106
      %s109 = sadd.s32 %s108, 1
      %p112 = scmp.eq.s32.totalorder %s20, 3
      %p113 = scmp.ne.s32.totalorder %s108, %s110
      %p114 = scmp.eq.s32.totalorder %s20, 0
      %p115 = por %p113, %p114
      %p116 = scmp.ne.s32.totalorder %s108, %s110
      %p117 = scmp.eq.s32.totalorder %s25, 3
      %p118 = por %p116, %p117
      %p119 = scmp.ne.s32.totalorder %s110, %s111
      %p120 = scmp.eq.s32.totalorder %s25, 0
      %p121 = por %p119, %p120
      %p122 = scmp.ne.s32.totalorder %s110, %s111
      %p123 = scmp.eq.s32.totalorder %s26, 3
      %p124 = por %p122, %p123
      %p126 = scmp.ne.s32.totalorder %s111, %s125
      %p127 = scmp.eq.s32.totalorder %s26, 0
      %p128 = por %p126, %p127
      %s130 = sadd.s32 %s129, 1
      %p133 = scmp.eq.s32.totalorder %s20, 3
      %p134 = scmp.ne.s32.totalorder %s129, %s131
      %p135 = scmp.eq.s32.totalorder %s20, 0
      %p136 = por %p134, %p135
      %p137 = scmp.ne.s32.totalorder %s129, %s131
      %p138 = scmp.eq.s32.totalorder %s25, 3
      %p139 = por %p137, %p138
      %p140 = scmp.ne.s32.totalorder %s131, %s132
      %p141 = scmp.eq.s32.totalorder %s25, 0
      %p142 = por %p140, %p141
      %p143 = scmp.ne.s32.totalorder %s131, %s132
      %p144 = scmp.eq.s32.totalorder %s26, 3
      %p145 = por %p143, %p144
      %p147 = scmp.ne.s32.totalorder %s132, %s146
      %p148 = scmp.eq.s32.totalorder %s26, 0
      %p149 = por %p147, %p148
      %s151 = sadd.s32 %s150, 1
      %p154 = scmp.eq.s32.totalorder %s20, 3
      %p155 = scmp.ne.s32.totalorder %s150, %s152
      %p156 = scmp.eq.s32.totalorder %s20, 0
      %p157 = por %p155, %p156
      %p158 = scmp.ne.s32.totalorder %s150, %s152
      %p159 = scmp.eq.s32.totalorder %s25, 3
      %p160 = por %p158, %p159
      %p161 = scmp.ne.s32.totalorder %s152, %s153
      %p162 = scmp.eq.s32.totalorder %s25, 0
      %p163 = por %p161, %p162
      %p164 = scmp.ne.s32.totalorder %s152, %s153
      %p165 = scmp.eq.s32.totalorder %s26, 3
      %p166 = por %p164, %p165
      %p168 = scmp.ne.s32.totalorder %s153, %s167
      %p169 = scmp.eq.s32.totalorder %s26, 0
      %p170 = por %p168, %p169
      %s172 = sadd.s32 %s171, 1
      %p175 = scmp.eq.s32.totalorder %s20, 3
      %p176 = scmp.ne.s32.totalorder %s171, %s173
      %p177 = scmp.eq.s32.totalorder %s20, 0
      %p178 = por %p176, %p177
      %p179 = scmp.ne.s32.totalorder %s171, %s173
      %p180 = scmp.eq.s32.totalorder %s25, 3
      %p181 = por %p179, %p180
      %p182 = scmp.ne.s32.totalorder %s173, %s174
      %p183 = scmp.eq.s32.totalorder %s25, 0
      %p184 = por %p182, %p183
      %p185 = scmp.ne.s32.totalorder %s173, %s174
      %p186 = scmp.eq.s32.totalorder %s26, 3
      %p187 = por %p185, %p186
      %p189 = scmp.ne.s32.totalorder %s174, %s188
      %p190 = scmp.eq.s32.totalorder %s26, 0
      %p191 = por %p189, %p190
      %s192 = ssub.s32 %s27, %s39
      %s193 = ssub.s32 %s28, %s35
      %s194 = sor.u32 %s192, %s193
      %p195 = scmp.eq.s32.totalorder %s194, 0
      %s197 = sadd.s32 %s196, 1
      %s198 = scalar_select %p195, %s196, %s197
      %p201 = pneg %p195
      %p202 = scmp.eq.s32.totalorder %s20, 3
      %p203 = por %p201, %p202
      %p204 = scmp.ne.s32.totalorder %s196, %s199
      %p205 = scmp.eq.s32.totalorder %s20, 0
      %p206 = por %p204, %p205
      %p207 = scmp.ne.s32.totalorder %s196, %s199
      %p208 = scmp.eq.s32.totalorder %s25, 3
      %p209 = por %p207, %p208
      %p210 = scmp.ne.s32.totalorder %s199, %s200
      %p211 = scmp.eq.s32.totalorder %s25, 0
      %p212 = por %p210, %p211
      %p213 = scmp.ne.s32.totalorder %s199, %s200
      %p214 = scmp.eq.s32.totalorder %s26, 3
      %p215 = por %p213, %p214
      %p217 = scmp.ne.s32.totalorder %s200, %s216
      %p218 = scmp.eq.s32.totalorder %s26, 0
      %p219 = por %p217, %p218
      %p220 = scmp.le.s32.totalorder 1, %s20
      %p221 = scmp.lt.s32.totalorder %s20, 5
      %p222 = pnand %p220, %p221
      %p223 = pneg %p222
      // Predicated region
      $region9: #{tpu_custom_call.1} parent=5 // pred_check
        _
      $region10: #{tpu_custom_call.1} parent=5 // pred_check_branch
        %225 = sbr.rel (%p222) target = $region12
      $region11: #{tpu_custom_call.1} parent=5 // pred_region
        %s226 = ssub.s32 %s20, 1
        // Predicated region
        $region13: #{tpu_custom_call.1} parent=11 // pred_check
          %p227 = pneg %p79
        $region14: #{tpu_custom_call.1} parent=11 // pred_check_branch
          %229 = sbr.rel (%p227) target = $region16
        $region15: #{tpu_custom_call.1} parent=11 // pred_region
          %s231 = ssub.s32 9216, 9216
          %232 = vsyncadd [#allocation7], %s231
          %s233 = sshll.u32 [#allocation6], 4
          %s234 = int_to_ptr.vmem [resolvable:$true] %s233
          %239 = dma.hbm_to_vmem [thread:$0]  %s1, 9216, %s234, [#allocation7], 64, 64, 4
        $region16: #{tpu_custom_call.1} parent=11 // pred_fallthru
          _
        // Predicated region
        $region17: #{tpu_custom_call.1} parent=11 // pred_check
          %p240 = pneg %p100
        $region18: #{tpu_custom_call.1} parent=11 // pred_check_branch
          %242 = sbr.rel (%p240) target = $region20
        $region19: #{tpu_custom_call.1} parent=11 // pred_region
          _
        $region20: #{tpu_custom_call.1} parent=11 // pred_fallthru
          _
        // Predicated region
        $region21: #{tpu_custom_call.1} parent=11 // pred_check
          %p243 = pneg %p121
        $region22: #{tpu_custom_call.1} parent=11 // pred_check_branch
          %245 = sbr.rel (%p243) target = $region24
        $region23: #{tpu_custom_call.1} parent=11 // pred_region
          _
        $region24: #{tpu_custom_call.1} parent=11 // pred_fallthru
          _
        // Predicated region
        $region25: #{tpu_custom_call.1} parent=11 // pred_check
          %p246 = pneg %p142
        $region26: #{tpu_custom_call.1} parent=11 // pred_check_branch
          %248 = sbr.rel (%p246) target = $region28
        $region27: #{tpu_custom_call.1} parent=11 // pred_region
          %s250 = ssub.s32 9216, 9216
          %251 = vsyncadd [#allocation7], %s250
          %s252 = sshll.u32 [#allocation8], 4
          %s253 = int_to_ptr.vmem [resolvable:$true] %s252
          %258 = dma.hbm_to_vmem [thread:$0]  %s4, 9216, %s253, [#allocation7], 64, 64, 4
        $region28: #{tpu_custom_call.1} parent=11 // pred_fallthru
          _
        // Predicated region
        $region29: #{tpu_custom_call.1} parent=11 // pred_check
          %p259 = pneg %p163
        $region30: #{tpu_custom_call.1} parent=11 // pred_check_branch
          %261 = sbr.rel (%p259) target = $region32
        $region31: #{tpu_custom_call.1} parent=11 // pred_region
          _
        $region32: #{tpu_custom_call.1} parent=11 // pred_fallthru
          _
        // Predicated region
        $region33: #{tpu_custom_call.1} parent=11 // pred_check
          %p262 = pneg %p184
        $region34: #{tpu_custom_call.1} parent=11 // pred_check_branch
          %264 = sbr.rel (%p262) target = $region36
        $region35: #{tpu_custom_call.1} parent=11 // pred_region
          _
        $region36: #{tpu_custom_call.1} parent=11 // pred_fallthru
          _
      $region12: #{tpu_custom_call.1} parent=5 // pred_fallthru
        _
      %p265 = scmp.lt.s32.totalorder %s20, 4
      // Predicated region
      $region37: #{tpu_custom_call.1} parent=5 // pred_check
        %p266 = pneg %p265
      $region38: #{tpu_custom_call.1} parent=5 // pred_check_branch
        %268 = sbr.rel (%p266) target = $region40
      $region39: #{tpu_custom_call.1} parent=5 // pred_region
        // Predicated region
        $region41: #{tpu_custom_call.1} parent=39 // pred_check
          %p269 = pneg %p52
        $region42: #{tpu_custom_call.1} parent=39 // pred_check_branch
          %271 = sbr.rel (%p269) target = $region44
        $region43: #{tpu_custom_call.1} parent=39 // pred_region
          %s272 = sand.u32 %s42, 1
          %s273 = scalar_lea.sflag [#allocation4], %s272
          %s274 = sand.u32 %s42, 1
          %s275 = smul.addr %s274, 240
          %s276 = scalar_lea.vmem [#allocation3], %s275
          %s278 = ssub.s32 3840, 3840
          %279 = vsyncadd %s273, %s278
          %s280 = smul.addr %s27, 60
          %s281 = smul.addr %s280, 64
          %s282 = scalar_lea.hbm %s0, %s281
          %s283 = sshll.u32 %s276, 4
          %s284 = int_to_ptr.vmem [resolvable:$true] %s283
          %289 = dma.hbm_to_vmem [thread:$0]  %s282, 3840, %s284, %s273, 64, 64, 4
        $region44: #{tpu_custom_call.1} parent=39 // pred_fallthru
          _
      $region40: #{tpu_custom_call.1} parent=5 // pred_fallthru
        _
      %p290 = scmp.le.s32.totalorder 1, %s20
      %p291 = scmp.lt.s32.totalorder %s20, 5
      %p292 = pnand %p290, %p291
      %p293 = pneg %p292
      // Predicated region
      $region45: #{tpu_custom_call.1} parent=5 // pred_check
        _
      $region46: #{tpu_custom_call.1} parent=5 // pred_check_branch
        %295 = sbr.rel (%p292) target = $region48
      $region47: #{tpu_custom_call.1} parent=5 // pred_region
        %s296 = ssub.s32 %s20, 1
        %s297 = sand.u32 %s45, 1
        %s298 = scalar_lea.sflag [#allocation4], %s297
        %s299 = sand.u32 %s45, 1
        %s300 = smul.addr %s299, 240
        %s301 = scalar_lea.vmem [#allocation3], %s300
        // Predicated region
        $region49: #{tpu_custom_call.1} parent=47 // pred_check
          %p302 = pneg %p58
        $region50: #{tpu_custom_call.1} parent=47 // pred_check_branch
          %304 = sbr.rel (%p302) target = $region52
        $region51: #{tpu_custom_call.1} parent=47 // pred_region
          %305 = dma.done %s298, 3840
        $region52: #{tpu_custom_call.1} parent=47 // pred_fallthru
          _
        // Predicated region
        $region53: #{tpu_custom_call.1} parent=47 // pred_check
          %p306 = pneg %p79
        $region54: #{tpu_custom_call.1} parent=47 // pred_check_branch
          %308 = sbr.rel (%p306) target = $region56
        $region55: #{tpu_custom_call.1} parent=47 // pred_region
          %309 = dma.done [#allocation7], 9216
        $region56: #{tpu_custom_call.1} parent=47 // pred_fallthru
          _
        // Predicated region
        $region57: #{tpu_custom_call.1} parent=47 // pred_check
          %p310 = pneg %p142
        $region58: #{tpu_custom_call.1} parent=47 // pred_check_branch
          %312 = sbr.rel (%p310) target = $region60
        $region59: #{tpu_custom_call.1} parent=47 // pred_region
          %313 = dma.done [#allocation7], 9216
        $region60: #{tpu_custom_call.1} parent=47 // pred_fallthru
          _
        %s314 = sand.u32 %s45, 1
        %s315 = scalar_lea.sflag [#allocation4], %s314
        %s316 = sand.u32 %s45, 1
        %s317 = smul.addr %s316, 240
        %s318 = scalar_lea.vmem [#allocation3], %s317
        %p319 = pneg %p58
        %p320 = pneg %p55
        %p321 = pneg %p79
        %p322 = pneg %p76
        %p323 = pneg %p100
        %p324 = pneg %p97
        %p325 = pneg %p121
        %p326 = pneg %p118
        %p327 = pneg %p142
        %p328 = pneg %p139
        %p329 = pneg %p163
        %p330 = pneg %p160
        %p331 = pneg %p184
        %p332 = pneg %p181
        %p333 = pneg %p212
        %p334 = pneg %p209
        %s335 = sand.u32 %s199, 1
        %s336 = scalar_lea.sflag [#allocation5], %s335
        %s337 = sand.u32 %s199, 1
        %s338 = smul.addr %s337, 128
        %s339 = scalar_lea.vmem [#allocation9], %s338
        %s340 = smul.u32 8, %s30
        %s342 = smul.u32 %s30, 8
        %s343 = smul.u32 %s342, 3
        %s344 = smul.addr %s343, 4
        %s345 = scalar_lea.vmem %s301, %s344 [#allocation3]
        %v346 = vld [vmem:[%s345] sm:$0xf]
        %v347 = vld [vmem:[%s345 + $0x4] sm:$0xf]
        %v348 = vld [vmem:[%s345 + $0xc] sm:$0xf]
        %v349 = vld [vmem:[%s345 + $0x10] sm:$0xf]
        %v350 = vld [vmem:[%s345 + $0x18] sm:$0xf]
        %v351 = vld [vmem:[%s345 + $0x1c] sm:$0xf]
        %v352 = vld [vmem:[%s345 + $0x24] sm:$0xf]
        %v353 = vld [vmem:[%s345 + $0x28] sm:$0xf]
        %v354 = vld [vmem:[%s345 + $0x30] sm:$0xf]
        %v355 = vld [vmem:[%s345 + $0x34] sm:$0xf]
        %v356 = vld [vmem:[%s345 + $0x3c] sm:$0xf]
        %v357 = vld [vmem:[%s345 + $0x40] sm:$0xf]
        %v358 = vld [vmem:[%s345 + $0x48] sm:$0xf]
        %v359 = vld [vmem:[%s345 + $0x4c] sm:$0xf]
        %v360 = vld [vmem:[%s345 + $0x54] sm:$0xf]
        %v361 = vld [vmem:[%s345 + $0x58] sm:$0xf]
        %v362 = vld [vmem:[%s345 + $0x60] sm:$0xf]
        %v363 = vld [vmem:[%s345 + $0x64] sm:$0xf]
        %v364 = vld [vmem:[%s345 + $0x6c] sm:$0xf]
        %v365 = vld [vmem:[%s345 + $0x70] sm:$0xf]
        %v366 = vld [vmem:[#allocation6] sm:$0xf]
        %v367 = vld [vmem:[#allocation6 + $0x4] sm:$0xf]
        %v368 = vld [vmem:[#allocation6 + $0x8] sm:$0xf]
        %v369 = vld [vmem:[#allocation6 + $0xc] sm:$0xf]
        %v370 = vld [vmem:[#allocation6 + $0x10] sm:$0xf]
        %v371 = vld [vmem:[#allocation6 + $0x14] sm:$0xf]
        %v372 = vld [vmem:[#allocation6 + $0x18] sm:$0xf]
        %v373 = vld [vmem:[#allocation6 + $0x1c] sm:$0xf]
        %v374 = vld [vmem:[#allocation6 + $0x20] sm:$0xf]
        %v375 = vld [vmem:[#allocation6 + $0x24] sm:$0xf]
        %v376 = vld [vmem:[#allocation6 + $0x28] sm:$0xf]
        %v377 = vld [vmem:[#allocation6 + $0x2c] sm:$0xf]
        %v378 = vld [vmem:[#allocation6 + $0x30] sm:$0xf]
        %v379 = vld [vmem:[#allocation6 + $0x34] sm:$0xf]
        %v380 = vld [vmem:[#allocation6 + $0x38] sm:$0xf]
        %v381 = vld [vmem:[#allocation6 + $0x3c] sm:$0xf]
        %v382 = vld [vmem:[%s345 + $0x8] sm:$0x1]
        %v383 = vld [vmem:[%s345 + $0x14] sm:$0x1]
        %v384 = vld [vmem:[%s345 + $0x20] sm:$0x1]
        %v385 = vld [vmem:[%s345 + $0x2c] sm:$0x1]
        %v386 = vld [vmem:[%s345 + $0x38] sm:$0x1]
        %v387 = vld [vmem:[%s345 + $0x44] sm:$0x1]
        %v388 = vld [vmem:[%s345 + $0x50] sm:$0x1]
        %v389 = vld [vmem:[%s345 + $0x5c] sm:$0x1]
        %v390 = vld [vmem:[%s345 + $0x68] sm:$0x1]
        %v391 = vld [vmem:[%s345 + $0x74] sm:$0x1]
        %vm392 = vsmask.f32 3328
        %vm393 = vsmask.f32 7440
        %vm394 = vmor %vm392, %vm393
        %v396 = vshrl.u32 %v346, 16
        %v398 = vrot.slane %v396, 4
        %v399 = vshll.u32 %v346, 16
        %v401 = vrot.slane %v399, 5
        %v402 = vor.u32 %v398, %v401
        %v403 = vrot.slane %v402, 4
        %v405 = vshll.u32 %v347, 16
        %v407 = vrot.slane %v405, 5
        %v408 = vsel %vm394, %v403, %v407
        %v409 = vshrl.u32 %v347, 16
        %v411 = vrot.slane %v409, 4
        %v412 = vor.u32 %v411, %v407
        %v413 = vrot.slane %v412, 4
        %v415 = vshll.u32 %v382, 16
        %v417 = vrot.slane %v415, 5
        %v418 = vsel %vm394, %v413, %v417
        %v420 = vshrl.u32 %v348, 16
        %v422 = vrot.slane %v420, 4
        %v423 = vshll.u32 %v348, 16
        %v425 = vrot.slane %v423, 5
        %v426 = vor.u32 %v422, %v425
        %v427 = vrot.slane %v426, 4
        %v429 = vshll.u32 %v349, 16
        %v431 = vrot.slane %v429, 5
        %v432 = vsel %vm394, %v427, %v431
        %v433 = vshrl.u32 %v349, 16
        %v435 = vrot.slane %v433, 4
        %v436 = vor.u32 %v435, %v431
        %v437 = vrot.slane %v436, 4
        %v439 = vshll.u32 %v383, 16
        %v441 = vrot.slane %v439, 5
        %v442 = vsel %vm394, %v437, %v441
        %v444 = vshrl.u32 %v350, 16
        %v446 = vrot.slane %v444, 4
        %v447 = vshll.u32 %v350, 16
        %v449 = vrot.slane %v447, 5
        %v450 = vor.u32 %v446, %v449
        %v451 = vrot.slane %v450, 4
        %v453 = vshll.u32 %v351, 16
        %v455 = vrot.slane %v453, 5
        %v456 = vsel %vm394, %v451, %v455
        %v457 = vshrl.u32 %v351, 16
        %v459 = vrot.slane %v457, 4
        %v460 = vor.u32 %v459, %v455
        %v461 = vrot.slane %v460, 4
        %v463 = vshll.u32 %v384, 16
        %v465 = vrot.slane %v463, 5
        %v466 = vsel %vm394, %v461, %v465
        %v468 = vshrl.u32 %v352, 16
        %v470 = vrot.slane %v468, 4
        %v471 = vshll.u32 %v352, 16
        %v473 = vrot.slane %v471, 5
        %v474 = vor.u32 %v470, %v473
        %v475 = vrot.slane %v474, 4
        %v477 = vshll.u32 %v353, 16
        %v479 = vrot.slane %v477, 5
        %v480 = vsel %vm394, %v475, %v479
        %v481 = vshrl.u32 %v353, 16
        %v483 = vrot.slane %v481, 4
        %v484 = vor.u32 %v483, %v479
        %v485 = vrot.slane %v484, 4
        %v487 = vshll.u32 %v385, 16
        %v489 = vrot.slane %v487, 5
        %v490 = vsel %vm394, %v485, %v489
        %v492 = vshrl.u32 %v354, 16
        %v494 = vrot.slane %v492, 4
        %v495 = vshll.u32 %v354, 16
        %v497 = vrot.slane %v495, 5
        %v498 = vor.u32 %v494, %v497
        %v499 = vrot.slane %v498, 4
        %v501 = vshll.u32 %v355, 16
        %v503 = vrot.slane %v501, 5
        %v504 = vsel %vm394, %v499, %v503
        %v505 = vshrl.u32 %v355, 16
        %v507 = vrot.slane %v505, 4
        %v508 = vor.u32 %v507, %v503
        %v509 = vrot.slane %v508, 4
        %v511 = vshll.u32 %v386, 16
        %v513 = vrot.slane %v511, 5
        %v514 = vsel %vm394, %v509, %v513
        %v516 = vshrl.u32 %v356, 16
        %v518 = vrot.slane %v516, 4
        %v519 = vshll.u32 %v356, 16
        %v521 = vrot.slane %v519, 5
        %v522 = vor.u32 %v518, %v521
        %v523 = vrot.slane %v522, 4
        %v525 = vshll.u32 %v357, 16
        %v527 = vrot.slane %v525, 5
        %v528 = vsel %vm394, %v523, %v527
        %v529 = vshrl.u32 %v357, 16
        %v531 = vrot.slane %v529, 4
        %v532 = vor.u32 %v531, %v527
        %v533 = vrot.slane %v532, 4
        %v535 = vshll.u32 %v387, 16
        %v537 = vrot.slane %v535, 5
        %v538 = vsel %vm394, %v533, %v537
        %v540 = vshrl.u32 %v358, 16
        %v542 = vrot.slane %v540, 4
        %v543 = vshll.u32 %v358, 16
        %v545 = vrot.slane %v543, 5
        %v546 = vor.u32 %v542, %v545
        %v547 = vrot.slane %v546, 4
        %v549 = vshll.u32 %v359, 16
        %v551 = vrot.slane %v549, 5
        %v552 = vsel %vm394, %v547, %v551
        %v553 = vshrl.u32 %v359, 16
        %v555 = vrot.slane %v553, 4
        %v556 = vor.u32 %v555, %v551
        %v557 = vrot.slane %v556, 4
        %v559 = vshll.u32 %v388, 16
        %v561 = vrot.slane %v559, 5
        %v562 = vsel %vm394, %v557, %v561
        %v564 = vshrl.u32 %v360, 16
        %v566 = vrot.slane %v564, 4
        %v567 = vshll.u32 %v360, 16
        %v569 = vrot.slane %v567, 5
        %v570 = vor.u32 %v566, %v569
        %v571 = vrot.slane %v570, 4
        %v573 = vshll.u32 %v361, 16
        %v575 = vrot.slane %v573, 5
        %v576 = vsel %vm394, %v571, %v575
        %v577 = vshrl.u32 %v361, 16
        %v579 = vrot.slane %v577, 4
        %v580 = vor.u32 %v579, %v575
        %v581 = vrot.slane %v580, 4
        %v583 = vshll.u32 %v389, 16
        %v585 = vrot.slane %v583, 5
        %v586 = vsel %vm394, %v581, %v585
        %v588 = vshrl.u32 %v362, 16
        %v590 = vrot.slane %v588, 4
        %v591 = vshll.u32 %v362, 16
        %v593 = vrot.slane %v591, 5
        %v594 = vor.u32 %v590, %v593
        %v595 = vrot.slane %v594, 4
        %v597 = vshll.u32 %v363, 16
        %v599 = vrot.slane %v597, 5
        %v600 = vsel %vm394, %v595, %v599
        %v601 = vshrl.u32 %v363, 16
        %v603 = vrot.slane %v601, 4
        %v604 = vor.u32 %v603, %v599
        %v605 = vrot.slane %v604, 4
        %v607 = vshll.u32 %v390, 16
        %v609 = vrot.slane %v607, 5
        %v610 = vsel %vm394, %v605, %v609
        %v612 = vshrl.u32 %v364, 16
        %v614 = vrot.slane %v612, 4
        %v615 = vshll.u32 %v364, 16
        %v617 = vrot.slane %v615, 5
        %v618 = vor.u32 %v614, %v617
        %v619 = vrot.slane %v618, 4
        %v621 = vshll.u32 %v365, 16
        %v623 = vrot.slane %v621, 5
        %v624 = vsel %vm394, %v619, %v623
        %v625 = vshrl.u32 %v365, 16
        %v627 = vrot.slane %v625, 4
        %v628 = vor.u32 %v627, %v623
        %v629 = vrot.slane %v628, 4
        %v631 = vshll.u32 %v391, 16
        %v633 = vrot.slane %v631, 5
        %v634 = vsel %vm394, %v629, %v633
        %s635 = scalar_lea.vmem [#allocation6], 64
        %v636 = vld [vmem:[%s635] sm:$0xf]
        %v637 = vld [vmem:[%s635 + $0x4] sm:$0xf]
        %v638 = vld [vmem:[%s635 + $0x8] sm:$0xf]
        %v639 = vld [vmem:[%s635 + $0xc] sm:$0xf]
        %v640 = vld [vmem:[%s635 + $0x10] sm:$0xf]
        %v641 = vld [vmem:[%s635 + $0x14] sm:$0xf]
        %v642 = vld [vmem:[%s635 + $0x18] sm:$0xf]
        %v643 = vld [vmem:[%s635 + $0x1c] sm:$0xf]
        %v644 = vld [vmem:[%s635 + $0x20] sm:$0xf]
        %v645 = vld [vmem:[%s635 + $0x24] sm:$0xf]
        %v646 = vld [vmem:[%s635 + $0x28] sm:$0xf]
        %v647 = vld [vmem:[%s635 + $0x2c] sm:$0xf]
        %v648 = vld [vmem:[%s635 + $0x30] sm:$0xf]
        %v649 = vld [vmem:[%s635 + $0x34] sm:$0xf]
        %v650 = vld [vmem:[%s635 + $0x38] sm:$0xf]
        %v651 = vld [vmem:[%s635 + $0x3c] sm:$0xf]
        %v652 = vunpack.c.l.b16 %v408
        %v653 = vunpack.c.l.b16 %v418
        %v654 = vunpack.c.l.b16 %v432
        %v655 = vunpack.c.l.b16 %v442
        %v656 = vunpack.c.l.b16 %v456
        %v657 = vunpack.c.l.b16 %v466
        %v658 = vunpack.c.l.b16 %v480
        %v659 = vunpack.c.l.b16 %v490
        %v660 = vunpack.c.l.b16 %v504
        %v661 = vunpack.c.l.b16 %v514
        %v662 = vunpack.c.l.b16 %v528
        %v663 = vunpack.c.l.b16 %v538
        %v664 = vunpack.c.l.b16 %v552
        %v665 = vunpack.c.l.b16 %v562
        %v666 = vunpack.c.l.b16 %v576
        %v667 = vunpack.c.l.b16 %v586
        %v668 = vunpack.c.l.b16 %v600
        %v669 = vunpack.c.l.b16 %v610
        %v670 = vunpack.c.l.b16 %v624
        %v671 = vunpack.c.l.b16 %v634
        %v672 = vpack.c.b16 %v653, %v652
        %v673 = vpack.c.b16 %v655, %v654
        %v674 = vpack.c.b16 %v657, %v656
        %v675 = vpack.c.b16 %v659, %v658
        %v676 = vpack.c.b16 %v661, %v660
        %v677 = vpack.c.b16 %v663, %v662
        %v678 = vpack.c.b16 %v665, %v664
        %v679 = vpack.c.b16 %v667, %v666
        %v680 = vpack.c.b16 %v669, %v668
        %v681 = vpack.c.b16 %v671, %v670
        %v708 = vunpack.c.l.b16 %v636
        %v709 = vunpack.c.l.b16 %v637
        %v710 = vunpack.c.l.b16 %v638
        %v711 = vunpack.c.l.b16 %v639
        %v712 = vunpack.c.l.b16 %v640
        %v713 = vunpack.c.l.b16 %v641
        %v714 = vunpack.c.l.b16 %v642
        %v715 = vunpack.c.l.b16 %v643
        %v716 = vunpack.c.l.b16 %v644
        %v717 = vunpack.c.l.b16 %v645
        %v718 = vunpack.c.l.b16 %v646
        %v719 = vunpack.c.l.b16 %v647
        %v720 = vunpack.c.l.b16 %v648
        %v721 = vunpack.c.l.b16 %v649
        %v722 = vunpack.c.l.b16 %v650
        %v723 = vunpack.c.l.b16 %v651
        %v724 = vpack.c.b16 %v709, %v708
        %v725 = vpack.c.b16 %v711, %v710
        %v726 = vpack.c.b16 %v713, %v712
        %v727 = vpack.c.b16 %v715, %v714
        %v728 = vpack.c.b16 %v717, %v716
        %v729 = vpack.c.b16 %v719, %v718
        %v730 = vpack.c.b16 %v721, %v720
        %v731 = vpack.c.b16 %v723, %v722
        %740 = vmatprep.subr.bf16.mxu0 0
        %741 = vmatpush1.bf16.msra.mxu0 %v724
        %742 = vmatprep.subr.bf16.mxu0 0
        %743 = vmatpush1.bf16.msra.mxu0 %v725
        %744 = vmatprep.subr.bf16.mxu0 0
        %745 = vmatpush1.bf16.msra.mxu0 %v726
        %746 = vmatprep.subr.bf16.mxu0 0
        %747 = vmatpush1.bf16.msra.mxu0 %v727
        %748 = vmatprep.subr.bf16.mxu0 0
        %749 = vmatpush1.bf16.msra.mxu0 %v728
        %750 = vmatprep.subr.bf16.mxu0 0
        %751 = vmatpush1.bf16.msra.mxu0 %v729
        %752 = vmatprep.subr.bf16.mxu0 0
        %753 = vmatpush1.bf16.msra.mxu0 %v730
        %754 = vmatprep.subr.bf16.mxu0 0
        %755 = vmatpush1.bf16.msra.mxu0 %v731
        %756 = vmatprep.subr.bf16.mxu0 0
        %757 = vmatpush1.bf16.msra.mxu0 0
        %758 = vmatprep.subr.bf16.mxu0 0
        %759 = vmatpush1.bf16.msra.mxu0 0
        %760 = vmatprep.subr.bf16.mxu0 0
        %761 = vmatpush1.bf16.msra.mxu0 0
        %762 = vmatprep.subr.bf16.mxu0 0
        %763 = vmatpush1.bf16.msra.mxu0 0
        %764 = vmatprep.subr.bf16.mxu0 0
        %765 = vmatpush1.bf16.msra.mxu0 0
        %766 = vmatprep.subr.bf16.mxu0 0
        %767 = vmatpush1.bf16.msra.mxu0 0
        %768 = vmatprep.subr.bf16.mxu0 0
        %769 = vmatpush1.bf16.msra.mxu0 0
        %770 = vmatprep.subr.bf16.mxu0 0
        %771 = vmatpush1.bf16.msra.mxu0 0
        %772 = vmatprep.mubr.bf16.mxu0 0
        %773 = vmatmul.mubr.bf16.gmra.mrb[0].mxu0 %v672
        %v774 = vpop.f32.mrb[0].mxu0
        %v775 = vadd.f32 0.0, %v774
        %v776 = vpop.f32.mrb[0].mxu0
        %v777 = vpop.f32.mrb[0].mxu0
        %v778 = vadd.f32 0.0, %v777
        %v779 = vpop.f32.mrb[0].mxu0
        %780 = vmatprep.mubr.bf16.mxu0 0
        %781 = vmatmul.mubr.bf16.gmra.mrb[0].mxu0 %v673
        %v782 = vpop.f32.mrb[0].mxu0
        %v783 = vadd.f32 0.0, %v782
        %v784 = vpop.f32.mrb[0].mxu0
        %v785 = vpop.f32.mrb[0].mxu0
        %v786 = vadd.f32 0.0, %v785
        %v787 = vpop.f32.mrb[0].mxu0
        %788 = vmatprep.mubr.bf16.mxu0 0
        %789 = vmatmul.mubr.bf16.gmra.mrb[0].mxu0 %v674
        %v790 = vpop.f32.mrb[0].mxu0
        %v791 = vadd.f32 0.0, %v790
        %v792 = vpop.f32.mrb[0].mxu0
        %v793 = vpop.f32.mrb[0].mxu0
        %v794 = vadd.f32 0.0, %v793
        %v795 = vpop.f32.mrb[0].mxu0
        %796 = vmatprep.mubr.bf16.mxu0 0
        %797 = vmatmul.mubr.bf16.gmra.mrb[0].mxu0 %v675
        %v798 = vpop.f32.mrb[0].mxu0
        %v799 = vadd.f32 0.0, %v798
        %v800 = vpop.f32.mrb[0].mxu0
        %v801 = vpop.f32.mrb[0].mxu0
        %v802 = vadd.f32 0.0, %v801
        %v803 = vpop.f32.mrb[0].mxu0
        %804 = vmatprep.mubr.bf16.mxu0 0
        %805 = vmatmul.mubr.bf16.gmra.mrb[0].mxu0 %v676
        %v806 = vpop.f32.mrb[0].mxu0
        %v807 = vadd.f32 0.0, %v806
        %v808 = vpop.f32.mrb[0].mxu0
        %v809 = vpop.f32.mrb[0].mxu0
        %v810 = vadd.f32 0.0, %v809
        %v811 = vpop.f32.mrb[0].mxu0
        %812 = vmatprep.mubr.bf16.mxu0 0
        %813 = vmatmul.mubr.bf16.gmra.mrb[0].mxu0 %v677
        %v814 = vpop.f32.mrb[0].mxu0
        %v815 = vadd.f32 0.0, %v814
        %v816 = vpop.f32.mrb[0].mxu0
        %v817 = vpop.f32.mrb[0].mxu0
        %v818 = vadd.f32 0.0, %v817
        %v819 = vpop.f32.mrb[0].mxu0
        %820 = vmatprep.mubr.bf16.mxu0 0
        %821 = vmatmul.mubr.bf16.gmra.mrb[0].mxu0 %v678
        %v822 = vpop.f32.mrb[0].mxu0
        %v823 = vadd.f32 0.0, %v822
        %v824 = vpop.f32.mrb[0].mxu0
        %v825 = vpop.f32.mrb[0].mxu0
        %v826 = vadd.f32 0.0, %v825
        %v827 = vpop.f32.mrb[0].mxu0
        %828 = vmatprep.mubr.bf16.mxu0 0
        %829 = vmatmul.mubr.bf16.gmra.mrb[0].mxu0 %v679
        %v830 = vpop.f32.mrb[0].mxu0
        %v831 = vadd.f32 0.0, %v830
        %v832 = vpop.f32.mrb[0].mxu0
        %v833 = vpop.f32.mrb[0].mxu0
        %v834 = vadd.f32 0.0, %v833
        %v835 = vpop.f32.mrb[0].mxu0
        %836 = vmatprep.mubr.bf16.mxu0 0
        %837 = vmatmul.mubr.bf16.gmra.mrb[0].mxu0 %v680
        %v838 = vpop.f32.mrb[0].mxu0
        %v839 = vadd.f32 0.0, %v838
        %v840 = vpop.f32.mrb[0].mxu0
        %v841 = vpop.f32.mrb[0].mxu0
        %v842 = vadd.f32 0.0, %v841
        %v843 = vpop.f32.mrb[0].mxu0
        %844 = vmatprep.mubr.bf16.mxu0 0
        %845 = vmatmul.mubr.bf16.gmra.mrb[0].mxu0 %v681
        %v846 = vpop.f32.mrb[0].mxu0
        %v847 = vadd.f32 0.0, %v846
        %v848 = vpop.f32.mrb[0].mxu0
        %v849 = vpop.f32.mrb[0].mxu0
        %v850 = vadd.f32 0.0, %v849
        %v851 = vpop.f32.mrb[0].mxu0
        %852 = vdwg.mxu0
        %v873 = vunpack.c.l.b16 %v346
        %v874 = vunpack.c.l.b16 %v347
        %v875 = vunpack.c.l.b16 %v348
        %v876 = vunpack.c.l.b16 %v349
        %v877 = vunpack.c.l.b16 %v350
        %v878 = vunpack.c.l.b16 %v351
        %v879 = vunpack.c.l.b16 %v352
        %v880 = vunpack.c.l.b16 %v353
        %v881 = vunpack.c.l.b16 %v354
        %v882 = vunpack.c.l.b16 %v355
        %v883 = vunpack.c.l.b16 %v356
        %v884 = vunpack.c.l.b16 %v357
        %v885 = vunpack.c.l.b16 %v358
        %v886 = vunpack.c.l.b16 %v359
        %v887 = vunpack.c.l.b16 %v360
        %v888 = vunpack.c.l.b16 %v361
        %v889 = vunpack.c.l.b16 %v362
        %v890 = vunpack.c.l.b16 %v363
        %v891 = vunpack.c.l.b16 %v364
        %v892 = vunpack.c.l.b16 %v365
        %v893 = vpack.c.b16 %v874, %v873
        %v894 = vpack.c.b16 %v876, %v875
        %v895 = vpack.c.b16 %v878, %v877
        %v896 = vpack.c.b16 %v880, %v879
        %v897 = vpack.c.b16 %v882, %v881
        %v898 = vpack.c.b16 %v884, %v883
        %v899 = vpack.c.b16 %v886, %v885
        %v900 = vpack.c.b16 %v888, %v887
        %v901 = vpack.c.b16 %v890, %v889
        %v902 = vpack.c.b16 %v892, %v891
        %v929 = vunpack.c.l.b16 %v366
        %v930 = vunpack.c.l.b16 %v367
        %v931 = vunpack.c.l.b16 %v368
        %v932 = vunpack.c.l.b16 %v369
        %v933 = vunpack.c.l.b16 %v370
        %v934 = vunpack.c.l.b16 %v371
        %v935 = vunpack.c.l.b16 %v372
        %v936 = vunpack.c.l.b16 %v373
        %v937 = vunpack.c.l.b16 %v374
        %v938 = vunpack.c.l.b16 %v375
        %v939 = vunpack.c.l.b16 %v376
        %v940 = vunpack.c.l.b16 %v377
        %v941 = vunpack.c.l.b16 %v378
        %v942 = vunpack.c.l.b16 %v379
        %v943 = vunpack.c.l.b16 %v380
        %v944 = vunpack.c.l.b16 %v381
        %v945 = vpack.c.b16 %v930, %v929
        %v946 = vpack.c.b16 %v932, %v931
        %v947 = vpack.c.b16 %v934, %v933
        %v948 = vpack.c.b16 %v936, %v935
        %v949 = vpack.c.b16 %v938, %v937
        %v950 = vpack.c.b16 %v940, %v939
        %v951 = vpack.c.b16 %v942, %v941
        %v952 = vpack.c.b16 %v944, %v943
        %961 = vmatprep.subr.bf16.mxu0 0
        %962 = vmatpush1.bf16.msra.mxu0 %v945
        %963 = vmatprep.subr.bf16.mxu0 0
        %964 = vmatpush1.bf16.msra.mxu0 %v946
        %965 = vmatprep.subr.bf16.mxu0 0
        %966 = vmatpush1.bf16.msra.mxu0 %v947
        %967 = vmatprep.subr.bf16.mxu0 0
        %968 = vmatpush1.bf16.msra.mxu0 %v948
        %969 = vmatprep.subr.bf16.mxu0 0
        %970 = vmatpush1.bf16.msra.mxu0 %v949
        %971 = vmatprep.subr.bf16.mxu0 0
        %972 = vmatpush1.bf16.msra.mxu0 %v950
        %973 = vmatprep.subr.bf16.mxu0 0
        %974 = vmatpush1.bf16.msra.mxu0 %v951
        %975 = vmatprep.subr.bf16.mxu0 0
        %976 = vmatpush1.bf16.msra.mxu0 %v952
        %977 = vmatprep.subr.bf16.mxu0 0
        %978 = vmatpush1.bf16.msra.mxu0 0
        %979 = vmatprep.subr.bf16.mxu0 0
        %980 = vmatpush1.bf16.msra.mxu0 0
        %981 = vmatprep.subr.bf16.mxu0 0
        %982 = vmatpush1.bf16.msra.mxu0 0
        %983 = vmatprep.subr.bf16.mxu0 0
        %984 = vmatpush1.bf16.msra.mxu0 0
        %985 = vmatprep.subr.bf16.mxu0 0
        %986 = vmatpush1.bf16.msra.mxu0 0
        %987 = vmatprep.subr.bf16.mxu0 0
        %988 = vmatpush1.bf16.msra.mxu0 0
        %989 = vmatprep.subr.bf16.mxu0 0
        %990 = vmatpush1.bf16.msra.mxu0 0
        %991 = vmatprep.subr.bf16.mxu0 0
        %992 = vmatpush1.bf16.msra.mxu0 0
        %993 = vmatprep.mubr.bf16.mxu0 0
        %994 = vmatmul.mubr.bf16.gmra.mrb[0].mxu0 %v893
        %v995 = vpop.f32.mrb[0].mxu0
        %v996 = vadd.f32 %v775, %v995
        %v997 = vpop.f32.mrb[0].mxu0
        %v998 = vpop.f32.mrb[0].mxu0
        %v999 = vadd.f32 %v778, %v998
        %v1000 = vpop.f32.mrb[0].mxu0
        %1001 = vmatprep.mubr.bf16.mxu0 0
        %1002 = vmatmul.mubr.bf16.gmra.mrb[0].mxu0 %v894
        %v1003 = vpop.f32.mrb[0].mxu0
        %v1004 = vadd.f32 %v783, %v1003
        %v1005 = vpop.f32.mrb[0].mxu0
        %v1006 = vpop.f32.mrb[0].mxu0
        %v1007 = vadd.f32 %v786, %v1006
        %v1008 = vpop.f32.mrb[0].mxu0
        %1009 = vmatprep.mubr.bf16.mxu0 0
        %1010 = vmatmul.mubr.bf16.gmra.mrb[0].mxu0 %v895
        %v1011 = vpop.f32.mrb[0].mxu0
        %v1012 = vadd.f32 %v791, %v1011
        %v1013 = vpop.f32.mrb[0].mxu0
        %v1014 = vpop.f32.mrb[0].mxu0
        %v1015 = vadd.f32 %v794, %v1014
        %v1016 = vpop.f32.mrb[0].mxu0
        %1017 = vmatprep.mubr.bf16.mxu0 0
        %1018 = vmatmul.mubr.bf16.gmra.mrb[0].mxu0 %v896
        %v1019 = vpop.f32.mrb[0].mxu0
        %v1020 = vadd.f32 %v799, %v1019
        %v1021 = vpop.f32.mrb[0].mxu0
        %v1022 = vpop.f32.mrb[0].mxu0
        %v1023 = vadd.f32 %v802, %v1022
        %v1024 = vpop.f32.mrb[0].mxu0
        %1025 = vmatprep.mubr.bf16.mxu0 0
        %1026 = vmatmul.mubr.bf16.gmra.mrb[0].mxu0 %v897
        %v1027 = vpop.f32.mrb[0].mxu0
        %v1028 = vadd.f32 %v807, %v1027
        %v1029 = vpop.f32.mrb[0].mxu0
        %v1030 = vpop.f32.mrb[0].mxu0
        %v1031 = vadd.f32 %v810, %v1030
        %v1032 = vpop.f32.mrb[0].mxu0
        %1033 = vmatprep.mubr.bf16.mxu0 0
        %1034 = vmatmul.mubr.bf16.gmra.mrb[0].mxu0 %v898
        %v1035 = vpop.f32.mrb[0].mxu0
        %v1036 = vadd.f32 %v815, %v1035
        %v1037 = vpop.f32.mrb[0].mxu0
        %v1038 = vpop.f32.mrb[0].mxu0
        %v1039 = vadd.f32 %v818, %v1038
        %v1040 = vpop.f32.mrb[0].mxu0
        %1041 = vmatprep.mubr.bf16.mxu0 0
        %1042 = vmatmul.mubr.bf16.gmra.mrb[0].mxu0 %v899
        %v1043 = vpop.f32.mrb[0].mxu0
        %v1044 = vadd.f32 %v823, %v1043
        %v1045 = vpop.f32.mrb[0].mxu0
        %v1046 = vpop.f32.mrb[0].mxu0
        %v1047 = vadd.f32 %v826, %v1046
        %v1048 = vpop.f32.mrb[0].mxu0
        %1049 = vmatprep.mubr.bf16.mxu0 0
        %1050 = vmatmul.mubr.bf16.gmra.mrb[0].mxu0 %v900
        %v1051 = vpop.f32.mrb[0].mxu0
        %v1052 = vadd.f32 %v831, %v1051
        %v1053 = vpop.f32.mrb[0].mxu0
        %v1054 = vpop.f32.mrb[0].mxu0
        %v1055 = vadd.f32 %v834, %v1054
        %v1056 = vpop.f32.mrb[0].mxu0
        %1057 = vmatprep.mubr.bf16.mxu0 0
        %1058 = vmatmul.mubr.bf16.gmra.mrb[0].mxu0 %v901
        %v1059 = vpop.f32.mrb[0].mxu0
        %v1060 = vadd.f32 %v839, %v1059
        %v1061 = vpop.f32.mrb[0].mxu0
        %v1062 = vpop.f32.mrb[0].mxu0
        %v1063 = vadd.f32 %v842, %v1062
        %v1064 = vpop.f32.mrb[0].mxu0
        %1065 = vmatprep.mubr.bf16.mxu0 0
        %1066 = vmatmul.mubr.bf16.gmra.mrb[0].mxu0 %v902
        %v1067 = vpop.f32.mrb[0].mxu0
        %v1068 = vadd.f32 %v847, %v1067
        %v1069 = vpop.f32.mrb[0].mxu0
        %v1070 = vpop.f32.mrb[0].mxu0
        %v1071 = vadd.f32 %v850, %v1070
        %v1072 = vpop.f32.mrb[0].mxu0
        %1073 = vdwg.mxu0
        %v1074 = vld [vmem:[%s345] sm:$0xe]
        %v1075 = vld [vmem:[%s345 + $0xc] sm:$0xe]
        %v1076 = vld [vmem:[%s345 + $0x18] sm:$0xe]
        %v1077 = vld [vmem:[%s345 + $0x24] sm:$0xe]
        %v1078 = vld [vmem:[%s345 + $0x30] sm:$0xe]
        %v1079 = vld [vmem:[%s345 + $0x3c] sm:$0xe]
        %v1080 = vld [vmem:[%s345 + $0x48] sm:$0xe]
        %v1081 = vld [vmem:[%s345 + $0x54] sm:$0xe]
        %v1082 = vld [vmem:[%s345 + $0x60] sm:$0xe]
        %v1083 = vld [vmem:[%s345 + $0x6c] sm:$0xe]
        %vm1104 = vcmask 1042432
        %vm1105 = vcmask 1046532
        %vm1106 = vmor %vm1104, %vm1105
        %v1107 = vrot.slane %v1074, 5
        %v1108 = vrot.slane %v1107, 4
        %v1109 = vrot.slane %v347, 5
        %v1110 = vsel %vm1106, %v1108, %v1109
        %v1111 = vrot.slane %v1109, 4
        %v1112 = vrot.slane %v382, 5
        %v1113 = vsel %vm1106, %v1111, %v1112
        %v1114 = vrot.slane %v1075, 5
        %v1115 = vrot.slane %v1114, 4
        %v1116 = vrot.slane %v349, 5
        %v1117 = vsel %vm1106, %v1115, %v1116
        %v1118 = vrot.slane %v1116, 4
        %v1119 = vrot.slane %v383, 5
        %v1120 = vsel %vm1106, %v1118, %v1119
        %v1121 = vrot.slane %v1076, 5
        %v1122 = vrot.slane %v1121, 4
        %v1123 = vrot.slane %v351, 5
        %v1124 = vsel %vm1106, %v1122, %v1123
        %v1125 = vrot.slane %v1123, 4
        %v1126 = vrot.slane %v384, 5
        %v1127 = vsel %vm1106, %v1125, %v1126
        %v1128 = vrot.slane %v1077, 5
        %v1129 = vrot.slane %v1128, 4
        %v1130 = vrot.slane %v353, 5
        %v1131 = vsel %vm1106, %v1129, %v1130
        %v1132 = vrot.slane %v1130, 4
        %v1133 = vrot.slane %v385, 5
        %v1134 = vsel %vm1106, %v1132, %v1133
        %v1135 = vrot.slane %v1078, 5
        %v1136 = vrot.slane %v1135, 4
        %v1137 = vrot.slane %v355, 5
        %v1138 = vsel %vm1106, %v1136, %v1137
        %v1139 = vrot.slane %v1137, 4
        %v1140 = vrot.slane %v386, 5
        %v1141 = vsel %vm1106, %v1139, %v1140
        %v1142 = vrot.slane %v1079, 5
        %v1143 = vrot.slane %v1142, 4
        %v1144 = vrot.slane %v357, 5
        %v1145 = vsel %vm1106, %v1143, %v1144
        %v1146 = vrot.slane %v1144, 4
        %v1147 = vrot.slane %v387, 5
        %v1148 = vsel %vm1106, %v1146, %v1147
        %v1149 = vrot.slane %v1080, 5
        %v1150 = vrot.slane %v1149, 4
        %v1151 = vrot.slane %v359, 5
        %v1152 = vsel %vm1106, %v1150, %v1151
        %v1153 = vrot.slane %v1151, 4
        %v1154 = vrot.slane %v388, 5
        %v1155 = vsel %vm1106, %v1153, %v1154
        %v1156 = vrot.slane %v1081, 5
        %v1157 = vrot.slane %v1156, 4
        %v1158 = vrot.slane %v361, 5
        %v1159 = vsel %vm1106, %v1157, %v1158
        %v1160 = vrot.slane %v1158, 4
        %v1161 = vrot.slane %v389, 5
        %v1162 = vsel %vm1106, %v1160, %v1161
        %v1163 = vrot.slane %v1082, 5
        %v1164 = vrot.slane %v1163, 4
        %v1165 = vrot.slane %v363, 5
        %v1166 = vsel %vm1106, %v1164, %v1165
        %v1167 = vrot.slane %v1165, 4
        %v1168 = vrot.slane %v390, 5
        %v1169 = vsel %vm1106, %v1167, %v1168
        %v1170 = vrot.slane %v1083, 5
        %v1171 = vrot.slane %v1170, 4
        %v1172 = vrot.slane %v365, 5
        %v1173 = vsel %vm1106, %v1171, %v1172
        %v1174 = vrot.slane %v1172, 4
        %v1175 = vrot.slane %v391, 5
        %v1176 = vsel %vm1106, %v1174, %v1175
        %s1177 = scalar_lea.vmem [#allocation6], 128
        %v1178 = vld [vmem:[%s1177] sm:$0xf]
        %v1179 = vld [vmem:[%s1177 + $0x4] sm:$0xf]
        %v1180 = vld [vmem:[%s1177 + $0x8] sm:$0xf]
        %v1181 = vld [vmem:[%s1177 + $0xc] sm:$0xf]
        %v1182 = vld [vmem:[%s1177 + $0x10] sm:$0xf]
        %v1183 = vld [vmem:[%s1177 + $0x14] sm:$0xf]
        %v1184 = vld [vmem:[%s1177 + $0x18] sm:$0xf]
        %v1185 = vld [vmem:[%s1177 + $0x1c] sm:$0xf]
        %v1186 = vld [vmem:[%s1177 + $0x20] sm:$0xf]
        %v1187 = vld [vmem:[%s1177 + $0x24] sm:$0xf]
        %v1188 = vld [vmem:[%s1177 + $0x28] sm:$0xf]
        %v1189 = vld [vmem:[%s1177 + $0x2c] sm:$0xf]
        %v1190 = vld [vmem:[%s1177 + $0x30] sm:$0xf]
        %v1191 = vld [vmem:[%s1177 + $0x34] sm:$0xf]
        %v1192 = vld [vmem:[%s1177 + $0x38] sm:$0xf]
        %v1193 = vld [vmem:[%s1177 + $0x3c] sm:$0xf]
        %v1194 = vunpack.c.l.b16 %v1110
        %v1195 = vunpack.c.l.b16 %v1113
        %v1196 = vunpack.c.l.b16 %v1117
        %v1197 = vunpack.c.l.b16 %v1120
        %v1198 = vunpack.c.l.b16 %v1124
        %v1199 = vunpack.c.l.b16 %v1127
        %v1200 = vunpack.c.l.b16 %v1131
        %v1201 = vunpack.c.l.b16 %v1134
        %v1202 = vunpack.c.l.b16 %v1138
        %v1203 = vunpack.c.l.b16 %v1141
        %v1204 = vunpack.c.l.b16 %v1145
        %v1205 = vunpack.c.l.b16 %v1148
        %v1206 = vunpack.c.l.b16 %v1152
        %v1207 = vunpack.c.l.b16 %v1155
        %v1208 = vunpack.c.l.b16 %v1159
        %v1209 = vunpack.c.l.b16 %v1162
        %v1210 = vunpack.c.l.b16 %v1166
        %v1211 = vunpack.c.l.b16 %v1169
        %v1212 = vunpack.c.l.b16 %v1173
        %v1213 = vunpack.c.l.b16 %v1176
        %v1214 = vpack.c.b16 %v1195, %v1194
        %v1215 = vpack.c.b16 %v1197, %v1196
        %v1216 = vpack.c.b16 %v1199, %v1198
        %v1217 = vpack.c.b16 %v1201, %v1200
        %v1218 = vpack.c.b16 %v1203, %v1202
        %v1219 = vpack.c.b16 %v1205, %v1204
        %v1220 = vpack.c.b16 %v1207, %v1206
        %v1221 = vpack.c.b16 %v1209, %v1208
        %v1222 = vpack.c.b16 %v1211, %v1210
        %v1223 = vpack.c.b16 %v1213, %v1212
        %v1250 = vunpack.c.l.b16 %v1178
        %v1251 = vunpack.c.l.b16 %v1179
        %v1252 = vunpack.c.l.b16 %v1180
        %v1253 = vunpack.c.l.b16 %v1181
        %v1254 = vunpack.c.l.b16 %v1182
        %v1255 = vunpack.c.l.b16 %v1183
        %v1256 = vunpack.c.l.b16 %v1184
        %v1257 = vunpack.c.l.b16 %v1185
        %v1258 = vunpack.c.l.b16 %v1186
        %v1259 = vunpack.c.l.b16 %v1187
        %v1260 = vunpack.c.l.b16 %v1188
        %v1261 = vunpack.c.l.b16 %v1189
        %v1262 = vunpack.c.l.b16 %v1190
        %v1263 = vunpack.c.l.b16 %v1191
        %v1264 = vunpack.c.l.b16 %v1192
        %v1265 = vunpack.c.l.b16 %v1193
        %v1266 = vpack.c.b16 %v1251, %v1250
        %v1267 = vpack.c.b16 %v1253, %v1252
        %v1268 = vpack.c.b16 %v1255, %v1254
        %v1269 = vpack.c.b16 %v1257, %v1256
        %v1270 = vpack.c.b16 %v1259, %v1258
        %v1271 = vpack.c.b16 %v1261, %v1260
        %v1272 = vpack.c.b16 %v1263, %v1262
        %v1273 = vpack.c.b16 %v1265, %v1264
        %1282 = vmatprep.subr.bf16.mxu0 0
        %1283 = vmatpush1.bf16.msra.mxu0 %v1266
        %1284 = vmatprep.subr.bf16.mxu0 0
        %1285 = vmatpush1.bf16.msra.mxu0 %v1267
        %1286 = vmatprep.subr.bf16.mxu0 0
        %1287 = vmatpush1.bf16.msra.mxu0 %v1268
        %1288 = vmatprep.subr.bf16.mxu0 0
        %1289 = vmatpush1.bf16.msra.mxu0 %v1269
        %1290 = vmatprep.subr.bf16.mxu0 0
        %1291 = vmatpush1.bf16.msra.mxu0 %v1270
        %1292 = vmatprep.subr.bf16.mxu0 0
        %1293 = vmatpush1.bf16.msra.mxu0 %v1271
        %1294 = vmatprep.subr.bf16.mxu0 0
        %1295 = vmatpush1.bf16.msra.mxu0 %v1272
        %1296 = vmatprep.subr.bf16.mxu0 0
        %1297 = vmatpush1.bf16.msra.mxu0 %v1273
        %1298 = vmatprep.subr.bf16.mxu0 0
        %1299 = vmatpush1.bf16.msra.mxu0 0
        %1300 = vmatprep.subr.bf16.mxu0 0
        %1301 = vmatpush1.bf16.msra.mxu0 0
        %1302 = vmatprep.subr.bf16.mxu0 0
        %1303 = vmatpush1.bf16.msra.mxu0 0
        %1304 = vmatprep.subr.bf16.mxu0 0
        %1305 = vmatpush1.bf16.msra.mxu0 0
        %1306 = vmatprep.subr.bf16.mxu0 0
        %1307 = vmatpush1.bf16.msra.mxu0 0
        %1308 = vmatprep.subr.bf16.mxu0 0
        %1309 = vmatpush1.bf16.msra.mxu0 0
        %1310 = vmatprep.subr.bf16.mxu0 0
        %1311 = vmatpush1.bf16.msra.mxu0 0
        %1312 = vmatprep.subr.bf16.mxu0 0
        %1313 = vmatpush1.bf16.msra.mxu0 0
        %1314 = vmatprep.mubr.bf16.mxu0 0
        %1315 = vmatmul.mubr.bf16.gmra.mrb[0].mxu0 %v1214
        %v1316 = vpop.f32.mrb[0].mxu0
        %v1317 = vadd.f32 0.0, %v1316
        %v1318 = vpop.f32.mrb[0].mxu0
        %v1319 = vpop.f32.mrb[0].mxu0
        %v1320 = vadd.f32 0.0, %v1319
        %v1321 = vpop.f32.mrb[0].mxu0
        %1322 = vmatprep.mubr.bf16.mxu0 0
        %1323 = vmatmul.mubr.bf16.gmra.mrb[0].mxu0 %v1215
        %v1324 = vpop.f32.mrb[0].mxu0
        %v1325 = vadd.f32 0.0, %v1324
        %v1326 = vpop.f32.mrb[0].mxu0
        %v1327 = vpop.f32.mrb[0].mxu0
        %v1328 = vadd.f32 0.0, %v1327
        %v1329 = vpop.f32.mrb[0].mxu0
        %1330 = vmatprep.mubr.bf16.mxu0 0
        %1331 = vmatmul.mubr.bf16.gmra.mrb[0].mxu0 %v1216
        %v1332 = vpop.f32.mrb[0].mxu0
        %v1333 = vadd.f32 0.0, %v1332
        %v1334 = vpop.f32.mrb[0].mxu0
        %v1335 = vpop.f32.mrb[0].mxu0
        %v1336 = vadd.f32 0.0, %v1335
        %v1337 = vpop.f32.mrb[0].mxu0
        %1338 = vmatprep.mubr.bf16.mxu0 0
        %1339 = vmatmul.mubr.bf16.gmra.mrb[0].mxu0 %v1217
        %v1340 = vpop.f32.mrb[0].mxu0
        %v1341 = vadd.f32 0.0, %v1340
        %v1342 = vpop.f32.mrb[0].mxu0
        %v1343 = vpop.f32.mrb[0].mxu0
        %v1344 = vadd.f32 0.0, %v1343
        %v1345 = vpop.f32.mrb[0].mxu0
        %1346 = vmatprep.mubr.bf16.mxu0 0
        %1347 = vmatmul.mubr.bf16.gmra.mrb[0].mxu0 %v1218
        %v1348 = vpop.f32.mrb[0].mxu0
        %v1349 = vadd.f32 0.0, %v1348
        %v1350 = vpop.f32.mrb[0].mxu0
        %v1351 = vpop.f32.mrb[0].mxu0
        %v1352 = vadd.f32 0.0, %v1351
        %v1353 = vpop.f32.mrb[0].mxu0
        %1354 = vmatprep.mubr.bf16.mxu0 0
        %1355 = vmatmul.mubr.bf16.gmra.mrb[0].mxu0 %v1219
        %v1356 = vpop.f32.mrb[0].mxu0
        %v1357 = vadd.f32 0.0, %v1356
        %v1358 = vpop.f32.mrb[0].mxu0
        %v1359 = vpop.f32.mrb[0].mxu0
        %v1360 = vadd.f32 0.0, %v1359
        %v1361 = vpop.f32.mrb[0].mxu0
        %1362 = vmatprep.mubr.bf16.mxu0 0
        %1363 = vmatmul.mubr.bf16.gmra.mrb[0].mxu0 %v1220
        %v1364 = vpop.f32.mrb[0].mxu0
        %v1365 = vadd.f32 0.0, %v1364
        %v1366 = vpop.f32.mrb[0].mxu0
        %v1367 = vpop.f32.mrb[0].mxu0
        %v1368 = vadd.f32 0.0, %v1367
        %v1369 = vpop.f32.mrb[0].mxu0
        %1370 = vmatprep.mubr.bf16.mxu0 0
        %1371 = vmatmul.mubr.bf16.gmra.mrb[0].mxu0 %v1221
        %v1372 = vpop.f32.mrb[0].mxu0
        %v1373 = vadd.f32 0.0, %v1372
        %v1374 = vpop.f32.mrb[0].mxu0
        %v1375 = vpop.f32.mrb[0].mxu0
        %v1376 = vadd.f32 0.0, %v1375
        %v1377 = vpop.f32.mrb[0].mxu0
        %1378 = vmatprep.mubr.bf16.mxu0 0
        %1379 = vmatmul.mubr.bf16.gmra.mrb[0].mxu0 %v1222
        %v1380 = vpop.f32.mrb[0].mxu0
        %v1381 = vadd.f32 0.0, %v1380
        %v1382 = vpop.f32.mrb[0].mxu0
        %v1383 = vpop.f32.mrb[0].mxu0
        %v1384 = vadd.f32 0.0, %v1383
        %v1385 = vpop.f32.mrb[0].mxu0
        %1386 = vmatprep.mubr.bf16.mxu0 0
        %1387 = vmatmul.mubr.bf16.gmra.mrb[0].mxu0 %v1223
        %v1388 = vpop.f32.mrb[0].mxu0
        %v1389 = vadd.f32 0.0, %v1388
        %v1390 = vpop.f32.mrb[0].mxu0
        %v1391 = vpop.f32.mrb[0].mxu0
        %v1392 = vadd.f32 0.0, %v1391
        %v1393 = vpop.f32.mrb[0].mxu0
        %1394 = vdwg.mxu0
        %v1395 = vadd.f32 %v996, %v1317
        %v1396 = vadd.f32 %v999, %v1320
        %v1397 = vadd.f32 %v1004, %v1325
        %v1398 = vadd.f32 %v1007, %v1328
        %v1399 = vadd.f32 %v1012, %v1333
        %v1400 = vadd.f32 %v1015, %v1336
        %v1401 = vadd.f32 %v1020, %v1341
        %v1402 = vadd.f32 %v1023, %v1344
        %v1403 = vadd.f32 %v1028, %v1349
        %v1404 = vadd.f32 %v1031, %v1352
        %v1405 = vadd.f32 %v1036, %v1357
        %v1406 = vadd.f32 %v1039, %v1360
        %v1407 = vadd.f32 %v1044, %v1365
        %v1408 = vadd.f32 %v1047, %v1368
        %v1409 = vadd.f32 %v1052, %v1373
        %v1410 = vadd.f32 %v1055, %v1376
        %v1411 = vadd.f32 %v1060, %v1381
        %v1412 = vadd.f32 %v1063, %v1384
        %v1413 = vadd.f32 %v1068, %v1389
        %v1414 = vadd.f32 %v1071, %v1392
        %s1415 = sadd.s32 %s342, 1
        %s1416 = smul.u32 %s1415, 3
        %s1417 = smul.addr %s1416, 4
        %s1418 = scalar_lea.vmem %s301, %s1417 [#allocation3]
        %v1419 = vld [vmem:[%s1418] sm:$0xf]
        %v1420 = vld [vmem:[%s1418 + $0x4] sm:$0xf]
        %v1421 = vld [vmem:[%s1418 + $0xc] sm:$0xf]
        %v1422 = vld [vmem:[%s1418 + $0x10] sm:$0xf]
        %v1423 = vld [vmem:[%s1418 + $0x18] sm:$0xf]
        %v1424 = vld [vmem:[%s1418 + $0x1c] sm:$0xf]
        %v1425 = vld [vmem:[%s1418 + $0x24] sm:$0xf]
        %v1426 = vld [vmem:[%s1418 + $0x28] sm:$0xf]
        %v1427 = vld [vmem:[%s1418 + $0x30] sm:$0xf]
        %v1428 = vld [vmem:[%s1418 + $0x34] sm:$0xf]
        %v1429 = vld [vmem:[%s1418 + $0x3c] sm:$0xf]
        %v1430 = vld [vmem:[%s1418 + $0x40] sm:$0xf]
        %v1431 = vld [vmem:[%s1418 + $0x48] sm:$0xf]
        %v1432 = vld [vmem:[%s1418 + $0x4c] sm:$0xf]
        %v1433 = vld [vmem:[%s1418 + $0x54] sm:$0xf]
        %v1434 = vld [vmem:[%s1418 + $0x58] sm:$0xf]
        %v1435 = vld [vmem:[%s1418 + $0x60] sm:$0xf]
        %v1436 = vld [vmem:[%s1418 + $0x64] sm:$0xf]
        %v1437 = vld [vmem:[%s1418 + $0x6c] sm:$0xf]
        %v1438 = vld [vmem:[%s1418 + $0x70] sm:$0xf]
        %s1439 = scalar_lea.vmem [#allocation6], 192
        %v1440 = vld [vmem:[%s1439] sm:$0xf]
        %v1441 = vld [vmem:[%s1439 + $0x4] sm:$0xf]
        %v1442 = vld [vmem:[%s1439 + $0x8] sm:$0xf]
        %v1443 = vld [vmem:[%s1439 + $0xc] sm:$0xf]
        %v1444 = vld [vmem:[%s1439 + $0x10] sm:$0xf]
        %v1445 = vld [vmem:[%s1439 + $0x14] sm:$0xf]
        %v1446 = vld [vmem:[%s1439 + $0x18] sm:$0xf]
        %v1447 = vld [vmem:[%s1439 + $0x1c] sm:$0xf]
        %v1448 = vld [vmem:[%s1439 + $0x20] sm:$0xf]
        %v1449 = vld [vmem:[%s1439 + $0x24] sm:$0xf]
        %v1450 = vld [vmem:[%s1439 + $0x28] sm:$0xf]
        %v1451 = vld [vmem:[%s1439 + $0x2c] sm:$0xf]
        %v1452 = vld [vmem:[%s1439 + $0x30] sm:$0xf]
        %v1453 = vld [vmem:[%s1439 + $0x34] sm:$0xf]
        %v1454 = vld [vmem:[%s1439 + $0x38] sm:$0xf]
        %v1455 = vld [vmem:[%s1439 + $0x3c] sm:$0xf]
        %v1476 = vunpack.c.l.b16 %v1419
        %v1477 = vunpack.c.l.b16 %v1420
        %v1478 = vunpack.c.l.b16 %v1421
        %v1479 = vunpack.c.l.b16 %v1422
        %v1480 = vunpack.c.l.b16 %v1423
        %v1481 = vunpack.c.l.b16 %v1424
        %v1482 = vunpack.c.l.b16 %v1425
        %v1483 = vunpack.c.l.b16 %v1426
        %v1484 = vunpack.c.l.b16 %v1427
        %v1485 = vunpack.c.l.b16 %v1428
        %v1486 = vunpack.c.l.b16 %v1429
        %v1487 = vunpack.c.l.b16 %v1430
        %v1488 = vunpack.c.l.b16 %v1431
        %v1489 = vunpack.c.l.b16 %v1432
        %v1490 = vunpack.c.l.b16 %v1433
        %v1491 = vunpack.c.l.b16 %v1434
        %v1492 = vunpack.c.l.b16 %v1435
        %v1493 = vunpack.c.l.b16 %v1436
        %v1494 = vunpack.c.l.b16 %v1437
        %v1495 = vunpack.c.l.b16 %v1438
        %v1496 = vpack.c.b16 %v1477, %v1476
        %v1497 = vpack.c.b16 %v1479, %v1478
        %v1498 = vpack.c.b16 %v1481, %v1480
        %v1499 = vpack.c.b16 %v1483, %v1482
        %v1500 = vpack.c.b16 %v1485, %v1484
        %v1501 = vpack.c.b16 %v1487, %v1486
        %v1502 = vpack.c.b16 %v1489, %v1488
        %v1503 = vpack.c.b16 %v1491, %v1490
        %v1504 = vpack.c.b16 %v1493, %v1492
        %v1505 = vpack.c.b16 %v1495, %v1494
        %v1532 = vunpack.c.l.b16 %v1440
        %v1533 = vunpack.c.l.b16 %v1441
        %v1534 = vunpack.c.l.b16 %v1442
        %v1535 = vunpack.c.l.b16 %v1443
        %v1536 = vunpack.c.l.b16 %v1444
        %v1537 = vunpack.c.l.b16 %v1445
        %v1538 = vunpack.c.l.b16 %v1446
        %v1539 = vunpack.c.l.b16 %v1447
        %v1540 = vunpack.c.l.b16 %v1448
        %v1541 = vunpack.c.l.b16 %v1449
        %v1542 = vunpack.c.l.b16 %v1450
        %v1543 = vunpack.c.l.b16 %v1451
        %v1544 = vunpack.c.l.b16 %v1452
        %v1545 = vunpack.c.l.b16 %v1453
        %v1546 = vunpack.c.l.b16 %v1454
        %v1547 = vunpack.c.l.b16 %v1455
        %v1548 = vpack.c.b16 %v1533, %v1532
        %v1549 = vpack.c.b16 %v1535, %v1534
        %v1550 = vpack.c.b16 %v1537, %v1536
        %v1551 = vpack.c.b16 %v1539, %v1538
        %v1552 = vpack.c.b16 %v1541, %v1540
        %v1553 = vpack.c.b16 %v1543, %v1542
        %v1554 = vpack.c.b16 %v1545, %v1544
        %v1555 = vpack.c.b16 %v1547, %v1546
        %1564 = vmatprep.subr.bf16.mxu0 0
        %1565 = vmatpush1.bf16.msra.mxu0 %v1548
        %1566 = vmatprep.subr.bf16.mxu0 0
        %1567 = vmatpush1.bf16.msra.mxu0 %v1549
        %1568 = vmatprep.subr.bf16.mxu0 0
        %1569 = vmatpush1.bf16.msra.mxu0 %v1550
        %1570 = vmatprep.subr.bf16.mxu0 0
        %1571 = vmatpush1.bf16.msra.mxu0 %v1551
        %1572 = vmatprep.subr.bf16.mxu0 0
        %1573 = vmatpush1.bf16.msra.mxu0 %v1552
        %1574 = vmatprep.subr.bf16.mxu0 0
        %1575 = vmatpush1.bf16.msra.mxu0 %v1553
        %1576 = vmatprep.subr.bf16.mxu0 0
        %1577 = vmatpush1.bf16.msra.mxu0 %v1554
        %1578 = vmatprep.subr.bf16.mxu0 0
        %1579 = vmatpush1.bf16.msra.mxu0 %v1555
        %1580 = vmatprep.subr.bf16.mxu0 0
        %1581 = vmatpush1.bf16.msra.mxu0 0
        %1582 = vmatprep.subr.bf16.mxu0 0
        %1583 = vmatpush1.bf16.msra.mxu0 0
        %1584 = vmatprep.subr.bf16.mxu0 0
        %1585 = vmatpush1.bf16.msra.mxu0 0
        %1586 = vmatprep.subr.bf16.mxu0 0
        %1587 = vmatpush1.bf16.msra.mxu0 0
        %1588 = vmatprep.subr.bf16.mxu0 0
        %1589 = vmatpush1.bf16.msra.mxu0 0
        %1590 = vmatprep.subr.bf16.mxu0 0
        %1591 = vmatpush1.bf16.msra.mxu0 0
        %1592 = vmatprep.subr.bf16.mxu0 0
        %1593 = vmatpush1.bf16.msra.mxu0 0
        %1594 = vmatprep.subr.bf16.mxu0 0
        %1595 = vmatpush1.bf16.msra.mxu0 0
        %1596 = vmatprep.mubr.bf16.mxu0 0
        %1597 = vmatmul.mubr.bf16.gmra.mrb[0].mxu0 %v1496
        %v1598 = vpop.f32.mrb[0].mxu0
        %v1599 = vadd.f32 0.0, %v1598
        %v1600 = vpop.f32.mrb[0].mxu0
        %v1601 = vpop.f32.mrb[0].mxu0
        %v1602 = vadd.f32 0.0, %v1601
        %v1603 = vpop.f32.mrb[0].mxu0
        %1604 = vmatprep.mubr.bf16.mxu0 0
        %1605 = vmatmul.mubr.bf16.gmra.mrb[0].mxu0 %v1497
        %v1606 = vpop.f32.mrb[0].mxu0
        %v1607 = vadd.f32 0.0, %v1606
        %v1608 = vpop.f32.mrb[0].mxu0
        %v1609 = vpop.f32.mrb[0].mxu0
        %v1610 = vadd.f32 0.0, %v1609
        %v1611 = vpop.f32.mrb[0].mxu0
        %1612 = vmatprep.mubr.bf16.mxu0 0
        %1613 = vmatmul.mubr.bf16.gmra.mrb[0].mxu0 %v1498
        %v1614 = vpop.f32.mrb[0].mxu0
        %v1615 = vadd.f32 0.0, %v1614
        %v1616 = vpop.f32.mrb[0].mxu0
        %v1617 = vpop.f32.mrb[0].mxu0
        %v1618 = vadd.f32 0.0, %v1617
        %v1619 = vpop.f32.mrb[0].mxu0
        %1620 = vmatprep.mubr.bf16.mxu0 0
        %1621 = vmatmul.mubr.bf16.gmra.mrb[0].mxu0 %v1499
        %v1622 = vpop.f32.mrb[0].mxu0
        %v1623 = vadd.f32 0.0, %v1622
        %v1624 = vpop.f32.mrb[0].mxu0
        %v1625 = vpop.f32.mrb[0].mxu0
        %v1626 = vadd.f32 0.0, %v1625
        %v1627 = vpop.f32.mrb[0].mxu0
        %1628 = vmatprep.mubr.bf16.mxu0 0
        %1629 = vmatmul.mubr.bf16.gmra.mrb[0].mxu0 %v1500
        %v1630 = vpop.f32.mrb[0].mxu0
        %v1631 = vadd.f32 0.0, %v1630
        %v1632 = vpop.f32.mrb[0].mxu0
        %v1633 = vpop.f32.mrb[0].mxu0
        %v1634 = vadd.f32 0.0, %v1633
        %v1635 = vpop.f32.mrb[0].mxu0
        %1636 = vmatprep.mubr.bf16.mxu0 0
        %1637 = vmatmul.mubr.bf16.gmra.mrb[0].mxu0 %v1501
        %v1638 = vpop.f32.mrb[0].mxu0
        %v1639 = vadd.f32 0.0, %v1638
        %v1640 = vpop.f32.mrb[0].mxu0
        %v1641 = vpop.f32.mrb[0].mxu0
        %v1642 = vadd.f32 0.0, %v1641
        %v1643 = vpop.f32.mrb[0].mxu0
        %1644 = vmatprep.mubr.bf16.mxu0 0
        %1645 = vmatmul.mubr.bf16.gmra.mrb[0].mxu0 %v1502
        %v1646 = vpop.f32.mrb[0].mxu0
        %v1647 = vadd.f32 0.0, %v1646
        %v1648 = vpop.f32.mrb[0].mxu0
        %v1649 = vpop.f32.mrb[0].mxu0
        %v1650 = vadd.f32 0.0, %v1649
        %v1651 = vpop.f32.mrb[0].mxu0
        %1652 = vmatprep.mubr.bf16.mxu0 0
        %1653 = vmatmul.mubr.bf16.gmra.mrb[0].mxu0 %v1503
        %v1654 = vpop.f32.mrb[0].mxu0
        %v1655 = vadd.f32 0.0, %v1654
        %v1656 = vpop.f32.mrb[0].mxu0
        %v1657 = vpop.f32.mrb[0].mxu0
        %v1658 = vadd.f32 0.0, %v1657
        %v1659 = vpop.f32.mrb[0].mxu0
        %1660 = vmatprep.mubr.bf16.mxu0 0
        %1661 = vmatmul.mubr.bf16.gmra.mrb[0].mxu0 %v1504
        %v1662 = vpop.f32.mrb[0].mxu0
        %v1663 = vadd.f32 0.0, %v1662
        %v1664 = vpop.f32.mrb[0].mxu0
        %v1665 = vpop.f32.mrb[0].mxu0
        %v1666 = vadd.f32 0.0, %v1665
        %v1667 = vpop.f32.mrb[0].mxu0
        %1668 = vmatprep.mubr.bf16.mxu0 0
        %1669 = vmatmul.mubr.bf16.gmra.mrb[0].mxu0 %v1505
        %v1670 = vpop.f32.mrb[0].mxu0
        %v1671 = vadd.f32 0.0, %v1670
        %v1672 = vpop.f32.mrb[0].mxu0
        %v1673 = vpop.f32.mrb[0].mxu0
        %v1674 = vadd.f32 0.0, %v1673
        %v1675 = vpop.f32.mrb[0].mxu0
        %1676 = vdwg.mxu0
        %v1677 = vadd.f32 %v1395, %v1599
        %v1678 = vadd.f32 %v1396, %v1602
        %v1679 = vadd.f32 %v1397, %v1607
        %v1680 = vadd.f32 %v1398, %v1610
        %v1681 = vadd.f32 %v1399, %v1615
        %v1682 = vadd.f32 %v1400, %v1618
        %v1683 = vadd.f32 %v1401, %v1623
        %v1684 = vadd.f32 %v1402, %v1626
        %v1685 = vadd.f32 %v1403, %v1631
        %v1686 = vadd.f32 %v1404, %v1634
        %v1687 = vadd.f32 %v1405, %v1639
        %v1688 = vadd.f32 %v1406, %v1642
        %v1689 = vadd.f32 %v1407, %v1647
        %v1690 = vadd.f32 %v1408, %v1650
        %v1691 = vadd.f32 %v1409, %v1655
        %v1692 = vadd.f32 %v1410, %v1658
        %v1693 = vadd.f32 %v1411, %v1663
        %v1694 = vadd.f32 %v1412, %v1666
        %v1695 = vadd.f32 %v1413, %v1671
        %v1696 = vadd.f32 %v1414, %v1674
        %v1697 = vld [vmem:[%s1418] sm:$0xf]
        %v1698 = vld [vmem:[%s1418 + $0x4] sm:$0xf]
        %v1699 = vld [vmem:[%s1418 + $0x8] sm:$0x1]
        %v1700 = vld [vmem:[%s1418 + $0xc] sm:$0xf]
        %v1701 = vld [vmem:[%s1418 + $0x10] sm:$0xf]
        %v1702 = vld [vmem:[%s1418 + $0x14] sm:$0x1]
        %v1703 = vld [vmem:[%s1418 + $0x18] sm:$0xf]
        %v1704 = vld [vmem:[%s1418 + $0x1c] sm:$0xf]
        %v1705 = vld [vmem:[%s1418 + $0x20] sm:$0x1]
        %v1706 = vld [vmem:[%s1418 + $0x24] sm:$0xf]
        %v1707 = vld [vmem:[%s1418 + $0x28] sm:$0xf]
        %v1708 = vld [vmem:[%s1418 + $0x2c] sm:$0x1]
        %v1709 = vld [vmem:[%s1418 + $0x30] sm:$0xf]
        %v1710 = vld [vmem:[%s1418 + $0x34] sm:$0xf]
        %v1711 = vld [vmem:[%s1418 + $0x38] sm:$0x1]
        %v1712 = vld [vmem:[%s1418 + $0x3c] sm:$0xf]
        %v1713 = vld [vmem:[%s1418 + $0x40] sm:$0xf]
        %v1714 = vld [vmem:[%s1418 + $0x44] sm:$0x1]
        %v1715 = vld [vmem:[%s1418 + $0x48] sm:$0xf]
        %v1716 = vld [vmem:[%s1418 + $0x4c] sm:$0xf]
        %v1717 = vld [vmem:[%s1418 + $0x50] sm:$0x1]
        %v1718 = vld [vmem:[%s1418 + $0x54] sm:$0xf]
        %v1719 = vld [vmem:[%s1418 + $0x58] sm:$0xf]
        %v1720 = vld [vmem:[%s1418 + $0x5c] sm:$0x1]
        %v1721 = vld [vmem:[%s1418 + $0x60] sm:$0xf]
        %v1722 = vld [vmem:[%s1418 + $0x64] sm:$0xf]
        %v1723 = vld [vmem:[%s1418 + $0x68] sm:$0x1]
        %v1724 = vld [vmem:[%s1418 + $0x6c] sm:$0xf]
        %v1725 = vld [vmem:[%s1418 + $0x70] sm:$0xf]
        %v1726 = vld [vmem:[%s1418 + $0x74] sm:$0x1]
        %v1728 = vshrl.u32 %v1697, 16
        %v1730 = vrot.slane %v1728, 4
        %v1731 = vshll.u32 %v1697, 16
        %v1733 = vrot.slane %v1731, 5
        %v1734 = vor.u32 %v1730, %v1733
        %v1735 = vrot.slane %v1734, 4
        %v1737 = vshll.u32 %v1698, 16
        %v1739 = vrot.slane %v1737, 5
        %v1740 = vsel %vm394, %v1735, %v1739
        %v1741 = vshrl.u32 %v1698, 16
        %v1743 = vrot.slane %v1741, 4
        %v1744 = vor.u32 %v1743, %v1739
        %v1745 = vrot.slane %v1744, 4
        %v1747 = vshll.u32 %v1699, 16
        %v1749 = vrot.slane %v1747, 5
        %v1750 = vsel %vm394, %v1745, %v1749
        %v1752 = vshrl.u32 %v1700, 16
        %v1754 = vrot.slane %v1752, 4
        %v1755 = vshll.u32 %v1700, 16
        %v1757 = vrot.slane %v1755, 5
        %v1758 = vor.u32 %v1754, %v1757
        %v1759 = vrot.slane %v1758, 4
        %v1761 = vshll.u32 %v1701, 16
        %v1763 = vrot.slane %v1761, 5
        %v1764 = vsel %vm394, %v1759, %v1763
        %v1765 = vshrl.u32 %v1701, 16
        %v1767 = vrot.slane %v1765, 4
        %v1768 = vor.u32 %v1767, %v1763
        %v1769 = vrot.slane %v1768, 4
        %v1771 = vshll.u32 %v1702, 16
        %v1773 = vrot.slane %v1771, 5
        %v1774 = vsel %vm394, %v1769, %v1773
        %v1776 = vshrl.u32 %v1703, 16
        %v1778 = vrot.slane %v1776, 4
        %v1779 = vshll.u32 %v1703, 16
        %v1781 = vrot.slane %v1779, 5
        %v1782 = vor.u32 %v1778, %v1781
        %v1783 = vrot.slane %v1782, 4
        %v1785 = vshll.u32 %v1704, 16
        %v1787 = vrot.slane %v1785, 5
        %v1788 = vsel %vm394, %v1783, %v1787
        %v1789 = vshrl.u32 %v1704, 16
        %v1791 = vrot.slane %v1789, 4
        %v1792 = vor.u32 %v1791, %v1787
        %v1793 = vrot.slane %v1792, 4
        %v1795 = vshll.u32 %v1705, 16
        %v1797 = vrot.slane %v1795, 5
        %v1798 = vsel %vm394, %v1793, %v1797
        %v1800 = vshrl.u32 %v1706, 16
        %v1802 = vrot.slane %v1800, 4
        %v1803 = vshll.u32 %v1706, 16
        %v1805 = vrot.slane %v1803, 5
        %v1806 = vor.u32 %v1802, %v1805
        %v1807 = vrot.slane %v1806, 4
        %v1809 = vshll.u32 %v1707, 16
        %v1811 = vrot.slane %v1809, 5
        %v1812 = vsel %vm394, %v1807, %v1811
        %v1813 = vshrl.u32 %v1707, 16
        %v1815 = vrot.slane %v1813, 4
        %v1816 = vor.u32 %v1815, %v1811
        %v1817 = vrot.slane %v1816, 4
        %v1819 = vshll.u32 %v1708, 16
        %v1821 = vrot.slane %v1819, 5
        %v1822 = vsel %vm394, %v1817, %v1821
        %v1824 = vshrl.u32 %v1709, 16
        %v1826 = vrot.slane %v1824, 4
        %v1827 = vshll.u32 %v1709, 16
        %v1829 = vrot.slane %v1827, 5
        %v1830 = vor.u32 %v1826, %v1829
        %v1831 = vrot.slane %v1830, 4
        %v1833 = vshll.u32 %v1710, 16
        %v1835 = vrot.slane %v1833, 5
        %v1836 = vsel %vm394, %v1831, %v1835
        %v1837 = vshrl.u32 %v1710, 16
        %v1839 = vrot.slane %v1837, 4
        %v1840 = vor.u32 %v1839, %v1835
        %v1841 = vrot.slane %v1840, 4
        %v1843 = vshll.u32 %v1711, 16
        %v1845 = vrot.slane %v1843, 5
        %v1846 = vsel %vm394, %v1841, %v1845
        %v1848 = vshrl.u32 %v1712, 16
        %v1850 = vrot.slane %v1848, 4
        %v1851 = vshll.u32 %v1712, 16
        %v1853 = vrot.slane %v1851, 5
        %v1854 = vor.u32 %v1850, %v1853
        %v1855 = vrot.slane %v1854, 4
        %v1857 = vshll.u32 %v1713, 16
        %v1859 = vrot.slane %v1857, 5
        %v1860 = vsel %vm394, %v1855, %v1859
        %v1861 = vshrl.u32 %v1713, 16
        %v1863 = vrot.slane %v1861, 4
        %v1864 = vor.u32 %v1863, %v1859
        %v1865 = vrot.slane %v1864, 4
        %v1867 = vshll.u32 %v1714, 16
        %v1869 = vrot.slane %v1867, 5
        %v1870 = vsel %vm394, %v1865, %v1869
        %v1872 = vshrl.u32 %v1715, 16
        %v1874 = vrot.slane %v1872, 4
        %v1875 = vshll.u32 %v1715, 16
        %v1877 = vrot.slane %v1875, 5
        %v1878 = vor.u32 %v1874, %v1877
        %v1879 = vrot.slane %v1878, 4
        %v1881 = vshll.u32 %v1716, 16
        %v1883 = vrot.slane %v1881, 5
        %v1884 = vsel %vm394, %v1879, %v1883
        %v1885 = vshrl.u32 %v1716, 16
        %v1887 = vrot.slane %v1885, 4
        %v1888 = vor.u32 %v1887, %v1883
        %v1889 = vrot.slane %v1888, 4
        %v1891 = vshll.u32 %v1717, 16
        %v1893 = vrot.slane %v1891, 5
        %v1894 = vsel %vm394, %v1889, %v1893
        %v1896 = vshrl.u32 %v1718, 16
        %v1898 = vrot.slane %v1896, 4
        %v1899 = vshll.u32 %v1718, 16
        %v1901 = vrot.slane %v1899, 5
        %v1902 = vor.u32 %v1898, %v1901
        %v1903 = vrot.slane %v1902, 4
        %v1905 = vshll.u32 %v1719, 16
        %v1907 = vrot.slane %v1905, 5
        %v1908 = vsel %vm394, %v1903, %v1907
        %v1909 = vshrl.u32 %v1719, 16
        %v1911 = vrot.slane %v1909, 4
        %v1912 = vor.u32 %v1911, %v1907
        %v1913 = vrot.slane %v1912, 4
        %v1915 = vshll.u32 %v1720, 16
        %v1917 = vrot.slane %v1915, 5
        %v1918 = vsel %vm394, %v1913, %v1917
        %v1920 = vshrl.u32 %v1721, 16
        %v1922 = vrot.slane %v1920, 4
        %v1923 = vshll.u32 %v1721, 16
        %v1925 = vrot.slane %v1923, 5
        %v1926 = vor.u32 %v1922, %v1925
        %v1927 = vrot.slane %v1926, 4
        %v1929 = vshll.u32 %v1722, 16
        %v1931 = vrot.slane %v1929, 5
        %v1932 = vsel %vm394, %v1927, %v1931
        %v1933 = vshrl.u32 %v1722, 16
        %v1935 = vrot.slane %v1933, 4
        %v1936 = vor.u32 %v1935, %v1931
        %v1937 = vrot.slane %v1936, 4
        %v1939 = vshll.u32 %v1723, 16
        %v1941 = vrot.slane %v1939, 5
        %v1942 = vsel %vm394, %v1937, %v1941
        %v1944 = vshrl.u32 %v1724, 16
        %v1946 = vrot.slane %v1944, 4
        %v1947 = vshll.u32 %v1724, 16
        %v1949 = vrot.slane %v1947, 5
        %v1950 = vor.u32 %v1946, %v1949
        %v1951 = vrot.slane %v1950, 4
        %v1953 = vshll.u32 %v1725, 16
        %v1955 = vrot.slane %v1953, 5
        %v1956 = vsel %vm394, %v1951, %v1955
        %v1957 = vshrl.u32 %v1725, 16
        %v1959 = vrot.slane %v1957, 4
        %v1960 = vor.u32 %v1959, %v1955
        %v1961 = vrot.slane %v1960, 4
        %v1963 = vshll.u32 %v1726, 16
        %v1965 = vrot.slane %v1963, 5
        %v1966 = vsel %vm394, %v1961, %v1965
        %s1967 = scalar_lea.vmem [#allocation6], 256
        %v1968 = vld [vmem:[%s1967] sm:$0xf]
        %v1969 = vld [vmem:[%s1967 + $0x4] sm:$0xf]
        %v1970 = vld [vmem:[%s1967 + $0x8] sm:$0xf]
        %v1971 = vld [vmem:[%s1967 + $0xc] sm:$0xf]
        %v1972 = vld [vmem:[%s1967 + $0x10] sm:$0xf]
        %v1973 = vld [vmem:[%s1967 + $0x14] sm:$0xf]
        %v1974 = vld [vmem:[%s1967 + $0x18] sm:$0xf]
        %v1975 = vld [vmem:[%s1967 + $0x1c] sm:$0xf]
        %v1976 = vld [vmem:[%s1967 + $0x20] sm:$0xf]
        %v1977 = vld [vmem:[%s1967 + $0x24] sm:$0xf]
        %v1978 = vld [vmem:[%s1967 + $0x28] sm:$0xf]
        %v1979 = vld [vmem:[%s1967 + $0x2c] sm:$0xf]
        %v1980 = vld [vmem:[%s1967 + $0x30] sm:$0xf]
        %v1981 = vld [vmem:[%s1967 + $0x34] sm:$0xf]
        %v1982 = vld [vmem:[%s1967 + $0x38] sm:$0xf]
        %v1983 = vld [vmem:[%s1967 + $0x3c] sm:$0xf]
        %v1984 = vunpack.c.l.b16 %v1740
        %v1985 = vunpack.c.l.b16 %v1750
        %v1986 = vunpack.c.l.b16 %v1764
        %v1987 = vunpack.c.l.b16 %v1774
        %v1988 = vunpack.c.l.b16 %v1788
        %v1989 = vunpack.c.l.b16 %v1798
        %v1990 = vunpack.c.l.b16 %v1812
        %v1991 = vunpack.c.l.b16 %v1822
        %v1992 = vunpack.c.l.b16 %v1836
        %v1993 = vunpack.c.l.b16 %v1846
        %v1994 = vunpack.c.l.b16 %v1860
        %v1995 = vunpack.c.l.b16 %v1870
        %v1996 = vunpack.c.l.b16 %v1884
        %v1997 = vunpack.c.l.b16 %v1894
        %v1998 = vunpack.c.l.b16 %v1908
        %v1999 = vunpack.c.l.b16 %v1918
        %v2000 = vunpack.c.l.b16 %v1932
        %v2001 = vunpack.c.l.b16 %v1942
        %v2002 = vunpack.c.l.b16 %v1956
        %v2003 = vunpack.c.l.b16 %v1966
        %v2004 = vpack.c.b16 %v1985, %v1984
        %v2005 = vpack.c.b16 %v1987, %v1986
        %v2006 = vpack.c.b16 %v1989, %v1988
        %v2007 = vpack.c.b16 %v1991, %v1990
        %v2008 = vpack.c.b16 %v1993, %v1992
        %v2009 = vpack.c.b16 %v1995, %v1994
        %v2010 = vpack.c.b16 %v1997, %v1996
        %v2011 = vpack.c.b16 %v1999, %v1998
        %v2012 = vpack.c.b16 %v2001, %v2000
        %v2013 = vpack.c.b16 %v2003, %v2002
        %v2040 = vunpack.c.l.b16 %v1968
        %v2041 = vunpack.c.l.b16 %v1969
        %v2042 = vunpack.c.l.b16 %v1970
        %v2043 = vunpack.c.l.b16 %v1971
        %v2044 = vunpack.c.l.b16 %v1972
        %v2045 = vunpack.c.l.b16 %v1973
        %v2046 = vunpack.c.l.b16 %v1974
        %v2047 = vunpack.c.l.b16 %v1975
        %v2048 = vunpack.c.l.b16 %v1976
        %v2049 = vunpack.c.l.b16 %v1977
        %v2050 = vunpack.c.l.b16 %v1978
        %v2051 = vunpack.c.l.b16 %v1979
        %v2052 = vunpack.c.l.b16 %v1980
        %v2053 = vunpack.c.l.b16 %v1981
        %v2054 = vunpack.c.l.b16 %v1982
        %v2055 = vunpack.c.l.b16 %v1983
        %v2056 = vpack.c.b16 %v2041, %v2040
        %v2057 = vpack.c.b16 %v2043, %v2042
        %v2058 = vpack.c.b16 %v2045, %v2044
        %v2059 = vpack.c.b16 %v2047, %v2046
        %v2060 = vpack.c.b16 %v2049, %v2048
        %v2061 = vpack.c.b16 %v2051, %v2050
        %v2062 = vpack.c.b16 %v2053, %v2052
        %v2063 = vpack.c.b16 %v2055, %v2054
        %2072 = vmatprep.subr.bf16.mxu0 0
        %2073 = vmatpush1.bf16.msra.mxu0 %v2056
        %2074 = vmatprep.subr.bf16.mxu0 0
        %2075 = vmatpush1.bf16.msra.mxu0 %v2057
        %2076 = vmatprep.subr.bf16.mxu0 0
        %2077 = vmatpush1.bf16.msra.mxu0 %v2058
        %2078 = vmatprep.subr.bf16.mxu0 0
        %2079 = vmatpush1.bf16.msra.mxu0 %v2059
        %2080 = vmatprep.subr.bf16.mxu0 0
        %2081 = vmatpush1.bf16.msra.mxu0 %v2060
        %2082 = vmatprep.subr.bf16.mxu0 0
        %2083 = vmatpush1.bf16.msra.mxu0 %v2061
        %2084 = vmatprep.subr.bf16.mxu0 0
        %2085 = vmatpush1.bf16.msra.mxu0 %v2062
        %2086 = vmatprep.subr.bf16.mxu0 0
        %2087 = vmatpush1.bf16.msra.mxu0 %v2063
        %2088 = vmatprep.subr.bf16.mxu0 0
        %2089 = vmatpush1.bf16.msra.mxu0 0
        %2090 = vmatprep.subr.bf16.mxu0 0
        %2091 = vmatpush1.bf16.msra.mxu0 0
        %2092 = vmatprep.subr.bf16.mxu0 0
        %2093 = vmatpush1.bf16.msra.mxu0 0
        %2094 = vmatprep.subr.bf16.mxu0 0
        %2095 = vmatpush1.bf16.msra.mxu0 0
        %2096 = vmatprep.subr.bf16.mxu0 0
        %2097 = vmatpush1.bf16.msra.mxu0 0
        %2098 = vmatprep.subr.bf16.mxu0 0
        %2099 = vmatpush1.bf16.msra.mxu0 0
        %2100 = vmatprep.subr.bf16.mxu0 0
        %2101 = vmatpush1.bf16.msra.mxu0 0
        %2102 = vmatprep.subr.bf16.mxu0 0
        %2103 = vmatpush1.bf16.msra.mxu0 0
        %2104 = vmatprep.mubr.bf16.mxu0 0
        %2105 = vmatmul.mubr.bf16.gmra.mrb[0].mxu0 %v2004
        %v2106 = vpop.f32.mrb[0].mxu0
        %v2107 = vadd.f32 0.0, %v2106
        %v2108 = vpop.f32.mrb[0].mxu0
        %v2109 = vpop.f32.mrb[0].mxu0
        %v2110 = vadd.f32 0.0, %v2109
        %v2111 = vpop.f32.mrb[0].mxu0
        %2112 = vmatprep.mubr.bf16.mxu0 0
        %2113 = vmatmul.mubr.bf16.gmra.mrb[0].mxu0 %v2005
        %v2114 = vpop.f32.mrb[0].mxu0
        %v2115 = vadd.f32 0.0, %v2114
        %v2116 = vpop.f32.mrb[0].mxu0
        %v2117 = vpop.f32.mrb[0].mxu0
        %v2118 = vadd.f32 0.0, %v2117
        %v2119 = vpop.f32.mrb[0].mxu0
        %2120 = vmatprep.mubr.bf16.mxu0 0
        %2121 = vmatmul.mubr.bf16.gmra.mrb[0].mxu0 %v2006
        %v2122 = vpop.f32.mrb[0].mxu0
        %v2123 = vadd.f32 0.0, %v2122
        %v2124 = vpop.f32.mrb[0].mxu0
        %v2125 = vpop.f32.mrb[0].mxu0
        %v2126 = vadd.f32 0.0, %v2125
        %v2127 = vpop.f32.mrb[0].mxu0
        %2128 = vmatprep.mubr.bf16.mxu0 0
        %2129 = vmatmul.mubr.bf16.gmra.mrb[0].mxu0 %v2007
        %v2130 = vpop.f32.mrb[0].mxu0
        %v2131 = vadd.f32 0.0, %v2130
        %v2132 = vpop.f32.mrb[0].mxu0
        %v2133 = vpop.f32.mrb[0].mxu0
        %v2134 = vadd.f32 0.0, %v2133
        %v2135 = vpop.f32.mrb[0].mxu0
        %2136 = vmatprep.mubr.bf16.mxu0 0
        %2137 = vmatmul.mubr.bf16.gmra.mrb[0].mxu0 %v2008
        %v2138 = vpop.f32.mrb[0].mxu0
        %v2139 = vadd.f32 0.0, %v2138
        %v2140 = vpop.f32.mrb[0].mxu0
        %v2141 = vpop.f32.mrb[0].mxu0
        %v2142 = vadd.f32 0.0, %v2141
        %v2143 = vpop.f32.mrb[0].mxu0
        %2144 = vmatprep.mubr.bf16.mxu0 0
        %2145 = vmatmul.mubr.bf16.gmra.mrb[0].mxu0 %v2009
        %v2146 = vpop.f32.mrb[0].mxu0
        %v2147 = vadd.f32 0.0, %v2146
        %v2148 = vpop.f32.mrb[0].mxu0
        %v2149 = vpop.f32.mrb[0].mxu0
        %v2150 = vadd.f32 0.0, %v2149
        %v2151 = vpop.f32.mrb[0].mxu0
        %2152 = vmatprep.mubr.bf16.mxu0 0
        %2153 = vmatmul.mubr.bf16.gmra.mrb[0].mxu0 %v2010
        %v2154 = vpop.f32.mrb[0].mxu0
        %v2155 = vadd.f32 0.0, %v2154
        %v2156 = vpop.f32.mrb[0].mxu0
        %v2157 = vpop.f32.mrb[0].mxu0
        %v2158 = vadd.f32 0.0, %v2157
        %v2159 = vpop.f32.mrb[0].mxu0
        %2160 = vmatprep.mubr.bf16.mxu0 0
        %2161 = vmatmul.mubr.bf16.gmra.mrb[0].mxu0 %v2011
        %v2162 = vpop.f32.mrb[0].mxu0
        %v2163 = vadd.f32 0.0, %v2162
        %v2164 = vpop.f32.mrb[0].mxu0
        %v2165 = vpop.f32.mrb[0].mxu0
        %v2166 = vadd.f32 0.0, %v2165
        %v2167 = vpop.f32.mrb[0].mxu0
        %2168 = vmatprep.mubr.bf16.mxu0 0
        %2169 = vmatmul.mubr.bf16.gmra.mrb[0].mxu0 %v2012
        %v2170 = vpop.f32.mrb[0].mxu0
        %v2171 = vadd.f32 0.0, %v2170
        %v2172 = vpop.f32.mrb[0].mxu0
        %v2173 = vpop.f32.mrb[0].mxu0
        %v2174 = vadd.f32 0.0, %v2173
        %v2175 = vpop.f32.mrb[0].mxu0
        %2176 = vmatprep.mubr.bf16.mxu0 0
        %2177 = vmatmul.mubr.bf16.gmra.mrb[0].mxu0 %v2013
        %v2178 = vpop.f32.mrb[0].mxu0
        %v2179 = vadd.f32 0.0, %v2178
        %v2180 = vpop.f32.mrb[0].mxu0
        %v2181 = vpop.f32.mrb[0].mxu0
        %v2182 = vadd.f32 0.0, %v2181
        %v2183 = vpop.f32.mrb[0].mxu0
        %2184 = vdwg.mxu0
        %v2185 = vadd.f32 %v1677, %v2107
        %v2186 = vadd.f32 %v1678, %v2110
        %v2187 = vadd.f32 %v1679, %v2115
        %v2188 = vadd.f32 %v1680, %v2118
        %v2189 = vadd.f32 %v1681, %v2123
        %v2190 = vadd.f32 %v1682, %v2126
        %v2191 = vadd.f32 %v1683, %v2131
        %v2192 = vadd.f32 %v1684, %v2134
        %v2193 = vadd.f32 %v1685, %v2139
        %v2194 = vadd.f32 %v1686, %v2142
        %v2195 = vadd.f32 %v1687, %v2147
        %v2196 = vadd.f32 %v1688, %v2150
        %v2197 = vadd.f32 %v1689, %v2155
        %v2198 = vadd.f32 %v1690, %v2158
        %v2199 = vadd.f32 %v1691, %v2163
        %v2200 = vadd.f32 %v1692, %v2166
        %v2201 = vadd.f32 %v1693, %v2171
        %v2202 = vadd.f32 %v1694, %v2174
        %v2203 = vadd.f32 %v1695, %v2179
        %v2204 = vadd.f32 %v1696, %v2182
        %v2205 = vld [vmem:[%s1418] sm:$0xe]
        %v2206 = vld [vmem:[%s1418 + $0xc] sm:$0xe]
        %v2207 = vld [vmem:[%s1418 + $0x18] sm:$0xe]
        %v2208 = vld [vmem:[%s1418 + $0x24] sm:$0xe]
        %v2209 = vld [vmem:[%s1418 + $0x30] sm:$0xe]
        %v2210 = vld [vmem:[%s1418 + $0x3c] sm:$0xe]
        %v2211 = vld [vmem:[%s1418 + $0x48] sm:$0xe]
        %v2212 = vld [vmem:[%s1418 + $0x54] sm:$0xe]
        %v2213 = vld [vmem:[%s1418 + $0x60] sm:$0xe]
        %v2214 = vld [vmem:[%s1418 + $0x6c] sm:$0xe]
        %v2245 = vrot.slane %v2205, 5
        %v2246 = vrot.slane %v2245, 4
        %v2247 = vrot.slane %v1698, 5
        %v2248 = vsel %vm1106, %v2246, %v2247
        %v2249 = vrot.slane %v2247, 4
        %v2250 = vrot.slane %v1699, 5
        %v2251 = vsel %vm1106, %v2249, %v2250
        %v2252 = vrot.slane %v2206, 5
        %v2253 = vrot.slane %v2252, 4
        %v2254 = vrot.slane %v1701, 5
        %v2255 = vsel %vm1106, %v2253, %v2254
        %v2256 = vrot.slane %v2254, 4
        %v2257 = vrot.slane %v1702, 5
        %v2258 = vsel %vm1106, %v2256, %v2257
        %v2259 = vrot.slane %v2207, 5
        %v2260 = vrot.slane %v2259, 4
        %v2261 = vrot.slane %v1704, 5
        %v2262 = vsel %vm1106, %v2260, %v2261
        %v2263 = vrot.slane %v2261, 4
        %v2264 = vrot.slane %v1705, 5
        %v2265 = vsel %vm1106, %v2263, %v2264
        %v2266 = vrot.slane %v2208, 5
        %v2267 = vrot.slane %v2266, 4
        %v2268 = vrot.slane %v1707, 5
        %v2269 = vsel %vm1106, %v2267, %v2268
        %v2270 = vrot.slane %v2268, 4
        %v2271 = vrot.slane %v1708, 5
        %v2272 = vsel %vm1106, %v2270, %v2271
        %v2273 = vrot.slane %v2209, 5
        %v2274 = vrot.slane %v2273, 4
        %v2275 = vrot.slane %v1710, 5
        %v2276 = vsel %vm1106, %v2274, %v2275
        %v2277 = vrot.slane %v2275, 4
        %v2278 = vrot.slane %v1711, 5
        %v2279 = vsel %vm1106, %v2277, %v2278
        %v2280 = vrot.slane %v2210, 5
        %v2281 = vrot.slane %v2280, 4
        %v2282 = vrot.slane %v1713, 5
        %v2283 = vsel %vm1106, %v2281, %v2282
        %v2284 = vrot.slane %v2282, 4
        %v2285 = vrot.slane %v1714, 5
        %v2286 = vsel %vm1106, %v2284, %v2285
        %v2287 = vrot.slane %v2211, 5
        %v2288 = vrot.slane %v2287, 4
        %v2289 = vrot.slane %v1716, 5
        %v2290 = vsel %vm1106, %v2288, %v2289
        %v2291 = vrot.slane %v2289, 4
        %v2292 = vrot.slane %v1717, 5
        %v2293 = vsel %vm1106, %v2291, %v2292
        %v2294 = vrot.slane %v2212, 5
        %v2295 = vrot.slane %v2294, 4
        %v2296 = vrot.slane %v1719, 5
        %v2297 = vsel %vm1106, %v2295, %v2296
        %v2298 = vrot.slane %v2296, 4
        %v2299 = vrot.slane %v1720, 5
        %v2300 = vsel %vm1106, %v2298, %v2299
        %v2301 = vrot.slane %v2213, 5
        %v2302 = vrot.slane %v2301, 4
        %v2303 = vrot.slane %v1722, 5
        %v2304 = vsel %vm1106, %v2302, %v2303
        %v2305 = vrot.slane %v2303, 4
        %v2306 = vrot.slane %v1723, 5
        %v2307 = vsel %vm1106, %v2305, %v2306
        %v2308 = vrot.slane %v2214, 5
        %v2309 = vrot.slane %v2308, 4
        %v2310 = vrot.slane %v1725, 5
        %v2311 = vsel %vm1106, %v2309, %v2310
        %v2312 = vrot.slane %v2310, 4
        %v2313 = vrot.slane %v1726, 5
        %v2314 = vsel %vm1106, %v2312, %v2313
        %s2315 = scalar_lea.vmem [#allocation6], 320
        %v2316 = vld [vmem:[%s2315] sm:$0xf]
        %v2317 = vld [vmem:[%s2315 + $0x4] sm:$0xf]
        %v2318 = vld [vmem:[%s2315 + $0x8] sm:$0xf]
        %v2319 = vld [vmem:[%s2315 + $0xc] sm:$0xf]
        %v2320 = vld [vmem:[%s2315 + $0x10] sm:$0xf]
        %v2321 = vld [vmem:[%s2315 + $0x14] sm:$0xf]
        %v2322 = vld [vmem:[%s2315 + $0x18] sm:$0xf]
        %v2323 = vld [vmem:[%s2315 + $0x1c] sm:$0xf]
        %v2324 = vld [vmem:[%s2315 + $0x20] sm:$0xf]
        %v2325 = vld [vmem:[%s2315 + $0x24] sm:$0xf]
        %v2326 = vld [vmem:[%s2315 + $0x28] sm:$0xf]
        %v2327 = vld [vmem:[%s2315 + $0x2c] sm:$0xf]
        %v2328 = vld [vmem:[%s2315 + $0x30] sm:$0xf]
        %v2329 = vld [vmem:[%s2315 + $0x34] sm:$0xf]
        %v2330 = vld [vmem:[%s2315 + $0x38] sm:$0xf]
        %v2331 = vld [vmem:[%s2315 + $0x3c] sm:$0xf]
        %v2332 = vunpack.c.l.b16 %v2248
        %v2333 = vunpack.c.l.b16 %v2251
        %v2334 = vunpack.c.l.b16 %v2255
        %v2335 = vunpack.c.l.b16 %v2258
        %v2336 = vunpack.c.l.b16 %v2262
        %v2337 = vunpack.c.l.b16 %v2265
        %v2338 = vunpack.c.l.b16 %v2269
        %v2339 = vunpack.c.l.b16 %v2272
        %v2340 = vunpack.c.l.b16 %v2276
        %v2341 = vunpack.c.l.b16 %v2279
        %v2342 = vunpack.c.l.b16 %v2283
        %v2343 = vunpack.c.l.b16 %v2286
        %v2344 = vunpack.c.l.b16 %v2290
        %v2345 = vunpack.c.l.b16 %v2293
        %v2346 = vunpack.c.l.b16 %v2297
        %v2347 = vunpack.c.l.b16 %v2300
        %v2348 = vunpack.c.l.b16 %v2304
        %v2349 = vunpack.c.l.b16 %v2307
        %v2350 = vunpack.c.l.b16 %v2311
        %v2351 = vunpack.c.l.b16 %v2314
        %v2352 = vpack.c.b16 %v2333, %v2332
        %v2353 = vpack.c.b16 %v2335, %v2334
        %v2354 = vpack.c.b16 %v2337, %v2336
        %v2355 = vpack.c.b16 %v2339, %v2338
        %v2356 = vpack.c.b16 %v2341, %v2340
        %v2357 = vpack.c.b16 %v2343, %v2342
        %v2358 = vpack.c.b16 %v2345, %v2344
        %v2359 = vpack.c.b16 %v2347, %v2346
        %v2360 = vpack.c.b16 %v2349, %v2348
        %v2361 = vpack.c.b16 %v2351, %v2350
        %v2388 = vunpack.c.l.b16 %v2316
        %v2389 = vunpack.c.l.b16 %v2317
        %v2390 = vunpack.c.l.b16 %v2318
        %v2391 = vunpack.c.l.b16 %v2319
        %v2392 = vunpack.c.l.b16 %v2320
        %v2393 = vunpack.c.l.b16 %v2321
        %v2394 = vunpack.c.l.b16 %v2322
        %v2395 = vunpack.c.l.b16 %v2323
        %v2396 = vunpack.c.l.b16 %v2324
        %v2397 = vunpack.c.l.b16 %v2325
        %v2398 = vunpack.c.l.b16 %v2326
        %v2399 = vunpack.c.l.b16 %v2327
        %v2400 = vunpack.c.l.b16 %v2328
        %v2401 = vunpack.c.l.b16 %v2329
        %v2402 = vunpack.c.l.b16 %v2330
        %v2403 = vunpack.c.l.b16 %v2331
        %v2404 = vpack.c.b16 %v2389, %v2388
        %v2405 = vpack.c.b16 %v2391, %v2390
        %v2406 = vpack.c.b16 %v2393, %v2392
        %v2407 = vpack.c.b16 %v2395, %v2394
        %v2408 = vpack.c.b16 %v2397, %v2396
        %v2409 = vpack.c.b16 %v2399, %v2398
        %v2410 = vpack.c.b16 %v2401, %v2400
        %v2411 = vpack.c.b16 %v2403, %v2402
        %2420 = vmatprep.subr.bf16.mxu0 0
        %2421 = vmatpush1.bf16.msra.mxu0 %v2404
        %2422 = vmatprep.subr.bf16.mxu0 0
        %2423 = vmatpush1.bf16.msra.mxu0 %v2405
        %2424 = vmatprep.subr.bf16.mxu0 0
        %2425 = vmatpush1.bf16.msra.mxu0 %v2406
        %2426 = vmatprep.subr.bf16.mxu0 0
        %2427 = vmatpush1.bf16.msra.mxu0 %v2407
        %2428 = vmatprep.subr.bf16.mxu0 0
        %2429 = vmatpush1.bf16.msra.mxu0 %v2408
        %2430 = vmatprep.subr.bf16.mxu0 0
        %2431 = vmatpush1.bf16.msra.mxu0 %v2409
        %2432 = vmatprep.subr.bf16.mxu0 0
        %2433 = vmatpush1.bf16.msra.mxu0 %v2410
        %2434 = vmatprep.subr.bf16.mxu0 0
        %2435 = vmatpush1.bf16.msra.mxu0 %v2411
        %2436 = vmatprep.subr.bf16.mxu0 0
        %2437 = vmatpush1.bf16.msra.mxu0 0
        %2438 = vmatprep.subr.bf16.mxu0 0
        %2439 = vmatpush1.bf16.msra.mxu0 0
        %2440 = vmatprep.subr.bf16.mxu0 0
        %2441 = vmatpush1.bf16.msra.mxu0 0
        %2442 = vmatprep.subr.bf16.mxu0 0
        %2443 = vmatpush1.bf16.msra.mxu0 0
        %2444 = vmatprep.subr.bf16.mxu0 0
        %2445 = vmatpush1.bf16.msra.mxu0 0
        %2446 = vmatprep.subr.bf16.mxu0 0
        %2447 = vmatpush1.bf16.msra.mxu0 0
        %2448 = vmatprep.subr.bf16.mxu0 0
        %2449 = vmatpush1.bf16.msra.mxu0 0
        %2450 = vmatprep.subr.bf16.mxu0 0
        %2451 = vmatpush1.bf16.msra.mxu0 0
        %2452 = vmatprep.mubr.bf16.mxu0 0
        %2453 = vmatmul.mubr.bf16.gmra.mrb[0].mxu0 %v2352
        %v2454 = vpop.f32.mrb[0].mxu0
        %v2455 = vadd.f32 0.0, %v2454
        %v2456 = vpop.f32.mrb[0].mxu0
        %v2457 = vpop.f32.mrb[0].mxu0
        %v2458 = vadd.f32 0.0, %v2457
        %v2459 = vpop.f32.mrb[0].mxu0
        %2460 = vmatprep.mubr.bf16.mxu0 0
        %2461 = vmatmul.mubr.bf16.gmra.mrb[0].mxu0 %v2353
        %v2462 = vpop.f32.mrb[0].mxu0
        %v2463 = vadd.f32 0.0, %v2462
        %v2464 = vpop.f32.mrb[0].mxu0
        %v2465 = vpop.f32.mrb[0].mxu0
        %v2466 = vadd.f32 0.0, %v2465
        %v2467 = vpop.f32.mrb[0].mxu0
        %2468 = vmatprep.mubr.bf16.mxu0 0
        %2469 = vmatmul.mubr.bf16.gmra.mrb[0].mxu0 %v2354
        %v2470 = vpop.f32.mrb[0].mxu0
        %v2471 = vadd.f32 0.0, %v2470
        %v2472 = vpop.f32.mrb[0].mxu0
        %v2473 = vpop.f32.mrb[0].mxu0
        %v2474 = vadd.f32 0.0, %v2473
        %v2475 = vpop.f32.mrb[0].mxu0
        %2476 = vmatprep.mubr.bf16.mxu0 0
        %2477 = vmatmul.mubr.bf16.gmra.mrb[0].mxu0 %v2355
        %v2478 = vpop.f32.mrb[0].mxu0
        %v2479 = vadd.f32 0.0, %v2478
        %v2480 = vpop.f32.mrb[0].mxu0
        %v2481 = vpop.f32.mrb[0].mxu0
        %v2482 = vadd.f32 0.0, %v2481
        %v2483 = vpop.f32.mrb[0].mxu0
        %2484 = vmatprep.mubr.bf16.mxu0 0
        %2485 = vmatmul.mubr.bf16.gmra.mrb[0].mxu0 %v2356
        %v2486 = vpop.f32.mrb[0].mxu0
        %v2487 = vadd.f32 0.0, %v2486
        %v2488 = vpop.f32.mrb[0].mxu0
        %v2489 = vpop.f32.mrb[0].mxu0
        %v2490 = vadd.f32 0.0, %v2489
        %v2491 = vpop.f32.mrb[0].mxu0
        %2492 = vmatprep.mubr.bf16.mxu0 0
        %2493 = vmatmul.mubr.bf16.gmra.mrb[0].mxu0 %v2357
        %v2494 = vpop.f32.mrb[0].mxu0
        %v2495 = vadd.f32 0.0, %v2494
        %v2496 = vpop.f32.mrb[0].mxu0
        %v2497 = vpop.f32.mrb[0].mxu0
        %v2498 = vadd.f32 0.0, %v2497
        %v2499 = vpop.f32.mrb[0].mxu0
        %2500 = vmatprep.mubr.bf16.mxu0 0
        %2501 = vmatmul.mubr.bf16.gmra.mrb[0].mxu0 %v2358
        %v2502 = vpop.f32.mrb[0].mxu0
        %v2503 = vadd.f32 0.0, %v2502
        %v2504 = vpop.f32.mrb[0].mxu0
        %v2505 = vpop.f32.mrb[0].mxu0
        %v2506 = vadd.f32 0.0, %v2505
        %v2507 = vpop.f32.mrb[0].mxu0
        %2508 = vmatprep.mubr.bf16.mxu0 0
        %2509 = vmatmul.mubr.bf16.gmra.mrb[0].mxu0 %v2359
        %v2510 = vpop.f32.mrb[0].mxu0
        %v2511 = vadd.f32 0.0, %v2510
        %v2512 = vpop.f32.mrb[0].mxu0
        %v2513 = vpop.f32.mrb[0].mxu0
        %v2514 = vadd.f32 0.0, %v2513
        %v2515 = vpop.f32.mrb[0].mxu0
        %2516 = vmatprep.mubr.bf16.mxu0 0
        %2517 = vmatmul.mubr.bf16.gmra.mrb[0].mxu0 %v2360
        %v2518 = vpop.f32.mrb[0].mxu0
        %v2519 = vadd.f32 0.0, %v2518
        %v2520 = vpop.f32.mrb[0].mxu0
        %v2521 = vpop.f32.mrb[0].mxu0
        %v2522 = vadd.f32 0.0, %v2521
        %v2523 = vpop.f32.mrb[0].mxu0
        %2524 = vmatprep.mubr.bf16.mxu0 0
        %2525 = vmatmul.mubr.bf16.gmra.mrb[0].mxu0 %v2361
        %v2526 = vpop.f32.mrb[0].mxu0
        %v2527 = vadd.f32 0.0, %v2526
        %v2528 = vpop.f32.mrb[0].mxu0
        %v2529 = vpop.f32.mrb[0].mxu0
        %v2530 = vadd.f32 0.0, %v2529
        %v2531 = vpop.f32.mrb[0].mxu0
        %2532 = vdwg.mxu0
        %v2533 = vadd.f32 %v2185, %v2455
        %v2534 = vadd.f32 %v2186, %v2458
        %v2535 = vadd.f32 %v2187, %v2463
        %v2536 = vadd.f32 %v2188, %v2466
        %v2537 = vadd.f32 %v2189, %v2471
        %v2538 = vadd.f32 %v2190, %v2474
        %v2539 = vadd.f32 %v2191, %v2479
        %v2540 = vadd.f32 %v2192, %v2482
        %v2541 = vadd.f32 %v2193, %v2487
        %v2542 = vadd.f32 %v2194, %v2490
        %v2543 = vadd.f32 %v2195, %v2495
        %v2544 = vadd.f32 %v2196, %v2498
        %v2545 = vadd.f32 %v2197, %v2503
        %v2546 = vadd.f32 %v2198, %v2506
        %v2547 = vadd.f32 %v2199, %v2511
        %v2548 = vadd.f32 %v2200, %v2514
        %v2549 = vadd.f32 %v2201, %v2519
        %v2550 = vadd.f32 %v2202, %v2522
        %v2551 = vadd.f32 %v2203, %v2527
        %v2552 = vadd.f32 %v2204, %v2530
        %s2553 = sadd.s32 %s342, 2
        %s2554 = smul.u32 %s2553, 3
        %s2555 = smul.addr %s2554, 4
        %s2556 = scalar_lea.vmem %s301, %s2555 [#allocation3]
        %v2557 = vld [vmem:[%s2556] sm:$0xf]
        %v2558 = vld [vmem:[%s2556 + $0x4] sm:$0xf]
        %v2559 = vld [vmem:[%s2556 + $0xc] sm:$0xf]
        %v2560 = vld [vmem:[%s2556 + $0x10] sm:$0xf]
        %v2561 = vld [vmem:[%s2556 + $0x18] sm:$0xf]
        %v2562 = vld [vmem:[%s2556 + $0x1c] sm:$0xf]
        %v2563 = vld [vmem:[%s2556 + $0x24] sm:$0xf]
        %v2564 = vld [vmem:[%s2556 + $0x28] sm:$0xf]
        %v2565 = vld [vmem:[%s2556 + $0x30] sm:$0xf]
        %v2566 = vld [vmem:[%s2556 + $0x34] sm:$0xf]
        %v2567 = vld [vmem:[%s2556 + $0x3c] sm:$0xf]
        %v2568 = vld [vmem:[%s2556 + $0x40] sm:$0xf]
        %v2569 = vld [vmem:[%s2556 + $0x48] sm:$0xf]
        %v2570 = vld [vmem:[%s2556 + $0x4c] sm:$0xf]
        %v2571 = vld [vmem:[%s2556 + $0x54] sm:$0xf]
        %v2572 = vld [vmem:[%s2556 + $0x58] sm:$0xf]
        %v2573 = vld [vmem:[%s2556 + $0x60] sm:$0xf]
        %v2574 = vld [vmem:[%s2556 + $0x64] sm:$0xf]
        %v2575 = vld [vmem:[%s2556 + $0x6c] sm:$0xf]
        %v2576 = vld [vmem:[%s2556 + $0x70] sm:$0xf]
        %s2577 = scalar_lea.vmem [#allocation6], 384
        %v2578 = vld [vmem:[%s2577] sm:$0xf]
        %v2579 = vld [vmem:[%s2577 + $0x4] sm:$0xf]
        %v2580 = vld [vmem:[%s2577 + $0x8] sm:$0xf]
        %v2581 = vld [vmem:[%s2577 + $0xc] sm:$0xf]
        %v2582 = vld [vmem:[%s2577 + $0x10] sm:$0xf]
        %v2583 = vld [vmem:[%s2577 + $0x14] sm:$0xf]
        %v2584 = vld [vmem:[%s2577 + $0x18] sm:$0xf]
        %v2585 = vld [vmem:[%s2577 + $0x1c] sm:$0xf]
        %v2586 = vld [vmem:[%s2577 + $0x20] sm:$0xf]
        %v2587 = vld [vmem:[%s2577 + $0x24] sm:$0xf]
        %v2588 = vld [vmem:[%s2577 + $0x28] sm:$0xf]
        %v2589 = vld [vmem:[%s2577 + $0x2c] sm:$0xf]
        %v2590 = vld [vmem:[%s2577 + $0x30] sm:$0xf]
        %v2591 = vld [vmem:[%s2577 + $0x34] sm:$0xf]
        %v2592 = vld [vmem:[%s2577 + $0x38] sm:$0xf]
        %v2593 = vld [vmem:[%s2577 + $0x3c] sm:$0xf]
        %v2614 = vunpack.c.l.b16 %v2557
        %v2615 = vunpack.c.l.b16 %v2558
        %v2616 = vunpack.c.l.b16 %v2559
        %v2617 = vunpack.c.l.b16 %v2560
        %v2618 = vunpack.c.l.b16 %v2561
        %v2619 = vunpack.c.l.b16 %v2562
        %v2620 = vunpack.c.l.b16 %v2563
        %v2621 = vunpack.c.l.b16 %v2564
        %v2622 = vunpack.c.l.b16 %v2565
        %v2623 = vunpack.c.l.b16 %v2566
        %v2624 = vunpack.c.l.b16 %v2567
        %v2625 = vunpack.c.l.b16 %v2568
        %v2626 = vunpack.c.l.b16 %v2569
        %v2627 = vunpack.c.l.b16 %v2570
        %v2628 = vunpack.c.l.b16 %v2571
        %v2629 = vunpack.c.l.b16 %v2572
        %v2630 = vunpack.c.l.b16 %v2573
        %v2631 = vunpack.c.l.b16 %v2574
        %v2632 = vunpack.c.l.b16 %v2575
        %v2633 = vunpack.c.l.b16 %v2576
        %v2634 = vpack.c.b16 %v2615, %v2614
        %v2635 = vpack.c.b16 %v2617, %v2616
        %v2636 = vpack.c.b16 %v2619, %v2618
        %v2637 = vpack.c.b16 %v2621, %v2620
        %v2638 = vpack.c.b16 %v2623, %v2622
        %v2639 = vpack.c.b16 %v2625, %v2624
        %v2640 = vpack.c.b16 %v2627, %v2626
        %v2641 = vpack.c.b16 %v2629, %v2628
        %v2642 = vpack.c.b16 %v2631, %v2630
        %v2643 = vpack.c.b16 %v2633, %v2632
        %v2670 = vunpack.c.l.b16 %v2578
        %v2671 = vunpack.c.l.b16 %v2579
        %v2672 = vunpack.c.l.b16 %v2580
        %v2673 = vunpack.c.l.b16 %v2581
        %v2674 = vunpack.c.l.b16 %v2582
        %v2675 = vunpack.c.l.b16 %v2583
        %v2676 = vunpack.c.l.b16 %v2584
        %v2677 = vunpack.c.l.b16 %v2585
        %v2678 = vunpack.c.l.b16 %v2586
        %v2679 = vunpack.c.l.b16 %v2587
        %v2680 = vunpack.c.l.b16 %v2588
        %v2681 = vunpack.c.l.b16 %v2589
        %v2682 = vunpack.c.l.b16 %v2590
        %v2683 = vunpack.c.l.b16 %v2591
        %v2684 = vunpack.c.l.b16 %v2592
        %v2685 = vunpack.c.l.b16 %v2593
        %v2686 = vpack.c.b16 %v2671, %v2670
        %v2687 = vpack.c.b16 %v2673, %v2672
        %v2688 = vpack.c.b16 %v2675, %v2674
        %v2689 = vpack.c.b16 %v2677, %v2676
        %v2690 = vpack.c.b16 %v2679, %v2678
        %v2691 = vpack.c.b16 %v2681, %v2680
        %v2692 = vpack.c.b16 %v2683, %v2682
        %v2693 = vpack.c.b16 %v2685, %v2684
        %2702 = vmatprep.subr.bf16.mxu0 0
        %2703 = vmatpush1.bf16.msra.mxu0 %v2686
        %2704 = vmatprep.subr.bf16.mxu0 0
        %2705 = vmatpush1.bf16.msra.mxu0 %v2687
        %2706 = vmatprep.subr.bf16.mxu0 0
        %2707 = vmatpush1.bf16.msra.mxu0 %v2688
        %2708 = vmatprep.subr.bf16.mxu0 0
        %2709 = vmatpush1.bf16.msra.mxu0 %v2689
        %2710 = vmatprep.subr.bf16.mxu0 0
        %2711 = vmatpush1.bf16.msra.mxu0 %v2690
        %2712 = vmatprep.subr.bf16.mxu0 0
        %2713 = vmatpush1.bf16.msra.mxu0 %v2691
        %2714 = vmatprep.subr.bf16.mxu0 0
        %2715 = vmatpush1.bf16.msra.mxu0 %v2692
        %2716 = vmatprep.subr.bf16.mxu0 0
        %2717 = vmatpush1.bf16.msra.mxu0 %v2693
        %2718 = vmatprep.subr.bf16.mxu0 0
        %2719 = vmatpush1.bf16.msra.mxu0 0
        %2720 = vmatprep.subr.bf16.mxu0 0
        %2721 = vmatpush1.bf16.msra.mxu0 0
        %2722 = vmatprep.subr.bf16.mxu0 0
        %2723 = vmatpush1.bf16.msra.mxu0 0
        %2724 = vmatprep.subr.bf16.mxu0 0
        %2725 = vmatpush1.bf16.msra.mxu0 0
        %2726 = vmatprep.subr.bf16.mxu0 0
        %2727 = vmatpush1.bf16.msra.mxu0 0
        %2728 = vmatprep.subr.bf16.mxu0 0
        %2729 = vmatpush1.bf16.msra.mxu0 0
        %2730 = vmatprep.subr.bf16.mxu0 0
        %2731 = vmatpush1.bf16.msra.mxu0 0
        %2732 = vmatprep.subr.bf16.mxu0 0
        %2733 = vmatpush1.bf16.msra.mxu0 0
        %2734 = vmatprep.mubr.bf16.mxu0 0
        %2735 = vmatmul.mubr.bf16.gmra.mrb[0].mxu0 %v2634
        %v2736 = vpop.f32.mrb[0].mxu0
        %v2737 = vadd.f32 0.0, %v2736
        %v2738 = vpop.f32.mrb[0].mxu0
        %v2739 = vpop.f32.mrb[0].mxu0
        %v2740 = vadd.f32 0.0, %v2739
        %v2741 = vpop.f32.mrb[0].mxu0
        %2742 = vmatprep.mubr.bf16.mxu0 0
        %2743 = vmatmul.mubr.bf16.gmra.mrb[0].mxu0 %v2635
        %v2744 = vpop.f32.mrb[0].mxu0
        %v2745 = vadd.f32 0.0, %v2744
        %v2746 = vpop.f32.mrb[0].mxu0
        %v2747 = vpop.f32.mrb[0].mxu0
        %v2748 = vadd.f32 0.0, %v2747
        %v2749 = vpop.f32.mrb[0].mxu0
        %2750 = vmatprep.mubr.bf16.mxu0 0
        %2751 = vmatmul.mubr.bf16.gmra.mrb[0].mxu0 %v2636
        %v2752 = vpop.f32.mrb[0].mxu0
        %v2753 = vadd.f32 0.0, %v2752
        %v2754 = vpop.f32.mrb[0].mxu0
        %v2755 = vpop.f32.mrb[0].mxu0
        %v2756 = vadd.f32 0.0, %v2755
        %v2757 = vpop.f32.mrb[0].mxu0
        %2758 = vmatprep.mubr.bf16.mxu0 0
        %2759 = vmatmul.mubr.bf16.gmra.mrb[0].mxu0 %v2637
        %v2760 = vpop.f32.mrb[0].mxu0
        %v2761 = vadd.f32 0.0, %v2760
        %v2762 = vpop.f32.mrb[0].mxu0
        %v2763 = vpop.f32.mrb[0].mxu0
        %v2764 = vadd.f32 0.0, %v2763
        %v2765 = vpop.f32.mrb[0].mxu0
        %2766 = vmatprep.mubr.bf16.mxu0 0
        %2767 = vmatmul.mubr.bf16.gmra.mrb[0].mxu0 %v2638
        %v2768 = vpop.f32.mrb[0].mxu0
        %v2769 = vadd.f32 0.0, %v2768
        %v2770 = vpop.f32.mrb[0].mxu0
        %v2771 = vpop.f32.mrb[0].mxu0
        %v2772 = vadd.f32 0.0, %v2771
        %v2773 = vpop.f32.mrb[0].mxu0
        %2774 = vmatprep.mubr.bf16.mxu0 0
        %2775 = vmatmul.mubr.bf16.gmra.mrb[0].mxu0 %v2639
        %v2776 = vpop.f32.mrb[0].mxu0
        %v2777 = vadd.f32 0.0, %v2776
        %v2778 = vpop.f32.mrb[0].mxu0
        %v2779 = vpop.f32.mrb[0].mxu0
        %v2780 = vadd.f32 0.0, %v2779
        %v2781 = vpop.f32.mrb[0].mxu0
        %2782 = vmatprep.mubr.bf16.mxu0 0
        %2783 = vmatmul.mubr.bf16.gmra.mrb[0].mxu0 %v2640
        %v2784 = vpop.f32.mrb[0].mxu0
        %v2785 = vadd.f32 0.0, %v2784
        %v2786 = vpop.f32.mrb[0].mxu0
        %v2787 = vpop.f32.mrb[0].mxu0
        %v2788 = vadd.f32 0.0, %v2787
        %v2789 = vpop.f32.mrb[0].mxu0
        %2790 = vmatprep.mubr.bf16.mxu0 0
        %2791 = vmatmul.mubr.bf16.gmra.mrb[0].mxu0 %v2641
        %v2792 = vpop.f32.mrb[0].mxu0
        %v2793 = vadd.f32 0.0, %v2792
        %v2794 = vpop.f32.mrb[0].mxu0
        %v2795 = vpop.f32.mrb[0].mxu0
        %v2796 = vadd.f32 0.0, %v2795
        %v2797 = vpop.f32.mrb[0].mxu0
        %2798 = vmatprep.mubr.bf16.mxu0 0
        %2799 = vmatmul.mubr.bf16.gmra.mrb[0].mxu0 %v2642
        %v2800 = vpop.f32.mrb[0].mxu0
        %v2801 = vadd.f32 0.0, %v2800
        %v2802 = vpop.f32.mrb[0].mxu0
        %v2803 = vpop.f32.mrb[0].mxu0
        %v2804 = vadd.f32 0.0, %v2803
        %v2805 = vpop.f32.mrb[0].mxu0
        %2806 = vmatprep.mubr.bf16.mxu0 0
        %2807 = vmatmul.mubr.bf16.gmra.mrb[0].mxu0 %v2643
        %v2808 = vpop.f32.mrb[0].mxu0
        %v2809 = vadd.f32 0.0, %v2808
        %v2810 = vpop.f32.mrb[0].mxu0
        %v2811 = vpop.f32.mrb[0].mxu0
        %v2812 = vadd.f32 0.0, %v2811
        %v2813 = vpop.f32.mrb[0].mxu0
        %2814 = vdwg.mxu0
        %v2815 = vadd.f32 %v2533, %v2737
        %v2816 = vadd.f32 %v2534, %v2740
        %v2817 = vadd.f32 %v2535, %v2745
        %v2818 = vadd.f32 %v2536, %v2748
        %v2819 = vadd.f32 %v2537, %v2753
        %v2820 = vadd.f32 %v2538, %v2756
        %v2821 = vadd.f32 %v2539, %v2761
        %v2822 = vadd.f32 %v2540, %v2764
        %v2823 = vadd.f32 %v2541, %v2769
        %v2824 = vadd.f32 %v2542, %v2772
        %v2825 = vadd.f32 %v2543, %v2777
        %v2826 = vadd.f32 %v2544, %v2780
        %v2827 = vadd.f32 %v2545, %v2785
        %v2828 = vadd.f32 %v2546, %v2788
        %v2829 = vadd.f32 %v2547, %v2793
        %v2830 = vadd.f32 %v2548, %v2796
        %v2831 = vadd.f32 %v2549, %v2801
        %v2832 = vadd.f32 %v2550, %v2804
        %v2833 = vadd.f32 %v2551, %v2809
        %v2834 = vadd.f32 %v2552, %v2812
        %v2835 = vld [vmem:[%s2556] sm:$0xf]
        %v2836 = vld [vmem:[%s2556 + $0x4] sm:$0xf]
        %v2837 = vld [vmem:[%s2556 + $0x8] sm:$0x1]
        %v2838 = vld [vmem:[%s2556 + $0xc] sm:$0xf]
        %v2839 = vld [vmem:[%s2556 + $0x10] sm:$0xf]
        %v2840 = vld [vmem:[%s2556 + $0x14] sm:$0x1]
        %v2841 = vld [vmem:[%s2556 + $0x18] sm:$0xf]
        %v2842 = vld [vmem:[%s2556 + $0x1c] sm:$0xf]
        %v2843 = vld [vmem:[%s2556 + $0x20] sm:$0x1]
        %v2844 = vld [vmem:[%s2556 + $0x24] sm:$0xf]
        %v2845 = vld [vmem:[%s2556 + $0x28] sm:$0xf]
        %v2846 = vld [vmem:[%s2556 + $0x2c] sm:$0x1]
        %v2847 = vld [vmem:[%s2556 + $0x30] sm:$0xf]
        %v2848 = vld [vmem:[%s2556 + $0x34] sm:$0xf]
        %v2849 = vld [vmem:[%s2556 + $0x38] sm:$0x1]
        %v2850 = vld [vmem:[%s2556 + $0x3c] sm:$0xf]
        %v2851 = vld [vmem:[%s2556 + $0x40] sm:$0xf]
        %v2852 = vld [vmem:[%s2556 + $0x44] sm:$0x1]
        %v2853 = vld [vmem:[%s2556 + $0x48] sm:$0xf]
        %v2854 = vld [vmem:[%s2556 + $0x4c] sm:$0xf]
        %v2855 = vld [vmem:[%s2556 + $0x50] sm:$0x1]
        %v2856 = vld [vmem:[%s2556 + $0x54] sm:$0xf]
        %v2857 = vld [vmem:[%s2556 + $0x58] sm:$0xf]
        %v2858 = vld [vmem:[%s2556 + $0x5c] sm:$0x1]
        %v2859 = vld [vmem:[%s2556 + $0x60] sm:$0xf]
        %v2860 = vld [vmem:[%s2556 + $0x64] sm:$0xf]
        %v2861 = vld [vmem:[%s2556 + $0x68] sm:$0x1]
        %v2862 = vld [vmem:[%s2556 + $0x6c] sm:$0xf]
        %v2863 = vld [vmem:[%s2556 + $0x70] sm:$0xf]
        %v2864 = vld [vmem:[%s2556 + $0x74] sm:$0x1]
        %v2866 = vshrl.u32 %v2835, 16
        %v2868 = vrot.slane %v2866, 4
        %v2869 = vshll.u32 %v2835, 16
        %v2871 = vrot.slane %v2869, 5
        %v2872 = vor.u32 %v2868, %v2871
        %v2873 = vrot.slane %v2872, 4
        %v2875 = vshll.u32 %v2836, 16
        %v2877 = vrot.slane %v2875, 5
        %v2878 = vsel %vm394, %v2873, %v2877
        %v2879 = vshrl.u32 %v2836, 16
        %v2881 = vrot.slane %v2879, 4
        %v2882 = vor.u32 %v2881, %v2877
        %v2883 = vrot.slane %v2882, 4
        %v2885 = vshll.u32 %v2837, 16
        %v2887 = vrot.slane %v2885, 5
        %v2888 = vsel %vm394, %v2883, %v2887
        %v2890 = vshrl.u32 %v2838, 16
        %v2892 = vrot.slane %v2890, 4
        %v2893 = vshll.u32 %v2838, 16
        %v2895 = vrot.slane %v2893, 5
        %v2896 = vor.u32 %v2892, %v2895
        %v2897 = vrot.slane %v2896, 4
        %v2899 = vshll.u32 %v2839, 16
        %v2901 = vrot.slane %v2899, 5
        %v2902 = vsel %vm394, %v2897, %v2901
        %v2903 = vshrl.u32 %v2839, 16
        %v2905 = vrot.slane %v2903, 4
        %v2906 = vor.u32 %v2905, %v2901
        %v2907 = vrot.slane %v2906, 4
        %v2909 = vshll.u32 %v2840, 16
        %v2911 = vrot.slane %v2909, 5
        %v2912 = vsel %vm394, %v2907, %v2911
        %v2914 = vshrl.u32 %v2841, 16
        %v2916 = vrot.slane %v2914, 4
        %v2917 = vshll.u32 %v2841, 16
        %v2919 = vrot.slane %v2917, 5
        %v2920 = vor.u32 %v2916, %v2919
        %v2921 = vrot.slane %v2920, 4
        %v2923 = vshll.u32 %v2842, 16
        %v2925 = vrot.slane %v2923, 5
        %v2926 = vsel %vm394, %v2921, %v2925
        %v2927 = vshrl.u32 %v2842, 16
        %v2929 = vrot.slane %v2927, 4
        %v2930 = vor.u32 %v2929, %v2925
        %v2931 = vrot.slane %v2930, 4
        %v2933 = vshll.u32 %v2843, 16
        %v2935 = vrot.slane %v2933, 5
        %v2936 = vsel %vm394, %v2931, %v2935
        %v2938 = vshrl.u32 %v2844, 16
        %v2940 = vrot.slane %v2938, 4
        %v2941 = vshll.u32 %v2844, 16
        %v2943 = vrot.slane %v2941, 5
        %v2944 = vor.u32 %v2940, %v2943
        %v2945 = vrot.slane %v2944, 4
        %v2947 = vshll.u32 %v2845, 16
        %v2949 = vrot.slane %v2947, 5
        %v2950 = vsel %vm394, %v2945, %v2949
        %v2951 = vshrl.u32 %v2845, 16
        %v2953 = vrot.slane %v2951, 4
        %v2954 = vor.u32 %v2953, %v2949
        %v2955 = vrot.slane %v2954, 4
        %v2957 = vshll.u32 %v2846, 16
        %v2959 = vrot.slane %v2957, 5
        %v2960 = vsel %vm394, %v2955, %v2959
        %v2962 = vshrl.u32 %v2847, 16
        %v2964 = vrot.slane %v2962, 4
        %v2965 = vshll.u32 %v2847, 16
        %v2967 = vrot.slane %v2965, 5
        %v2968 = vor.u32 %v2964, %v2967
        %v2969 = vrot.slane %v2968, 4
        %v2971 = vshll.u32 %v2848, 16
        %v2973 = vrot.slane %v2971, 5
        %v2974 = vsel %vm394, %v2969, %v2973
        %v2975 = vshrl.u32 %v2848, 16
        %v2977 = vrot.slane %v2975, 4
        %v2978 = vor.u32 %v2977, %v2973
        %v2979 = vrot.slane %v2978, 4
        %v2981 = vshll.u32 %v2849, 16
        %v2983 = vrot.slane %v2981, 5
        %v2984 = vsel %vm394, %v2979, %v2983
        %v2986 = vshrl.u32 %v2850, 16
        %v2988 = vrot.slane %v2986, 4
        %v2989 = vshll.u32 %v2850, 16
        %v2991 = vrot.slane %v2989, 5
        %v2992 = vor.u32 %v2988, %v2991
        %v2993 = vrot.slane %v2992, 4
        %v2995 = vshll.u32 %v2851, 16
        %v2997 = vrot.slane %v2995, 5
        %v2998 = vsel %vm394, %v2993, %v2997
        %v2999 = vshrl.u32 %v2851, 16
        %v3001 = vrot.slane %v2999, 4
        %v3002 = vor.u32 %v3001, %v2997
        %v3003 = vrot.slane %v3002, 4
        %v3005 = vshll.u32 %v2852, 16
        %v3007 = vrot.slane %v3005, 5
        %v3008 = vsel %vm394, %v3003, %v3007
        %v3010 = vshrl.u32 %v2853, 16
        %v3012 = vrot.slane %v3010, 4
        %v3013 = vshll.u32 %v2853, 16
        %v3015 = vrot.slane %v3013, 5
        %v3016 = vor.u32 %v3012, %v3015
        %v3017 = vrot.slane %v3016, 4
        %v3019 = vshll.u32 %v2854, 16
        %v3021 = vrot.slane %v3019, 5
        %v3022 = vsel %vm394, %v3017, %v3021
        %v3023 = vshrl.u32 %v2854, 16
        %v3025 = vrot.slane %v3023, 4
        %v3026 = vor.u32 %v3025, %v3021
        %v3027 = vrot.slane %v3026, 4
        %v3029 = vshll.u32 %v2855, 16
        %v3031 = vrot.slane %v3029, 5
        %v3032 = vsel %vm394, %v3027, %v3031
        %v3034 = vshrl.u32 %v2856, 16
        %v3036 = vrot.slane %v3034, 4
        %v3037 = vshll.u32 %v2856, 16
        %v3039 = vrot.slane %v3037, 5
        %v3040 = vor.u32 %v3036, %v3039
        %v3041 = vrot.slane %v3040, 4
        %v3043 = vshll.u32 %v2857, 16
        %v3045 = vrot.slane %v3043, 5
        %v3046 = vsel %vm394, %v3041, %v3045
        %v3047 = vshrl.u32 %v2857, 16
        %v3049 = vrot.slane %v3047, 4
        %v3050 = vor.u32 %v3049, %v3045
        %v3051 = vrot.slane %v3050, 4
        %v3053 = vshll.u32 %v2858, 16
        %v3055 = vrot.slane %v3053, 5
        %v3056 = vsel %vm394, %v3051, %v3055
        %v3058 = vshrl.u32 %v2859, 16
        %v3060 = vrot.slane %v3058, 4
        %v3061 = vshll.u32 %v2859, 16
        %v3063 = vrot.slane %v3061, 5
        %v3064 = vor.u32 %v3060, %v3063
        %v3065 = vrot.slane %v3064, 4
        %v3067 = vshll.u32 %v2860, 16
        %v3069 = vrot.slane %v3067, 5
        %v3070 = vsel %vm394, %v3065, %v3069
        %v3071 = vshrl.u32 %v2860, 16
        %v3073 = vrot.slane %v3071, 4
        %v3074 = vor.u32 %v3073, %v3069
        %v3075 = vrot.slane %v3074, 4
        %v3077 = vshll.u32 %v2861, 16
        %v3079 = vrot.slane %v3077, 5
        %v3080 = vsel %vm394, %v3075, %v3079
        %v3082 = vshrl.u32 %v2862, 16
        %v3084 = vrot.slane %v3082, 4
        %v3085 = vshll.u32 %v2862, 16
        %v3087 = vrot.slane %v3085, 5
        %v3088 = vor.u32 %v3084, %v3087
        %v3089 = vrot.slane %v3088, 4
        %v3091 = vshll.u32 %v2863, 16
        %v3093 = vrot.slane %v3091, 5
        %v3094 = vsel %vm394, %v3089, %v3093
        %v3095 = vshrl.u32 %v2863, 16
        %v3097 = vrot.slane %v3095, 4
        %v3098 = vor.u32 %v3097, %v3093
        %v3099 = vrot.slane %v3098, 4
        %v3101 = vshll.u32 %v2864, 16
        %v3103 = vrot.slane %v3101, 5
        %v3104 = vsel %vm394, %v3099, %v3103
        %s3105 = scalar_lea.vmem [#allocation6], 448
        %v3106 = vld [vmem:[%s3105] sm:$0xf]
        %v3107 = vld [vmem:[%s3105 + $0x4] sm:$0xf]
        %v3108 = vld [vmem:[%s3105 + $0x8] sm:$0xf]
        %v3109 = vld [vmem:[%s3105 + $0xc] sm:$0xf]
        %v3110 = vld [vmem:[%s3105 + $0x10] sm:$0xf]
        %v3111 = vld [vmem:[%s3105 + $0x14] sm:$0xf]
        %v3112 = vld [vmem:[%s3105 + $0x18] sm:$0xf]
        %v3113 = vld [vmem:[%s3105 + $0x1c] sm:$0xf]
        %v3114 = vld [vmem:[%s3105 + $0x20] sm:$0xf]
        %v3115 = vld [vmem:[%s3105 + $0x24] sm:$0xf]
        %v3116 = vld [vmem:[%s3105 + $0x28] sm:$0xf]
        %v3117 = vld [vmem:[%s3105 + $0x2c] sm:$0xf]
        %v3118 = vld [vmem:[%s3105 + $0x30] sm:$0xf]
        %v3119 = vld [vmem:[%s3105 + $0x34] sm:$0xf]
        %v3120 = vld [vmem:[%s3105 + $0x38] sm:$0xf]
        %v3121 = vld [vmem:[%s3105 + $0x3c] sm:$0xf]
        %v3122 = vunpack.c.l.b16 %v2878
        %v3123 = vunpack.c.l.b16 %v2888
        %v3124 = vunpack.c.l.b16 %v2902
        %v3125 = vunpack.c.l.b16 %v2912
        %v3126 = vunpack.c.l.b16 %v2926
        %v3127 = vunpack.c.l.b16 %v2936
        %v3128 = vunpack.c.l.b16 %v2950
        %v3129 = vunpack.c.l.b16 %v2960
        %v3130 = vunpack.c.l.b16 %v2974
        %v3131 = vunpack.c.l.b16 %v2984
        %v3132 = vunpack.c.l.b16 %v2998
        %v3133 = vunpack.c.l.b16 %v3008
        %v3134 = vunpack.c.l.b16 %v3022
        %v3135 = vunpack.c.l.b16 %v3032
        %v3136 = vunpack.c.l.b16 %v3046
        %v3137 = vunpack.c.l.b16 %v3056
        %v3138 = vunpack.c.l.b16 %v3070
        %v3139 = vunpack.c.l.b16 %v3080
        %v3140 = vunpack.c.l.b16 %v3094
        %v3141 = vunpack.c.l.b16 %v3104
        %v3142 = vpack.c.b16 %v3123, %v3122
        %v3143 = vpack.c.b16 %v3125, %v3124
        %v3144 = vpack.c.b16 %v3127, %v3126
        %v3145 = vpack.c.b16 %v3129, %v3128
        %v3146 = vpack.c.b16 %v3131, %v3130
        %v3147 = vpack.c.b16 %v3133, %v3132
        %v3148 = vpack.c.b16 %v3135, %v3134
        %v3149 = vpack.c.b16 %v3137, %v3136
        %v3150 = vpack.c.b16 %v3139, %v3138
        %v3151 = vpack.c.b16 %v3141, %v3140
        %v3178 = vunpack.c.l.b16 %v3106
        %v3179 = vunpack.c.l.b16 %v3107
        %v3180 = vunpack.c.l.b16 %v3108
        %v3181 = vunpack.c.l.b16 %v3109
        %v3182 = vunpack.c.l.b16 %v3110
        %v3183 = vunpack.c.l.b16 %v3111
        %v3184 = vunpack.c.l.b16 %v3112
        %v3185 = vunpack.c.l.b16 %v3113
        %v3186 = vunpack.c.l.b16 %v3114
        %v3187 = vunpack.c.l.b16 %v3115
        %v3188 = vunpack.c.l.b16 %v3116
        %v3189 = vunpack.c.l.b16 %v3117
        %v3190 = vunpack.c.l.b16 %v3118
        %v3191 = vunpack.c.l.b16 %v3119
        %v3192 = vunpack.c.l.b16 %v3120
        %v3193 = vunpack.c.l.b16 %v3121
        %v3194 = vpack.c.b16 %v3179, %v3178
        %v3195 = vpack.c.b16 %v3181, %v3180
        %v3196 = vpack.c.b16 %v3183, %v3182
        %v3197 = vpack.c.b16 %v3185, %v3184
        %v3198 = vpack.c.b16 %v3187, %v3186
        %v3199 = vpack.c.b16 %v3189, %v3188
        %v3200 = vpack.c.b16 %v3191, %v3190
        %v3201 = vpack.c.b16 %v3193, %v3192
        %3210 = vmatprep.subr.bf16.mxu0 0
        %3211 = vmatpush1.bf16.msra.mxu0 %v3194
        %3212 = vmatprep.subr.bf16.mxu0 0
        %3213 = vmatpush1.bf16.msra.mxu0 %v3195
        %3214 = vmatprep.subr.bf16.mxu0 0
        %3215 = vmatpush1.bf16.msra.mxu0 %v3196
        %3216 = vmatprep.subr.bf16.mxu0 0
        %3217 = vmatpush1.bf16.msra.mxu0 %v3197
        %3218 = vmatprep.subr.bf16.mxu0 0
        %3219 = vmatpush1.bf16.msra.mxu0 %v3198
        %3220 = vmatprep.subr.bf16.mxu0 0
        %3221 = vmatpush1.bf16.msra.mxu0 %v3199
        %3222 = vmatprep.subr.bf16.mxu0 0
        %3223 = vmatpush1.bf16.msra.mxu0 %v3200
        %3224 = vmatprep.subr.bf16.mxu0 0
        %3225 = vmatpush1.bf16.msra.mxu0 %v3201
        %3226 = vmatprep.subr.bf16.mxu0 0
        %3227 = vmatpush1.bf16.msra.mxu0 0
        %3228 = vmatprep.subr.bf16.mxu0 0
        %3229 = vmatpush1.bf16.msra.mxu0 0
        %3230 = vmatprep.subr.bf16.mxu0 0
        %3231 = vmatpush1.bf16.msra.mxu0 0
        %3232 = vmatprep.subr.bf16.mxu0 0
        %3233 = vmatpush1.bf16.msra.mxu0 0
        %3234 = vmatprep.subr.bf16.mxu0 0
        %3235 = vmatpush1.bf16.msra.mxu0 0
        %3236 = vmatprep.subr.bf16.mxu0 0
        %3237 = vmatpush1.bf16.msra.mxu0 0
        %3238 = vmatprep.subr.bf16.mxu0 0
        %3239 = vmatpush1.bf16.msra.mxu0 0
        %3240 = vmatprep.subr.bf16.mxu0 0
        %3241 = vmatpush1.bf16.msra.mxu0 0
        %3242 = vmatprep.mubr.bf16.mxu0 0
        %3243 = vmatmul.mubr.bf16.gmra.mrb[0].mxu0 %v3142
        %v3244 = vpop.f32.mrb[0].mxu0
        %v3245 = vadd.f32 0.0, %v3244
        %v3246 = vpop.f32.mrb[0].mxu0
        %v3247 = vpop.f32.mrb[0].mxu0
        %v3248 = vadd.f32 0.0, %v3247
        %v3249 = vpop.f32.mrb[0].mxu0
        %3250 = vmatprep.mubr.bf16.mxu0 0
        %3251 = vmatmul.mubr.bf16.gmra.mrb[0].mxu0 %v3143
        %v3252 = vpop.f32.mrb[0].mxu0
        %v3253 = vadd.f32 0.0, %v3252
        %v3254 = vpop.f32.mrb[0].mxu0
        %v3255 = vpop.f32.mrb[0].mxu0
        %v3256 = vadd.f32 0.0, %v3255
        %v3257 = vpop.f32.mrb[0].mxu0
        %3258 = vmatprep.mubr.bf16.mxu0 0
        %3259 = vmatmul.mubr.bf16.gmra.mrb[0].mxu0 %v3144
        %v3260 = vpop.f32.mrb[0].mxu0
        %v3261 = vadd.f32 0.0, %v3260
        %v3262 = vpop.f32.mrb[0].mxu0
        %v3263 = vpop.f32.mrb[0].mxu0
        %v3264 = vadd.f32 0.0, %v3263
        %v3265 = vpop.f32.mrb[0].mxu0
        %3266 = vmatprep.mubr.bf16.mxu0 0
        %3267 = vmatmul.mubr.bf16.gmra.mrb[0].mxu0 %v3145
        %v3268 = vpop.f32.mrb[0].mxu0
        %v3269 = vadd.f32 0.0, %v3268
        %v3270 = vpop.f32.mrb[0].mxu0
        %v3271 = vpop.f32.mrb[0].mxu0
        %v3272 = vadd.f32 0.0, %v3271
        %v3273 = vpop.f32.mrb[0].mxu0
        %3274 = vmatprep.mubr.bf16.mxu0 0
        %3275 = vmatmul.mubr.bf16.gmra.mrb[0].mxu0 %v3146
        %v3276 = vpop.f32.mrb[0].mxu0
        %v3277 = vadd.f32 0.0, %v3276
        %v3278 = vpop.f32.mrb[0].mxu0
        %v3279 = vpop.f32.mrb[0].mxu0
        %v3280 = vadd.f32 0.0, %v3279
        %v3281 = vpop.f32.mrb[0].mxu0
        %3282 = vmatprep.mubr.bf16.mxu0 0
        %3283 = vmatmul.mubr.bf16.gmra.mrb[0].mxu0 %v3147
        %v3284 = vpop.f32.mrb[0].mxu0
        %v3285 = vadd.f32 0.0, %v3284
        %v3286 = vpop.f32.mrb[0].mxu0
        %v3287 = vpop.f32.mrb[0].mxu0
        %v3288 = vadd.f32 0.0, %v3287
        %v3289 = vpop.f32.mrb[0].mxu0
        %3290 = vmatprep.mubr.bf16.mxu0 0
        %3291 = vmatmul.mubr.bf16.gmra.mrb[0].mxu0 %v3148
        %v3292 = vpop.f32.mrb[0].mxu0
        %v3293 = vadd.f32 0.0, %v3292
        %v3294 = vpop.f32.mrb[0].mxu0
        %v3295 = vpop.f32.mrb[0].mxu0
        %v3296 = vadd.f32 0.0, %v3295
        %v3297 = vpop.f32.mrb[0].mxu0
        %3298 = vmatprep.mubr.bf16.mxu0 0
        %3299 = vmatmul.mubr.bf16.gmra.mrb[0].mxu0 %v3149
        %v3300 = vpop.f32.mrb[0].mxu0
        %v3301 = vadd.f32 0.0, %v3300
        %v3302 = vpop.f32.mrb[0].mxu0
        %v3303 = vpop.f32.mrb[0].mxu0
        %v3304 = vadd.f32 0.0, %v3303
        %v3305 = vpop.f32.mrb[0].mxu0
        %3306 = vmatprep.mubr.bf16.mxu0 0
        %3307 = vmatmul.mubr.bf16.gmra.mrb[0].mxu0 %v3150
        %v3308 = vpop.f32.mrb[0].mxu0
        %v3309 = vadd.f32 0.0, %v3308
        %v3310 = vpop.f32.mrb[0].mxu0
        %v3311 = vpop.f32.mrb[0].mxu0
        %v3312 = vadd.f32 0.0, %v3311
        %v3313 = vpop.f32.mrb[0].mxu0
        %3314 = vmatprep.mubr.bf16.mxu0 0
        %3315 = vmatmul.mubr.bf16.gmra.mrb[0].mxu0 %v3151
        %v3316 = vpop.f32.mrb[0].mxu0
        %v3317 = vadd.f32 0.0, %v3316
        %v3318 = vpop.f32.mrb[0].mxu0
        %v3319 = vpop.f32.mrb[0].mxu0
        %v3320 = vadd.f32 0.0, %v3319
        %v3321 = vpop.f32.mrb[0].mxu0
        %3322 = vdwg.mxu0
        %v3323 = vadd.f32 %v2815, %v3245
        %v3324 = vadd.f32 %v2816, %v3248
        %v3325 = vadd.f32 %v2817, %v3253
        %v3326 = vadd.f32 %v2818, %v3256
        %v3327 = vadd.f32 %v2819, %v3261
        %v3328 = vadd.f32 %v2820, %v3264
        %v3329 = vadd.f32 %v2821, %v3269
        %v3330 = vadd.f32 %v2822, %v3272
        %v3331 = vadd.f32 %v2823, %v3277
        %v3332 = vadd.f32 %v2824, %v3280
        %v3333 = vadd.f32 %v2825, %v3285
        %v3334 = vadd.f32 %v2826, %v3288
        %v3335 = vadd.f32 %v2827, %v3293
        %v3336 = vadd.f32 %v2828, %v3296
        %v3337 = vadd.f32 %v2829, %v3301
        %v3338 = vadd.f32 %v2830, %v3304
        %v3339 = vadd.f32 %v2831, %v3309
        %v3340 = vadd.f32 %v2832, %v3312
        %v3341 = vadd.f32 %v2833, %v3317
        %v3342 = vadd.f32 %v2834, %v3320
        %v3343 = vld [vmem:[%s2556] sm:$0xe]
        %v3344 = vld [vmem:[%s2556 + $0xc] sm:$0xe]
        %v3345 = vld [vmem:[%s2556 + $0x18] sm:$0xe]
        %v3346 = vld [vmem:[%s2556 + $0x24] sm:$0xe]
        %v3347 = vld [vmem:[%s2556 + $0x30] sm:$0xe]
        %v3348 = vld [vmem:[%s2556 + $0x3c] sm:$0xe]
        %v3349 = vld [vmem:[%s2556 + $0x48] sm:$0xe]
        %v3350 = vld [vmem:[%s2556 + $0x54] sm:$0xe]
        %v3351 = vld [vmem:[%s2556 + $0x60] sm:$0xe]
        %v3352 = vld [vmem:[%s2556 + $0x6c] sm:$0xe]
        %v3383 = vrot.slane %v3343, 5
        %v3384 = vrot.slane %v3383, 4
        %v3385 = vrot.slane %v2836, 5
        %v3386 = vsel %vm1106, %v3384, %v3385
        %v3387 = vrot.slane %v3385, 4
        %v3388 = vrot.slane %v2837, 5
        %v3389 = vsel %vm1106, %v3387, %v3388
        %v3390 = vrot.slane %v3344, 5
        %v3391 = vrot.slane %v3390, 4
        %v3392 = vrot.slane %v2839, 5
        %v3393 = vsel %vm1106, %v3391, %v3392
        %v3394 = vrot.slane %v3392, 4
        %v3395 = vrot.slane %v2840, 5
        %v3396 = vsel %vm1106, %v3394, %v3395
        %v3397 = vrot.slane %v3345, 5
        %v3398 = vrot.slane %v3397, 4
        %v3399 = vrot.slane %v2842, 5
        %v3400 = vsel %vm1106, %v3398, %v3399
        %v3401 = vrot.slane %v3399, 4
        %v3402 = vrot.slane %v2843, 5
        %v3403 = vsel %vm1106, %v3401, %v3402
        %v3404 = vrot.slane %v3346, 5
        %v3405 = vrot.slane %v3404, 4
        %v3406 = vrot.slane %v2845, 5
        %v3407 = vsel %vm1106, %v3405, %v3406
        %v3408 = vrot.slane %v3406, 4
        %v3409 = vrot.slane %v2846, 5
        %v3410 = vsel %vm1106, %v3408, %v3409
        %v3411 = vrot.slane %v3347, 5
        %v3412 = vrot.slane %v3411, 4
        %v3413 = vrot.slane %v2848, 5
        %v3414 = vsel %vm1106, %v3412, %v3413
        %v3415 = vrot.slane %v3413, 4
        %v3416 = vrot.slane %v2849, 5
        %v3417 = vsel %vm1106, %v3415, %v3416
        %v3418 = vrot.slane %v3348, 5
        %v3419 = vrot.slane %v3418, 4
        %v3420 = vrot.slane %v2851, 5
        %v3421 = vsel %vm1106, %v3419, %v3420
        %v3422 = vrot.slane %v3420, 4
        %v3423 = vrot.slane %v2852, 5
        %v3424 = vsel %vm1106, %v3422, %v3423
        %v3425 = vrot.slane %v3349, 5
        %v3426 = vrot.slane %v3425, 4
        %v3427 = vrot.slane %v2854, 5
        %v3428 = vsel %vm1106, %v3426, %v3427
        %v3429 = vrot.slane %v3427, 4
        %v3430 = vrot.slane %v2855, 5
        %v3431 = vsel %vm1106, %v3429, %v3430
        %v3432 = vrot.slane %v3350, 5
        %v3433 = vrot.slane %v3432, 4
        %v3434 = vrot.slane %v2857, 5
        %v3435 = vsel %vm1106, %v3433, %v3434
        %v3436 = vrot.slane %v3434, 4
        %v3437 = vrot.slane %v2858, 5
        %v3438 = vsel %vm1106, %v3436, %v3437
        %v3439 = vrot.slane %v3351, 5
        %v3440 = vrot.slane %v3439, 4
        %v3441 = vrot.slane %v2860, 5
        %v3442 = vsel %vm1106, %v3440, %v3441
        %v3443 = vrot.slane %v3441, 4
        %v3444 = vrot.slane %v2861, 5
        %v3445 = vsel %vm1106, %v3443, %v3444
        %v3446 = vrot.slane %v3352, 5
        %v3447 = vrot.slane %v3446, 4
        %v3448 = vrot.slane %v2863, 5
        %v3449 = vsel %vm1106, %v3447, %v3448
        %v3450 = vrot.slane %v3448, 4
        %v3451 = vrot.slane %v2864, 5
        %v3452 = vsel %vm1106, %v3450, %v3451
        %s3453 = scalar_lea.vmem [#allocation6], 512
        %v3454 = vld [vmem:[%s3453] sm:$0xf]
        %v3455 = vld [vmem:[%s3453 + $0x4] sm:$0xf]
        %v3456 = vld [vmem:[%s3453 + $0x8] sm:$0xf]
        %v3457 = vld [vmem:[%s3453 + $0xc] sm:$0xf]
        %v3458 = vld [vmem:[%s3453 + $0x10] sm:$0xf]
        %v3459 = vld [vmem:[%s3453 + $0x14] sm:$0xf]
        %v3460 = vld [vmem:[%s3453 + $0x18] sm:$0xf]
        %v3461 = vld [vmem:[%s3453 + $0x1c] sm:$0xf]
        %v3462 = vld [vmem:[%s3453 + $0x20] sm:$0xf]
        %v3463 = vld [vmem:[%s3453 + $0x24] sm:$0xf]
        %v3464 = vld [vmem:[%s3453 + $0x28] sm:$0xf]
        %v3465 = vld [vmem:[%s3453 + $0x2c] sm:$0xf]
        %v3466 = vld [vmem:[%s3453 + $0x30] sm:$0xf]
        %v3467 = vld [vmem:[%s3453 + $0x34] sm:$0xf]
        %v3468 = vld [vmem:[%s3453 + $0x38] sm:$0xf]
        %v3469 = vld [vmem:[%s3453 + $0x3c] sm:$0xf]
        %v3470 = vunpack.c.l.b16 %v3386
        %v3471 = vunpack.c.l.b16 %v3389
        %v3472 = vunpack.c.l.b16 %v3393
        %v3473 = vunpack.c.l.b16 %v3396
        %v3474 = vunpack.c.l.b16 %v3400
        %v3475 = vunpack.c.l.b16 %v3403
        %v3476 = vunpack.c.l.b16 %v3407
        %v3477 = vunpack.c.l.b16 %v3410
        %v3478 = vunpack.c.l.b16 %v3414
        %v3479 = vunpack.c.l.b16 %v3417
        %v3480 = vunpack.c.l.b16 %v3421
        %v3481 = vunpack.c.l.b16 %v3424
        %v3482 = vunpack.c.l.b16 %v3428
        %v3483 = vunpack.c.l.b16 %v3431
        %v3484 = vunpack.c.l.b16 %v3435
        %v3485 = vunpack.c.l.b16 %v3438
        %v3486 = vunpack.c.l.b16 %v3442
        %v3487 = vunpack.c.l.b16 %v3445
        %v3488 = vunpack.c.l.b16 %v3449
        %v3489 = vunpack.c.l.b16 %v3452
        %v3490 = vpack.c.b16 %v3471, %v3470
        %v3491 = vpack.c.b16 %v3473, %v3472
        %v3492 = vpack.c.b16 %v3475, %v3474
        %v3493 = vpack.c.b16 %v3477, %v3476
        %v3494 = vpack.c.b16 %v3479, %v3478
        %v3495 = vpack.c.b16 %v3481, %v3480
        %v3496 = vpack.c.b16 %v3483, %v3482
        %v3497 = vpack.c.b16 %v3485, %v3484
        %v3498 = vpack.c.b16 %v3487, %v3486
        %v3499 = vpack.c.b16 %v3489, %v3488
        %v3526 = vunpack.c.l.b16 %v3454
        %v3527 = vunpack.c.l.b16 %v3455
        %v3528 = vunpack.c.l.b16 %v3456
        %v3529 = vunpack.c.l.b16 %v3457
        %v3530 = vunpack.c.l.b16 %v3458
        %v3531 = vunpack.c.l.b16 %v3459
        %v3532 = vunpack.c.l.b16 %v3460
        %v3533 = vunpack.c.l.b16 %v3461
        %v3534 = vunpack.c.l.b16 %v3462
        %v3535 = vunpack.c.l.b16 %v3463
        %v3536 = vunpack.c.l.b16 %v3464
        %v3537 = vunpack.c.l.b16 %v3465
        %v3538 = vunpack.c.l.b16 %v3466
        %v3539 = vunpack.c.l.b16 %v3467
        %v3540 = vunpack.c.l.b16 %v3468
        %v3541 = vunpack.c.l.b16 %v3469
        %v3542 = vpack.c.b16 %v3527, %v3526
        %v3543 = vpack.c.b16 %v3529, %v3528
        %v3544 = vpack.c.b16 %v3531, %v3530
        %v3545 = vpack.c.b16 %v3533, %v3532
        %v3546 = vpack.c.b16 %v3535, %v3534
        %v3547 = vpack.c.b16 %v3537, %v3536
        %v3548 = vpack.c.b16 %v3539, %v3538
        %v3549 = vpack.c.b16 %v3541, %v3540
        %3558 = vmatprep.subr.bf16.mxu0 0
        %3559 = vmatpush1.bf16.msra.mxu0 %v3542
        %3560 = vmatprep.subr.bf16.mxu0 0
        %3561 = vmatpush1.bf16.msra.mxu0 %v3543
        %3562 = vmatprep.subr.bf16.mxu0 0
        %3563 = vmatpush1.bf16.msra.mxu0 %v3544
        %3564 = vmatprep.subr.bf16.mxu0 0
        %3565 = vmatpush1.bf16.msra.mxu0 %v3545
        %3566 = vmatprep.subr.bf16.mxu0 0
        %3567 = vmatpush1.bf16.msra.mxu0 %v3546
        %3568 = vmatprep.subr.bf16.mxu0 0
        %3569 = vmatpush1.bf16.msra.mxu0 %v3547
        %3570 = vmatprep.subr.bf16.mxu0 0
        %3571 = vmatpush1.bf16.msra.mxu0 %v3548
        %3572 = vmatprep.subr.bf16.mxu0 0
        %3573 = vmatpush1.bf16.msra.mxu0 %v3549
        %3574 = vmatprep.subr.bf16.mxu0 0
        %3575 = vmatpush1.bf16.msra.mxu0 0
        %3576 = vmatprep.subr.bf16.mxu0 0
        %3577 = vmatpush1.bf16.msra.mxu0 0
        %3578 = vmatprep.subr.bf16.mxu0 0
        %3579 = vmatpush1.bf16.msra.mxu0 0
        %3580 = vmatprep.subr.bf16.mxu0 0
        %3581 = vmatpush1.bf16.msra.mxu0 0
        %3582 = vmatprep.subr.bf16.mxu0 0
        %3583 = vmatpush1.bf16.msra.mxu0 0
        %3584 = vmatprep.subr.bf16.mxu0 0
        %3585 = vmatpush1.bf16.msra.mxu0 0
        %3586 = vmatprep.subr.bf16.mxu0 0
        %3587 = vmatpush1.bf16.msra.mxu0 0
        %3588 = vmatprep.subr.bf16.mxu0 0
        %3589 = vmatpush1.bf16.msra.mxu0 0
        %3590 = vmatprep.mubr.bf16.mxu0 0
        %3591 = vmatmul.mubr.bf16.gmra.mrb[0].mxu0 %v3490
        %v3592 = vpop.f32.mrb[0].mxu0
        %v3593 = vadd.f32 0.0, %v3592
        %v3594 = vpop.f32.mrb[0].mxu0
        %v3595 = vpop.f32.mrb[0].mxu0
        %v3596 = vadd.f32 0.0, %v3595
        %v3597 = vpop.f32.mrb[0].mxu0
        %3598 = vmatprep.mubr.bf16.mxu0 0
        %3599 = vmatmul.mubr.bf16.gmra.mrb[0].mxu0 %v3491
        %v3600 = vpop.f32.mrb[0].mxu0
        %v3601 = vadd.f32 0.0, %v3600
        %v3602 = vpop.f32.mrb[0].mxu0
        %v3603 = vpop.f32.mrb[0].mxu0
        %v3604 = vadd.f32 0.0, %v3603
        %v3605 = vpop.f32.mrb[0].mxu0
        %3606 = vmatprep.mubr.bf16.mxu0 0
        %3607 = vmatmul.mubr.bf16.gmra.mrb[0].mxu0 %v3492
        %v3608 = vpop.f32.mrb[0].mxu0
        %v3609 = vadd.f32 0.0, %v3608
        %v3610 = vpop.f32.mrb[0].mxu0
        %v3611 = vpop.f32.mrb[0].mxu0
        %v3612 = vadd.f32 0.0, %v3611
        %v3613 = vpop.f32.mrb[0].mxu0
        %3614 = vmatprep.mubr.bf16.mxu0 0
        %3615 = vmatmul.mubr.bf16.gmra.mrb[0].mxu0 %v3493
        %v3616 = vpop.f32.mrb[0].mxu0
        %v3617 = vadd.f32 0.0, %v3616
        %v3618 = vpop.f32.mrb[0].mxu0
        %v3619 = vpop.f32.mrb[0].mxu0
        %v3620 = vadd.f32 0.0, %v3619
        %v3621 = vpop.f32.mrb[0].mxu0
        %3622 = vmatprep.mubr.bf16.mxu0 0
        %3623 = vmatmul.mubr.bf16.gmra.mrb[0].mxu0 %v3494
        %v3624 = vpop.f32.mrb[0].mxu0
        %v3625 = vadd.f32 0.0, %v3624
        %v3626 = vpop.f32.mrb[0].mxu0
        %v3627 = vpop.f32.mrb[0].mxu0
        %v3628 = vadd.f32 0.0, %v3627
        %v3629 = vpop.f32.mrb[0].mxu0
        %3630 = vmatprep.mubr.bf16.mxu0 0
        %3631 = vmatmul.mubr.bf16.gmra.mrb[0].mxu0 %v3495
        %v3632 = vpop.f32.mrb[0].mxu0
        %v3633 = vadd.f32 0.0, %v3632
        %v3634 = vpop.f32.mrb[0].mxu0
        %v3635 = vpop.f32.mrb[0].mxu0
        %v3636 = vadd.f32 0.0, %v3635
        %v3637 = vpop.f32.mrb[0].mxu0
        %3638 = vmatprep.mubr.bf16.mxu0 0
        %3639 = vmatmul.mubr.bf16.gmra.mrb[0].mxu0 %v3496
        %v3640 = vpop.f32.mrb[0].mxu0
        %v3641 = vadd.f32 0.0, %v3640
        %v3642 = vpop.f32.mrb[0].mxu0
        %v3643 = vpop.f32.mrb[0].mxu0
        %v3644 = vadd.f32 0.0, %v3643
        %v3645 = vpop.f32.mrb[0].mxu0
        %3646 = vmatprep.mubr.bf16.mxu0 0
        %3647 = vmatmul.mubr.bf16.gmra.mrb[0].mxu0 %v3497
        %v3648 = vpop.f32.mrb[0].mxu0
        %v3649 = vadd.f32 0.0, %v3648
        %v3650 = vpop.f32.mrb[0].mxu0
        %v3651 = vpop.f32.mrb[0].mxu0
        %v3652 = vadd.f32 0.0, %v3651
        %v3653 = vpop.f32.mrb[0].mxu0
        %3654 = vmatprep.mubr.bf16.mxu0 0
        %3655 = vmatmul.mubr.bf16.gmra.mrb[0].mxu0 %v3498
        %v3656 = vpop.f32.mrb[0].mxu0
        %v3657 = vadd.f32 0.0, %v3656
        %v3658 = vpop.f32.mrb[0].mxu0
        %v3659 = vpop.f32.mrb[0].mxu0
        %v3660 = vadd.f32 0.0, %v3659
        %v3661 = vpop.f32.mrb[0].mxu0
        %3662 = vmatprep.mubr.bf16.mxu0 0
        %3663 = vmatmul.mubr.bf16.gmra.mrb[0].mxu0 %v3499
        %v3664 = vpop.f32.mrb[0].mxu0
        %v3665 = vadd.f32 0.0, %v3664
        %v3666 = vpop.f32.mrb[0].mxu0
        %v3667 = vpop.f32.mrb[0].mxu0
        %v3668 = vadd.f32 0.0, %v3667
        %v3669 = vpop.f32.mrb[0].mxu0
        %3670 = vdwg.mxu0
        %v3671 = vadd.f32 %v3323, %v3593
        %v3672 = vadd.f32 %v3324, %v3596
        %v3673 = vadd.f32 %v3325, %v3601
        %v3674 = vadd.f32 %v3326, %v3604
        %v3675 = vadd.f32 %v3327, %v3609
        %v3676 = vadd.f32 %v3328, %v3612
        %v3677 = vadd.f32 %v3329, %v3617
        %v3678 = vadd.f32 %v3330, %v3620
        %v3679 = vadd.f32 %v3331, %v3625
        %v3680 = vadd.f32 %v3332, %v3628
        %v3681 = vadd.f32 %v3333, %v3633
        %v3682 = vadd.f32 %v3334, %v3636
        %v3683 = vadd.f32 %v3335, %v3641
        %v3684 = vadd.f32 %v3336, %v3644
        %v3685 = vadd.f32 %v3337, %v3649
        %v3686 = vadd.f32 %v3338, %v3652
        %v3687 = vadd.f32 %v3339, %v3657
        %v3688 = vadd.f32 %v3340, %v3660
        %v3689 = vadd.f32 %v3341, %v3665
        %v3690 = vadd.f32 %v3342, %v3668
        %v3691 = vld [vmem:[%s2] sm:$0x1]
        %v3693 = vlaneseq
        %v3694 = vshrl.u32 %v3693, 7
        %v3695 = vsub.s32 0, %v3694
        %v3696 = vrot.slane %v3691, %v3695
        %v3698 = vmul.f32 %v3671, %v3696
        %v3699 = vmul.f32 %v3672, %v3696
        %v3700 = vmul.f32 %v3673, %v3696
        %v3701 = vmul.f32 %v3674, %v3696
        %v3702 = vmul.f32 %v3675, %v3696
        %v3703 = vmul.f32 %v3676, %v3696
        %v3704 = vmul.f32 %v3677, %v3696
        %v3705 = vmul.f32 %v3678, %v3696
        %v3706 = vmul.f32 %v3679, %v3696
        %v3707 = vmul.f32 %v3680, %v3696
        %v3708 = vmul.f32 %v3681, %v3696
        %v3709 = vmul.f32 %v3682, %v3696
        %v3710 = vmul.f32 %v3683, %v3696
        %v3711 = vmul.f32 %v3684, %v3696
        %v3712 = vmul.f32 %v3685, %v3696
        %v3713 = vmul.f32 %v3686, %v3696
        %v3714 = vmul.f32 %v3687, %v3696
        %v3715 = vmul.f32 %v3688, %v3696
        %v3716 = vmul.f32 %v3689, %v3696
        %v3717 = vmul.f32 %v3690, %v3696
        %v3718 = vld [vmem:[%s3] sm:$0x1]
        %v3720 = vlaneseq
        %v3721 = vshrl.u32 %v3720, 7
        %v3722 = vsub.s32 0, %v3721
        %v3723 = vrot.slane %v3718, %v3722
        %v3725 = vadd.f32 %v3698, %v3723
        %v3726 = vadd.f32 %v3699, %v3723
        %v3727 = vadd.f32 %v3700, %v3723
        %v3728 = vadd.f32 %v3701, %v3723
        %v3729 = vadd.f32 %v3702, %v3723
        %v3730 = vadd.f32 %v3703, %v3723
        %v3731 = vadd.f32 %v3704, %v3723
        %v3732 = vadd.f32 %v3705, %v3723
        %v3733 = vadd.f32 %v3706, %v3723
        %v3734 = vadd.f32 %v3707, %v3723
        %v3735 = vadd.f32 %v3708, %v3723
        %v3736 = vadd.f32 %v3709, %v3723
        %v3737 = vadd.f32 %v3710, %v3723
        %v3738 = vadd.f32 %v3711, %v3723
        %v3739 = vadd.f32 %v3712, %v3723
        %v3740 = vadd.f32 %v3713, %v3723
        %v3741 = vadd.f32 %v3714, %v3723
        %v3742 = vadd.f32 %v3715, %v3723
        %v3743 = vadd.f32 %v3716, %v3723
        %v3744 = vadd.f32 %v3717, %v3723
        %v3745 = vmax.f32 %v3725, 0.0
        %v3746 = vmax.f32 %v3726, 0.0
        %v3747 = vmax.f32 %v3727, 0.0
        %v3748 = vmax.f32 %v3728, 0.0
        %v3749 = vmax.f32 %v3729, 0.0
        %v3750 = vmax.f32 %v3730, 0.0
        %v3751 = vmax.f32 %v3731, 0.0
        %v3752 = vmax.f32 %v3732, 0.0
        %v3753 = vmax.f32 %v3733, 0.0
        %v3754 = vmax.f32 %v3734, 0.0
        %v3755 = vmax.f32 %v3735, 0.0
        %v3756 = vmax.f32 %v3736, 0.0
        %v3757 = vmax.f32 %v3737, 0.0
        %v3758 = vmax.f32 %v3738, 0.0
        %v3759 = vmax.f32 %v3739, 0.0
        %v3760 = vmax.f32 %v3740, 0.0
        %v3761 = vmax.f32 %v3741, 0.0
        %v3762 = vmax.f32 %v3742, 0.0
        %v3763 = vmax.f32 %v3743, 0.0
        %v3764 = vmax.f32 %v3744, 0.0
        %v3765 = vpack.c.bf16 %v3746, %v3745
        %v3766 = vpack.c.bf16 %v3748, %v3747
        %v3767 = vpack.c.bf16 %v3750, %v3749
        %v3768 = vpack.c.bf16 %v3752, %v3751
        %v3769 = vpack.c.bf16 %v3754, %v3753
        %v3770 = vpack.c.bf16 %v3756, %v3755
        %v3771 = vpack.c.bf16 %v3758, %v3757
        %v3772 = vpack.c.bf16 %v3760, %v3759
        %v3773 = vpack.c.bf16 %v3762, %v3761
        %v3774 = vpack.c.bf16 %v3764, %v3763
        %v3785 = vunpack.c.l.b16 %v3765
        %v3786 = vunpack.c.h.b16 %v3765
        %v3787 = vunpack.c.l.b16 %v3766
        %v3788 = vunpack.c.h.b16 %v3766
        %v3789 = vunpack.c.l.b16 %v3767
        %v3790 = vunpack.c.h.b16 %v3767
        %v3791 = vunpack.c.l.b16 %v3768
        %v3792 = vunpack.c.h.b16 %v3768
        %v3793 = vunpack.c.l.b16 %v3769
        %v3794 = vunpack.c.h.b16 %v3769
        %v3795 = vunpack.c.l.b16 %v3770
        %v3796 = vunpack.c.h.b16 %v3770
        %v3797 = vunpack.c.l.b16 %v3771
        %v3798 = vunpack.c.h.b16 %v3771
        %v3799 = vunpack.c.l.b16 %v3772
        %v3800 = vunpack.c.h.b16 %v3772
        %v3801 = vunpack.c.l.b16 %v3773
        %v3802 = vunpack.c.h.b16 %v3773
        %v3803 = vunpack.c.l.b16 %v3774
        %v3804 = vunpack.c.h.b16 %v3774
        %v3805 = vpack.c.b16 %v3785, %v3785
        %v3806 = vpack.c.b16 %v3786, %v3786
        %v3807 = vpack.c.b16 %v3787, %v3787
        %v3808 = vpack.c.b16 %v3788, %v3788
        %v3809 = vpack.c.b16 %v3789, %v3789
        %v3810 = vpack.c.b16 %v3790, %v3790
        %v3811 = vpack.c.b16 %v3791, %v3791
        %v3812 = vpack.c.b16 %v3792, %v3792
        %v3813 = vpack.c.b16 %v3793, %v3793
        %v3814 = vpack.c.b16 %v3794, %v3794
        %v3815 = vpack.c.b16 %v3795, %v3795
        %v3816 = vpack.c.b16 %v3796, %v3796
        %v3817 = vpack.c.b16 %v3797, %v3797
        %v3818 = vpack.c.b16 %v3798, %v3798
        %v3819 = vpack.c.b16 %v3799, %v3799
        %v3820 = vpack.c.b16 %v3800, %v3800
        %v3821 = vpack.c.b16 %v3801, %v3801
        %v3822 = vpack.c.b16 %v3802, %v3802
        %v3823 = vpack.c.b16 %v3803, %v3803
        %v3824 = vpack.c.b16 %v3804, %v3804
        %vm3825 = vsmask.f32 256
        %vm3826 = vsmask.f32 4368
        %vm3827 = vmor %vm3825, %vm3826
        %v3829 = vshrl.u32 %v3805, 16
        %v3831 = vrot.slane %v3829, 7
        %v3832 = vshll.u32 %v3805, 16
        %v3834 = vor.u32 %v3831, %v3832
        %v3835 = vrot.slane %v3831, 4
        %v3837 = vshrl.u32 %v3806, 16
        %v3839 = vrot.slane %v3837, 7
        %v3840 = vshll.u32 %v3806, 16
        %v3842 = vor.u32 %v3839, %v3840
        %v3843 = vsel %vm3827, %v3835, %v3842
        %v3844 = vrot.slane %v3839, 4
        %v3846 = vshrl.u32 %v3807, 16
        %v3848 = vrot.slane %v3846, 7
        %v3849 = vshll.u32 %v3807, 16
        %v3851 = vor.u32 %v3848, %v3849
        %v3852 = vrot.slane %v3848, 4
        %v3854 = vshrl.u32 %v3808, 16
        %v3856 = vrot.slane %v3854, 7
        %v3857 = vshll.u32 %v3808, 16
        %v3859 = vor.u32 %v3856, %v3857
        %v3860 = vsel %vm3827, %v3852, %v3859
        %v3861 = vrot.slane %v3856, 4
        %v3863 = vshrl.u32 %v3809, 16
        %v3865 = vrot.slane %v3863, 7
        %v3866 = vshll.u32 %v3809, 16
        %v3868 = vor.u32 %v3865, %v3866
        %v3869 = vrot.slane %v3865, 4
        %v3871 = vshrl.u32 %v3810, 16
        %v3873 = vrot.slane %v3871, 7
        %v3874 = vshll.u32 %v3810, 16
        %v3876 = vor.u32 %v3873, %v3874
        %v3877 = vsel %vm3827, %v3869, %v3876
        %v3878 = vrot.slane %v3873, 4
        %v3880 = vshrl.u32 %v3811, 16
        %v3882 = vrot.slane %v3880, 7
        %v3883 = vshll.u32 %v3811, 16
        %v3885 = vor.u32 %v3882, %v3883
        %v3886 = vrot.slane %v3882, 4
        %v3888 = vshrl.u32 %v3812, 16
        %v3890 = vrot.slane %v3888, 7
        %v3891 = vshll.u32 %v3812, 16
        %v3893 = vor.u32 %v3890, %v3891
        %v3894 = vsel %vm3827, %v3886, %v3893
        %v3895 = vrot.slane %v3890, 4
        %v3897 = vshrl.u32 %v3813, 16
        %v3899 = vrot.slane %v3897, 7
        %v3900 = vshll.u32 %v3813, 16
        %v3902 = vor.u32 %v3899, %v3900
        %v3903 = vrot.slane %v3899, 4
        %v3905 = vshrl.u32 %v3814, 16
        %v3907 = vrot.slane %v3905, 7
        %v3908 = vshll.u32 %v3814, 16
        %v3910 = vor.u32 %v3907, %v3908
        %v3911 = vsel %vm3827, %v3903, %v3910
        %v3912 = vrot.slane %v3907, 4
        %v3914 = vshrl.u32 %v3815, 16
        %v3916 = vrot.slane %v3914, 7
        %v3917 = vshll.u32 %v3815, 16
        %v3919 = vor.u32 %v3916, %v3917
        %v3920 = vrot.slane %v3916, 4
        %v3922 = vshrl.u32 %v3816, 16
        %v3924 = vrot.slane %v3922, 7
        %v3925 = vshll.u32 %v3816, 16
        %v3927 = vor.u32 %v3924, %v3925
        %v3928 = vsel %vm3827, %v3920, %v3927
        %v3929 = vrot.slane %v3924, 4
        %v3931 = vshrl.u32 %v3817, 16
        %v3933 = vrot.slane %v3931, 7
        %v3934 = vshll.u32 %v3817, 16
        %v3936 = vor.u32 %v3933, %v3934
        %v3937 = vrot.slane %v3933, 4
        %v3939 = vshrl.u32 %v3818, 16
        %v3941 = vrot.slane %v3939, 7
        %v3942 = vshll.u32 %v3818, 16
        %v3944 = vor.u32 %v3941, %v3942
        %v3945 = vsel %vm3827, %v3937, %v3944
        %v3946 = vrot.slane %v3941, 4
        %v3948 = vshrl.u32 %v3819, 16
        %v3950 = vrot.slane %v3948, 7
        %v3951 = vshll.u32 %v3819, 16
        %v3953 = vor.u32 %v3950, %v3951
        %v3954 = vrot.slane %v3950, 4
        %v3956 = vshrl.u32 %v3820, 16
        %v3958 = vrot.slane %v3956, 7
        %v3959 = vshll.u32 %v3820, 16
        %v3961 = vor.u32 %v3958, %v3959
        %v3962 = vsel %vm3827, %v3954, %v3961
        %v3963 = vrot.slane %v3958, 4
        %v3965 = vshrl.u32 %v3821, 16
        %v3967 = vrot.slane %v3965, 7
        %v3968 = vshll.u32 %v3821, 16
        %v3970 = vor.u32 %v3967, %v3968
        %v3971 = vrot.slane %v3967, 4
        %v3973 = vshrl.u32 %v3822, 16
        %v3975 = vrot.slane %v3973, 7
        %v3976 = vshll.u32 %v3822, 16
        %v3978 = vor.u32 %v3975, %v3976
        %v3979 = vsel %vm3827, %v3971, %v3978
        %v3980 = vrot.slane %v3975, 4
        %v3982 = vshrl.u32 %v3823, 16
        %v3984 = vrot.slane %v3982, 7
        %v3985 = vshll.u32 %v3823, 16
        %v3987 = vor.u32 %v3984, %v3985
        %v3988 = vrot.slane %v3984, 4
        %v3990 = vshrl.u32 %v3824, 16
        %v3992 = vrot.slane %v3990, 7
        %v3993 = vshll.u32 %v3824, 16
        %v3995 = vor.u32 %v3992, %v3993
        %v3996 = vsel %vm3827, %v3988, %v3995
        %v3997 = vrot.slane %v3992, 4
        %vm4028 = vcmask 1043456
        %vm4029 = vsmask.f32 7938
        %vm4030 = vmand %vm4028, %vm4029
        %v4031 = vld [vmem:[#allocation2] sm:$0xf]
        %v4032 = vsel %vm4030, %v3834, %v4031
        %4033 = vst [vmem:[#allocation2] sm:$0xf] %v4032
        %4034 = vst [vmem:[#allocation2 + $0x4] sm:$0xf] %v3843
        %vm4035 = vcmask 1040384
        %vm4036 = vmand %vm4035, %vm3825
        %v4037 = vld [vmem:[#allocation2 + $0x8] sm:$0x1]
        %v4038 = vsel %vm4036, %v3844, %v4037
        %4039 = vst [vmem:[#allocation2 + $0x8] sm:$0x1] %v4038
        %v4040 = vld [vmem:[#allocation2 + $0xc] sm:$0xf]
        %v4041 = vsel %vm4030, %v3851, %v4040
        %4042 = vst [vmem:[#allocation2 + $0xc] sm:$0xf] %v4041
        %4043 = vst [vmem:[#allocation2 + $0x10] sm:$0xf] %v3860
        %v4044 = vld [vmem:[#allocation2 + $0x14] sm:$0x1]
        %v4045 = vsel %vm4036, %v3861, %v4044
        %4046 = vst [vmem:[#allocation2 + $0x14] sm:$0x1] %v4045
        %v4047 = vld [vmem:[#allocation2 + $0x18] sm:$0xf]
        %v4048 = vsel %vm4030, %v3868, %v4047
        %4049 = vst [vmem:[#allocation2 + $0x18] sm:$0xf] %v4048
        %4050 = vst [vmem:[#allocation2 + $0x1c] sm:$0xf] %v3877
        %v4051 = vld [vmem:[#allocation2 + $0x20] sm:$0x1]
        %v4052 = vsel %vm4036, %v3878, %v4051
        %4053 = vst [vmem:[#allocation2 + $0x20] sm:$0x1] %v4052
        %v4054 = vld [vmem:[#allocation2 + $0x24] sm:$0xf]
        %v4055 = vsel %vm4030, %v3885, %v4054
        %4056 = vst [vmem:[#allocation2 + $0x24] sm:$0xf] %v4055
        %4057 = vst [vmem:[#allocation2 + $0x28] sm:$0xf] %v3894
        %v4058 = vld [vmem:[#allocation2 + $0x2c] sm:$0x1]
        %v4059 = vsel %vm4036, %v3895, %v4058
        %4060 = vst [vmem:[#allocation2 + $0x2c] sm:$0x1] %v4059
        %v4061 = vld [vmem:[#allocation2 + $0x30] sm:$0xf]
        %v4062 = vsel %vm4030, %v3902, %v4061
        %4063 = vst [vmem:[#allocation2 + $0x30] sm:$0xf] %v4062
        %4064 = vst [vmem:[#allocation2 + $0x34] sm:$0xf] %v3911
        %v4065 = vld [vmem:[#allocation2 + $0x38] sm:$0x1]
        %v4066 = vsel %vm4036, %v3912, %v4065
        %4067 = vst [vmem:[#allocation2 + $0x38] sm:$0x1] %v4066
        %v4068 = vld [vmem:[#allocation2 + $0x3c] sm:$0xf]
        %v4069 = vsel %vm4030, %v3919, %v4068
        %4070 = vst [vmem:[#allocation2 + $0x3c] sm:$0xf] %v4069
        %4071 = vst [vmem:[#allocation2 + $0x40] sm:$0xf] %v3928
        %v4072 = vld [vmem:[#allocation2 + $0x44] sm:$0x1]
        %v4073 = vsel %vm4036, %v3929, %v4072
        %4074 = vst [vmem:[#allocation2 + $0x44] sm:$0x1] %v4073
        %v4075 = vld [vmem:[#allocation2 + $0x48] sm:$0xf]
        %v4076 = vsel %vm4030, %v3936, %v4075
        %4077 = vst [vmem:[#allocation2 + $0x48] sm:$0xf] %v4076
        %4078 = vst [vmem:[#allocation2 + $0x4c] sm:$0xf] %v3945
        %v4079 = vld [vmem:[#allocation2 + $0x50] sm:$0x1]
        %v4080 = vsel %vm4036, %v3946, %v4079
        %4081 = vst [vmem:[#allocation2 + $0x50] sm:$0x1] %v4080
        %v4082 = vld [vmem:[#allocation2 + $0x54] sm:$0xf]
        %v4083 = vsel %vm4030, %v3953, %v4082
        %4084 = vst [vmem:[#allocation2 + $0x54] sm:$0xf] %v4083
        %4085 = vst [vmem:[#allocation2 + $0x58] sm:$0xf] %v3962
        %v4086 = vld [vmem:[#allocation2 + $0x5c] sm:$0x1]
        %v4087 = vsel %vm4036, %v3963, %v4086
        %4088 = vst [vmem:[#allocation2 + $0x5c] sm:$0x1] %v4087
        %v4089 = vld [vmem:[#allocation2 + $0x60] sm:$0xf]
        %v4090 = vsel %vm4030, %v3970, %v4089
        %4091 = vst [vmem:[#allocation2 + $0x60] sm:$0xf] %v4090
        %4092 = vst [vmem:[#allocation2 + $0x64] sm:$0xf] %v3979
        %v4093 = vld [vmem:[#allocation2 + $0x68] sm:$0x1]
        %v4094 = vsel %vm4036, %v3980, %v4093
        %4095 = vst [vmem:[#allocation2 + $0x68] sm:$0x1] %v4094
        %v4096 = vld [vmem:[#allocation2 + $0x6c] sm:$0xf]
        %v4097 = vsel %vm4030, %v3987, %v4096
        %4098 = vst [vmem:[#allocation2 + $0x6c] sm:$0xf] %v4097
        %4099 = vst [vmem:[#allocation2 + $0x70] sm:$0xf] %v3996
        %v4100 = vld [vmem:[#allocation2 + $0x74] sm:$0x1]
        %v4101 = vsel %vm4036, %v3997, %v4100
        %4102 = vst [vmem:[#allocation2 + $0x74] sm:$0x1] %v4101
        %v4103 = vld [vmem:[#allocation2] sm:$0x1]
        %v4104 = vsel %vm4036, 0, %v4103
        %4105 = vst [vmem:[#allocation2] sm:$0x1] %v4104
        %v4106 = vld [vmem:[#allocation2 + $0xc] sm:$0x1]
        %v4107 = vsel %vm4036, 0, %v4106
        %4108 = vst [vmem:[#allocation2 + $0xc] sm:$0x1] %v4107
        %v4109 = vld [vmem:[#allocation2 + $0x18] sm:$0x1]
        %v4110 = vsel %vm4036, 0, %v4109
        %4111 = vst [vmem:[#allocation2 + $0x18] sm:$0x1] %v4110
        %v4112 = vld [vmem:[#allocation2 + $0x24] sm:$0x1]
        %v4113 = vsel %vm4036, 0, %v4112
        %4114 = vst [vmem:[#allocation2 + $0x24] sm:$0x1] %v4113
        %v4115 = vld [vmem:[#allocation2 + $0x30] sm:$0x1]
        %v4116 = vsel %vm4036, 0, %v4115
        %4117 = vst [vmem:[#allocation2 + $0x30] sm:$0x1] %v4116
        %v4118 = vld [vmem:[#allocation2 + $0x3c] sm:$0x1]
        %v4119 = vsel %vm4036, 0, %v4118
        %4120 = vst [vmem:[#allocation2 + $0x3c] sm:$0x1] %v4119
        %v4121 = vld [vmem:[#allocation2 + $0x48] sm:$0x1]
        %v4122 = vsel %vm4036, 0, %v4121
        %4123 = vst [vmem:[#allocation2 + $0x48] sm:$0x1] %v4122
        %v4124 = vld [vmem:[#allocation2 + $0x54] sm:$0x1]
        %v4125 = vsel %vm4036, 0, %v4124
        %4126 = vst [vmem:[#allocation2 + $0x54] sm:$0x1] %v4125
        %v4127 = vld [vmem:[#allocation2 + $0x60] sm:$0x1]
        %v4128 = vsel %vm4036, 0, %v4127
        %4129 = vst [vmem:[#allocation2 + $0x60] sm:$0x1] %v4128
        %v4130 = vld [vmem:[#allocation2 + $0x6c] sm:$0x1]
        %v4131 = vsel %vm4036, 0, %v4130
        %4132 = vst [vmem:[#allocation2 + $0x6c] sm:$0x1] %v4131
        %vm4133 = vmand %vm4035, %vm4029
        %v4134 = vld [vmem:[#allocation2 + $0x8] sm:$0x1]
        %v4135 = vsel %vm4133, 0, %v4134
        %4136 = vst [vmem:[#allocation2 + $0x8] sm:$0x1] %v4135
        %v4137 = vld [vmem:[#allocation2 + $0x14] sm:$0x1]
        %v4138 = vsel %vm4133, 0, %v4137
        %4139 = vst [vmem:[#allocation2 + $0x14] sm:$0x1] %v4138
        %v4140 = vld [vmem:[#allocation2 + $0x20] sm:$0x1]
        %v4141 = vsel %vm4133, 0, %v4140
        %4142 = vst [vmem:[#allocation2 + $0x20] sm:$0x1] %v4141
        %v4143 = vld [vmem:[#allocation2 + $0x2c] sm:$0x1]
        %v4144 = vsel %vm4133, 0, %v4143
        %4145 = vst [vmem:[#allocation2 + $0x2c] sm:$0x1] %v4144
        %v4146 = vld [vmem:[#allocation2 + $0x38] sm:$0x1]
        %v4147 = vsel %vm4133, 0, %v4146
        %4148 = vst [vmem:[#allocation2 + $0x38] sm:$0x1] %v4147
        %v4149 = vld [vmem:[#allocation2 + $0x44] sm:$0x1]
        %v4150 = vsel %vm4133, 0, %v4149
        %4151 = vst [vmem:[#allocation2 + $0x44] sm:$0x1] %v4150
        %v4152 = vld [vmem:[#allocation2 + $0x50] sm:$0x1]
        %v4153 = vsel %vm4133, 0, %v4152
        %4154 = vst [vmem:[#allocation2 + $0x50] sm:$0x1] %v4153
        %v4155 = vld [vmem:[#allocation2 + $0x5c] sm:$0x1]
        %v4156 = vsel %vm4133, 0, %v4155
        %4157 = vst [vmem:[#allocation2 + $0x5c] sm:$0x1] %v4156
        %v4158 = vld [vmem:[#allocation2 + $0x68] sm:$0x1]
        %v4159 = vsel %vm4133, 0, %v4158
        %4160 = vst [vmem:[#allocation2 + $0x68] sm:$0x1] %v4159
        %v4161 = vld [vmem:[#allocation2 + $0x74] sm:$0x1]
        %v4162 = vsel %vm4133, 0, %v4161
        %4163 = vst [vmem:[#allocation2 + $0x74] sm:$0x1] %v4162
        %p4164 = scmp.eq.s32.totalorder %s30, 0
        // Predicated region
        $region61: #{tpu_custom_call.1} parent=47 // pred_check
          %p4165 = pneg %p4164
        $region62: #{tpu_custom_call.1} parent=47 // pred_check_branch
          %4167 = sbr.rel (%p4165) target = $region64
        $region63: #{tpu_custom_call.1} parent=47 // pred_region
          %4168 = vst [vmem:[#allocation2] sm:$0xf] 0
          %4169 = vst [vmem:[#allocation2 + $0x4] sm:$0xf] 0
          %4170 = vst [vmem:[#allocation2 + $0x8] sm:$0xf] 0
        $region64: #{tpu_custom_call.1} parent=47 // pred_fallthru
          _
        %p4171 = scmp.eq.s32.totalorder %s30, 1
        // Predicated region
        $region65: #{tpu_custom_call.1} parent=47 // pred_check
          %p4172 = pneg %p4171
        $region66: #{tpu_custom_call.1} parent=47 // pred_check_branch
          %4174 = sbr.rel (%p4172) target = $region68
        $region67: #{tpu_custom_call.1} parent=47 // pred_region
          %s4175 = scalar_lea.vmem [#allocation2], 108
          %4176 = vst [vmem:[%s4175] sm:$0xf] 0
          %4177 = vst [vmem:[%s4175 + $0x4] sm:$0xf] 0
          %4178 = vst [vmem:[%s4175 + $0x8] sm:$0xf] 0
        $region68: #{tpu_custom_call.1} parent=47 // pred_fallthru
          _
        %v4179 = vld [vmem:[#allocation2] sm:$0xf]
        %v4180 = vld [vmem:[#allocation2 + $0x4] sm:$0xf]
        %v4181 = vld [vmem:[#allocation2 + $0xc] sm:$0xf]
        %v4182 = vld [vmem:[#allocation2 + $0x10] sm:$0xf]
        %v4183 = vld [vmem:[#allocation2 + $0x18] sm:$0xf]
        %v4184 = vld [vmem:[#allocation2 + $0x1c] sm:$0xf]
        %v4185 = vld [vmem:[#allocation2 + $0x24] sm:$0xf]
        %v4186 = vld [vmem:[#allocation2 + $0x28] sm:$0xf]
        %v4187 = vld [vmem:[#allocation2 + $0x30] sm:$0xf]
        %v4188 = vld [vmem:[#allocation2 + $0x34] sm:$0xf]
        %v4189 = vld [vmem:[#allocation2 + $0x3c] sm:$0xf]
        %v4190 = vld [vmem:[#allocation2 + $0x40] sm:$0xf]
        %v4191 = vld [vmem:[#allocation2 + $0x48] sm:$0xf]
        %v4192 = vld [vmem:[#allocation2 + $0x4c] sm:$0xf]
        %v4193 = vld [vmem:[#allocation2 + $0x54] sm:$0xf]
        %v4194 = vld [vmem:[#allocation2 + $0x58] sm:$0xf]
        %v4195 = vld [vmem:[#allocation8] sm:$0xf]
        %v4196 = vld [vmem:[#allocation8 + $0x4] sm:$0xf]
        %v4197 = vld [vmem:[#allocation8 + $0x8] sm:$0xf]
        %v4198 = vld [vmem:[#allocation8 + $0xc] sm:$0xf]
        %v4199 = vld [vmem:[#allocation8 + $0x10] sm:$0xf]
        %v4200 = vld [vmem:[#allocation8 + $0x14] sm:$0xf]
        %v4201 = vld [vmem:[#allocation8 + $0x18] sm:$0xf]
        %v4202 = vld [vmem:[#allocation8 + $0x1c] sm:$0xf]
        %v4203 = vld [vmem:[#allocation8 + $0x20] sm:$0xf]
        %v4204 = vld [vmem:[#allocation8 + $0x24] sm:$0xf]
        %v4205 = vld [vmem:[#allocation8 + $0x28] sm:$0xf]
        %v4206 = vld [vmem:[#allocation8 + $0x2c] sm:$0xf]
        %v4207 = vld [vmem:[#allocation8 + $0x30] sm:$0xf]
        %v4208 = vld [vmem:[#allocation8 + $0x34] sm:$0xf]
        %v4209 = vld [vmem:[#allocation8 + $0x38] sm:$0xf]
        %v4210 = vld [vmem:[#allocation8 + $0x3c] sm:$0xf]
        %v4211 = vld [vmem:[#allocation2 + $0x8] sm:$0x1]
        %v4212 = vld [vmem:[#allocation2 + $0x14] sm:$0x1]
        %v4213 = vld [vmem:[#allocation2 + $0x20] sm:$0x1]
        %v4214 = vld [vmem:[#allocation2 + $0x2c] sm:$0x1]
        %v4215 = vld [vmem:[#allocation2 + $0x38] sm:$0x1]
        %v4216 = vld [vmem:[#allocation2 + $0x44] sm:$0x1]
        %v4217 = vld [vmem:[#allocation2 + $0x50] sm:$0x1]
        %v4218 = vld [vmem:[#allocation2 + $0x5c] sm:$0x1]
        %v4220 = vshrl.u32 %v4179, 16
        %v4222 = vrot.slane %v4220, 4
        %v4223 = vshll.u32 %v4179, 16
        %v4225 = vrot.slane %v4223, 5
        %v4226 = vor.u32 %v4222, %v4225
        %v4227 = vrot.slane %v4226, 4
        %v4229 = vshll.u32 %v4180, 16
        %v4231 = vrot.slane %v4229, 5
        %v4232 = vsel %vm394, %v4227, %v4231
        %v4233 = vshrl.u32 %v4180, 16
        %v4235 = vrot.slane %v4233, 4
        %v4236 = vor.u32 %v4235, %v4231
        %v4237 = vrot.slane %v4236, 4
        %v4239 = vshll.u32 %v4211, 16
        %v4241 = vrot.slane %v4239, 5
        %v4242 = vsel %vm394, %v4237, %v4241
        %v4244 = vshrl.u32 %v4181, 16
        %v4246 = vrot.slane %v4244, 4
        %v4247 = vshll.u32 %v4181, 16
        %v4249 = vrot.slane %v4247, 5
        %v4250 = vor.u32 %v4246, %v4249
        %v4251 = vrot.slane %v4250, 4
        %v4253 = vshll.u32 %v4182, 16
        %v4255 = vrot.slane %v4253, 5
        %v4256 = vsel %vm394, %v4251, %v4255
        %v4257 = vshrl.u32 %v4182, 16
        %v4259 = vrot.slane %v4257, 4
        %v4260 = vor.u32 %v4259, %v4255
        %v4261 = vrot.slane %v4260, 4
        %v4263 = vshll.u32 %v4212, 16
        %v4265 = vrot.slane %v4263, 5
        %v4266 = vsel %vm394, %v4261, %v4265
        %v4268 = vshrl.u32 %v4183, 16
        %v4270 = vrot.slane %v4268, 4
        %v4271 = vshll.u32 %v4183, 16
        %v4273 = vrot.slane %v4271, 5
        %v4274 = vor.u32 %v4270, %v4273
        %v4275 = vrot.slane %v4274, 4
        %v4277 = vshll.u32 %v4184, 16
        %v4279 = vrot.slane %v4277, 5
        %v4280 = vsel %vm394, %v4275, %v4279
        %v4281 = vshrl.u32 %v4184, 16
        %v4283 = vrot.slane %v4281, 4
        %v4284 = vor.u32 %v4283, %v4279
        %v4285 = vrot.slane %v4284, 4
        %v4287 = vshll.u32 %v4213, 16
        %v4289 = vrot.slane %v4287, 5
        %v4290 = vsel %vm394, %v4285, %v4289
        %v4292 = vshrl.u32 %v4185, 16
        %v4294 = vrot.slane %v4292, 4
        %v4295 = vshll.u32 %v4185, 16
        %v4297 = vrot.slane %v4295, 5
        %v4298 = vor.u32 %v4294, %v4297
        %v4299 = vrot.slane %v4298, 4
        %v4301 = vshll.u32 %v4186, 16
        %v4303 = vrot.slane %v4301, 5
        %v4304 = vsel %vm394, %v4299, %v4303
        %v4305 = vshrl.u32 %v4186, 16
        %v4307 = vrot.slane %v4305, 4
        %v4308 = vor.u32 %v4307, %v4303
        %v4309 = vrot.slane %v4308, 4
        %v4311 = vshll.u32 %v4214, 16
        %v4313 = vrot.slane %v4311, 5
        %v4314 = vsel %vm394, %v4309, %v4313
        %v4316 = vshrl.u32 %v4187, 16
        %v4318 = vrot.slane %v4316, 4
        %v4319 = vshll.u32 %v4187, 16
        %v4321 = vrot.slane %v4319, 5
        %v4322 = vor.u32 %v4318, %v4321
        %v4323 = vrot.slane %v4322, 4
        %v4325 = vshll.u32 %v4188, 16
        %v4327 = vrot.slane %v4325, 5
        %v4328 = vsel %vm394, %v4323, %v4327
        %v4329 = vshrl.u32 %v4188, 16
        %v4331 = vrot.slane %v4329, 4
        %v4332 = vor.u32 %v4331, %v4327
        %v4333 = vrot.slane %v4332, 4
        %v4335 = vshll.u32 %v4215, 16
        %v4337 = vrot.slane %v4335, 5
        %v4338 = vsel %vm394, %v4333, %v4337
        %v4340 = vshrl.u32 %v4189, 16
        %v4342 = vrot.slane %v4340, 4
        %v4343 = vshll.u32 %v4189, 16
        %v4345 = vrot.slane %v4343, 5
        %v4346 = vor.u32 %v4342, %v4345
        %v4347 = vrot.slane %v4346, 4
        %v4349 = vshll.u32 %v4190, 16
        %v4351 = vrot.slane %v4349, 5
        %v4352 = vsel %vm394, %v4347, %v4351
        %v4353 = vshrl.u32 %v4190, 16
        %v4355 = vrot.slane %v4353, 4
        %v4356 = vor.u32 %v4355, %v4351
        %v4357 = vrot.slane %v4356, 4
        %v4359 = vshll.u32 %v4216, 16
        %v4361 = vrot.slane %v4359, 5
        %v4362 = vsel %vm394, %v4357, %v4361
        %v4364 = vshrl.u32 %v4191, 16
        %v4366 = vrot.slane %v4364, 4
        %v4367 = vshll.u32 %v4191, 16
        %v4369 = vrot.slane %v4367, 5
        %v4370 = vor.u32 %v4366, %v4369
        %v4371 = vrot.slane %v4370, 4
        %v4373 = vshll.u32 %v4192, 16
        %v4375 = vrot.slane %v4373, 5
        %v4376 = vsel %vm394, %v4371, %v4375
        %v4377 = vshrl.u32 %v4192, 16
        %v4379 = vrot.slane %v4377, 4
        %v4380 = vor.u32 %v4379, %v4375
        %v4381 = vrot.slane %v4380, 4
        %v4383 = vshll.u32 %v4217, 16
        %v4385 = vrot.slane %v4383, 5
        %v4386 = vsel %vm394, %v4381, %v4385
        %v4388 = vshrl.u32 %v4193, 16
        %v4390 = vrot.slane %v4388, 4
        %v4391 = vshll.u32 %v4193, 16
        %v4393 = vrot.slane %v4391, 5
        %v4394 = vor.u32 %v4390, %v4393
        %v4395 = vrot.slane %v4394, 4
        %v4397 = vshll.u32 %v4194, 16
        %v4399 = vrot.slane %v4397, 5
        %v4400 = vsel %vm394, %v4395, %v4399
        %v4401 = vshrl.u32 %v4194, 16
        %v4403 = vrot.slane %v4401, 4
        %v4404 = vor.u32 %v4403, %v4399
        %v4405 = vrot.slane %v4404, 4
        %v4407 = vshll.u32 %v4218, 16
        %v4409 = vrot.slane %v4407, 5
        %v4410 = vsel %vm394, %v4405, %v4409
        %s4411 = scalar_lea.vmem [#allocation8], 64
        %v4412 = vld [vmem:[%s4411] sm:$0xf]
        %v4413 = vld [vmem:[%s4411 + $0x4] sm:$0xf]
        %v4414 = vld [vmem:[%s4411 + $0x8] sm:$0xf]
        %v4415 = vld [vmem:[%s4411 + $0xc] sm:$0xf]
        %v4416 = vld [vmem:[%s4411 + $0x10] sm:$0xf]
        %v4417 = vld [vmem:[%s4411 + $0x14] sm:$0xf]
        %v4418 = vld [vmem:[%s4411 + $0x18] sm:$0xf]
        %v4419 = vld [vmem:[%s4411 + $0x1c] sm:$0xf]
        %v4420 = vld [vmem:[%s4411 + $0x20] sm:$0xf]
        %v4421 = vld [vmem:[%s4411 + $0x24] sm:$0xf]
        %v4422 = vld [vmem:[%s4411 + $0x28] sm:$0xf]
        %v4423 = vld [vmem:[%s4411 + $0x2c] sm:$0xf]
        %v4424 = vld [vmem:[%s4411 + $0x30] sm:$0xf]
        %v4425 = vld [vmem:[%s4411 + $0x34] sm:$0xf]
        %v4426 = vld [vmem:[%s4411 + $0x38] sm:$0xf]
        %v4427 = vld [vmem:[%s4411 + $0x3c] sm:$0xf]
        %v4428 = vunpack.c.l.b16 %v4232
        %v4429 = vunpack.c.l.b16 %v4242
        %v4430 = vunpack.c.l.b16 %v4256
        %v4431 = vunpack.c.l.b16 %v4266
        %v4432 = vunpack.c.l.b16 %v4280
        %v4433 = vunpack.c.l.b16 %v4290
        %v4434 = vunpack.c.l.b16 %v4304
        %v4435 = vunpack.c.l.b16 %v4314
        %v4436 = vunpack.c.l.b16 %v4328
        %v4437 = vunpack.c.l.b16 %v4338
        %v4438 = vunpack.c.l.b16 %v4352
        %v4439 = vunpack.c.l.b16 %v4362
        %v4440 = vunpack.c.l.b16 %v4376
        %v4441 = vunpack.c.l.b16 %v4386
        %v4442 = vunpack.c.l.b16 %v4400
        %v4443 = vunpack.c.l.b16 %v4410
        %v4444 = vpack.c.b16 %v4429, %v4428
        %v4445 = vpack.c.b16 %v4431, %v4430
        %v4446 = vpack.c.b16 %v4433, %v4432
        %v4447 = vpack.c.b16 %v4435, %v4434
        %v4448 = vpack.c.b16 %v4437, %v4436
        %v4449 = vpack.c.b16 %v4439, %v4438
        %v4450 = vpack.c.b16 %v4441, %v4440
        %v4451 = vpack.c.b16 %v4443, %v4442
        %v4476 = vunpack.c.l.b16 %v4412
        %v4477 = vunpack.c.l.b16 %v4413
        %v4478 = vunpack.c.l.b16 %v4414
        %v4479 = vunpack.c.l.b16 %v4415
        %v4480 = vunpack.c.l.b16 %v4416
        %v4481 = vunpack.c.l.b16 %v4417
        %v4482 = vunpack.c.l.b16 %v4418
        %v4483 = vunpack.c.l.b16 %v4419
        %v4484 = vunpack.c.l.b16 %v4420
        %v4485 = vunpack.c.l.b16 %v4421
        %v4486 = vunpack.c.l.b16 %v4422
        %v4487 = vunpack.c.l.b16 %v4423
        %v4488 = vunpack.c.l.b16 %v4424
        %v4489 = vunpack.c.l.b16 %v4425
        %v4490 = vunpack.c.l.b16 %v4426
        %v4491 = vunpack.c.l.b16 %v4427
        %v4492 = vpack.c.b16 %v4477, %v4476
        %v4493 = vpack.c.b16 %v4479, %v4478
        %v4494 = vpack.c.b16 %v4481, %v4480
        %v4495 = vpack.c.b16 %v4483, %v4482
        %v4496 = vpack.c.b16 %v4485, %v4484
        %v4497 = vpack.c.b16 %v4487, %v4486
        %v4498 = vpack.c.b16 %v4489, %v4488
        %v4499 = vpack.c.b16 %v4491, %v4490
        %4508 = vmatprep.subr.bf16.mxu0 0
        %4509 = vmatpush1.bf16.msra.mxu0 %v4492
        %4510 = vmatprep.subr.bf16.mxu0 0
        %4511 = vmatpush1.bf16.msra.mxu0 %v4493
        %4512 = vmatprep.subr.bf16.mxu0 0
        %4513 = vmatpush1.bf16.msra.mxu0 %v4494
        %4514 = vmatprep.subr.bf16.mxu0 0
        %4515 = vmatpush1.bf16.msra.mxu0 %v4495
        %4516 = vmatprep.subr.bf16.mxu0 0
        %4517 = vmatpush1.bf16.msra.mxu0 %v4496
        %4518 = vmatprep.subr.bf16.mxu0 0
        %4519 = vmatpush1.bf16.msra.mxu0 %v4497
        %4520 = vmatprep.subr.bf16.mxu0 0
        %4521 = vmatpush1.bf16.msra.mxu0 %v4498
        %4522 = vmatprep.subr.bf16.mxu0 0
        %4523 = vmatpush1.bf16.msra.mxu0 %v4499
        %4524 = vmatprep.subr.bf16.mxu0 0
        %4525 = vmatpush1.bf16.msra.mxu0 0
        %4526 = vmatprep.subr.bf16.mxu0 0
        %4527 = vmatpush1.bf16.msra.mxu0 0
        %4528 = vmatprep.subr.bf16.mxu0 0
        %4529 = vmatpush1.bf16.msra.mxu0 0
        %4530 = vmatprep.subr.bf16.mxu0 0
        %4531 = vmatpush1.bf16.msra.mxu0 0
        %4532 = vmatprep.subr.bf16.mxu0 0
        %4533 = vmatpush1.bf16.msra.mxu0 0
        %4534 = vmatprep.subr.bf16.mxu0 0
        %4535 = vmatpush1.bf16.msra.mxu0 0
        %4536 = vmatprep.subr.bf16.mxu0 0
        %4537 = vmatpush1.bf16.msra.mxu0 0
        %4538 = vmatprep.subr.bf16.mxu0 0
        %4539 = vmatpush1.bf16.msra.mxu0 0
        %4540 = vmatprep.mubr.bf16.mxu0 0
        %4541 = vmatmul.mubr.bf16.gmra.mrb[0].mxu0 %v4444
        %v4542 = vpop.f32.mrb[0].mxu0
        %v4543 = vadd.f32 0.0, %v4542
        %v4544 = vpop.f32.mrb[0].mxu0
        %v4545 = vpop.f32.mrb[0].mxu0
        %v4546 = vadd.f32 0.0, %v4545
        %v4547 = vpop.f32.mrb[0].mxu0
        %4548 = vmatprep.mubr.bf16.mxu0 0
        %4549 = vmatmul.mubr.bf16.gmra.mrb[0].mxu0 %v4445
        %v4550 = vpop.f32.mrb[0].mxu0
        %v4551 = vadd.f32 0.0, %v4550
        %v4552 = vpop.f32.mrb[0].mxu0
        %v4553 = vpop.f32.mrb[0].mxu0
        %v4554 = vadd.f32 0.0, %v4553
        %v4555 = vpop.f32.mrb[0].mxu0
        %4556 = vmatprep.mubr.bf16.mxu0 0
        %4557 = vmatmul.mubr.bf16.gmra.mrb[0].mxu0 %v4446
        %v4558 = vpop.f32.mrb[0].mxu0
        %v4559 = vadd.f32 0.0, %v4558
        %v4560 = vpop.f32.mrb[0].mxu0
        %v4561 = vpop.f32.mrb[0].mxu0
        %v4562 = vadd.f32 0.0, %v4561
        %v4563 = vpop.f32.mrb[0].mxu0
        %4564 = vmatprep.mubr.bf16.mxu0 0
        %4565 = vmatmul.mubr.bf16.gmra.mrb[0].mxu0 %v4447
        %v4566 = vpop.f32.mrb[0].mxu0
        %v4567 = vadd.f32 0.0, %v4566
        %v4568 = vpop.f32.mrb[0].mxu0
        %v4569 = vpop.f32.mrb[0].mxu0
        %v4570 = vadd.f32 0.0, %v4569
        %v4571 = vpop.f32.mrb[0].mxu0
        %4572 = vmatprep.mubr.bf16.mxu0 0
        %4573 = vmatmul.mubr.bf16.gmra.mrb[0].mxu0 %v4448
        %v4574 = vpop.f32.mrb[0].mxu0
        %v4575 = vadd.f32 0.0, %v4574
        %v4576 = vpop.f32.mrb[0].mxu0
        %v4577 = vpop.f32.mrb[0].mxu0
        %v4578 = vadd.f32 0.0, %v4577
        %v4579 = vpop.f32.mrb[0].mxu0
        %4580 = vmatprep.mubr.bf16.mxu0 0
        %4581 = vmatmul.mubr.bf16.gmra.mrb[0].mxu0 %v4449
        %v4582 = vpop.f32.mrb[0].mxu0
        %v4583 = vadd.f32 0.0, %v4582
        %v4584 = vpop.f32.mrb[0].mxu0
        %v4585 = vpop.f32.mrb[0].mxu0
        %v4586 = vadd.f32 0.0, %v4585
        %v4587 = vpop.f32.mrb[0].mxu0
        %4588 = vmatprep.mubr.bf16.mxu0 0
        %4589 = vmatmul.mubr.bf16.gmra.mrb[0].mxu0 %v4450
        %v4590 = vpop.f32.mrb[0].mxu0
        %v4591 = vadd.f32 0.0, %v4590
        %v4592 = vpop.f32.mrb[0].mxu0
        %v4593 = vpop.f32.mrb[0].mxu0
        %v4594 = vadd.f32 0.0, %v4593
        %v4595 = vpop.f32.mrb[0].mxu0
        %4596 = vmatprep.mubr.bf16.mxu0 0
        %4597 = vmatmul.mubr.bf16.gmra.mrb[0].mxu0 %v4451
        %v4598 = vpop.f32.mrb[0].mxu0
        %v4599 = vadd.f32 0.0, %v4598
        %v4600 = vpop.f32.mrb[0].mxu0
        %v4601 = vpop.f32.mrb[0].mxu0
        %v4602 = vadd.f32 0.0, %v4601
        %v4603 = vpop.f32.mrb[0].mxu0
        %4604 = vdwg.mxu0
        %v4621 = vunpack.c.l.b16 %v4179
        %v4622 = vunpack.c.l.b16 %v4180
        %v4623 = vunpack.c.l.b16 %v4181
        %v4624 = vunpack.c.l.b16 %v4182
        %v4625 = vunpack.c.l.b16 %v4183
        %v4626 = vunpack.c.l.b16 %v4184
        %v4627 = vunpack.c.l.b16 %v4185
        %v4628 = vunpack.c.l.b16 %v4186
        %v4629 = vunpack.c.l.b16 %v4187
        %v4630 = vunpack.c.l.b16 %v4188
        %v4631 = vunpack.c.l.b16 %v4189
        %v4632 = vunpack.c.l.b16 %v4190
        %v4633 = vunpack.c.l.b16 %v4191
        %v4634 = vunpack.c.l.b16 %v4192
        %v4635 = vunpack.c.l.b16 %v4193
        %v4636 = vunpack.c.l.b16 %v4194
        %v4637 = vpack.c.b16 %v4622, %v4621
        %v4638 = vpack.c.b16 %v4624, %v4623
        %v4639 = vpack.c.b16 %v4626, %v4625
        %v4640 = vpack.c.b16 %v4628, %v4627
        %v4641 = vpack.c.b16 %v4630, %v4629
        %v4642 = vpack.c.b16 %v4632, %v4631
        %v4643 = vpack.c.b16 %v4634, %v4633
        %v4644 = vpack.c.b16 %v4636, %v4635
        %v4669 = vunpack.c.l.b16 %v4195
        %v4670 = vunpack.c.l.b16 %v4196
        %v4671 = vunpack.c.l.b16 %v4197
        %v4672 = vunpack.c.l.b16 %v4198
        %v4673 = vunpack.c.l.b16 %v4199
        %v4674 = vunpack.c.l.b16 %v4200
        %v4675 = vunpack.c.l.b16 %v4201
        %v4676 = vunpack.c.l.b16 %v4202
        %v4677 = vunpack.c.l.b16 %v4203
        %v4678 = vunpack.c.l.b16 %v4204
        %v4679 = vunpack.c.l.b16 %v4205
        %v4680 = vunpack.c.l.b16 %v4206
        %v4681 = vunpack.c.l.b16 %v4207
        %v4682 = vunpack.c.l.b16 %v4208
        %v4683 = vunpack.c.l.b16 %v4209
        %v4684 = vunpack.c.l.b16 %v4210
        %v4685 = vpack.c.b16 %v4670, %v4669
        %v4686 = vpack.c.b16 %v4672, %v4671
        %v4687 = vpack.c.b16 %v4674, %v4673
        %v4688 = vpack.c.b16 %v4676, %v4675
        %v4689 = vpack.c.b16 %v4678, %v4677
        %v4690 = vpack.c.b16 %v4680, %v4679
        %v4691 = vpack.c.b16 %v4682, %v4681
        %v4692 = vpack.c.b16 %v4684, %v4683
        %4701 = vmatprep.subr.bf16.mxu0 0
        %4702 = vmatpush1.bf16.msra.mxu0 %v4685
        %4703 = vmatprep.subr.bf16.mxu0 0
        %4704 = vmatpush1.bf16.msra.mxu0 %v4686
        %4705 = vmatprep.subr.bf16.mxu0 0
        %4706 = vmatpush1.bf16.msra.mxu0 %v4687
        %4707 = vmatprep.subr.bf16.mxu0 0
        %4708 = vmatpush1.bf16.msra.mxu0 %v4688
        %4709 = vmatprep.subr.bf16.mxu0 0
        %4710 = vmatpush1.bf16.msra.mxu0 %v4689
        %4711 = vmatprep.subr.bf16.mxu0 0
        %4712 = vmatpush1.bf16.msra.mxu0 %v4690
        %4713 = vmatprep.subr.bf16.mxu0 0
        %4714 = vmatpush1.bf16.msra.mxu0 %v4691
        %4715 = vmatprep.subr.bf16.mxu0 0
        %4716 = vmatpush1.bf16.msra.mxu0 %v4692
        %4717 = vmatprep.subr.bf16.mxu0 0
        %4718 = vmatpush1.bf16.msra.mxu0 0
        %4719 = vmatprep.subr.bf16.mxu0 0
        %4720 = vmatpush1.bf16.msra.mxu0 0
        %4721 = vmatprep.subr.bf16.mxu0 0
        %4722 = vmatpush1.bf16.msra.mxu0 0
        %4723 = vmatprep.subr.bf16.mxu0 0
        %4724 = vmatpush1.bf16.msra.mxu0 0
        %4725 = vmatprep.subr.bf16.mxu0 0
        %4726 = vmatpush1.bf16.msra.mxu0 0
        %4727 = vmatprep.subr.bf16.mxu0 0
        %4728 = vmatpush1.bf16.msra.mxu0 0
        %4729 = vmatprep.subr.bf16.mxu0 0
        %4730 = vmatpush1.bf16.msra.mxu0 0
        %4731 = vmatprep.subr.bf16.mxu0 0
        %4732 = vmatpush1.bf16.msra.mxu0 0
        %4733 = vmatprep.mubr.bf16.mxu0 0
        %4734 = vmatmul.mubr.bf16.gmra.mrb[0].mxu0 %v4637
        %v4735 = vpop.f32.mrb[0].mxu0
        %v4736 = vadd.f32 %v4543, %v4735
        %v4737 = vpop.f32.mrb[0].mxu0
        %v4738 = vpop.f32.mrb[0].mxu0
        %v4739 = vadd.f32 %v4546, %v4738
        %v4740 = vpop.f32.mrb[0].mxu0
        %4741 = vmatprep.mubr.bf16.mxu0 0
        %4742 = vmatmul.mubr.bf16.gmra.mrb[0].mxu0 %v4638
        %v4743 = vpop.f32.mrb[0].mxu0
        %v4744 = vadd.f32 %v4551, %v4743
        %v4745 = vpop.f32.mrb[0].mxu0
        %v4746 = vpop.f32.mrb[0].mxu0
        %v4747 = vadd.f32 %v4554, %v4746
        %v4748 = vpop.f32.mrb[0].mxu0
        %4749 = vmatprep.mubr.bf16.mxu0 0
        %4750 = vmatmul.mubr.bf16.gmra.mrb[0].mxu0 %v4639
        %v4751 = vpop.f32.mrb[0].mxu0
        %v4752 = vadd.f32 %v4559, %v4751
        %v4753 = vpop.f32.mrb[0].mxu0
        %v4754 = vpop.f32.mrb[0].mxu0
        %v4755 = vadd.f32 %v4562, %v4754
        %v4756 = vpop.f32.mrb[0].mxu0
        %4757 = vmatprep.mubr.bf16.mxu0 0
        %4758 = vmatmul.mubr.bf16.gmra.mrb[0].mxu0 %v4640
        %v4759 = vpop.f32.mrb[0].mxu0
        %v4760 = vadd.f32 %v4567, %v4759
        %v4761 = vpop.f32.mrb[0].mxu0
        %v4762 = vpop.f32.mrb[0].mxu0
        %v4763 = vadd.f32 %v4570, %v4762
        %v4764 = vpop.f32.mrb[0].mxu0
        %4765 = vmatprep.mubr.bf16.mxu0 0
        %4766 = vmatmul.mubr.bf16.gmra.mrb[0].mxu0 %v4641
        %v4767 = vpop.f32.mrb[0].mxu0
        %v4768 = vadd.f32 %v4575, %v4767
        %v4769 = vpop.f32.mrb[0].mxu0
        %v4770 = vpop.f32.mrb[0].mxu0
        %v4771 = vadd.f32 %v4578, %v4770
        %v4772 = vpop.f32.mrb[0].mxu0
        %4773 = vmatprep.mubr.bf16.mxu0 0
        %4774 = vmatmul.mubr.bf16.gmra.mrb[0].mxu0 %v4642
        %v4775 = vpop.f32.mrb[0].mxu0
        %v4776 = vadd.f32 %v4583, %v4775
        %v4777 = vpop.f32.mrb[0].mxu0
        %v4778 = vpop.f32.mrb[0].mxu0
        %v4779 = vadd.f32 %v4586, %v4778
        %v4780 = vpop.f32.mrb[0].mxu0
        %4781 = vmatprep.mubr.bf16.mxu0 0
        %4782 = vmatmul.mubr.bf16.gmra.mrb[0].mxu0 %v4643
        %v4783 = vpop.f32.mrb[0].mxu0
        %v4784 = vadd.f32 %v4591, %v4783
        %v4785 = vpop.f32.mrb[0].mxu0
        %v4786 = vpop.f32.mrb[0].mxu0
        %v4787 = vadd.f32 %v4594, %v4786
        %v4788 = vpop.f32.mrb[0].mxu0
        %4789 = vmatprep.mubr.bf16.mxu0 0
        %4790 = vmatmul.mubr.bf16.gmra.mrb[0].mxu0 %v4644
        %v4791 = vpop.f32.mrb[0].mxu0
        %v4792 = vadd.f32 %v4599, %v4791
        %v4793 = vpop.f32.mrb[0].mxu0
        %v4794 = vpop.f32.mrb[0].mxu0
        %v4795 = vadd.f32 %v4602, %v4794
        %v4796 = vpop.f32.mrb[0].mxu0
        %4797 = vdwg.mxu0
        %v4798 = vld [vmem:[#allocation2] sm:$0xe]
        %v4799 = vld [vmem:[#allocation2 + $0xc] sm:$0xe]
        %v4800 = vld [vmem:[#allocation2 + $0x18] sm:$0xe]
        %v4801 = vld [vmem:[#allocation2 + $0x24] sm:$0xe]
        %v4802 = vld [vmem:[#allocation2 + $0x30] sm:$0xe]
        %v4803 = vld [vmem:[#allocation2 + $0x3c] sm:$0xe]
        %v4804 = vld [vmem:[#allocation2 + $0x48] sm:$0xe]
        %v4805 = vld [vmem:[#allocation2 + $0x54] sm:$0xe]
        %v4822 = vrot.slane %v4798, 5
        %v4823 = vrot.slane %v4822, 4
        %v4824 = vrot.slane %v4180, 5
        %v4825 = vsel %vm1106, %v4823, %v4824
        %v4826 = vrot.slane %v4824, 4
        %v4827 = vrot.slane %v4211, 5
        %v4828 = vsel %vm1106, %v4826, %v4827
        %v4829 = vrot.slane %v4799, 5
        %v4830 = vrot.slane %v4829, 4
        %v4831 = vrot.slane %v4182, 5
        %v4832 = vsel %vm1106, %v4830, %v4831
        %v4833 = vrot.slane %v4831, 4
        %v4834 = vrot.slane %v4212, 5
        %v4835 = vsel %vm1106, %v4833, %v4834
        %v4836 = vrot.slane %v4800, 5
        %v4837 = vrot.slane %v4836, 4
        %v4838 = vrot.slane %v4184, 5
        %v4839 = vsel %vm1106, %v4837, %v4838
        %v4840 = vrot.slane %v4838, 4
        %v4841 = vrot.slane %v4213, 5
        %v4842 = vsel %vm1106, %v4840, %v4841
        %v4843 = vrot.slane %v4801, 5
        %v4844 = vrot.slane %v4843, 4
        %v4845 = vrot.slane %v4186, 5
        %v4846 = vsel %vm1106, %v4844, %v4845
        %v4847 = vrot.slane %v4845, 4
        %v4848 = vrot.slane %v4214, 5
        %v4849 = vsel %vm1106, %v4847, %v4848
        %v4850 = vrot.slane %v4802, 5
        %v4851 = vrot.slane %v4850, 4
        %v4852 = vrot.slane %v4188, 5
        %v4853 = vsel %vm1106, %v4851, %v4852
        %v4854 = vrot.slane %v4852, 4
        %v4855 = vrot.slane %v4215, 5
        %v4856 = vsel %vm1106, %v4854, %v4855
        %v4857 = vrot.slane %v4803, 5
        %v4858 = vrot.slane %v4857, 4
        %v4859 = vrot.slane %v4190, 5
        %v4860 = vsel %vm1106, %v4858, %v4859
        %v4861 = vrot.slane %v4859, 4
        %v4862 = vrot.slane %v4216, 5
        %v4863 = vsel %vm1106, %v4861, %v4862
        %v4864 = vrot.slane %v4804, 5
        %v4865 = vrot.slane %v4864, 4
        %v4866 = vrot.slane %v4192, 5
        %v4867 = vsel %vm1106, %v4865, %v4866
        %v4868 = vrot.slane %v4866, 4
        %v4869 = vrot.slane %v4217, 5
        %v4870 = vsel %vm1106, %v4868, %v4869
        %v4871 = vrot.slane %v4805, 5
        %v4872 = vrot.slane %v4871, 4
        %v4873 = vrot.slane %v4194, 5
        %v4874 = vsel %vm1106, %v4872, %v4873
        %v4875 = vrot.slane %v4873, 4
        %v4876 = vrot.slane %v4218, 5
        %v4877 = vsel %vm1106, %v4875, %v4876
        %s4878 = scalar_lea.vmem [#allocation8], 128
        %v4879 = vld [vmem:[%s4878] sm:$0xf]
        %v4880 = vld [vmem:[%s4878 + $0x4] sm:$0xf]
        %v4881 = vld [vmem:[%s4878 + $0x8] sm:$0xf]
        %v4882 = vld [vmem:[%s4878 + $0xc] sm:$0xf]
        %v4883 = vld [vmem:[%s4878 + $0x10] sm:$0xf]
        %v4884 = vld [vmem:[%s4878 + $0x14] sm:$0xf]
        %v4885 = vld [vmem:[%s4878 + $0x18] sm:$0xf]
        %v4886 = vld [vmem:[%s4878 + $0x1c] sm:$0xf]
        %v4887 = vld [vmem:[%s4878 + $0x20] sm:$0xf]
        %v4888 = vld [vmem:[%s4878 + $0x24] sm:$0xf]
        %v4889 = vld [vmem:[%s4878 + $0x28] sm:$0xf]
        %v4890 = vld [vmem:[%s4878 + $0x2c] sm:$0xf]
        %v4891 = vld [vmem:[%s4878 + $0x30] sm:$0xf]
        %v4892 = vld [vmem:[%s4878 + $0x34] sm:$0xf]
        %v4893 = vld [vmem:[%s4878 + $0x38] sm:$0xf]
        %v4894 = vld [vmem:[%s4878 + $0x3c] sm:$0xf]
        %v4895 = vunpack.c.l.b16 %v4825
        %v4896 = vunpack.c.l.b16 %v4828
        %v4897 = vunpack.c.l.b16 %v4832
        %v4898 = vunpack.c.l.b16 %v4835
        %v4899 = vunpack.c.l.b16 %v4839
        %v4900 = vunpack.c.l.b16 %v4842
        %v4901 = vunpack.c.l.b16 %v4846
        %v4902 = vunpack.c.l.b16 %v4849
        %v4903 = vunpack.c.l.b16 %v4853
        %v4904 = vunpack.c.l.b16 %v4856
        %v4905 = vunpack.c.l.b16 %v4860
        %v4906 = vunpack.c.l.b16 %v4863
        %v4907 = vunpack.c.l.b16 %v4867
        %v4908 = vunpack.c.l.b16 %v4870
        %v4909 = vunpack.c.l.b16 %v4874
        %v4910 = vunpack.c.l.b16 %v4877
        %v4911 = vpack.c.b16 %v4896, %v4895
        %v4912 = vpack.c.b16 %v4898, %v4897
        %v4913 = vpack.c.b16 %v4900, %v4899
        %v4914 = vpack.c.b16 %v4902, %v4901
        %v4915 = vpack.c.b16 %v4904, %v4903
        %v4916 = vpack.c.b16 %v4906, %v4905
        %v4917 = vpack.c.b16 %v4908, %v4907
        %v4918 = vpack.c.b16 %v4910, %v4909
        %v4943 = vunpack.c.l.b16 %v4879
        %v4944 = vunpack.c.l.b16 %v4880
        %v4945 = vunpack.c.l.b16 %v4881
        %v4946 = vunpack.c.l.b16 %v4882
        %v4947 = vunpack.c.l.b16 %v4883
        %v4948 = vunpack.c.l.b16 %v4884
        %v4949 = vunpack.c.l.b16 %v4885
        %v4950 = vunpack.c.l.b16 %v4886
        %v4951 = vunpack.c.l.b16 %v4887
        %v4952 = vunpack.c.l.b16 %v4888
        %v4953 = vunpack.c.l.b16 %v4889
        %v4954 = vunpack.c.l.b16 %v4890
        %v4955 = vunpack.c.l.b16 %v4891
        %v4956 = vunpack.c.l.b16 %v4892
        %v4957 = vunpack.c.l.b16 %v4893
        %v4958 = vunpack.c.l.b16 %v4894
        %v4959 = vpack.c.b16 %v4944, %v4943
        %v4960 = vpack.c.b16 %v4946, %v4945
        %v4961 = vpack.c.b16 %v4948, %v4947
        %v4962 = vpack.c.b16 %v4950, %v4949
        %v4963 = vpack.c.b16 %v4952, %v4951
        %v4964 = vpack.c.b16 %v4954, %v4953
        %v4965 = vpack.c.b16 %v4956, %v4955
        %v4966 = vpack.c.b16 %v4958, %v4957
        %4975 = vmatprep.subr.bf16.mxu0 0
        %4976 = vmatpush1.bf16.msra.mxu0 %v4959
        %4977 = vmatprep.subr.bf16.mxu0 0
        %4978 = vmatpush1.bf16.msra.mxu0 %v4960
        %4979 = vmatprep.subr.bf16.mxu0 0
        %4980 = vmatpush1.bf16.msra.mxu0 %v4961
        %4981 = vmatprep.subr.bf16.mxu0 0
        %4982 = vmatpush1.bf16.msra.mxu0 %v4962
        %4983 = vmatprep.subr.bf16.mxu0 0
        %4984 = vmatpush1.bf16.msra.mxu0 %v4963
        %4985 = vmatprep.subr.bf16.mxu0 0
        %4986 = vmatpush1.bf16.msra.mxu0 %v4964
        %4987 = vmatprep.subr.bf16.mxu0 0
        %4988 = vmatpush1.bf16.msra.mxu0 %v4965
        %4989 = vmatprep.subr.bf16.mxu0 0
        %4990 = vmatpush1.bf16.msra.mxu0 %v4966
        %4991 = vmatprep.subr.bf16.mxu0 0
        %4992 = vmatpush1.bf16.msra.mxu0 0
        %4993 = vmatprep.subr.bf16.mxu0 0
        %4994 = vmatpush1.bf16.msra.mxu0 0
        %4995 = vmatprep.subr.bf16.mxu0 0
        %4996 = vmatpush1.bf16.msra.mxu0 0
        %4997 = vmatprep.subr.bf16.mxu0 0
        %4998 = vmatpush1.bf16.msra.mxu0 0
        %4999 = vmatprep.subr.bf16.mxu0 0
        %5000 = vmatpush1.bf16.msra.mxu0 0
        %5001 = vmatprep.subr.bf16.mxu0 0
        %5002 = vmatpush1.bf16.msra.mxu0 0
        %5003 = vmatprep.subr.bf16.mxu0 0
        %5004 = vmatpush1.bf16.msra.mxu0 0
        %5005 = vmatprep.subr.bf16.mxu0 0
        %5006 = vmatpush1.bf16.msra.mxu0 0
        %5007 = vmatprep.mubr.bf16.mxu0 0
        %5008 = vmatmul.mubr.bf16.gmra.mrb[0].mxu0 %v4911
        %v5009 = vpop.f32.mrb[0].mxu0
        %v5010 = vadd.f32 0.0, %v5009
        %v5011 = vpop.f32.mrb[0].mxu0
        %v5012 = vpop.f32.mrb[0].mxu0
        %v5013 = vadd.f32 0.0, %v5012
        %v5014 = vpop.f32.mrb[0].mxu0
        %5015 = vmatprep.mubr.bf16.mxu0 0
        %5016 = vmatmul.mubr.bf16.gmra.mrb[0].mxu0 %v4912
        %v5017 = vpop.f32.mrb[0].mxu0
        %v5018 = vadd.f32 0.0, %v5017
        %v5019 = vpop.f32.mrb[0].mxu0
        %v5020 = vpop.f32.mrb[0].mxu0
        %v5021 = vadd.f32 0.0, %v5020
        %v5022 = vpop.f32.mrb[0].mxu0
        %5023 = vmatprep.mubr.bf16.mxu0 0
        %5024 = vmatmul.mubr.bf16.gmra.mrb[0].mxu0 %v4913
        %v5025 = vpop.f32.mrb[0].mxu0
        %v5026 = vadd.f32 0.0, %v5025
        %v5027 = vpop.f32.mrb[0].mxu0
        %v5028 = vpop.f32.mrb[0].mxu0
        %v5029 = vadd.f32 0.0, %v5028
        %v5030 = vpop.f32.mrb[0].mxu0
        %5031 = vmatprep.mubr.bf16.mxu0 0
        %5032 = vmatmul.mubr.bf16.gmra.mrb[0].mxu0 %v4914
        %v5033 = vpop.f32.mrb[0].mxu0
        %v5034 = vadd.f32 0.0, %v5033
        %v5035 = vpop.f32.mrb[0].mxu0
        %v5036 = vpop.f32.mrb[0].mxu0
        %v5037 = vadd.f32 0.0, %v5036
        %v5038 = vpop.f32.mrb[0].mxu0
        %5039 = vmatprep.mubr.bf16.mxu0 0
        %5040 = vmatmul.mubr.bf16.gmra.mrb[0].mxu0 %v4915
        %v5041 = vpop.f32.mrb[0].mxu0
        %v5042 = vadd.f32 0.0, %v5041
        %v5043 = vpop.f32.mrb[0].mxu0
        %v5044 = vpop.f32.mrb[0].mxu0
        %v5045 = vadd.f32 0.0, %v5044
        %v5046 = vpop.f32.mrb[0].mxu0
        %5047 = vmatprep.mubr.bf16.mxu0 0
        %5048 = vmatmul.mubr.bf16.gmra.mrb[0].mxu0 %v4916
        %v5049 = vpop.f32.mrb[0].mxu0
        %v5050 = vadd.f32 0.0, %v5049
        %v5051 = vpop.f32.mrb[0].mxu0
        %v5052 = vpop.f32.mrb[0].mxu0
        %v5053 = vadd.f32 0.0, %v5052
        %v5054 = vpop.f32.mrb[0].mxu0
        %5055 = vmatprep.mubr.bf16.mxu0 0
        %5056 = vmatmul.mubr.bf16.gmra.mrb[0].mxu0 %v4917
        %v5057 = vpop.f32.mrb[0].mxu0
        %v5058 = vadd.f32 0.0, %v5057
        %v5059 = vpop.f32.mrb[0].mxu0
        %v5060 = vpop.f32.mrb[0].mxu0
        %v5061 = vadd.f32 0.0, %v5060
        %v5062 = vpop.f32.mrb[0].mxu0
        %5063 = vmatprep.mubr.bf16.mxu0 0
        %5064 = vmatmul.mubr.bf16.gmra.mrb[0].mxu0 %v4918
        %v5065 = vpop.f32.mrb[0].mxu0
        %v5066 = vadd.f32 0.0, %v5065
        %v5067 = vpop.f32.mrb[0].mxu0
        %v5068 = vpop.f32.mrb[0].mxu0
        %v5069 = vadd.f32 0.0, %v5068
        %v5070 = vpop.f32.mrb[0].mxu0
        %5071 = vdwg.mxu0
        %v5072 = vadd.f32 %v4736, %v5010
        %v5073 = vadd.f32 %v4739, %v5013
        %v5074 = vadd.f32 %v4744, %v5018
        %v5075 = vadd.f32 %v4747, %v5021
        %v5076 = vadd.f32 %v4752, %v5026
        %v5077 = vadd.f32 %v4755, %v5029
        %v5078 = vadd.f32 %v4760, %v5034
        %v5079 = vadd.f32 %v4763, %v5037
        %v5080 = vadd.f32 %v4768, %v5042
        %v5081 = vadd.f32 %v4771, %v5045
        %v5082 = vadd.f32 %v4776, %v5050
        %v5083 = vadd.f32 %v4779, %v5053
        %v5084 = vadd.f32 %v4784, %v5058
        %v5085 = vadd.f32 %v4787, %v5061
        %v5086 = vadd.f32 %v4792, %v5066
        %v5087 = vadd.f32 %v4795, %v5069
        %s5088 = scalar_lea.vmem [#allocation2], 12
        %v5089 = vld [vmem:[%s5088] sm:$0xf]
        %v5090 = vld [vmem:[%s5088 + $0x4] sm:$0xf]
        %v5091 = vld [vmem:[%s5088 + $0xc] sm:$0xf]
        %v5092 = vld [vmem:[%s5088 + $0x10] sm:$0xf]
        %v5093 = vld [vmem:[%s5088 + $0x18] sm:$0xf]
        %v5094 = vld [vmem:[%s5088 + $0x1c] sm:$0xf]
        %v5095 = vld [vmem:[%s5088 + $0x24] sm:$0xf]
        %v5096 = vld [vmem:[%s5088 + $0x28] sm:$0xf]
        %v5097 = vld [vmem:[%s5088 + $0x30] sm:$0xf]
        %v5098 = vld [vmem:[%s5088 + $0x34] sm:$0xf]
        %v5099 = vld [vmem:[%s5088 + $0x3c] sm:$0xf]
        %v5100 = vld [vmem:[%s5088 + $0x40] sm:$0xf]
        %v5101 = vld [vmem:[%s5088 + $0x48] sm:$0xf]
        %v5102 = vld [vmem:[%s5088 + $0x4c] sm:$0xf]
        %v5103 = vld [vmem:[%s5088 + $0x54] sm:$0xf]
        %v5104 = vld [vmem:[%s5088 + $0x58] sm:$0xf]
        %s5105 = scalar_lea.vmem [#allocation8], 192
        %v5106 = vld [vmem:[%s5105] sm:$0xf]
        %v5107 = vld [vmem:[%s5105 + $0x4] sm:$0xf]
        %v5108 = vld [vmem:[%s5105 + $0x8] sm:$0xf]
        %v5109 = vld [vmem:[%s5105 + $0xc] sm:$0xf]
        %v5110 = vld [vmem:[%s5105 + $0x10] sm:$0xf]
        %v5111 = vld [vmem:[%s5105 + $0x14] sm:$0xf]
        %v5112 = vld [vmem:[%s5105 + $0x18] sm:$0xf]
        %v5113 = vld [vmem:[%s5105 + $0x1c] sm:$0xf]
        %v5114 = vld [vmem:[%s5105 + $0x20] sm:$0xf]
        %v5115 = vld [vmem:[%s5105 + $0x24] sm:$0xf]
        %v5116 = vld [vmem:[%s5105 + $0x28] sm:$0xf]
        %v5117 = vld [vmem:[%s5105 + $0x2c] sm:$0xf]
        %v5118 = vld [vmem:[%s5105 + $0x30] sm:$0xf]
        %v5119 = vld [vmem:[%s5105 + $0x34] sm:$0xf]
        %v5120 = vld [vmem:[%s5105 + $0x38] sm:$0xf]
        %v5121 = vld [vmem:[%s5105 + $0x3c] sm:$0xf]
        %v5138 = vunpack.c.l.b16 %v5089
        %v5139 = vunpack.c.l.b16 %v5090
        %v5140 = vunpack.c.l.b16 %v5091
        %v5141 = vunpack.c.l.b16 %v5092
        %v5142 = vunpack.c.l.b16 %v5093
        %v5143 = vunpack.c.l.b16 %v5094
        %v5144 = vunpack.c.l.b16 %v5095
        %v5145 = vunpack.c.l.b16 %v5096
        %v5146 = vunpack.c.l.b16 %v5097
        %v5147 = vunpack.c.l.b16 %v5098
        %v5148 = vunpack.c.l.b16 %v5099
        %v5149 = vunpack.c.l.b16 %v5100
        %v5150 = vunpack.c.l.b16 %v5101
        %v5151 = vunpack.c.l.b16 %v5102
        %v5152 = vunpack.c.l.b16 %v5103
        %v5153 = vunpack.c.l.b16 %v5104
        %v5154 = vpack.c.b16 %v5139, %v5138
        %v5155 = vpack.c.b16 %v5141, %v5140
        %v5156 = vpack.c.b16 %v5143, %v5142
        %v5157 = vpack.c.b16 %v5145, %v5144
        %v5158 = vpack.c.b16 %v5147, %v5146
        %v5159 = vpack.c.b16 %v5149, %v5148
        %v5160 = vpack.c.b16 %v5151, %v5150
        %v5161 = vpack.c.b16 %v5153, %v5152
        %v5186 = vunpack.c.l.b16 %v5106
        %v5187 = vunpack.c.l.b16 %v5107
        %v5188 = vunpack.c.l.b16 %v5108
        %v5189 = vunpack.c.l.b16 %v5109
        %v5190 = vunpack.c.l.b16 %v5110
        %v5191 = vunpack.c.l.b16 %v5111
        %v5192 = vunpack.c.l.b16 %v5112
        %v5193 = vunpack.c.l.b16 %v5113
        %v5194 = vunpack.c.l.b16 %v5114
        %v5195 = vunpack.c.l.b16 %v5115
        %v5196 = vunpack.c.l.b16 %v5116
        %v5197 = vunpack.c.l.b16 %v5117
        %v5198 = vunpack.c.l.b16 %v5118
        %v5199 = vunpack.c.l.b16 %v5119
        %v5200 = vunpack.c.l.b16 %v5120
        %v5201 = vunpack.c.l.b16 %v5121
        %v5202 = vpack.c.b16 %v5187, %v5186
        %v5203 = vpack.c.b16 %v5189, %v5188
        %v5204 = vpack.c.b16 %v5191, %v5190
        %v5205 = vpack.c.b16 %v5193, %v5192
        %v5206 = vpack.c.b16 %v5195, %v5194
        %v5207 = vpack.c.b16 %v5197, %v5196
        %v5208 = vpack.c.b16 %v5199, %v5198
        %v5209 = vpack.c.b16 %v5201, %v5200
        %5218 = vmatprep.subr.bf16.mxu0 0
        %5219 = vmatpush1.bf16.msra.mxu0 %v5202
        %5220 = vmatprep.subr.bf16.mxu0 0
        %5221 = vmatpush1.bf16.msra.mxu0 %v5203
        %5222 = vmatprep.subr.bf16.mxu0 0
        %5223 = vmatpush1.bf16.msra.mxu0 %v5204
        %5224 = vmatprep.subr.bf16.mxu0 0
        %5225 = vmatpush1.bf16.msra.mxu0 %v5205
        %5226 = vmatprep.subr.bf16.mxu0 0
        %5227 = vmatpush1.bf16.msra.mxu0 %v5206
        %5228 = vmatprep.subr.bf16.mxu0 0
        %5229 = vmatpush1.bf16.msra.mxu0 %v5207
        %5230 = vmatprep.subr.bf16.mxu0 0
        %5231 = vmatpush1.bf16.msra.mxu0 %v5208
        %5232 = vmatprep.subr.bf16.mxu0 0
        %5233 = vmatpush1.bf16.msra.mxu0 %v5209
        %5234 = vmatprep.subr.bf16.mxu0 0
        %5235 = vmatpush1.bf16.msra.mxu0 0
        %5236 = vmatprep.subr.bf16.mxu0 0
        %5237 = vmatpush1.bf16.msra.mxu0 0
        %5238 = vmatprep.subr.bf16.mxu0 0
        %5239 = vmatpush1.bf16.msra.mxu0 0
        %5240 = vmatprep.subr.bf16.mxu0 0
        %5241 = vmatpush1.bf16.msra.mxu0 0
        %5242 = vmatprep.subr.bf16.mxu0 0
        %5243 = vmatpush1.bf16.msra.mxu0 0
        %5244 = vmatprep.subr.bf16.mxu0 0
        %5245 = vmatpush1.bf16.msra.mxu0 0
        %5246 = vmatprep.subr.bf16.mxu0 0
        %5247 = vmatpush1.bf16.msra.mxu0 0
        %5248 = vmatprep.subr.bf16.mxu0 0
        %5249 = vmatpush1.bf16.msra.mxu0 0
        %5250 = vmatprep.mubr.bf16.mxu0 0
        %5251 = vmatmul.mubr.bf16.gmra.mrb[0].mxu0 %v5154
        %v5252 = vpop.f32.mrb[0].mxu0
        %v5253 = vadd.f32 0.0, %v5252
        %v5254 = vpop.f32.mrb[0].mxu0
        %v5255 = vpop.f32.mrb[0].mxu0
        %v5256 = vadd.f32 0.0, %v5255
        %v5257 = vpop.f32.mrb[0].mxu0
        %5258 = vmatprep.mubr.bf16.mxu0 0
        %5259 = vmatmul.mubr.bf16.gmra.mrb[0].mxu0 %v5155
        %v5260 = vpop.f32.mrb[0].mxu0
        %v5261 = vadd.f32 0.0, %v5260
        %v5262 = vpop.f32.mrb[0].mxu0
        %v5263 = vpop.f32.mrb[0].mxu0
        %v5264 = vadd.f32 0.0, %v5263
        %v5265 = vpop.f32.mrb[0].mxu0
        %5266 = vmatprep.mubr.bf16.mxu0 0
        %5267 = vmatmul.mubr.bf16.gmra.mrb[0].mxu0 %v5156
        %v5268 = vpop.f32.mrb[0].mxu0
        %v5269 = vadd.f32 0.0, %v5268
        %v5270 = vpop.f32.mrb[0].mxu0
        %v5271 = vpop.f32.mrb[0].mxu0
        %v5272 = vadd.f32 0.0, %v5271
        %v5273 = vpop.f32.mrb[0].mxu0
        %5274 = vmatprep.mubr.bf16.mxu0 0
        %5275 = vmatmul.mubr.bf16.gmra.mrb[0].mxu0 %v5157
        %v5276 = vpop.f32.mrb[0].mxu0
        %v5277 = vadd.f32 0.0, %v5276
        %v5278 = vpop.f32.mrb[0].mxu0
        %v5279 = vpop.f32.mrb[0].mxu0
        %v5280 = vadd.f32 0.0, %v5279
        %v5281 = vpop.f32.mrb[0].mxu0
        %5282 = vmatprep.mubr.bf16.mxu0 0
        %5283 = vmatmul.mubr.bf16.gmra.mrb[0].mxu0 %v5158
        %v5284 = vpop.f32.mrb[0].mxu0
        %v5285 = vadd.f32 0.0, %v5284
        %v5286 = vpop.f32.mrb[0].mxu0
        %v5287 = vpop.f32.mrb[0].mxu0
        %v5288 = vadd.f32 0.0, %v5287
        %v5289 = vpop.f32.mrb[0].mxu0
        %5290 = vmatprep.mubr.bf16.mxu0 0
        %5291 = vmatmul.mubr.bf16.gmra.mrb[0].mxu0 %v5159
        %v5292 = vpop.f32.mrb[0].mxu0
        %v5293 = vadd.f32 0.0, %v5292
        %v5294 = vpop.f32.mrb[0].mxu0
        %v5295 = vpop.f32.mrb[0].mxu0
        %v5296 = vadd.f32 0.0, %v5295
        %v5297 = vpop.f32.mrb[0].mxu0
        %5298 = vmatprep.mubr.bf16.mxu0 0
        %5299 = vmatmul.mubr.bf16.gmra.mrb[0].mxu0 %v5160
        %v5300 = vpop.f32.mrb[0].mxu0
        %v5301 = vadd.f32 0.0, %v5300
        %v5302 = vpop.f32.mrb[0].mxu0
        %v5303 = vpop.f32.mrb[0].mxu0
        %v5304 = vadd.f32 0.0, %v5303
        %v5305 = vpop.f32.mrb[0].mxu0
        %5306 = vmatprep.mubr.bf16.mxu0 0
        %5307 = vmatmul.mubr.bf16.gmra.mrb[0].mxu0 %v5161
        %v5308 = vpop.f32.mrb[0].mxu0
        %v5309 = vadd.f32 0.0, %v5308
        %v5310 = vpop.f32.mrb[0].mxu0
        %v5311 = vpop.f32.mrb[0].mxu0
        %v5312 = vadd.f32 0.0, %v5311
        %v5313 = vpop.f32.mrb[0].mxu0
        %5314 = vdwg.mxu0
        %v5315 = vadd.f32 %v5072, %v5253
        %v5316 = vadd.f32 %v5073, %v5256
        %v5317 = vadd.f32 %v5074, %v5261
        %v5318 = vadd.f32 %v5075, %v5264
        %v5319 = vadd.f32 %v5076, %v5269
        %v5320 = vadd.f32 %v5077, %v5272
        %v5321 = vadd.f32 %v5078, %v5277
        %v5322 = vadd.f32 %v5079, %v5280
        %v5323 = vadd.f32 %v5080, %v5285
        %v5324 = vadd.f32 %v5081, %v5288
        %v5325 = vadd.f32 %v5082, %v5293
        %v5326 = vadd.f32 %v5083, %v5296
        %v5327 = vadd.f32 %v5084, %v5301
        %v5328 = vadd.f32 %v5085, %v5304
        %v5329 = vadd.f32 %v5086, %v5309
        %v5330 = vadd.f32 %v5087, %v5312
        %v5331 = vld [vmem:[%s5088] sm:$0xf]
        %v5332 = vld [vmem:[%s5088 + $0x4] sm:$0xf]
        %v5333 = vld [vmem:[%s5088 + $0x8] sm:$0x1]
        %v5334 = vld [vmem:[%s5088 + $0xc] sm:$0xf]
        %v5335 = vld [vmem:[%s5088 + $0x10] sm:$0xf]
        %v5336 = vld [vmem:[%s5088 + $0x14] sm:$0x1]
        %v5337 = vld [vmem:[%s5088 + $0x18] sm:$0xf]
        %v5338 = vld [vmem:[%s5088 + $0x1c] sm:$0xf]
        %v5339 = vld [vmem:[%s5088 + $0x20] sm:$0x1]
        %v5340 = vld [vmem:[%s5088 + $0x24] sm:$0xf]
        %v5341 = vld [vmem:[%s5088 + $0x28] sm:$0xf]
        %v5342 = vld [vmem:[%s5088 + $0x2c] sm:$0x1]
        %v5343 = vld [vmem:[%s5088 + $0x30] sm:$0xf]
        %v5344 = vld [vmem:[%s5088 + $0x34] sm:$0xf]
        %v5345 = vld [vmem:[%s5088 + $0x38] sm:$0x1]
        %v5346 = vld [vmem:[%s5088 + $0x3c] sm:$0xf]
        %v5347 = vld [vmem:[%s5088 + $0x40] sm:$0xf]
        %v5348 = vld [vmem:[%s5088 + $0x44] sm:$0x1]
        %v5349 = vld [vmem:[%s5088 + $0x48] sm:$0xf]
        %v5350 = vld [vmem:[%s5088 + $0x4c] sm:$0xf]
        %v5351 = vld [vmem:[%s5088 + $0x50] sm:$0x1]
        %v5352 = vld [vmem:[%s5088 + $0x54] sm:$0xf]
        %v5353 = vld [vmem:[%s5088 + $0x58] sm:$0xf]
        %v5354 = vld [vmem:[%s5088 + $0x5c] sm:$0x1]
        %v5356 = vshrl.u32 %v5331, 16
        %v5358 = vrot.slane %v5356, 4
        %v5359 = vshll.u32 %v5331, 16
        %v5361 = vrot.slane %v5359, 5
        %v5362 = vor.u32 %v5358, %v5361
        %v5363 = vrot.slane %v5362, 4
        %v5365 = vshll.u32 %v5332, 16
        %v5367 = vrot.slane %v5365, 5
        %v5368 = vsel %vm394, %v5363, %v5367
        %v5369 = vshrl.u32 %v5332, 16
        %v5371 = vrot.slane %v5369, 4
        %v5372 = vor.u32 %v5371, %v5367
        %v5373 = vrot.slane %v5372, 4
        %v5375 = vshll.u32 %v5333, 16
        %v5377 = vrot.slane %v5375, 5
        %v5378 = vsel %vm394, %v5373, %v5377
        %v5380 = vshrl.u32 %v5334, 16
        %v5382 = vrot.slane %v5380, 4
        %v5383 = vshll.u32 %v5334, 16
        %v5385 = vrot.slane %v5383, 5
        %v5386 = vor.u32 %v5382, %v5385
        %v5387 = vrot.slane %v5386, 4
        %v5389 = vshll.u32 %v5335, 16
        %v5391 = vrot.slane %v5389, 5
        %v5392 = vsel %vm394, %v5387, %v5391
        %v5393 = vshrl.u32 %v5335, 16
        %v5395 = vrot.slane %v5393, 4
        %v5396 = vor.u32 %v5395, %v5391
        %v5397 = vrot.slane %v5396, 4
        %v5399 = vshll.u32 %v5336, 16
        %v5401 = vrot.slane %v5399, 5
        %v5402 = vsel %vm394, %v5397, %v5401
        %v5404 = vshrl.u32 %v5337, 16
        %v5406 = vrot.slane %v5404, 4
        %v5407 = vshll.u32 %v5337, 16
        %v5409 = vrot.slane %v5407, 5
        %v5410 = vor.u32 %v5406, %v5409
        %v5411 = vrot.slane %v5410, 4
        %v5413 = vshll.u32 %v5338, 16
        %v5415 = vrot.slane %v5413, 5
        %v5416 = vsel %vm394, %v5411, %v5415
        %v5417 = vshrl.u32 %v5338, 16
        %v5419 = vrot.slane %v5417, 4
        %v5420 = vor.u32 %v5419, %v5415
        %v5421 = vrot.slane %v5420, 4
        %v5423 = vshll.u32 %v5339, 16
        %v5425 = vrot.slane %v5423, 5
        %v5426 = vsel %vm394, %v5421, %v5425
        %v5428 = vshrl.u32 %v5340, 16
        %v5430 = vrot.slane %v5428, 4
        %v5431 = vshll.u32 %v5340, 16
        %v5433 = vrot.slane %v5431, 5
        %v5434 = vor.u32 %v5430, %v5433
        %v5435 = vrot.slane %v5434, 4
        %v5437 = vshll.u32 %v5341, 16
        %v5439 = vrot.slane %v5437, 5
        %v5440 = vsel %vm394, %v5435, %v5439
        %v5441 = vshrl.u32 %v5341, 16
        %v5443 = vrot.slane %v5441, 4
        %v5444 = vor.u32 %v5443, %v5439
        %v5445 = vrot.slane %v5444, 4
        %v5447 = vshll.u32 %v5342, 16
        %v5449 = vrot.slane %v5447, 5
        %v5450 = vsel %vm394, %v5445, %v5449
        %v5452 = vshrl.u32 %v5343, 16
        %v5454 = vrot.slane %v5452, 4
        %v5455 = vshll.u32 %v5343, 16
        %v5457 = vrot.slane %v5455, 5
        %v5458 = vor.u32 %v5454, %v5457
        %v5459 = vrot.slane %v5458, 4
        %v5461 = vshll.u32 %v5344, 16
        %v5463 = vrot.slane %v5461, 5
        %v5464 = vsel %vm394, %v5459, %v5463
        %v5465 = vshrl.u32 %v5344, 16
        %v5467 = vrot.slane %v5465, 4
        %v5468 = vor.u32 %v5467, %v5463
        %v5469 = vrot.slane %v5468, 4
        %v5471 = vshll.u32 %v5345, 16
        %v5473 = vrot.slane %v5471, 5
        %v5474 = vsel %vm394, %v5469, %v5473
        %v5476 = vshrl.u32 %v5346, 16
        %v5478 = vrot.slane %v5476, 4
        %v5479 = vshll.u32 %v5346, 16
        %v5481 = vrot.slane %v5479, 5
        %v5482 = vor.u32 %v5478, %v5481
        %v5483 = vrot.slane %v5482, 4
        %v5485 = vshll.u32 %v5347, 16
        %v5487 = vrot.slane %v5485, 5
        %v5488 = vsel %vm394, %v5483, %v5487
        %v5489 = vshrl.u32 %v5347, 16
        %v5491 = vrot.slane %v5489, 4
        %v5492 = vor.u32 %v5491, %v5487
        %v5493 = vrot.slane %v5492, 4
        %v5495 = vshll.u32 %v5348, 16
        %v5497 = vrot.slane %v5495, 5
        %v5498 = vsel %vm394, %v5493, %v5497
        %v5500 = vshrl.u32 %v5349, 16
        %v5502 = vrot.slane %v5500, 4
        %v5503 = vshll.u32 %v5349, 16
        %v5505 = vrot.slane %v5503, 5
        %v5506 = vor.u32 %v5502, %v5505
        %v5507 = vrot.slane %v5506, 4
        %v5509 = vshll.u32 %v5350, 16
        %v5511 = vrot.slane %v5509, 5
        %v5512 = vsel %vm394, %v5507, %v5511
        %v5513 = vshrl.u32 %v5350, 16
        %v5515 = vrot.slane %v5513, 4
        %v5516 = vor.u32 %v5515, %v5511
        %v5517 = vrot.slane %v5516, 4
        %v5519 = vshll.u32 %v5351, 16
        %v5521 = vrot.slane %v5519, 5
        %v5522 = vsel %vm394, %v5517, %v5521
        %v5524 = vshrl.u32 %v5352, 16
        %v5526 = vrot.slane %v5524, 4
        %v5527 = vshll.u32 %v5352, 16
        %v5529 = vrot.slane %v5527, 5
        %v5530 = vor.u32 %v5526, %v5529
        %v5531 = vrot.slane %v5530, 4
        %v5533 = vshll.u32 %v5353, 16
        %v5535 = vrot.slane %v5533, 5
        %v5536 = vsel %vm394, %v5531, %v5535
        %v5537 = vshrl.u32 %v5353, 16
        %v5539 = vrot.slane %v5537, 4
        %v5540 = vor.u32 %v5539, %v5535
        %v5541 = vrot.slane %v5540, 4
        %v5543 = vshll.u32 %v5354, 16
        %v5545 = vrot.slane %v5543, 5
        %v5546 = vsel %vm394, %v5541, %v5545
        %s5547 = scalar_lea.vmem [#allocation8], 256
        %v5548 = vld [vmem:[%s5547] sm:$0xf]
        %v5549 = vld [vmem:[%s5547 + $0x4] sm:$0xf]
        %v5550 = vld [vmem:[%s5547 + $0x8] sm:$0xf]
        %v5551 = vld [vmem:[%s5547 + $0xc] sm:$0xf]
        %v5552 = vld [vmem:[%s5547 + $0x10] sm:$0xf]
        %v5553 = vld [vmem:[%s5547 + $0x14] sm:$0xf]
        %v5554 = vld [vmem:[%s5547 + $0x18] sm:$0xf]
        %v5555 = vld [vmem:[%s5547 + $0x1c] sm:$0xf]
        %v5556 = vld [vmem:[%s5547 + $0x20] sm:$0xf]
        %v5557 = vld [vmem:[%s5547 + $0x24] sm:$0xf]
        %v5558 = vld [vmem:[%s5547 + $0x28] sm:$0xf]
        %v5559 = vld [vmem:[%s5547 + $0x2c] sm:$0xf]
        %v5560 = vld [vmem:[%s5547 + $0x30] sm:$0xf]
        %v5561 = vld [vmem:[%s5547 + $0x34] sm:$0xf]
        %v5562 = vld [vmem:[%s5547 + $0x38] sm:$0xf]
        %v5563 = vld [vmem:[%s5547 + $0x3c] sm:$0xf]
        %v5564 = vunpack.c.l.b16 %v5368
        %v5565 = vunpack.c.l.b16 %v5378
        %v5566 = vunpack.c.l.b16 %v5392
        %v5567 = vunpack.c.l.b16 %v5402
        %v5568 = vunpack.c.l.b16 %v5416
        %v5569 = vunpack.c.l.b16 %v5426
        %v5570 = vunpack.c.l.b16 %v5440
        %v5571 = vunpack.c.l.b16 %v5450
        %v5572 = vunpack.c.l.b16 %v5464
        %v5573 = vunpack.c.l.b16 %v5474
        %v5574 = vunpack.c.l.b16 %v5488
        %v5575 = vunpack.c.l.b16 %v5498
        %v5576 = vunpack.c.l.b16 %v5512
        %v5577 = vunpack.c.l.b16 %v5522
        %v5578 = vunpack.c.l.b16 %v5536
        %v5579 = vunpack.c.l.b16 %v5546
        %v5580 = vpack.c.b16 %v5565, %v5564
        %v5581 = vpack.c.b16 %v5567, %v5566
        %v5582 = vpack.c.b16 %v5569, %v5568
        %v5583 = vpack.c.b16 %v5571, %v5570
        %v5584 = vpack.c.b16 %v5573, %v5572
        %v5585 = vpack.c.b16 %v5575, %v5574
        %v5586 = vpack.c.b16 %v5577, %v5576
        %v5587 = vpack.c.b16 %v5579, %v5578
        %v5612 = vunpack.c.l.b16 %v5548
        %v5613 = vunpack.c.l.b16 %v5549
        %v5614 = vunpack.c.l.b16 %v5550
        %v5615 = vunpack.c.l.b16 %v5551
        %v5616 = vunpack.c.l.b16 %v5552
        %v5617 = vunpack.c.l.b16 %v5553
        %v5618 = vunpack.c.l.b16 %v5554
        %v5619 = vunpack.c.l.b16 %v5555
        %v5620 = vunpack.c.l.b16 %v5556
        %v5621 = vunpack.c.l.b16 %v5557
        %v5622 = vunpack.c.l.b16 %v5558
        %v5623 = vunpack.c.l.b16 %v5559
        %v5624 = vunpack.c.l.b16 %v5560
        %v5625 = vunpack.c.l.b16 %v5561
        %v5626 = vunpack.c.l.b16 %v5562
        %v5627 = vunpack.c.l.b16 %v5563
        %v5628 = vpack.c.b16 %v5613, %v5612
        %v5629 = vpack.c.b16 %v5615, %v5614
        %v5630 = vpack.c.b16 %v5617, %v5616
        %v5631 = vpack.c.b16 %v5619, %v5618
        %v5632 = vpack.c.b16 %v5621, %v5620
        %v5633 = vpack.c.b16 %v5623, %v5622
        %v5634 = vpack.c.b16 %v5625, %v5624
        %v5635 = vpack.c.b16 %v5627, %v5626
        %5644 = vmatprep.subr.bf16.mxu0 0
        %5645 = vmatpush1.bf16.msra.mxu0 %v5628
        %5646 = vmatprep.subr.bf16.mxu0 0
        %5647 = vmatpush1.bf16.msra.mxu0 %v5629
        %5648 = vmatprep.subr.bf16.mxu0 0
        %5649 = vmatpush1.bf16.msra.mxu0 %v5630
        %5650 = vmatprep.subr.bf16.mxu0 0
        %5651 = vmatpush1.bf16.msra.mxu0 %v5631
        %5652 = vmatprep.subr.bf16.mxu0 0
        %5653 = vmatpush1.bf16.msra.mxu0 %v5632
        %5654 = vmatprep.subr.bf16.mxu0 0
        %5655 = vmatpush1.bf16.msra.mxu0 %v5633
        %5656 = vmatprep.subr.bf16.mxu0 0
        %5657 = vmatpush1.bf16.msra.mxu0 %v5634
        %5658 = vmatprep.subr.bf16.mxu0 0
        %5659 = vmatpush1.bf16.msra.mxu0 %v5635
        %5660 = vmatprep.subr.bf16.mxu0 0
        %5661 = vmatpush1.bf16.msra.mxu0 0
        %5662 = vmatprep.subr.bf16.mxu0 0
        %5663 = vmatpush1.bf16.msra.mxu0 0
        %5664 = vmatprep.subr.bf16.mxu0 0
        %5665 = vmatpush1.bf16.msra.mxu0 0
        %5666 = vmatprep.subr.bf16.mxu0 0
        %5667 = vmatpush1.bf16.msra.mxu0 0
        %5668 = vmatprep.subr.bf16.mxu0 0
        %5669 = vmatpush1.bf16.msra.mxu0 0
        %5670 = vmatprep.subr.bf16.mxu0 0
        %5671 = vmatpush1.bf16.msra.mxu0 0
        %5672 = vmatprep.subr.bf16.mxu0 0
        %5673 = vmatpush1.bf16.msra.mxu0 0
        %5674 = vmatprep.subr.bf16.mxu0 0
        %5675 = vmatpush1.bf16.msra.mxu0 0
        %5676 = vmatprep.mubr.bf16.mxu0 0
        %5677 = vmatmul.mubr.bf16.gmra.mrb[0].mxu0 %v5580
        %v5678 = vpop.f32.mrb[0].mxu0
        %v5679 = vadd.f32 0.0, %v5678
        %v5680 = vpop.f32.mrb[0].mxu0
        %v5681 = vpop.f32.mrb[0].mxu0
        %v5682 = vadd.f32 0.0, %v5681
        %v5683 = vpop.f32.mrb[0].mxu0
        %5684 = vmatprep.mubr.bf16.mxu0 0
        %5685 = vmatmul.mubr.bf16.gmra.mrb[0].mxu0 %v5581
        %v5686 = vpop.f32.mrb[0].mxu0
        %v5687 = vadd.f32 0.0, %v5686
        %v5688 = vpop.f32.mrb[0].mxu0
        %v5689 = vpop.f32.mrb[0].mxu0
        %v5690 = vadd.f32 0.0, %v5689
        %v5691 = vpop.f32.mrb[0].mxu0
        %5692 = vmatprep.mubr.bf16.mxu0 0
        %5693 = vmatmul.mubr.bf16.gmra.mrb[0].mxu0 %v5582
        %v5694 = vpop.f32.mrb[0].mxu0
        %v5695 = vadd.f32 0.0, %v5694
        %v5696 = vpop.f32.mrb[0].mxu0
        %v5697 = vpop.f32.mrb[0].mxu0
        %v5698 = vadd.f32 0.0, %v5697
        %v5699 = vpop.f32.mrb[0].mxu0
        %5700 = vmatprep.mubr.bf16.mxu0 0
        %5701 = vmatmul.mubr.bf16.gmra.mrb[0].mxu0 %v5583
        %v5702 = vpop.f32.mrb[0].mxu0
        %v5703 = vadd.f32 0.0, %v5702
        %v5704 = vpop.f32.mrb[0].mxu0
        %v5705 = vpop.f32.mrb[0].mxu0
        %v5706 = vadd.f32 0.0, %v5705
        %v5707 = vpop.f32.mrb[0].mxu0
        %5708 = vmatprep.mubr.bf16.mxu0 0
        %5709 = vmatmul.mubr.bf16.gmra.mrb[0].mxu0 %v5584
        %v5710 = vpop.f32.mrb[0].mxu0
        %v5711 = vadd.f32 0.0, %v5710
        %v5712 = vpop.f32.mrb[0].mxu0
        %v5713 = vpop.f32.mrb[0].mxu0
        %v5714 = vadd.f32 0.0, %v5713
        %v5715 = vpop.f32.mrb[0].mxu0
        %5716 = vmatprep.mubr.bf16.mxu0 0
        %5717 = vmatmul.mubr.bf16.gmra.mrb[0].mxu0 %v5585
        %v5718 = vpop.f32.mrb[0].mxu0
        %v5719 = vadd.f32 0.0, %v5718
        %v5720 = vpop.f32.mrb[0].mxu0
        %v5721 = vpop.f32.mrb[0].mxu0
        %v5722 = vadd.f32 0.0, %v5721
        %v5723 = vpop.f32.mrb[0].mxu0
        %5724 = vmatprep.mubr.bf16.mxu0 0
        %5725 = vmatmul.mubr.bf16.gmra.mrb[0].mxu0 %v5586
        %v5726 = vpop.f32.mrb[0].mxu0
        %v5727 = vadd.f32 0.0, %v5726
        %v5728 = vpop.f32.mrb[0].mxu0
        %v5729 = vpop.f32.mrb[0].mxu0
        %v5730 = vadd.f32 0.0, %v5729
        %v5731 = vpop.f32.mrb[0].mxu0
        %5732 = vmatprep.mubr.bf16.mxu0 0
        %5733 = vmatmul.mubr.bf16.gmra.mrb[0].mxu0 %v5587
        %v5734 = vpop.f32.mrb[0].mxu0
        %v5735 = vadd.f32 0.0, %v5734
        %v5736 = vpop.f32.mrb[0].mxu0
        %v5737 = vpop.f32.mrb[0].mxu0
        %v5738 = vadd.f32 0.0, %v5737
        %v5739 = vpop.f32.mrb[0].mxu0
        %5740 = vdwg.mxu0
        %v5741 = vadd.f32 %v5315, %v5679
        %v5742 = vadd.f32 %v5316, %v5682
        %v5743 = vadd.f32 %v5317, %v5687
        %v5744 = vadd.f32 %v5318, %v5690
        %v5745 = vadd.f32 %v5319, %v5695
        %v5746 = vadd.f32 %v5320, %v5698
        %v5747 = vadd.f32 %v5321, %v5703
        %v5748 = vadd.f32 %v5322, %v5706
        %v5749 = vadd.f32 %v5323, %v5711
        %v5750 = vadd.f32 %v5324, %v5714
        %v5751 = vadd.f32 %v5325, %v5719
        %v5752 = vadd.f32 %v5326, %v5722
        %v5753 = vadd.f32 %v5327, %v5727
        %v5754 = vadd.f32 %v5328, %v5730
        %v5755 = vadd.f32 %v5329, %v5735
        %v5756 = vadd.f32 %v5330, %v5738
        %v5757 = vld [vmem:[%s5088] sm:$0xe]
        %v5758 = vld [vmem:[%s5088 + $0xc] sm:$0xe]
        %v5759 = vld [vmem:[%s5088 + $0x18] sm:$0xe]
        %v5760 = vld [vmem:[%s5088 + $0x24] sm:$0xe]
        %v5761 = vld [vmem:[%s5088 + $0x30] sm:$0xe]
        %v5762 = vld [vmem:[%s5088 + $0x3c] sm:$0xe]
        %v5763 = vld [vmem:[%s5088 + $0x48] sm:$0xe]
        %v5764 = vld [vmem:[%s5088 + $0x54] sm:$0xe]
        %v5789 = vrot.slane %v5757, 5
        %v5790 = vrot.slane %v5789, 4
        %v5791 = vrot.slane %v5332, 5
        %v5792 = vsel %vm1106, %v5790, %v5791
        %v5793 = vrot.slane %v5791, 4
        %v5794 = vrot.slane %v5333, 5
        %v5795 = vsel %vm1106, %v5793, %v5794
        %v5796 = vrot.slane %v5758, 5
        %v5797 = vrot.slane %v5796, 4
        %v5798 = vrot.slane %v5335, 5
        %v5799 = vsel %vm1106, %v5797, %v5798
        %v5800 = vrot.slane %v5798, 4
        %v5801 = vrot.slane %v5336, 5
        %v5802 = vsel %vm1106, %v5800, %v5801
        %v5803 = vrot.slane %v5759, 5
        %v5804 = vrot.slane %v5803, 4
        %v5805 = vrot.slane %v5338, 5
        %v5806 = vsel %vm1106, %v5804, %v5805
        %v5807 = vrot.slane %v5805, 4
        %v5808 = vrot.slane %v5339, 5
        %v5809 = vsel %vm1106, %v5807, %v5808
        %v5810 = vrot.slane %v5760, 5
        %v5811 = vrot.slane %v5810, 4
        %v5812 = vrot.slane %v5341, 5
        %v5813 = vsel %vm1106, %v5811, %v5812
        %v5814 = vrot.slane %v5812, 4
        %v5815 = vrot.slane %v5342, 5
        %v5816 = vsel %vm1106, %v5814, %v5815
        %v5817 = vrot.slane %v5761, 5
        %v5818 = vrot.slane %v5817, 4
        %v5819 = vrot.slane %v5344, 5
        %v5820 = vsel %vm1106, %v5818, %v5819
        %v5821 = vrot.slane %v5819, 4
        %v5822 = vrot.slane %v5345, 5
        %v5823 = vsel %vm1106, %v5821, %v5822
        %v5824 = vrot.slane %v5762, 5
        %v5825 = vrot.slane %v5824, 4
        %v5826 = vrot.slane %v5347, 5
        %v5827 = vsel %vm1106, %v5825, %v5826
        %v5828 = vrot.slane %v5826, 4
        %v5829 = vrot.slane %v5348, 5
        %v5830 = vsel %vm1106, %v5828, %v5829
        %v5831 = vrot.slane %v5763, 5
        %v5832 = vrot.slane %v5831, 4
        %v5833 = vrot.slane %v5350, 5
        %v5834 = vsel %vm1106, %v5832, %v5833
        %v5835 = vrot.slane %v5833, 4
        %v5836 = vrot.slane %v5351, 5
        %v5837 = vsel %vm1106, %v5835, %v5836
        %v5838 = vrot.slane %v5764, 5
        %v5839 = vrot.slane %v5838, 4
        %v5840 = vrot.slane %v5353, 5
        %v5841 = vsel %vm1106, %v5839, %v5840
        %v5842 = vrot.slane %v5840, 4
        %v5843 = vrot.slane %v5354, 5
        %v5844 = vsel %vm1106, %v5842, %v5843
        %s5845 = scalar_lea.vmem [#allocation8], 320
        %v5846 = vld [vmem:[%s5845] sm:$0xf]
        %v5847 = vld [vmem:[%s5845 + $0x4] sm:$0xf]
        %v5848 = vld [vmem:[%s5845 + $0x8] sm:$0xf]
        %v5849 = vld [vmem:[%s5845 + $0xc] sm:$0xf]
        %v5850 = vld [vmem:[%s5845 + $0x10] sm:$0xf]
        %v5851 = vld [vmem:[%s5845 + $0x14] sm:$0xf]
        %v5852 = vld [vmem:[%s5845 + $0x18] sm:$0xf]
        %v5853 = vld [vmem:[%s5845 + $0x1c] sm:$0xf]
        %v5854 = vld [vmem:[%s5845 + $0x20] sm:$0xf]
        %v5855 = vld [vmem:[%s5845 + $0x24] sm:$0xf]
        %v5856 = vld [vmem:[%s5845 + $0x28] sm:$0xf]
        %v5857 = vld [vmem:[%s5845 + $0x2c] sm:$0xf]
        %v5858 = vld [vmem:[%s5845 + $0x30] sm:$0xf]
        %v5859 = vld [vmem:[%s5845 + $0x34] sm:$0xf]
        %v5860 = vld [vmem:[%s5845 + $0x38] sm:$0xf]
        %v5861 = vld [vmem:[%s5845 + $0x3c] sm:$0xf]
        %v5862 = vunpack.c.l.b16 %v5792
        %v5863 = vunpack.c.l.b16 %v5795
        %v5864 = vunpack.c.l.b16 %v5799
        %v5865 = vunpack.c.l.b16 %v5802
        %v5866 = vunpack.c.l.b16 %v5806
        %v5867 = vunpack.c.l.b16 %v5809
        %v5868 = vunpack.c.l.b16 %v5813
        %v5869 = vunpack.c.l.b16 %v5816
        %v5870 = vunpack.c.l.b16 %v5820
        %v5871 = vunpack.c.l.b16 %v5823
        %v5872 = vunpack.c.l.b16 %v5827
        %v5873 = vunpack.c.l.b16 %v5830
        %v5874 = vunpack.c.l.b16 %v5834
        %v5875 = vunpack.c.l.b16 %v5837
        %v5876 = vunpack.c.l.b16 %v5841
        %v5877 = vunpack.c.l.b16 %v5844
        %v5878 = vpack.c.b16 %v5863, %v5862
        %v5879 = vpack.c.b16 %v5865, %v5864
        %v5880 = vpack.c.b16 %v5867, %v5866
        %v5881 = vpack.c.b16 %v5869, %v5868
        %v5882 = vpack.c.b16 %v5871, %v5870
        %v5883 = vpack.c.b16 %v5873, %v5872
        %v5884 = vpack.c.b16 %v5875, %v5874
        %v5885 = vpack.c.b16 %v5877, %v5876
        %v5910 = vunpack.c.l.b16 %v5846
        %v5911 = vunpack.c.l.b16 %v5847
        %v5912 = vunpack.c.l.b16 %v5848
        %v5913 = vunpack.c.l.b16 %v5849
        %v5914 = vunpack.c.l.b16 %v5850
        %v5915 = vunpack.c.l.b16 %v5851
        %v5916 = vunpack.c.l.b16 %v5852
        %v5917 = vunpack.c.l.b16 %v5853
        %v5918 = vunpack.c.l.b16 %v5854
        %v5919 = vunpack.c.l.b16 %v5855
        %v5920 = vunpack.c.l.b16 %v5856
        %v5921 = vunpack.c.l.b16 %v5857
        %v5922 = vunpack.c.l.b16 %v5858
        %v5923 = vunpack.c.l.b16 %v5859
        %v5924 = vunpack.c.l.b16 %v5860
        %v5925 = vunpack.c.l.b16 %v5861
        %v5926 = vpack.c.b16 %v5911, %v5910
        %v5927 = vpack.c.b16 %v5913, %v5912
        %v5928 = vpack.c.b16 %v5915, %v5914
        %v5929 = vpack.c.b16 %v5917, %v5916
        %v5930 = vpack.c.b16 %v5919, %v5918
        %v5931 = vpack.c.b16 %v5921, %v5920
        %v5932 = vpack.c.b16 %v5923, %v5922
        %v5933 = vpack.c.b16 %v5925, %v5924
        %5942 = vmatprep.subr.bf16.mxu0 0
        %5943 = vmatpush1.bf16.msra.mxu0 %v5926
        %5944 = vmatprep.subr.bf16.mxu0 0
        %5945 = vmatpush1.bf16.msra.mxu0 %v5927
        %5946 = vmatprep.subr.bf16.mxu0 0
        %5947 = vmatpush1.bf16.msra.mxu0 %v5928
        %5948 = vmatprep.subr.bf16.mxu0 0
        %5949 = vmatpush1.bf16.msra.mxu0 %v5929
        %5950 = vmatprep.subr.bf16.mxu0 0
        %5951 = vmatpush1.bf16.msra.mxu0 %v5930
        %5952 = vmatprep.subr.bf16.mxu0 0
        %5953 = vmatpush1.bf16.msra.mxu0 %v5931
        %5954 = vmatprep.subr.bf16.mxu0 0
        %5955 = vmatpush1.bf16.msra.mxu0 %v5932
        %5956 = vmatprep.subr.bf16.mxu0 0
        %5957 = vmatpush1.bf16.msra.mxu0 %v5933
        %5958 = vmatprep.subr.bf16.mxu0 0
        %5959 = vmatpush1.bf16.msra.mxu0 0
        %5960 = vmatprep.subr.bf16.mxu0 0
        %5961 = vmatpush1.bf16.msra.mxu0 0
        %5962 = vmatprep.subr.bf16.mxu0 0
        %5963 = vmatpush1.bf16.msra.mxu0 0
        %5964 = vmatprep.subr.bf16.mxu0 0
        %5965 = vmatpush1.bf16.msra.mxu0 0
        %5966 = vmatprep.subr.bf16.mxu0 0
        %5967 = vmatpush1.bf16.msra.mxu0 0
        %5968 = vmatprep.subr.bf16.mxu0 0
        %5969 = vmatpush1.bf16.msra.mxu0 0
        %5970 = vmatprep.subr.bf16.mxu0 0
        %5971 = vmatpush1.bf16.msra.mxu0 0
        %5972 = vmatprep.subr.bf16.mxu0 0
        %5973 = vmatpush1.bf16.msra.mxu0 0
        %5974 = vmatprep.mubr.bf16.mxu0 0
        %5975 = vmatmul.mubr.bf16.gmra.mrb[0].mxu0 %v5878
        %v5976 = vpop.f32.mrb[0].mxu0
        %v5977 = vadd.f32 0.0, %v5976
        %v5978 = vpop.f32.mrb[0].mxu0
        %v5979 = vpop.f32.mrb[0].mxu0
        %v5980 = vadd.f32 0.0, %v5979
        %v5981 = vpop.f32.mrb[0].mxu0
        %5982 = vmatprep.mubr.bf16.mxu0 0
        %5983 = vmatmul.mubr.bf16.gmra.mrb[0].mxu0 %v5879
        %v5984 = vpop.f32.mrb[0].mxu0
        %v5985 = vadd.f32 0.0, %v5984
        %v5986 = vpop.f32.mrb[0].mxu0
        %v5987 = vpop.f32.mrb[0].mxu0
        %v5988 = vadd.f32 0.0, %v5987
        %v5989 = vpop.f32.mrb[0].mxu0
        %5990 = vmatprep.mubr.bf16.mxu0 0
        %5991 = vmatmul.mubr.bf16.gmra.mrb[0].mxu0 %v5880
        %v5992 = vpop.f32.mrb[0].mxu0
        %v5993 = vadd.f32 0.0, %v5992
        %v5994 = vpop.f32.mrb[0].mxu0
        %v5995 = vpop.f32.mrb[0].mxu0
        %v5996 = vadd.f32 0.0, %v5995
        %v5997 = vpop.f32.mrb[0].mxu0
        %5998 = vmatprep.mubr.bf16.mxu0 0
        %5999 = vmatmul.mubr.bf16.gmra.mrb[0].mxu0 %v5881
        %v6000 = vpop.f32.mrb[0].mxu0
        %v6001 = vadd.f32 0.0, %v6000
        %v6002 = vpop.f32.mrb[0].mxu0
        %v6003 = vpop.f32.mrb[0].mxu0
        %v6004 = vadd.f32 0.0, %v6003
        %v6005 = vpop.f32.mrb[0].mxu0
        %6006 = vmatprep.mubr.bf16.mxu0 0
        %6007 = vmatmul.mubr.bf16.gmra.mrb[0].mxu0 %v5882
        %v6008 = vpop.f32.mrb[0].mxu0
        %v6009 = vadd.f32 0.0, %v6008
        %v6010 = vpop.f32.mrb[0].mxu0
        %v6011 = vpop.f32.mrb[0].mxu0
        %v6012 = vadd.f32 0.0, %v6011
        %v6013 = vpop.f32.mrb[0].mxu0
        %6014 = vmatprep.mubr.bf16.mxu0 0
        %6015 = vmatmul.mubr.bf16.gmra.mrb[0].mxu0 %v5883
        %v6016 = vpop.f32.mrb[0].mxu0
        %v6017 = vadd.f32 0.0, %v6016
        %v6018 = vpop.f32.mrb[0].mxu0
        %v6019 = vpop.f32.mrb[0].mxu0
        %v6020 = vadd.f32 0.0, %v6019
        %v6021 = vpop.f32.mrb[0].mxu0
        %6022 = vmatprep.mubr.bf16.mxu0 0
        %6023 = vmatmul.mubr.bf16.gmra.mrb[0].mxu0 %v5884
        %v6024 = vpop.f32.mrb[0].mxu0
        %v6025 = vadd.f32 0.0, %v6024
        %v6026 = vpop.f32.mrb[0].mxu0
        %v6027 = vpop.f32.mrb[0].mxu0
        %v6028 = vadd.f32 0.0, %v6027
        %v6029 = vpop.f32.mrb[0].mxu0
        %6030 = vmatprep.mubr.bf16.mxu0 0
        %6031 = vmatmul.mubr.bf16.gmra.mrb[0].mxu0 %v5885
        %v6032 = vpop.f32.mrb[0].mxu0
        %v6033 = vadd.f32 0.0, %v6032
        %v6034 = vpop.f32.mrb[0].mxu0
        %v6035 = vpop.f32.mrb[0].mxu0
        %v6036 = vadd.f32 0.0, %v6035
        %v6037 = vpop.f32.mrb[0].mxu0
        %6038 = vdwg.mxu0
        %v6039 = vadd.f32 %v5741, %v5977
        %v6040 = vadd.f32 %v5742, %v5980
        %v6041 = vadd.f32 %v5743, %v5985
        %v6042 = vadd.f32 %v5744, %v5988
        %v6043 = vadd.f32 %v5745, %v5993
        %v6044 = vadd.f32 %v5746, %v5996
        %v6045 = vadd.f32 %v5747, %v6001
        %v6046 = vadd.f32 %v5748, %v6004
        %v6047 = vadd.f32 %v5749, %v6009
        %v6048 = vadd.f32 %v5750, %v6012
        %v6049 = vadd.f32 %v5751, %v6017
        %v6050 = vadd.f32 %v5752, %v6020
        %v6051 = vadd.f32 %v5753, %v6025
        %v6052 = vadd.f32 %v5754, %v6028
        %v6053 = vadd.f32 %v5755, %v6033
        %v6054 = vadd.f32 %v5756, %v6036
        %s6055 = scalar_lea.vmem [#allocation2], 24
        %v6056 = vld [vmem:[%s6055] sm:$0xf]
        %v6057 = vld [vmem:[%s6055 + $0x4] sm:$0xf]
        %v6058 = vld [vmem:[%s6055 + $0xc] sm:$0xf]
        %v6059 = vld [vmem:[%s6055 + $0x10] sm:$0xf]
        %v6060 = vld [vmem:[%s6055 + $0x18] sm:$0xf]
        %v6061 = vld [vmem:[%s6055 + $0x1c] sm:$0xf]
        %v6062 = vld [vmem:[%s6055 + $0x24] sm:$0xf]
        %v6063 = vld [vmem:[%s6055 + $0x28] sm:$0xf]
        %v6064 = vld [vmem:[%s6055 + $0x30] sm:$0xf]
        %v6065 = vld [vmem:[%s6055 + $0x34] sm:$0xf]
        %v6066 = vld [vmem:[%s6055 + $0x3c] sm:$0xf]
        %v6067 = vld [vmem:[%s6055 + $0x40] sm:$0xf]
        %v6068 = vld [vmem:[%s6055 + $0x48] sm:$0xf]
        %v6069 = vld [vmem:[%s6055 + $0x4c] sm:$0xf]
        %v6070 = vld [vmem:[%s6055 + $0x54] sm:$0xf]
        %v6071 = vld [vmem:[%s6055 + $0x58] sm:$0xf]
        %s6072 = scalar_lea.vmem [#allocation8], 384
        %v6073 = vld [vmem:[%s6072] sm:$0xf]
        %v6074 = vld [vmem:[%s6072 + $0x4] sm:$0xf]
        %v6075 = vld [vmem:[%s6072 + $0x8] sm:$0xf]
        %v6076 = vld [vmem:[%s6072 + $0xc] sm:$0xf]
        %v6077 = vld [vmem:[%s6072 + $0x10] sm:$0xf]
        %v6078 = vld [vmem:[%s6072 + $0x14] sm:$0xf]
        %v6079 = vld [vmem:[%s6072 + $0x18] sm:$0xf]
        %v6080 = vld [vmem:[%s6072 + $0x1c] sm:$0xf]
        %v6081 = vld [vmem:[%s6072 + $0x20] sm:$0xf]
        %v6082 = vld [vmem:[%s6072 + $0x24] sm:$0xf]
        %v6083 = vld [vmem:[%s6072 + $0x28] sm:$0xf]
        %v6084 = vld [vmem:[%s6072 + $0x2c] sm:$0xf]
        %v6085 = vld [vmem:[%s6072 + $0x30] sm:$0xf]
        %v6086 = vld [vmem:[%s6072 + $0x34] sm:$0xf]
        %v6087 = vld [vmem:[%s6072 + $0x38] sm:$0xf]
        %v6088 = vld [vmem:[%s6072 + $0x3c] sm:$0xf]
        %v6105 = vunpack.c.l.b16 %v6056
        %v6106 = vunpack.c.l.b16 %v6057
        %v6107 = vunpack.c.l.b16 %v6058
        %v6108 = vunpack.c.l.b16 %v6059
        %v6109 = vunpack.c.l.b16 %v6060
        %v6110 = vunpack.c.l.b16 %v6061
        %v6111 = vunpack.c.l.b16 %v6062
        %v6112 = vunpack.c.l.b16 %v6063
        %v6113 = vunpack.c.l.b16 %v6064
        %v6114 = vunpack.c.l.b16 %v6065
        %v6115 = vunpack.c.l.b16 %v6066
        %v6116 = vunpack.c.l.b16 %v6067
        %v6117 = vunpack.c.l.b16 %v6068
        %v6118 = vunpack.c.l.b16 %v6069
        %v6119 = vunpack.c.l.b16 %v6070
        %v6120 = vunpack.c.l.b16 %v6071
        %v6121 = vpack.c.b16 %v6106, %v6105
        %v6122 = vpack.c.b16 %v6108, %v6107
        %v6123 = vpack.c.b16 %v6110, %v6109
        %v6124 = vpack.c.b16 %v6112, %v6111
        %v6125 = vpack.c.b16 %v6114, %v6113
        %v6126 = vpack.c.b16 %v6116, %v6115
        %v6127 = vpack.c.b16 %v6118, %v6117
        %v6128 = vpack.c.b16 %v6120, %v6119
        %v6153 = vunpack.c.l.b16 %v6073
        %v6154 = vunpack.c.l.b16 %v6074
        %v6155 = vunpack.c.l.b16 %v6075
        %v6156 = vunpack.c.l.b16 %v6076
        %v6157 = vunpack.c.l.b16 %v6077
        %v6158 = vunpack.c.l.b16 %v6078
        %v6159 = vunpack.c.l.b16 %v6079
        %v6160 = vunpack.c.l.b16 %v6080
        %v6161 = vunpack.c.l.b16 %v6081
        %v6162 = vunpack.c.l.b16 %v6082
        %v6163 = vunpack.c.l.b16 %v6083
        %v6164 = vunpack.c.l.b16 %v6084
        %v6165 = vunpack.c.l.b16 %v6085
        %v6166 = vunpack.c.l.b16 %v6086
        %v6167 = vunpack.c.l.b16 %v6087
        %v6168 = vunpack.c.l.b16 %v6088
        %v6169 = vpack.c.b16 %v6154, %v6153
        %v6170 = vpack.c.b16 %v6156, %v6155
        %v6171 = vpack.c.b16 %v6158, %v6157
        %v6172 = vpack.c.b16 %v6160, %v6159
        %v6173 = vpack.c.b16 %v6162, %v6161
        %v6174 = vpack.c.b16 %v6164, %v6163
        %v6175 = vpack.c.b16 %v6166, %v6165
        %v6176 = vpack.c.b16 %v6168, %v6167
        %6185 = vmatprep.subr.bf16.mxu0 0
        %6186 = vmatpush1.bf16.msra.mxu0 %v6169
        %6187 = vmatprep.subr.bf16.mxu0 0
        %6188 = vmatpush1.bf16.msra.mxu0 %v6170
        %6189 = vmatprep.subr.bf16.mxu0 0
        %6190 = vmatpush1.bf16.msra.mxu0 %v6171
        %6191 = vmatprep.subr.bf16.mxu0 0
        %6192 = vmatpush1.bf16.msra.mxu0 %v6172
        %6193 = vmatprep.subr.bf16.mxu0 0
        %6194 = vmatpush1.bf16.msra.mxu0 %v6173
        %6195 = vmatprep.subr.bf16.mxu0 0
        %6196 = vmatpush1.bf16.msra.mxu0 %v6174
        %6197 = vmatprep.subr.bf16.mxu0 0
        %6198 = vmatpush1.bf16.msra.mxu0 %v6175
        %6199 = vmatprep.subr.bf16.mxu0 0
        %6200 = vmatpush1.bf16.msra.mxu0 %v6176
        %6201 = vmatprep.subr.bf16.mxu0 0
        %6202 = vmatpush1.bf16.msra.mxu0 0
        %6203 = vmatprep.subr.bf16.mxu0 0
        %6204 = vmatpush1.bf16.msra.mxu0 0
        %6205 = vmatprep.subr.bf16.mxu0 0
        %6206 = vmatpush1.bf16.msra.mxu0 0
        %6207 = vmatprep.subr.bf16.mxu0 0
        %6208 = vmatpush1.bf16.msra.mxu0 0
        %6209 = vmatprep.subr.bf16.mxu0 0
        %6210 = vmatpush1.bf16.msra.mxu0 0
        %6211 = vmatprep.subr.bf16.mxu0 0
        %6212 = vmatpush1.bf16.msra.mxu0 0
        %6213 = vmatprep.subr.bf16.mxu0 0
        %6214 = vmatpush1.bf16.msra.mxu0 0
        %6215 = vmatprep.subr.bf16.mxu0 0
        %6216 = vmatpush1.bf16.msra.mxu0 0
        %6217 = vmatprep.mubr.bf16.mxu0 0
        %6218 = vmatmul.mubr.bf16.gmra.mrb[0].mxu0 %v6121
        %v6219 = vpop.f32.mrb[0].mxu0
        %v6220 = vadd.f32 0.0, %v6219
        %v6221 = vpop.f32.mrb[0].mxu0
        %v6222 = vpop.f32.mrb[0].mxu0
        %v6223 = vadd.f32 0.0, %v6222
        %v6224 = vpop.f32.mrb[0].mxu0
        %6225 = vmatprep.mubr.bf16.mxu0 0
        %6226 = vmatmul.mubr.bf16.gmra.mrb[0].mxu0 %v6122
        %v6227 = vpop.f32.mrb[0].mxu0
        %v6228 = vadd.f32 0.0, %v6227
        %v6229 = vpop.f32.mrb[0].mxu0
        %v6230 = vpop.f32.mrb[0].mxu0
        %v6231 = vadd.f32 0.0, %v6230
        %v6232 = vpop.f32.mrb[0].mxu0
        %6233 = vmatprep.mubr.bf16.mxu0 0
        %6234 = vmatmul.mubr.bf16.gmra.mrb[0].mxu0 %v6123
        %v6235 = vpop.f32.mrb[0].mxu0
        %v6236 = vadd.f32 0.0, %v6235
        %v6237 = vpop.f32.mrb[0].mxu0
        %v6238 = vpop.f32.mrb[0].mxu0
        %v6239 = vadd.f32 0.0, %v6238
        %v6240 = vpop.f32.mrb[0].mxu0
        %6241 = vmatprep.mubr.bf16.mxu0 0
        %6242 = vmatmul.mubr.bf16.gmra.mrb[0].mxu0 %v6124
        %v6243 = vpop.f32.mrb[0].mxu0
        %v6244 = vadd.f32 0.0, %v6243
        %v6245 = vpop.f32.mrb[0].mxu0
        %v6246 = vpop.f32.mrb[0].mxu0
        %v6247 = vadd.f32 0.0, %v6246
        %v6248 = vpop.f32.mrb[0].mxu0
        %6249 = vmatprep.mubr.bf16.mxu0 0
        %6250 = vmatmul.mubr.bf16.gmra.mrb[0].mxu0 %v6125
        %v6251 = vpop.f32.mrb[0].mxu0
        %v6252 = vadd.f32 0.0, %v6251
        %v6253 = vpop.f32.mrb[0].mxu0
        %v6254 = vpop.f32.mrb[0].mxu0
        %v6255 = vadd.f32 0.0, %v6254
        %v6256 = vpop.f32.mrb[0].mxu0
        %6257 = vmatprep.mubr.bf16.mxu0 0
        %6258 = vmatmul.mubr.bf16.gmra.mrb[0].mxu0 %v6126
        %v6259 = vpop.f32.mrb[0].mxu0
        %v6260 = vadd.f32 0.0, %v6259
        %v6261 = vpop.f32.mrb[0].mxu0
        %v6262 = vpop.f32.mrb[0].mxu0
        %v6263 = vadd.f32 0.0, %v6262
        %v6264 = vpop.f32.mrb[0].mxu0
        %6265 = vmatprep.mubr.bf16.mxu0 0
        %6266 = vmatmul.mubr.bf16.gmra.mrb[0].mxu0 %v6127
        %v6267 = vpop.f32.mrb[0].mxu0
        %v6268 = vadd.f32 0.0, %v6267
        %v6269 = vpop.f32.mrb[0].mxu0
        %v6270 = vpop.f32.mrb[0].mxu0
        %v6271 = vadd.f32 0.0, %v6270
        %v6272 = vpop.f32.mrb[0].mxu0
        %6273 = vmatprep.mubr.bf16.mxu0 0
        %6274 = vmatmul.mubr.bf16.gmra.mrb[0].mxu0 %v6128
        %v6275 = vpop.f32.mrb[0].mxu0
        %v6276 = vadd.f32 0.0, %v6275
        %v6277 = vpop.f32.mrb[0].mxu0
        %v6278 = vpop.f32.mrb[0].mxu0
        %v6279 = vadd.f32 0.0, %v6278
        %v6280 = vpop.f32.mrb[0].mxu0
        %6281 = vdwg.mxu0
        %v6282 = vadd.f32 %v6039, %v6220
        %v6283 = vadd.f32 %v6040, %v6223
        %v6284 = vadd.f32 %v6041, %v6228
        %v6285 = vadd.f32 %v6042, %v6231
        %v6286 = vadd.f32 %v6043, %v6236
        %v6287 = vadd.f32 %v6044, %v6239
        %v6288 = vadd.f32 %v6045, %v6244
        %v6289 = vadd.f32 %v6046, %v6247
        %v6290 = vadd.f32 %v6047, %v6252
        %v6291 = vadd.f32 %v6048, %v6255
        %v6292 = vadd.f32 %v6049, %v6260
        %v6293 = vadd.f32 %v6050, %v6263
        %v6294 = vadd.f32 %v6051, %v6268
        %v6295 = vadd.f32 %v6052, %v6271
        %v6296 = vadd.f32 %v6053, %v6276
        %v6297 = vadd.f32 %v6054, %v6279
        %v6298 = vld [vmem:[%s6055] sm:$0xf]
        %v6299 = vld [vmem:[%s6055 + $0x4] sm:$0xf]
        %v6300 = vld [vmem:[%s6055 + $0x8] sm:$0x1]
        %v6301 = vld [vmem:[%s6055 + $0xc] sm:$0xf]
        %v6302 = vld [vmem:[%s6055 + $0x10] sm:$0xf]
        %v6303 = vld [vmem:[%s6055 + $0x14] sm:$0x1]
        %v6304 = vld [vmem:[%s6055 + $0x18] sm:$0xf]
        %v6305 = vld [vmem:[%s6055 + $0x1c] sm:$0xf]
        %v6306 = vld [vmem:[%s6055 + $0x20] sm:$0x1]
        %v6307 = vld [vmem:[%s6055 + $0x24] sm:$0xf]
        %v6308 = vld [vmem:[%s6055 + $0x28] sm:$0xf]
        %v6309 = vld [vmem:[%s6055 + $0x2c] sm:$0x1]
        %v6310 = vld [vmem:[%s6055 + $0x30] sm:$0xf]
        %v6311 = vld [vmem:[%s6055 + $0x34] sm:$0xf]
        %v6312 = vld [vmem:[%s6055 + $0x38] sm:$0x1]
        %v6313 = vld [vmem:[%s6055 + $0x3c] sm:$0xf]
        %v6314 = vld [vmem:[%s6055 + $0x40] sm:$0xf]
        %v6315 = vld [vmem:[%s6055 + $0x44] sm:$0x1]
        %v6316 = vld [vmem:[%s6055 + $0x48] sm:$0xf]
        %v6317 = vld [vmem:[%s6055 + $0x4c] sm:$0xf]
        %v6318 = vld [vmem:[%s6055 + $0x50] sm:$0x1]
        %v6319 = vld [vmem:[%s6055 + $0x54] sm:$0xf]
        %v6320 = vld [vmem:[%s6055 + $0x58] sm:$0xf]
        %v6321 = vld [vmem:[%s6055 + $0x5c] sm:$0x1]
        %v6323 = vshrl.u32 %v6298, 16
        %v6325 = vrot.slane %v6323, 4
        %v6326 = vshll.u32 %v6298, 16
        %v6328 = vrot.slane %v6326, 5
        %v6329 = vor.u32 %v6325, %v6328
        %v6330 = vrot.slane %v6329, 4
        %v6332 = vshll.u32 %v6299, 16
        %v6334 = vrot.slane %v6332, 5
        %v6335 = vsel %vm394, %v6330, %v6334
        %v6336 = vshrl.u32 %v6299, 16
        %v6338 = vrot.slane %v6336, 4
        %v6339 = vor.u32 %v6338, %v6334
        %v6340 = vrot.slane %v6339, 4
        %v6342 = vshll.u32 %v6300, 16
        %v6344 = vrot.slane %v6342, 5
        %v6345 = vsel %vm394, %v6340, %v6344
        %v6347 = vshrl.u32 %v6301, 16
        %v6349 = vrot.slane %v6347, 4
        %v6350 = vshll.u32 %v6301, 16
        %v6352 = vrot.slane %v6350, 5
        %v6353 = vor.u32 %v6349, %v6352
        %v6354 = vrot.slane %v6353, 4
        %v6356 = vshll.u32 %v6302, 16
        %v6358 = vrot.slane %v6356, 5
        %v6359 = vsel %vm394, %v6354, %v6358
        %v6360 = vshrl.u32 %v6302, 16
        %v6362 = vrot.slane %v6360, 4
        %v6363 = vor.u32 %v6362, %v6358
        %v6364 = vrot.slane %v6363, 4
        %v6366 = vshll.u32 %v6303, 16
        %v6368 = vrot.slane %v6366, 5
        %v6369 = vsel %vm394, %v6364, %v6368
        %v6371 = vshrl.u32 %v6304, 16
        %v6373 = vrot.slane %v6371, 4
        %v6374 = vshll.u32 %v6304, 16
        %v6376 = vrot.slane %v6374, 5
        %v6377 = vor.u32 %v6373, %v6376
        %v6378 = vrot.slane %v6377, 4
        %v6380 = vshll.u32 %v6305, 16
        %v6382 = vrot.slane %v6380, 5
        %v6383 = vsel %vm394, %v6378, %v6382
        %v6384 = vshrl.u32 %v6305, 16
        %v6386 = vrot.slane %v6384, 4
        %v6387 = vor.u32 %v6386, %v6382
        %v6388 = vrot.slane %v6387, 4
        %v6390 = vshll.u32 %v6306, 16
        %v6392 = vrot.slane %v6390, 5
        %v6393 = vsel %vm394, %v6388, %v6392
        %v6395 = vshrl.u32 %v6307, 16
        %v6397 = vrot.slane %v6395, 4
        %v6398 = vshll.u32 %v6307, 16
        %v6400 = vrot.slane %v6398, 5
        %v6401 = vor.u32 %v6397, %v6400
        %v6402 = vrot.slane %v6401, 4
        %v6404 = vshll.u32 %v6308, 16
        %v6406 = vrot.slane %v6404, 5
        %v6407 = vsel %vm394, %v6402, %v6406
        %v6408 = vshrl.u32 %v6308, 16
        %v6410 = vrot.slane %v6408, 4
        %v6411 = vor.u32 %v6410, %v6406
        %v6412 = vrot.slane %v6411, 4
        %v6414 = vshll.u32 %v6309, 16
        %v6416 = vrot.slane %v6414, 5
        %v6417 = vsel %vm394, %v6412, %v6416
        %v6419 = vshrl.u32 %v6310, 16
        %v6421 = vrot.slane %v6419, 4
        %v6422 = vshll.u32 %v6310, 16
        %v6424 = vrot.slane %v6422, 5
        %v6425 = vor.u32 %v6421, %v6424
        %v6426 = vrot.slane %v6425, 4
        %v6428 = vshll.u32 %v6311, 16
        %v6430 = vrot.slane %v6428, 5
        %v6431 = vsel %vm394, %v6426, %v6430
        %v6432 = vshrl.u32 %v6311, 16
        %v6434 = vrot.slane %v6432, 4
        %v6435 = vor.u32 %v6434, %v6430
        %v6436 = vrot.slane %v6435, 4
        %v6438 = vshll.u32 %v6312, 16
        %v6440 = vrot.slane %v6438, 5
        %v6441 = vsel %vm394, %v6436, %v6440
        %v6443 = vshrl.u32 %v6313, 16
        %v6445 = vrot.slane %v6443, 4
        %v6446 = vshll.u32 %v6313, 16
        %v6448 = vrot.slane %v6446, 5
        %v6449 = vor.u32 %v6445, %v6448
        %v6450 = vrot.slane %v6449, 4
        %v6452 = vshll.u32 %v6314, 16
        %v6454 = vrot.slane %v6452, 5
        %v6455 = vsel %vm394, %v6450, %v6454
        %v6456 = vshrl.u32 %v6314, 16
        %v6458 = vrot.slane %v6456, 4
        %v6459 = vor.u32 %v6458, %v6454
        %v6460 = vrot.slane %v6459, 4
        %v6462 = vshll.u32 %v6315, 16
        %v6464 = vrot.slane %v6462, 5
        %v6465 = vsel %vm394, %v6460, %v6464
        %v6467 = vshrl.u32 %v6316, 16
        %v6469 = vrot.slane %v6467, 4
        %v6470 = vshll.u32 %v6316, 16
        %v6472 = vrot.slane %v6470, 5
        %v6473 = vor.u32 %v6469, %v6472
        %v6474 = vrot.slane %v6473, 4
        %v6476 = vshll.u32 %v6317, 16
        %v6478 = vrot.slane %v6476, 5
        %v6479 = vsel %vm394, %v6474, %v6478
        %v6480 = vshrl.u32 %v6317, 16
        %v6482 = vrot.slane %v6480, 4
        %v6483 = vor.u32 %v6482, %v6478
        %v6484 = vrot.slane %v6483, 4
        %v6486 = vshll.u32 %v6318, 16
        %v6488 = vrot.slane %v6486, 5
        %v6489 = vsel %vm394, %v6484, %v6488
        %v6491 = vshrl.u32 %v6319, 16
        %v6493 = vrot.slane %v6491, 4
        %v6494 = vshll.u32 %v6319, 16
        %v6496 = vrot.slane %v6494, 5
        %v6497 = vor.u32 %v6493, %v6496
        %v6498 = vrot.slane %v6497, 4
        %v6500 = vshll.u32 %v6320, 16
        %v6502 = vrot.slane %v6500, 5
        %v6503 = vsel %vm394, %v6498, %v6502
        %v6504 = vshrl.u32 %v6320, 16
        %v6506 = vrot.slane %v6504, 4
        %v6507 = vor.u32 %v6506, %v6502
        %v6508 = vrot.slane %v6507, 4
        %v6510 = vshll.u32 %v6321, 16
        %v6512 = vrot.slane %v6510, 5
        %v6513 = vsel %vm394, %v6508, %v6512
        %s6514 = scalar_lea.vmem [#allocation8], 448
        %v6515 = vld [vmem:[%s6514] sm:$0xf]
        %v6516 = vld [vmem:[%s6514 + $0x4] sm:$0xf]
        %v6517 = vld [vmem:[%s6514 + $0x8] sm:$0xf]
        %v6518 = vld [vmem:[%s6514 + $0xc] sm:$0xf]
        %v6519 = vld [vmem:[%s6514 + $0x10] sm:$0xf]
        %v6520 = vld [vmem:[%s6514 + $0x14] sm:$0xf]
        %v6521 = vld [vmem:[%s6514 + $0x18] sm:$0xf]
        %v6522 = vld [vmem:[%s6514 + $0x1c] sm:$0xf]
        %v6523 = vld [vmem:[%s6514 + $0x20] sm:$0xf]
        %v6524 = vld [vmem:[%s6514 + $0x24] sm:$0xf]
        %v6525 = vld [vmem:[%s6514 + $0x28] sm:$0xf]
        %v6526 = vld [vmem:[%s6514 + $0x2c] sm:$0xf]
        %v6527 = vld [vmem:[%s6514 + $0x30] sm:$0xf]
        %v6528 = vld [vmem:[%s6514 + $0x34] sm:$0xf]
        %v6529 = vld [vmem:[%s6514 + $0x38] sm:$0xf]
        %v6530 = vld [vmem:[%s6514 + $0x3c] sm:$0xf]
        %v6531 = vunpack.c.l.b16 %v6335
        %v6532 = vunpack.c.l.b16 %v6345
        %v6533 = vunpack.c.l.b16 %v6359
        %v6534 = vunpack.c.l.b16 %v6369
        %v6535 = vunpack.c.l.b16 %v6383
        %v6536 = vunpack.c.l.b16 %v6393
        %v6537 = vunpack.c.l.b16 %v6407
        %v6538 = vunpack.c.l.b16 %v6417
        %v6539 = vunpack.c.l.b16 %v6431
        %v6540 = vunpack.c.l.b16 %v6441
        %v6541 = vunpack.c.l.b16 %v6455
        %v6542 = vunpack.c.l.b16 %v6465
        %v6543 = vunpack.c.l.b16 %v6479
        %v6544 = vunpack.c.l.b16 %v6489
        %v6545 = vunpack.c.l.b16 %v6503
        %v6546 = vunpack.c.l.b16 %v6513
        %v6547 = vpack.c.b16 %v6532, %v6531
        %v6548 = vpack.c.b16 %v6534, %v6533
        %v6549 = vpack.c.b16 %v6536, %v6535
        %v6550 = vpack.c.b16 %v6538, %v6537
        %v6551 = vpack.c.b16 %v6540, %v6539
        %v6552 = vpack.c.b16 %v6542, %v6541
        %v6553 = vpack.c.b16 %v6544, %v6543
        %v6554 = vpack.c.b16 %v6546, %v6545
        %v6579 = vunpack.c.l.b16 %v6515
        %v6580 = vunpack.c.l.b16 %v6516
        %v6581 = vunpack.c.l.b16 %v6517
        %v6582 = vunpack.c.l.b16 %v6518
        %v6583 = vunpack.c.l.b16 %v6519
        %v6584 = vunpack.c.l.b16 %v6520
        %v6585 = vunpack.c.l.b16 %v6521
        %v6586 = vunpack.c.l.b16 %v6522
        %v6587 = vunpack.c.l.b16 %v6523
        %v6588 = vunpack.c.l.b16 %v6524
        %v6589 = vunpack.c.l.b16 %v6525
        %v6590 = vunpack.c.l.b16 %v6526
        %v6591 = vunpack.c.l.b16 %v6527
        %v6592 = vunpack.c.l.b16 %v6528
        %v6593 = vunpack.c.l.b16 %v6529
        %v6594 = vunpack.c.l.b16 %v6530
        %v6595 = vpack.c.b16 %v6580, %v6579
        %v6596 = vpack.c.b16 %v6582, %v6581
        %v6597 = vpack.c.b16 %v6584, %v6583
        %v6598 = vpack.c.b16 %v6586, %v6585
        %v6599 = vpack.c.b16 %v6588, %v6587
        %v6600 = vpack.c.b16 %v6590, %v6589
        %v6601 = vpack.c.b16 %v6592, %v6591
        %v6602 = vpack.c.b16 %v6594, %v6593
        %6611 = vmatprep.subr.bf16.mxu0 0
        %6612 = vmatpush1.bf16.msra.mxu0 %v6595
        %6613 = vmatprep.subr.bf16.mxu0 0
        %6614 = vmatpush1.bf16.msra.mxu0 %v6596
        %6615 = vmatprep.subr.bf16.mxu0 0
        %6616 = vmatpush1.bf16.msra.mxu0 %v6597
        %6617 = vmatprep.subr.bf16.mxu0 0
        %6618 = vmatpush1.bf16.msra.mxu0 %v6598
        %6619 = vmatprep.subr.bf16.mxu0 0
        %6620 = vmatpush1.bf16.msra.mxu0 %v6599
        %6621 = vmatprep.subr.bf16.mxu0 0
        %6622 = vmatpush1.bf16.msra.mxu0 %v6600
        %6623 = vmatprep.subr.bf16.mxu0 0
        %6624 = vmatpush1.bf16.msra.mxu0 %v6601
        %6625 = vmatprep.subr.bf16.mxu0 0
        %6626 = vmatpush1.bf16.msra.mxu0 %v6602
        %6627 = vmatprep.subr.bf16.mxu0 0
        %6628 = vmatpush1.bf16.msra.mxu0 0
        %6629 = vmatprep.subr.bf16.mxu0 0
        %6630 = vmatpush1.bf16.msra.mxu0 0
        %6631 = vmatprep.subr.bf16.mxu0 0
        %6632 = vmatpush1.bf16.msra.mxu0 0
        %6633 = vmatprep.subr.bf16.mxu0 0
        %6634 = vmatpush1.bf16.msra.mxu0 0
        %6635 = vmatprep.subr.bf16.mxu0 0
        %6636 = vmatpush1.bf16.msra.mxu0 0
        %6637 = vmatprep.subr.bf16.mxu0 0
        %6638 = vmatpush1.bf16.msra.mxu0 0
        %6639 = vmatprep.subr.bf16.mxu0 0
        %6640 = vmatpush1.bf16.msra.mxu0 0
        %6641 = vmatprep.subr.bf16.mxu0 0
        %6642 = vmatpush1.bf16.msra.mxu0 0
        %6643 = vmatprep.mubr.bf16.mxu0 0
        %6644 = vmatmul.mubr.bf16.gmra.mrb[0].mxu0 %v6547
        %v6645 = vpop.f32.mrb[0].mxu0
        %v6646 = vadd.f32 0.0, %v6645
        %v6647 = vpop.f32.mrb[0].mxu0
        %v6648 = vpop.f32.mrb[0].mxu0
        %v6649 = vadd.f32 0.0, %v6648
        %v6650 = vpop.f32.mrb[0].mxu0
        %6651 = vmatprep.mubr.bf16.mxu0 0
        %6652 = vmatmul.mubr.bf16.gmra.mrb[0].mxu0 %v6548
        %v6653 = vpop.f32.mrb[0].mxu0
        %v6654 = vadd.f32 0.0, %v6653
        %v6655 = vpop.f32.mrb[0].mxu0
        %v6656 = vpop.f32.mrb[0].mxu0
        %v6657 = vadd.f32 0.0, %v6656
        %v6658 = vpop.f32.mrb[0].mxu0
        %6659 = vmatprep.mubr.bf16.mxu0 0
        %6660 = vmatmul.mubr.bf16.gmra.mrb[0].mxu0 %v6549
        %v6661 = vpop.f32.mrb[0].mxu0
        %v6662 = vadd.f32 0.0, %v6661
        %v6663 = vpop.f32.mrb[0].mxu0
        %v6664 = vpop.f32.mrb[0].mxu0
        %v6665 = vadd.f32 0.0, %v6664
        %v6666 = vpop.f32.mrb[0].mxu0
        %6667 = vmatprep.mubr.bf16.mxu0 0
        %6668 = vmatmul.mubr.bf16.gmra.mrb[0].mxu0 %v6550
        %v6669 = vpop.f32.mrb[0].mxu0
        %v6670 = vadd.f32 0.0, %v6669
        %v6671 = vpop.f32.mrb[0].mxu0
        %v6672 = vpop.f32.mrb[0].mxu0
        %v6673 = vadd.f32 0.0, %v6672
        %v6674 = vpop.f32.mrb[0].mxu0
        %6675 = vmatprep.mubr.bf16.mxu0 0
        %6676 = vmatmul.mubr.bf16.gmra.mrb[0].mxu0 %v6551
        %v6677 = vpop.f32.mrb[0].mxu0
        %v6678 = vadd.f32 0.0, %v6677
        %v6679 = vpop.f32.mrb[0].mxu0
        %v6680 = vpop.f32.mrb[0].mxu0
        %v6681 = vadd.f32 0.0, %v6680
        %v6682 = vpop.f32.mrb[0].mxu0
        %6683 = vmatprep.mubr.bf16.mxu0 0
        %6684 = vmatmul.mubr.bf16.gmra.mrb[0].mxu0 %v6552
        %v6685 = vpop.f32.mrb[0].mxu0
        %v6686 = vadd.f32 0.0, %v6685
        %v6687 = vpop.f32.mrb[0].mxu0
        %v6688 = vpop.f32.mrb[0].mxu0
        %v6689 = vadd.f32 0.0, %v6688
        %v6690 = vpop.f32.mrb[0].mxu0
        %6691 = vmatprep.mubr.bf16.mxu0 0
        %6692 = vmatmul.mubr.bf16.gmra.mrb[0].mxu0 %v6553
        %v6693 = vpop.f32.mrb[0].mxu0
        %v6694 = vadd.f32 0.0, %v6693
        %v6695 = vpop.f32.mrb[0].mxu0
        %v6696 = vpop.f32.mrb[0].mxu0
        %v6697 = vadd.f32 0.0, %v6696
        %v6698 = vpop.f32.mrb[0].mxu0
        %6699 = vmatprep.mubr.bf16.mxu0 0
        %6700 = vmatmul.mubr.bf16.gmra.mrb[0].mxu0 %v6554
        %v6701 = vpop.f32.mrb[0].mxu0
        %v6702 = vadd.f32 0.0, %v6701
        %v6703 = vpop.f32.mrb[0].mxu0
        %v6704 = vpop.f32.mrb[0].mxu0
        %v6705 = vadd.f32 0.0, %v6704
        %v6706 = vpop.f32.mrb[0].mxu0
        %6707 = vdwg.mxu0
        %v6708 = vadd.f32 %v6282, %v6646
        %v6709 = vadd.f32 %v6283, %v6649
        %v6710 = vadd.f32 %v6284, %v6654
        %v6711 = vadd.f32 %v6285, %v6657
        %v6712 = vadd.f32 %v6286, %v6662
        %v6713 = vadd.f32 %v6287, %v6665
        %v6714 = vadd.f32 %v6288, %v6670
        %v6715 = vadd.f32 %v6289, %v6673
        %v6716 = vadd.f32 %v6290, %v6678
        %v6717 = vadd.f32 %v6291, %v6681
        %v6718 = vadd.f32 %v6292, %v6686
        %v6719 = vadd.f32 %v6293, %v6689
        %v6720 = vadd.f32 %v6294, %v6694
        %v6721 = vadd.f32 %v6295, %v6697
        %v6722 = vadd.f32 %v6296, %v6702
        %v6723 = vadd.f32 %v6297, %v6705
        %v6724 = vld [vmem:[%s6055] sm:$0xe]
        %v6725 = vld [vmem:[%s6055 + $0xc] sm:$0xe]
        %v6726 = vld [vmem:[%s6055 + $0x18] sm:$0xe]
        %v6727 = vld [vmem:[%s6055 + $0x24] sm:$0xe]
        %v6728 = vld [vmem:[%s6055 + $0x30] sm:$0xe]
        %v6729 = vld [vmem:[%s6055 + $0x3c] sm:$0xe]
        %v6730 = vld [vmem:[%s6055 + $0x48] sm:$0xe]
        %v6731 = vld [vmem:[%s6055 + $0x54] sm:$0xe]
        %v6756 = vrot.slane %v6724, 5
        %v6757 = vrot.slane %v6756, 4
        %v6758 = vrot.slane %v6299, 5
        %v6759 = vsel %vm1106, %v6757, %v6758
        %v6760 = vrot.slane %v6758, 4
        %v6761 = vrot.slane %v6300, 5
        %v6762 = vsel %vm1106, %v6760, %v6761
        %v6763 = vrot.slane %v6725, 5
        %v6764 = vrot.slane %v6763, 4
        %v6765 = vrot.slane %v6302, 5
        %v6766 = vsel %vm1106, %v6764, %v6765
        %v6767 = vrot.slane %v6765, 4
        %v6768 = vrot.slane %v6303, 5
        %v6769 = vsel %vm1106, %v6767, %v6768
        %v6770 = vrot.slane %v6726, 5
        %v6771 = vrot.slane %v6770, 4
        %v6772 = vrot.slane %v6305, 5
        %v6773 = vsel %vm1106, %v6771, %v6772
        %v6774 = vrot.slane %v6772, 4
        %v6775 = vrot.slane %v6306, 5
        %v6776 = vsel %vm1106, %v6774, %v6775
        %v6777 = vrot.slane %v6727, 5
        %v6778 = vrot.slane %v6777, 4
        %v6779 = vrot.slane %v6308, 5
        %v6780 = vsel %vm1106, %v6778, %v6779
        %v6781 = vrot.slane %v6779, 4
        %v6782 = vrot.slane %v6309, 5
        %v6783 = vsel %vm1106, %v6781, %v6782
        %v6784 = vrot.slane %v6728, 5
        %v6785 = vrot.slane %v6784, 4
        %v6786 = vrot.slane %v6311, 5
        %v6787 = vsel %vm1106, %v6785, %v6786
        %v6788 = vrot.slane %v6786, 4
        %v6789 = vrot.slane %v6312, 5
        %v6790 = vsel %vm1106, %v6788, %v6789
        %v6791 = vrot.slane %v6729, 5
        %v6792 = vrot.slane %v6791, 4
        %v6793 = vrot.slane %v6314, 5
        %v6794 = vsel %vm1106, %v6792, %v6793
        %v6795 = vrot.slane %v6793, 4
        %v6796 = vrot.slane %v6315, 5
        %v6797 = vsel %vm1106, %v6795, %v6796
        %v6798 = vrot.slane %v6730, 5
        %v6799 = vrot.slane %v6798, 4
        %v6800 = vrot.slane %v6317, 5
        %v6801 = vsel %vm1106, %v6799, %v6800
        %v6802 = vrot.slane %v6800, 4
        %v6803 = vrot.slane %v6318, 5
        %v6804 = vsel %vm1106, %v6802, %v6803
        %v6805 = vrot.slane %v6731, 5
        %v6806 = vrot.slane %v6805, 4
        %v6807 = vrot.slane %v6320, 5
        %v6808 = vsel %vm1106, %v6806, %v6807
        %v6809 = vrot.slane %v6807, 4
        %v6810 = vrot.slane %v6321, 5
        %v6811 = vsel %vm1106, %v6809, %v6810
        %s6812 = scalar_lea.vmem [#allocation8], 512
        %v6813 = vld [vmem:[%s6812] sm:$0xf]
        %v6814 = vld [vmem:[%s6812 + $0x4] sm:$0xf]
        %v6815 = vld [vmem:[%s6812 + $0x8] sm:$0xf]
        %v6816 = vld [vmem:[%s6812 + $0xc] sm:$0xf]
        %v6817 = vld [vmem:[%s6812 + $0x10] sm:$0xf]
        %v6818 = vld [vmem:[%s6812 + $0x14] sm:$0xf]
        %v6819 = vld [vmem:[%s6812 + $0x18] sm:$0xf]
        %v6820 = vld [vmem:[%s6812 + $0x1c] sm:$0xf]
        %v6821 = vld [vmem:[%s6812 + $0x20] sm:$0xf]
        %v6822 = vld [vmem:[%s6812 + $0x24] sm:$0xf]
        %v6823 = vld [vmem:[%s6812 + $0x28] sm:$0xf]
        %v6824 = vld [vmem:[%s6812 + $0x2c] sm:$0xf]
        %v6825 = vld [vmem:[%s6812 + $0x30] sm:$0xf]
        %v6826 = vld [vmem:[%s6812 + $0x34] sm:$0xf]
        %v6827 = vld [vmem:[%s6812 + $0x38] sm:$0xf]
        %v6828 = vld [vmem:[%s6812 + $0x3c] sm:$0xf]
        %v6829 = vunpack.c.l.b16 %v6759
        %v6830 = vunpack.c.l.b16 %v6762
        %v6831 = vunpack.c.l.b16 %v6766
        %v6832 = vunpack.c.l.b16 %v6769
        %v6833 = vunpack.c.l.b16 %v6773
        %v6834 = vunpack.c.l.b16 %v6776
        %v6835 = vunpack.c.l.b16 %v6780
        %v6836 = vunpack.c.l.b16 %v6783
        %v6837 = vunpack.c.l.b16 %v6787
        %v6838 = vunpack.c.l.b16 %v6790
        %v6839 = vunpack.c.l.b16 %v6794
        %v6840 = vunpack.c.l.b16 %v6797
        %v6841 = vunpack.c.l.b16 %v6801
        %v6842 = vunpack.c.l.b16 %v6804
        %v6843 = vunpack.c.l.b16 %v6808
        %v6844 = vunpack.c.l.b16 %v6811
        %v6845 = vpack.c.b16 %v6830, %v6829
        %v6846 = vpack.c.b16 %v6832, %v6831
        %v6847 = vpack.c.b16 %v6834, %v6833
        %v6848 = vpack.c.b16 %v6836, %v6835
        %v6849 = vpack.c.b16 %v6838, %v6837
        %v6850 = vpack.c.b16 %v6840, %v6839
        %v6851 = vpack.c.b16 %v6842, %v6841
        %v6852 = vpack.c.b16 %v6844, %v6843
        %v6877 = vunpack.c.l.b16 %v6813
        %v6878 = vunpack.c.l.b16 %v6814
        %v6879 = vunpack.c.l.b16 %v6815
        %v6880 = vunpack.c.l.b16 %v6816
        %v6881 = vunpack.c.l.b16 %v6817
        %v6882 = vunpack.c.l.b16 %v6818
        %v6883 = vunpack.c.l.b16 %v6819
        %v6884 = vunpack.c.l.b16 %v6820
        %v6885 = vunpack.c.l.b16 %v6821
        %v6886 = vunpack.c.l.b16 %v6822
        %v6887 = vunpack.c.l.b16 %v6823
        %v6888 = vunpack.c.l.b16 %v6824
        %v6889 = vunpack.c.l.b16 %v6825
        %v6890 = vunpack.c.l.b16 %v6826
        %v6891 = vunpack.c.l.b16 %v6827
        %v6892 = vunpack.c.l.b16 %v6828
        %v6893 = vpack.c.b16 %v6878, %v6877
        %v6894 = vpack.c.b16 %v6880, %v6879
        %v6895 = vpack.c.b16 %v6882, %v6881
        %v6896 = vpack.c.b16 %v6884, %v6883
        %v6897 = vpack.c.b16 %v6886, %v6885
        %v6898 = vpack.c.b16 %v6888, %v6887
        %v6899 = vpack.c.b16 %v6890, %v6889
        %v6900 = vpack.c.b16 %v6892, %v6891
        %6909 = vmatprep.subr.bf16.mxu0 0
        %6910 = vmatpush1.bf16.msra.mxu0 %v6893
        %6911 = vmatprep.subr.bf16.mxu0 0
        %6912 = vmatpush1.bf16.msra.mxu0 %v6894
        %6913 = vmatprep.subr.bf16.mxu0 0
        %6914 = vmatpush1.bf16.msra.mxu0 %v6895
        %6915 = vmatprep.subr.bf16.mxu0 0
        %6916 = vmatpush1.bf16.msra.mxu0 %v6896
        %6917 = vmatprep.subr.bf16.mxu0 0
        %6918 = vmatpush1.bf16.msra.mxu0 %v6897
        %6919 = vmatprep.subr.bf16.mxu0 0
        %6920 = vmatpush1.bf16.msra.mxu0 %v6898
        %6921 = vmatprep.subr.bf16.mxu0 0
        %6922 = vmatpush1.bf16.msra.mxu0 %v6899
        %6923 = vmatprep.subr.bf16.mxu0 0
        %6924 = vmatpush1.bf16.msra.mxu0 %v6900
        %6925 = vmatprep.subr.bf16.mxu0 0
        %6926 = vmatpush1.bf16.msra.mxu0 0
        %6927 = vmatprep.subr.bf16.mxu0 0
        %6928 = vmatpush1.bf16.msra.mxu0 0
        %6929 = vmatprep.subr.bf16.mxu0 0
        %6930 = vmatpush1.bf16.msra.mxu0 0
        %6931 = vmatprep.subr.bf16.mxu0 0
        %6932 = vmatpush1.bf16.msra.mxu0 0
        %6933 = vmatprep.subr.bf16.mxu0 0
        %6934 = vmatpush1.bf16.msra.mxu0 0
        %6935 = vmatprep.subr.bf16.mxu0 0
        %6936 = vmatpush1.bf16.msra.mxu0 0
        %6937 = vmatprep.subr.bf16.mxu0 0
        %6938 = vmatpush1.bf16.msra.mxu0 0
        %6939 = vmatprep.subr.bf16.mxu0 0
        %6940 = vmatpush1.bf16.msra.mxu0 0
        %6941 = vmatprep.mubr.bf16.mxu0 0
        %6942 = vmatmul.mubr.bf16.gmra.mrb[0].mxu0 %v6845
        %v6943 = vpop.f32.mrb[0].mxu0
        %v6944 = vadd.f32 0.0, %v6943
        %v6945 = vpop.f32.mrb[0].mxu0
        %v6946 = vpop.f32.mrb[0].mxu0
        %v6947 = vadd.f32 0.0, %v6946
        %v6948 = vpop.f32.mrb[0].mxu0
        %6949 = vmatprep.mubr.bf16.mxu0 0
        %6950 = vmatmul.mubr.bf16.gmra.mrb[0].mxu0 %v6846
        %v6951 = vpop.f32.mrb[0].mxu0
        %v6952 = vadd.f32 0.0, %v6951
        %v6953 = vpop.f32.mrb[0].mxu0
        %v6954 = vpop.f32.mrb[0].mxu0
        %v6955 = vadd.f32 0.0, %v6954
        %v6956 = vpop.f32.mrb[0].mxu0
        %6957 = vmatprep.mubr.bf16.mxu0 0
        %6958 = vmatmul.mubr.bf16.gmra.mrb[0].mxu0 %v6847
        %v6959 = vpop.f32.mrb[0].mxu0
        %v6960 = vadd.f32 0.0, %v6959
        %v6961 = vpop.f32.mrb[0].mxu0
        %v6962 = vpop.f32.mrb[0].mxu0
        %v6963 = vadd.f32 0.0, %v6962
        %v6964 = vpop.f32.mrb[0].mxu0
        %6965 = vmatprep.mubr.bf16.mxu0 0
        %6966 = vmatmul.mubr.bf16.gmra.mrb[0].mxu0 %v6848
        %v6967 = vpop.f32.mrb[0].mxu0
        %v6968 = vadd.f32 0.0, %v6967
        %v6969 = vpop.f32.mrb[0].mxu0
        %v6970 = vpop.f32.mrb[0].mxu0
        %v6971 = vadd.f32 0.0, %v6970
        %v6972 = vpop.f32.mrb[0].mxu0
        %6973 = vmatprep.mubr.bf16.mxu0 0
        %6974 = vmatmul.mubr.bf16.gmra.mrb[0].mxu0 %v6849
        %v6975 = vpop.f32.mrb[0].mxu0
        %v6976 = vadd.f32 0.0, %v6975
        %v6977 = vpop.f32.mrb[0].mxu0
        %v6978 = vpop.f32.mrb[0].mxu0
        %v6979 = vadd.f32 0.0, %v6978
        %v6980 = vpop.f32.mrb[0].mxu0
        %6981 = vmatprep.mubr.bf16.mxu0 0
        %6982 = vmatmul.mubr.bf16.gmra.mrb[0].mxu0 %v6850
        %v6983 = vpop.f32.mrb[0].mxu0
        %v6984 = vadd.f32 0.0, %v6983
        %v6985 = vpop.f32.mrb[0].mxu0
        %v6986 = vpop.f32.mrb[0].mxu0
        %v6987 = vadd.f32 0.0, %v6986
        %v6988 = vpop.f32.mrb[0].mxu0
        %6989 = vmatprep.mubr.bf16.mxu0 0
        %6990 = vmatmul.mubr.bf16.gmra.mrb[0].mxu0 %v6851
        %v6991 = vpop.f32.mrb[0].mxu0
        %v6992 = vadd.f32 0.0, %v6991
        %v6993 = vpop.f32.mrb[0].mxu0
        %v6994 = vpop.f32.mrb[0].mxu0
        %v6995 = vadd.f32 0.0, %v6994
        %v6996 = vpop.f32.mrb[0].mxu0
        %6997 = vmatprep.mubr.bf16.mxu0 0
        %6998 = vmatmul.mubr.bf16.gmra.mrb[0].mxu0 %v6852
        %v6999 = vpop.f32.mrb[0].mxu0
        %v7000 = vadd.f32 0.0, %v6999
        %v7001 = vpop.f32.mrb[0].mxu0
        %v7002 = vpop.f32.mrb[0].mxu0
        %v7003 = vadd.f32 0.0, %v7002
        %v7004 = vpop.f32.mrb[0].mxu0
        %7005 = vdwg.mxu0
        %v7006 = vadd.f32 %v6708, %v6944
        %v7007 = vadd.f32 %v6709, %v6947
        %v7008 = vadd.f32 %v6710, %v6952
        %v7009 = vadd.f32 %v6711, %v6955
        %v7010 = vadd.f32 %v6712, %v6960
        %v7011 = vadd.f32 %v6713, %v6963
        %v7012 = vadd.f32 %v6714, %v6968
        %v7013 = vadd.f32 %v6715, %v6971
        %v7014 = vadd.f32 %v6716, %v6976
        %v7015 = vadd.f32 %v6717, %v6979
        %v7016 = vadd.f32 %v6718, %v6984
        %v7017 = vadd.f32 %v6719, %v6987
        %v7018 = vadd.f32 %v6720, %v6992
        %v7019 = vadd.f32 %v6721, %v6995
        %v7020 = vadd.f32 %v6722, %v7000
        %v7021 = vadd.f32 %v6723, %v7003
        %v7022 = vld [vmem:[%s5] sm:$0x1]
        %v7024 = vlaneseq
        %v7025 = vshrl.u32 %v7024, 7
        %v7026 = vsub.s32 0, %v7025
        %v7027 = vrot.slane %v7022, %v7026
        %v7029 = vmul.f32 %v7006, %v7027
        %v7030 = vmul.f32 %v7007, %v7027
        %v7031 = vmul.f32 %v7008, %v7027
        %v7032 = vmul.f32 %v7009, %v7027
        %v7033 = vmul.f32 %v7010, %v7027
        %v7034 = vmul.f32 %v7011, %v7027
        %v7035 = vmul.f32 %v7012, %v7027
        %v7036 = vmul.f32 %v7013, %v7027
        %v7037 = vmul.f32 %v7014, %v7027
        %v7038 = vmul.f32 %v7015, %v7027
        %v7039 = vmul.f32 %v7016, %v7027
        %v7040 = vmul.f32 %v7017, %v7027
        %v7041 = vmul.f32 %v7018, %v7027
        %v7042 = vmul.f32 %v7019, %v7027
        %v7043 = vmul.f32 %v7020, %v7027
        %v7044 = vmul.f32 %v7021, %v7027
        %v7045 = vld [vmem:[%s6] sm:$0x1]
        %v7047 = vlaneseq
        %v7048 = vshrl.u32 %v7047, 7
        %v7049 = vsub.s32 0, %v7048
        %v7050 = vrot.slane %v7045, %v7049
        %v7052 = vadd.f32 %v7029, %v7050
        %v7053 = vadd.f32 %v7030, %v7050
        %v7054 = vadd.f32 %v7031, %v7050
        %v7055 = vadd.f32 %v7032, %v7050
        %v7056 = vadd.f32 %v7033, %v7050
        %v7057 = vadd.f32 %v7034, %v7050
        %v7058 = vadd.f32 %v7035, %v7050
        %v7059 = vadd.f32 %v7036, %v7050
        %v7060 = vadd.f32 %v7037, %v7050
        %v7061 = vadd.f32 %v7038, %v7050
        %v7062 = vadd.f32 %v7039, %v7050
        %v7063 = vadd.f32 %v7040, %v7050
        %v7064 = vadd.f32 %v7041, %v7050
        %v7065 = vadd.f32 %v7042, %v7050
        %v7066 = vadd.f32 %v7043, %v7050
        %v7067 = vadd.f32 %v7044, %v7050
        %v7068 = vld [vmem:[%s2556] sm:$0xf]
        %v7069 = vld [vmem:[%s2556 + $0x4] sm:$0xf]
        %v7070 = vld [vmem:[%s2556 + $0x8] sm:$0x1]
        %v7071 = vld [vmem:[%s2556 + $0xc] sm:$0xf]
        %v7072 = vld [vmem:[%s2556 + $0x10] sm:$0xf]
        %v7073 = vld [vmem:[%s2556 + $0x14] sm:$0x1]
        %v7074 = vld [vmem:[%s2556 + $0x18] sm:$0xf]
        %v7075 = vld [vmem:[%s2556 + $0x1c] sm:$0xf]
        %v7076 = vld [vmem:[%s2556 + $0x20] sm:$0x1]
        %v7077 = vld [vmem:[%s2556 + $0x24] sm:$0xf]
        %v7078 = vld [vmem:[%s2556 + $0x28] sm:$0xf]
        %v7079 = vld [vmem:[%s2556 + $0x2c] sm:$0x1]
        %v7080 = vld [vmem:[%s2556 + $0x30] sm:$0xf]
        %v7081 = vld [vmem:[%s2556 + $0x34] sm:$0xf]
        %v7082 = vld [vmem:[%s2556 + $0x38] sm:$0x1]
        %v7083 = vld [vmem:[%s2556 + $0x3c] sm:$0xf]
        %v7084 = vld [vmem:[%s2556 + $0x40] sm:$0xf]
        %v7085 = vld [vmem:[%s2556 + $0x44] sm:$0x1]
        %v7086 = vld [vmem:[%s2556 + $0x48] sm:$0xf]
        %v7087 = vld [vmem:[%s2556 + $0x4c] sm:$0xf]
        %v7088 = vld [vmem:[%s2556 + $0x50] sm:$0x1]
        %v7089 = vld [vmem:[%s2556 + $0x54] sm:$0xf]
        %v7090 = vld [vmem:[%s2556 + $0x58] sm:$0xf]
        %v7091 = vld [vmem:[%s2556 + $0x5c] sm:$0x1]
        %v7093 = vshrl.u32 %v7068, 16
        %v7095 = vrot.slane %v7093, 4
        %v7096 = vshll.u32 %v7068, 16
        %v7098 = vrot.slane %v7096, 5
        %v7099 = vor.u32 %v7095, %v7098
        %v7100 = vrot.slane %v7099, 4
        %v7102 = vshll.u32 %v7069, 16
        %v7104 = vrot.slane %v7102, 5
        %v7105 = vsel %vm394, %v7100, %v7104
        %v7106 = vshrl.u32 %v7069, 16
        %v7108 = vrot.slane %v7106, 4
        %v7109 = vor.u32 %v7108, %v7104
        %v7110 = vrot.slane %v7109, 4
        %v7112 = vshll.u32 %v7070, 16
        %v7114 = vrot.slane %v7112, 5
        %v7115 = vsel %vm394, %v7110, %v7114
        %v7117 = vshrl.u32 %v7071, 16
        %v7119 = vrot.slane %v7117, 4
        %v7120 = vshll.u32 %v7071, 16
        %v7122 = vrot.slane %v7120, 5
        %v7123 = vor.u32 %v7119, %v7122
        %v7124 = vrot.slane %v7123, 4
        %v7126 = vshll.u32 %v7072, 16
        %v7128 = vrot.slane %v7126, 5
        %v7129 = vsel %vm394, %v7124, %v7128
        %v7130 = vshrl.u32 %v7072, 16
        %v7132 = vrot.slane %v7130, 4
        %v7133 = vor.u32 %v7132, %v7128
        %v7134 = vrot.slane %v7133, 4
        %v7136 = vshll.u32 %v7073, 16
        %v7138 = vrot.slane %v7136, 5
        %v7139 = vsel %vm394, %v7134, %v7138
        %v7141 = vshrl.u32 %v7074, 16
        %v7143 = vrot.slane %v7141, 4
        %v7144 = vshll.u32 %v7074, 16
        %v7146 = vrot.slane %v7144, 5
        %v7147 = vor.u32 %v7143, %v7146
        %v7148 = vrot.slane %v7147, 4
        %v7150 = vshll.u32 %v7075, 16
        %v7152 = vrot.slane %v7150, 5
        %v7153 = vsel %vm394, %v7148, %v7152
        %v7154 = vshrl.u32 %v7075, 16
        %v7156 = vrot.slane %v7154, 4
        %v7157 = vor.u32 %v7156, %v7152
        %v7158 = vrot.slane %v7157, 4
        %v7160 = vshll.u32 %v7076, 16
        %v7162 = vrot.slane %v7160, 5
        %v7163 = vsel %vm394, %v7158, %v7162
        %v7165 = vshrl.u32 %v7077, 16
        %v7167 = vrot.slane %v7165, 4
        %v7168 = vshll.u32 %v7077, 16
        %v7170 = vrot.slane %v7168, 5
        %v7171 = vor.u32 %v7167, %v7170
        %v7172 = vrot.slane %v7171, 4
        %v7174 = vshll.u32 %v7078, 16
        %v7176 = vrot.slane %v7174, 5
        %v7177 = vsel %vm394, %v7172, %v7176
        %v7178 = vshrl.u32 %v7078, 16
        %v7180 = vrot.slane %v7178, 4
        %v7181 = vor.u32 %v7180, %v7176
        %v7182 = vrot.slane %v7181, 4
        %v7184 = vshll.u32 %v7079, 16
        %v7186 = vrot.slane %v7184, 5
        %v7187 = vsel %vm394, %v7182, %v7186
        %v7189 = vshrl.u32 %v7080, 16
        %v7191 = vrot.slane %v7189, 4
        %v7192 = vshll.u32 %v7080, 16
        %v7194 = vrot.slane %v7192, 5
        %v7195 = vor.u32 %v7191, %v7194
        %v7196 = vrot.slane %v7195, 4
        %v7198 = vshll.u32 %v7081, 16
        %v7200 = vrot.slane %v7198, 5
        %v7201 = vsel %vm394, %v7196, %v7200
        %v7202 = vshrl.u32 %v7081, 16
        %v7204 = vrot.slane %v7202, 4
        %v7205 = vor.u32 %v7204, %v7200
        %v7206 = vrot.slane %v7205, 4
        %v7208 = vshll.u32 %v7082, 16
        %v7210 = vrot.slane %v7208, 5
        %v7211 = vsel %vm394, %v7206, %v7210
        %v7213 = vshrl.u32 %v7083, 16
        %v7215 = vrot.slane %v7213, 4
        %v7216 = vshll.u32 %v7083, 16
        %v7218 = vrot.slane %v7216, 5
        %v7219 = vor.u32 %v7215, %v7218
        %v7220 = vrot.slane %v7219, 4
        %v7222 = vshll.u32 %v7084, 16
        %v7224 = vrot.slane %v7222, 5
        %v7225 = vsel %vm394, %v7220, %v7224
        %v7226 = vshrl.u32 %v7084, 16
        %v7228 = vrot.slane %v7226, 4
        %v7229 = vor.u32 %v7228, %v7224
        %v7230 = vrot.slane %v7229, 4
        %v7232 = vshll.u32 %v7085, 16
        %v7234 = vrot.slane %v7232, 5
        %v7235 = vsel %vm394, %v7230, %v7234
        %v7237 = vshrl.u32 %v7086, 16
        %v7239 = vrot.slane %v7237, 4
        %v7240 = vshll.u32 %v7086, 16
        %v7242 = vrot.slane %v7240, 5
        %v7243 = vor.u32 %v7239, %v7242
        %v7244 = vrot.slane %v7243, 4
        %v7246 = vshll.u32 %v7087, 16
        %v7248 = vrot.slane %v7246, 5
        %v7249 = vsel %vm394, %v7244, %v7248
        %v7250 = vshrl.u32 %v7087, 16
        %v7252 = vrot.slane %v7250, 4
        %v7253 = vor.u32 %v7252, %v7248
        %v7254 = vrot.slane %v7253, 4
        %v7256 = vshll.u32 %v7088, 16
        %v7258 = vrot.slane %v7256, 5
        %v7259 = vsel %vm394, %v7254, %v7258
        %v7261 = vshrl.u32 %v7089, 16
        %v7263 = vrot.slane %v7261, 4
        %v7264 = vshll.u32 %v7089, 16
        %v7266 = vrot.slane %v7264, 5
        %v7267 = vor.u32 %v7263, %v7266
        %v7268 = vrot.slane %v7267, 4
        %v7270 = vshll.u32 %v7090, 16
        %v7272 = vrot.slane %v7270, 5
        %v7273 = vsel %vm394, %v7268, %v7272
        %v7274 = vshrl.u32 %v7090, 16
        %v7276 = vrot.slane %v7274, 4
        %v7277 = vor.u32 %v7276, %v7272
        %v7278 = vrot.slane %v7277, 4
        %v7280 = vshll.u32 %v7091, 16
        %v7282 = vrot.slane %v7280, 5
        %v7283 = vsel %vm394, %v7278, %v7282
        %v7300 = vunpack.c.l.bf16 %v7105
        %v7301 = vunpack.c.l.bf16 %v7115
        %v7302 = vunpack.c.l.bf16 %v7129
        %v7303 = vunpack.c.l.bf16 %v7139
        %v7304 = vunpack.c.l.bf16 %v7153
        %v7305 = vunpack.c.l.bf16 %v7163
        %v7306 = vunpack.c.l.bf16 %v7177
        %v7307 = vunpack.c.l.bf16 %v7187
        %v7308 = vunpack.c.l.bf16 %v7201
        %v7309 = vunpack.c.l.bf16 %v7211
        %v7310 = vunpack.c.l.bf16 %v7225
        %v7311 = vunpack.c.l.bf16 %v7235
        %v7312 = vunpack.c.l.bf16 %v7249
        %v7313 = vunpack.c.l.bf16 %v7259
        %v7314 = vunpack.c.l.bf16 %v7273
        %v7315 = vunpack.c.l.bf16 %v7283
        %v7316 = vadd.f32 %v7052, %v7300
        %v7317 = vadd.f32 %v7053, %v7301
        %v7318 = vadd.f32 %v7054, %v7302
        %v7319 = vadd.f32 %v7055, %v7303
        %v7320 = vadd.f32 %v7056, %v7304
        %v7321 = vadd.f32 %v7057, %v7305
        %v7322 = vadd.f32 %v7058, %v7306
        %v7323 = vadd.f32 %v7059, %v7307
        %v7324 = vadd.f32 %v7060, %v7308
        %v7325 = vadd.f32 %v7061, %v7309
        %v7326 = vadd.f32 %v7062, %v7310
        %v7327 = vadd.f32 %v7063, %v7311
        %v7328 = vadd.f32 %v7064, %v7312
        %v7329 = vadd.f32 %v7065, %v7313
        %v7330 = vadd.f32 %v7066, %v7314
        %v7331 = vadd.f32 %v7067, %v7315
        %v7332 = vmax.f32 %v7316, 0.0
        %v7333 = vmax.f32 %v7317, 0.0
        %v7334 = vmax.f32 %v7318, 0.0
        %v7335 = vmax.f32 %v7319, 0.0
        %v7336 = vmax.f32 %v7320, 0.0
        %v7337 = vmax.f32 %v7321, 0.0
        %v7338 = vmax.f32 %v7322, 0.0
        %v7339 = vmax.f32 %v7323, 0.0
        %v7340 = vmax.f32 %v7324, 0.0
        %v7341 = vmax.f32 %v7325, 0.0
        %v7342 = vmax.f32 %v7326, 0.0
        %v7343 = vmax.f32 %v7327, 0.0
        %v7344 = vmax.f32 %v7328, 0.0
        %v7345 = vmax.f32 %v7329, 0.0
        %v7346 = vmax.f32 %v7330, 0.0
        %v7347 = vmax.f32 %v7331, 0.0
        %7348 = vst [vmem:[%s339] sm:$0xff] %v7332
        %7349 = vst [vmem:[%s339 + $0x8] sm:$0xff] %v7333
        %7350 = vst [vmem:[%s339 + $0x10] sm:$0xff] %v7334
        %7351 = vst [vmem:[%s339 + $0x18] sm:$0xff] %v7335
        %7352 = vst [vmem:[%s339 + $0x20] sm:$0xff] %v7336
        %7353 = vst [vmem:[%s339 + $0x28] sm:$0xff] %v7337
        %7354 = vst [vmem:[%s339 + $0x30] sm:$0xff] %v7338
        %7355 = vst [vmem:[%s339 + $0x38] sm:$0xff] %v7339
        %7356 = vst [vmem:[%s339 + $0x40] sm:$0xff] %v7340
        %7357 = vst [vmem:[%s339 + $0x48] sm:$0xff] %v7341
        %7358 = vst [vmem:[%s339 + $0x50] sm:$0xff] %v7342
        %7359 = vst [vmem:[%s339 + $0x58] sm:$0xff] %v7343
        %7360 = vst [vmem:[%s339 + $0x60] sm:$0xff] %v7344
        %7361 = vst [vmem:[%s339 + $0x68] sm:$0xff] %v7345
        %7362 = vst [vmem:[%s339 + $0x70] sm:$0xff] %v7346
        %7363 = vst [vmem:[%s339 + $0x78] sm:$0xff] %v7347
        %s7364 = sand.u32 %s199, 1
        %s7365 = scalar_lea.sflag [#allocation5], %s7364
        %s7366 = sand.u32 %s199, 1
        %s7367 = smul.addr %s7366, 128
        %s7368 = scalar_lea.vmem [#allocation9], %s7367
        // Predicated region
        $region69: #{tpu_custom_call.1} parent=47 // pred_check
          %p7369 = pneg %p209
        $region70: #{tpu_custom_call.1} parent=47 // pred_check_branch
          %7371 = sbr.rel (%p7369) target = $region72
        $region71: #{tpu_custom_call.1} parent=47 // pred_region
          %s7372 = smul.u32 8, %s30
          %s7374 = ssub.s32 2048, 2048
          %7375 = vsyncadd %s7365, %s7374
          %s7376 = smul.addr %s7372, 2
          %s7377 = smul.addr %s29, 32
          %s7378 = sadd.s32 %s7376, %s7377
          %s7379 = smul.addr %s7378, 128
          %s7380 = scalar_lea.hbm %s7, %s7379
          %s7381 = sshll.u32 %s7368, 4
          %s7382 = int_to_ptr.vmem [resolvable:$true] %s7381
          %7387 = dma.vmem_to_hbm [thread:$0]  %s7382, 2048, %s7380, %s7365, 128, 128, 8
        $region72: #{tpu_custom_call.1} parent=47 // pred_fallthru
          _
      $region48: #{tpu_custom_call.1} parent=5 // pred_fallthru
        _
      %p7388 = scmp.le.s32.totalorder 2, %s20
      // Predicated region
      $region73: #{tpu_custom_call.1} parent=5 // pred_check
        %p7389 = pneg %p7388
      $region74: #{tpu_custom_call.1} parent=5 // pred_check_branch
        %7391 = sbr.rel (%p7389) target = $region76
      $region75: #{tpu_custom_call.1} parent=5 // pred_region
        %s7392 = ssub.s32 %s20, 2
        // Predicated region
        $region77: #{tpu_custom_call.1} parent=75 // pred_check
          %p7393 = pneg %p215
        $region78: #{tpu_custom_call.1} parent=75 // pred_check_branch
          %7395 = sbr.rel (%p7393) target = $region80
        $region79: #{tpu_custom_call.1} parent=75 // pred_region
          %s7396 = sand.u32 %s200, 1
          %s7397 = scalar_lea.sflag [#allocation5], %s7396
          %s7398 = sand.u32 %s200, 1
          %s7399 = smul.addr %s7398, 128
          %s7400 = scalar_lea.vmem [#allocation9], %s7399
          %7401 = dma.done %s7397, 2048
        $region80: #{tpu_custom_call.1} parent=75 // pred_fallthru
          _
      $region76: #{tpu_custom_call.1} parent=5 // pred_fallthru
        _
    $region6: #{tpu_custom_call.1} parent=1 // loop_footer
      %s24 = sadd.s32 1, %s20
    $region7: #{tpu_custom_call.1} parent=1 // loop_footer_branch
      %19 = sbr.rel target = $region3
    $region8: #{tpu_custom_call.1} parent=1 // loop_exit
      _
    %7402 = vsyncpa [#allocation4], 1
    %s7403 = scalar_lea.sflag [#allocation4], 1
    %7404 = vsyncpa %s7403, 1
    %7405 = vsyncpa [#allocation7], 1
    %7406 = vsyncpa [#allocation5], 1
    %s7407 = scalar_lea.sflag [#allocation5], 1
    %7408 = vsyncpa %s7407, 1

</llo_original>
